<compile_context>
chip_gen: v6e
topology: v6e:2x2x1
jax: 0.10.0
libtpu: 0.0.40
codegen_flags: <defaults>
</compile_context>

<pallas_src>
import jax
import jax.numpy as jnp
from jax import lax
from jax.experimental import pallas as pl
from jax.experimental.pallas import tpu as pltpu

C = 64            # in_chan == out_chan
C2 = 2 * C        # two batch elements packed into the 128-lane axis
H = W = 16        # x_l spatial
HR = WR = 8       # x_r spatial (bilinearly upsampled to H, W)
B = 2

# Row layout of the packed small-parameter array (PAR_ROWS x 128, f32).
ROW_W_L1, ROW_W_L2, ROW_W_R2A, ROW_W_F = 0, 9, 18, 27
ROW_BN_L1, ROW_BN_L2, ROW_BN_R2A, ROW_BN_R2B, ROW_BN_F = 36, 38, 40, 42, 44
PAR_ROWS = 48     # 4*9 + 5*2 = 46, padded to a multiple of 8


# ----------------------------------------------------------------------------
# Pallas kernel: one grid step = one *pair* of batch elements (lane-packed).
# ----------------------------------------------------------------------------
def _bff_kernel(xl_ref, xr_ref, mup_ref, par_ref, wr2b_ref, out_ref):
    f32 = jnp.float32

    def pad_h(x, p):
        # Zero-pad the leading (H) axis only: vreg-aligned copies, no sublane
        # shifts.
        z = jnp.zeros((p,) + x.shape[1:], x.dtype)
        return jnp.concatenate([z, x, z], axis=0)

    def wplanes(x, d):
        # The 3 W-shifted planes (offsets -d, 0, +d) with zero fill at edges.
        # plane_kw[:, j, :] == x[:, j + (kw-1)*d, :]  (0 outside [0, W)).
        hp, w, c = x.shape
        z = jnp.zeros((hp, d, c), x.dtype)
        left = jnp.concatenate([z, x[:, :w - d, :]], axis=1)     # kw = 0
        right = jnp.concatenate([x[:, d:, :], z], axis=1)        # kw = 2
        return (left, x, right)

    def bn_relu(x, bnbase):
        return jnp.maximum(x * par_ref[bnbase] + par_ref[bnbase + 1], 0.0)

    def dw_conv(planes, wbase, d):
        # Depthwise 3x3, dilation d: H offsets are cheap leading-axis slices of
        # the H-padded planes, W offsets are the 3 prebuilt shifted planes.
        acc = None
        for kh in range(3):
            for kw in range(3):
                tap = planes[kw][kh * d:kh * d + H]
                term = tap * par_ref[wbase + kh * 3 + kw]
                acc = term if acc is None else acc + term
        return acc

    # ---- left branch: both dilated (d=2) depthwise convs share the planes ----
    xl = xl_ref[0, :, :, :]                               # (H, W, C2) f32
    pL = wplanes(pad_h(xl, 2), 2)
    acc1 = None
    acc2 = None
    for kh in range(3):
        for kw in range(3):
            tap = pL[kw][kh * 2:kh * 2 + H]
            t1 = tap * par_ref[ROW_W_L1 + kh * 3 + kw]
            t2 = tap * par_ref[ROW_W_L2 + kh * 3 + kw]
            acc1 = t1 if acc1 is None else acc1 + t1
            acc2 = t2 if acc2 is None else acc2 + t2
    l1 = bn_relu(acc1, ROW_BN_L1)
    l2c = bn_relu(acc2, ROW_BN_L2)

    # ---- avgpool 3x3 stride 1 pad 1 (count_include_pad): separable ----------
    pw = wplanes(l2c, 1)
    s1 = pw[0] + pw[1] + pw[2]                            # 3-tap W sum
    s1h = pad_h(s1, 1)
    l2 = (s1h[0:H] + s1h[1:H + 1] + s1h[2:H + 2]) * (1.0 / 9.0)

    # ---- bilinear upsample of x_r (align_corners=True): one f32 MXU matmul --
    xr_up = jnp.dot(mup_ref[...], xr_ref[0, :, :],
                    preferred_element_type=f32).reshape(H, W, C2)

    # ---- right_2 first conv: depthwise 3x3 pad 1 + BN + ReLU -----------------
    pra = wplanes(pad_h(xr_up, 1), 1)
    r2a = bn_relu(dw_conv(pra, ROW_W_R2A, 1), ROW_BN_R2A)

    # ---- right_2 second conv: dense 3x3 dil=2 as 9 accumulated bf16 matmuls --
    pr2 = wplanes(pad_h(r2a.astype(jnp.bfloat16), 2), 2)
    racc = None
    for kh in range(3):
        for kw in range(3):
            lhs = pr2[kw][kh * 2:kh * 2 + H].reshape(H * W, C2)   # (256,128) bf16
            term = jnp.dot(lhs, wr2b_ref[kh * 3 + kw],
                           preferred_element_type=f32)
            racc = term if racc is None else racc + term
    r2b = bn_relu(racc.reshape(H, W, C2), ROW_BN_R2B)

    # ---- fusion --------------------------------------------------------------
    fused = l1 * jax.nn.sigmoid(xr_up) + l2 * jax.nn.sigmoid(r2b)

    # ---- final conv: depthwise 3x3 pad 1 + BN + ReLU (lane-dense 128 store) --
    pf = wplanes(pad_h(fused, 1), 1)
    out_ref[0, :, :, :] = bn_relu(dw_conv(pf, ROW_W_F, 1), ROW_BN_F)


# ----------------------------------------------------------------------------
# Bilinear (align_corners=True) interpolation matrix, as in F.interpolate.
# ----------------------------------------------------------------------------
def _bilinear_matrix(n_out, n_in):
    if n_in == 1:
        return jnp.ones((n_out, 1), jnp.float32)
    if n_out == 1:
        return jnp.zeros((1, n_in), jnp.float32).at[0, 0].set(1.0)
    src = jnp.arange(n_out, dtype=jnp.float32) * ((n_in - 1) / (n_out - 1))
    lo = jnp.clip(jnp.floor(src).astype(jnp.int32), 0, n_in - 2)
    frac = src - lo.astype(jnp.float32)
    rows = jnp.arange(n_out)
    m = jnp.zeros((n_out, n_in), jnp.float32)
    m = m.at[rows, lo].add(1.0 - frac)
    m = m.at[rows, lo + 1].add(frac)
    return m


# ----------------------------------------------------------------------------
# Parameter packing for the lane-packed (2 batches -> 128 lanes) layout.
# ----------------------------------------------------------------------------
def pack_params(params):
    def tile2(a):                        # duplicate per-channel params along C
        return jnp.concatenate([a, a], axis=-1)

    # One f32 array for everything small (4 dw weights + 5 folded BNs).
    par = jnp.concatenate([
        tile2(params['w_l1']),           # rows  0..8
        tile2(params['w_l2']),           # rows  9..17
        tile2(params['w_r2a']),          # rows 18..26
        tile2(params['w_f']),            # rows 27..35
        tile2(params['bn_l1']),          # rows 36..37
        tile2(params['bn_l2']),          # rows 38..39
        tile2(params['bn_r2a']),         # rows 40..41
        tile2(params['bn_r2b']),         # rows 42..43
        tile2(params['bn_f']),           # rows 44..45
        jnp.zeros((PAR_ROWS - 46, C2), jnp.float32),
    ], axis=0).astype(jnp.float32)       # (48, 128)

    # Dense conv weight: block-diagonal per tap so the two lane-packed halves
    # stay independent. (9, 2C, 2C), bf16 (f32 accumulate on the MXU).
    w = params['w_r2b']                  # (9, C, C) = (tap, ci, co)
    z = jnp.zeros_like(w)
    wp = jnp.concatenate([jnp.concatenate([w, z], axis=2),
                          jnp.concatenate([z, w], axis=2)], axis=1)

    # kron(mh, mw): (H*W, HR*WR) upsample matrix applied in-kernel on the MXU.
    mh = _bilinear_matrix(H, HR)
    mw = _bilinear_matrix(W, WR)
    mup = jnp.einsum('hp,wq->hwpq', mh, mw).reshape(H * W, HR * WR)

    return {'par': par, 'w_r2b': wp.astype(jnp.bfloat16), 'mup': mup}


# ----------------------------------------------------------------------------
# Wrappers.
# ----------------------------------------------------------------------------
def bff_forward_packed(xl_packed, xr_packed, pp):
    """Lane-packed fast path: xl (nb,H,W,2C) f32, xr (nb,HR*WR,2C) f32."""
    nb = xl_packed.shape[0]
    return pl.pallas_call(
        _bff_kernel,
        out_shape=jax.ShapeDtypeStruct((nb, H, W, C2), jnp.float32),
        grid=(nb,),
        in_specs=[
            pl.BlockSpec((1, H, W, C2), lambda i: (i, 0, 0, 0)),      # x_l packed
            pl.BlockSpec((1, HR * WR, C2), lambda i: (i, 0, 0)),      # x_r packed
            pl.BlockSpec((H * W, HR * WR), lambda i: (0, 0)),         # upsample mat
            pl.BlockSpec((PAR_ROWS, C2), lambda i: (0, 0)),           # packed params
            pl.BlockSpec((9, C2, C2), lambda i: (0, 0, 0)),           # w_r2b (bf16)
        ],
        out_specs=pl.BlockSpec((1, H, W, C2), lambda i: (i, 0, 0, 0)),
        compiler_params=pltpu.CompilerParams(dimension_semantics=("parallel",)),
    )(xl_packed, xr_packed, pp['mup'], pp['par'], pp['w_r2b'])


def pack_inputs(x_l_nchw, x_r_nchw):
    b = x_l_nchw.shape[0]
    assert b % 2 == 0, "batch is packed in pairs along the lane axis"
    nb = b // 2
    xl = (x_l_nchw.astype(jnp.float32)
          .reshape(nb, 2, C, H, W).transpose(0, 3, 4, 1, 2).reshape(nb, H, W, C2))
    xr = (x_r_nchw.astype(jnp.float32)
          .reshape(nb, 2, C, HR, WR).transpose(0, 3, 4, 1, 2)
          .reshape(nb, HR * WR, C2))
    return xl, xr


def unpack_output(out_packed, b):
    nb = b // 2
    return (out_packed.reshape(nb, H, W, 2, C)
            .transpose(0, 3, 4, 1, 2).reshape(b, C, H, W))


def bff_forward(x_l_nchw, x_r_nchw, pp):
    # NOTE: producers that can supply the lane-packed NHWC layout should call
    # bff_forward_packed directly and skip these transposes (wrapper plumbing
    # costs ~as much as the kernel at this size).
    xl, xr = pack_inputs(x_l_nchw, x_r_nchw)
    out = bff_forward_packed(xl, xr, pp)
    return unpack_output(out, x_l_nchw.shape[0])


# ----------------------------------------------------------------------------
# Deterministic parameter init (synthetic weights; BN folded to scale/bias).
# ----------------------------------------------------------------------------
def init_params(key):
    ks = jax.random.split(key, 10)

    def dw_weight(k):
        # torch Conv2d(C, C, 3, groups=C).weight is (C,1,3,3); stored as (9, C)
        return jax.random.normal(k, (9, C), jnp.float32) * 0.2

    def bn_fold(k):
        kg, kb, km, kv = jax.random.split(k, 4)
        gamma = 1.0 + 0.1 * jax.random.normal(kg, (C,), jnp.float32)
        beta = 0.1 * jax.random.normal(kb, (C,), jnp.float32)
        mean = 0.1 * jax.random.normal(km, (C,), jnp.float32)
        var = jnp.abs(jax.random.normal(kv, (C,), jnp.float32)) * 0.5 + 0.5
        scale = gamma / jnp.sqrt(var + 1e-5)
        bias = beta - mean * scale
        return jnp.stack([scale, bias]).astype(jnp.float32)

    return {
        'w_l1': dw_weight(ks[0]), 'bn_l1': bn_fold(ks[1]),
        'w_l2': dw_weight(ks[2]), 'bn_l2': bn_fold(ks[3]),
        'w_r2a': dw_weight(ks[4]), 'bn_r2a': bn_fold(ks[5]),
        # dense conv weight stored as (9, C_in, C_out) = (tap, ci, co)
        'w_r2b': jax.random.normal(ks[6], (9, C, C), jnp.float32) * 0.03,
        'bn_r2b': bn_fold(ks[7]),
        'w_f': dw_weight(ks[8]), 'bn_f': bn_fold(ks[9]),
    }


# ----------------------------------------------------------------------------
# Pure-JAX reference (lax.conv_general_dilated) for the correctness check.
# ----------------------------------------------------------------------------
def ref_forward(x_l_nchw, x_r_nchw, params):
    xl = jnp.transpose(x_l_nchw, (0, 2, 3, 1)).astype(jnp.float32)
    xr = jnp.transpose(x_r_nchw, (0, 2, 3, 1)).astype(jnp.float32)
    mh = _bilinear_matrix(H, xr.shape[1])
    mw = _bilinear_matrix(W, xr.shape[2])
    xr_up = jnp.einsum('hp,wq,bpqc->bhwc', mh, mw, xr)

    def dw(x, w9, dil, pad):
        w = w9.reshape(3, 3, 1, C)
        return lax.conv_general_dilated(
            x, w, (1, 1), [(pad, pad), (pad, pad)],
            rhs_dilation=(dil, dil),
            dimension_numbers=('NHWC', 'HWIO', 'NHWC'),
            feature_group_count=C)

    def dense(x, w, dil, pad):
        return lax.conv_general_dilated(
            x, w.reshape(3, 3, C, C), (1, 1), [(pad, pad), (pad, pad)],
            rhs_dilation=(dil, dil),
            dimension_numbers=('NHWC', 'HWIO', 'NHWC'))

    def bnrelu(x, sb):
        return jnp.maximum(x * sb[0] + sb[1], 0.0)

    l1 = bnrelu(dw(xl, params['w_l1'], 2, 2), params['bn_l1'])
    l2 = bnrelu(dw(xl, params['w_l2'], 2, 2), params['bn_l2'])
    l2 = dw(l2, jnp.full((9, C), 1.0 / 9.0, jnp.float32), 1, 1)  # avgpool
    r2a = bnrelu(dw(xr_up, params['w_r2a'], 1, 1), params['bn_r2a'])
    r2b = bnrelu(dense(r2a, params['w_r2b'], 2, 2), params['bn_r2b'])
    left = l1 * jax.nn.sigmoid(xr_up)
    right = l2 * jax.nn.sigmoid(r2b)
    out = bnrelu(dw(left + right, params['w_f'], 1, 1), params['bn_f'])
    return jnp.transpose(out, (0, 3, 1, 2))


if __name__ == "__main__":
    key = jax.random.PRNGKey(0)
    k1, k2, k3 = jax.random.split(key, 3)
    x_l = jax.random.normal(k1, (B, C, H, W), jnp.float32)     # NCHW, like torch
    x_r = jax.random.normal(k2, (B, C, HR, WR), jnp.float32)   # NCHW, like torch
    params = init_params(k3)
    packed = pack_params(params)

    out = bff_forward(x_l, x_r, packed)
    out = jax.block_until_ready(out)
    assert out.shape == (B, C, H, W)

    ref = ref_forward(x_l, x_r, params)
    err = float(jnp.max(jnp.abs(out - ref)))
    assert err < 5e-3, f"max abs err {err}"
    print("KERNEL_OK")
</pallas_src>

<mosaic_0001>
module attributes {stable_mosaic.version = 11 : i64} {
  func.func @_bff_kernel(%arg0: i32, %arg1: memref<1x16x16x128xf32, #tpu.memory_space<vmem>>, %arg2: memref<1x64x128xf32, #tpu.memory_space<vmem>>, %arg3: memref<256x64xf32, #tpu.memory_space<vmem>>, %arg4: memref<48x128xf32, #tpu.memory_space<vmem>>, %arg5: memref<9x128x128xbf16, #tpu.memory_space<vmem>>, %arg6: memref<1x16x16x128xf32, #tpu.memory_space<vmem>>) attributes {dimension_semantics = [#tpu.dimension_semantics<parallel>], iteration_bounds = array<i64: 1>, scalar_prefetch = 0 : i64, scratch_operands = 0 : i64, tpu.core_type = #tpu.core_type<tc>, window_params = [{transform_indices = @transform_0, window_bounds = array<i64: 1, 16, 16, 128>}, {transform_indices = @transform_1, window_bounds = array<i64: 1, 64, 128>}, {pipeline_mode = #tpu.pipeline_mode<synchronous>, transform_indices = @transform_2, window_bounds = array<i64: 256, 64>}, {pipeline_mode = #tpu.pipeline_mode<synchronous>, transform_indices = @transform_3, window_bounds = array<i64: 48, 128>}, {pipeline_mode = #tpu.pipeline_mode<synchronous>, transform_indices = @transform_4, window_bounds = array<i64: 9, 128, 128>}, {transform_indices = @transform_5, window_bounds = array<i64: 1, 16, 16, 128>}]} {
    %c0 = arith.constant 0 : index
    %c0_0 = arith.constant 0 : index
    %c0_1 = arith.constant 0 : index
    %c0_2 = arith.constant 0 : index
    %0 = vector.load %arg1[%c0, %c0_0, %c0_1, %c0_2] : memref<1x16x16x128xf32, #tpu.memory_space<vmem>>, vector<1x16x16x128xf32>
    %1 = vector.shape_cast %0 : vector<1x16x16x128xf32> to vector<16x16x128xf32>
    %cst = arith.constant 0.000000e+00 : f32
    %2 = vector.broadcast %cst : f32 to vector<2x16x128xf32>
    %3 = tpu.concatenate %2, %1, %2 in 0 : vector<2x16x128xf32>, vector<16x16x128xf32>, vector<2x16x128xf32> -> vector<20x16x128xf32>
    %cst_3 = arith.constant 0.000000e+00 : f32
    %4 = vector.broadcast %cst_3 : f32 to vector<20x2x128xf32>
    %5 = vector.extract_strided_slice %3 {offsets = [0, 0, 0], sizes = [20, 14, 128], strides = [1, 1, 1]} : vector<20x16x128xf32> to vector<20x14x128xf32>
    %6 = tpu.concatenate %4, %5 in 1 : vector<20x2x128xf32>, vector<20x14x128xf32> -> vector<20x16x128xf32>
    %7 = vector.extract_strided_slice %3 {offsets = [0, 2, 0], sizes = [20, 14, 128], strides = [1, 1, 1]} : vector<20x16x128xf32> to vector<20x14x128xf32>
    %8 = tpu.concatenate %7, %4 in 1 : vector<20x14x128xf32>, vector<20x2x128xf32> -> vector<20x16x128xf32>
    %9 = vector.extract_strided_slice %6 {offsets = [0, 0, 0], sizes = [16, 16, 128], strides = [1, 1, 1]} : vector<20x16x128xf32> to vector<16x16x128xf32>
    %c0_4 = arith.constant 0 : index
    %c0_5 = arith.constant 0 : index
    %10 = vector.load %arg4[%c0_4, %c0_5] : memref<48x128xf32, #tpu.memory_space<vmem>>, vector<1x128xf32>
    %11 = vector.shape_cast %10 : vector<1x128xf32> to vector<128xf32>
    %12 = vector.shape_cast %11 : vector<128xf32> to vector<1x1x128xf32>
    %13 = vector.broadcast %12 : vector<1x1x128xf32> to vector<16x16x128xf32>
    %14 = arith.mulf %9, %13 : vector<16x16x128xf32>
    %c9 = arith.constant 9 : index
    %c0_6 = arith.constant 0 : index
    %15 = vector.load %arg4[%c9, %c0_6] : memref<48x128xf32, #tpu.memory_space<vmem>>, vector<1x128xf32>
    %16 = vector.shape_cast %15 : vector<1x128xf32> to vector<128xf32>
    %17 = vector.shape_cast %16 : vector<128xf32> to vector<1x1x128xf32>
    %18 = vector.broadcast %17 : vector<1x1x128xf32> to vector<16x16x128xf32>
    %19 = arith.mulf %9, %18 : vector<16x16x128xf32>
    %20 = vector.extract_strided_slice %3 {offsets = [0, 0, 0], sizes = [16, 16, 128], strides = [1, 1, 1]} : vector<20x16x128xf32> to vector<16x16x128xf32>
    %c1 = arith.constant 1 : index
    %c0_7 = arith.constant 0 : index
    %21 = vector.load %arg4[%c1, %c0_7] : memref<48x128xf32, #tpu.memory_space<vmem>>, vector<1x128xf32>
    %22 = vector.shape_cast %21 : vector<1x128xf32> to vector<128xf32>
    %23 = vector.shape_cast %22 : vector<128xf32> to vector<1x1x128xf32>
    %24 = vector.broadcast %23 : vector<1x1x128xf32> to vector<16x16x128xf32>
    %25 = arith.mulf %20, %24 : vector<16x16x128xf32>
    %c10 = arith.constant 10 : index
    %c0_8 = arith.constant 0 : index
    %26 = vector.load %arg4[%c10, %c0_8] : memref<48x128xf32, #tpu.memory_space<vmem>>, vector<1x128xf32>
    %27 = vector.shape_cast %26 : vector<1x128xf32> to vector<128xf32>
    %28 = vector.shape_cast %27 : vector<128xf32> to vector<1x1x128xf32>
    %29 = vector.broadcast %28 : vector<1x1x128xf32> to vector<16x16x128xf32>
    %30 = arith.mulf %20, %29 : vector<16x16x128xf32>
    %31 = arith.addf %14, %25 : vector<16x16x128xf32>
    %32 = arith.addf %19, %30 : vector<16x16x128xf32>
    %33 = vector.extract_strided_slice %8 {offsets = [0, 0, 0], sizes = [16, 16, 128], strides = [1, 1, 1]} : vector<20x16x128xf32> to vector<16x16x128xf32>
    %c2 = arith.constant 2 : index
    %c0_9 = arith.constant 0 : index
    %34 = vector.load %arg4[%c2, %c0_9] : memref<48x128xf32, #tpu.memory_space<vmem>>, vector<1x128xf32>
    %35 = vector.shape_cast %34 : vector<1x128xf32> to vector<128xf32>
    %36 = vector.shape_cast %35 : vector<128xf32> to vector<1x1x128xf32>
    %37 = vector.broadcast %36 : vector<1x1x128xf32> to vector<16x16x128xf32>
    %38 = arith.mulf %33, %37 : vector<16x16x128xf32>
    %c11 = arith.constant 11 : index
    %c0_10 = arith.constant 0 : index
    %39 = vector.load %arg4[%c11, %c0_10] : memref<48x128xf32, #tpu.memory_space<vmem>>, vector<1x128xf32>
    %40 = vector.shape_cast %39 : vector<1x128xf32> to vector<128xf32>
    %41 = vector.shape_cast %40 : vector<128xf32> to vector<1x1x128xf32>
    %42 = vector.broadcast %41 : vector<1x1x128xf32> to vector<16x16x128xf32>
    %43 = arith.mulf %33, %42 : vector<16x16x128xf32>
    %44 = arith.addf %31, %38 : vector<16x16x128xf32>
    %45 = arith.addf %32, %43 : vector<16x16x128xf32>
    %46 = vector.extract_strided_slice %6 {offsets = [2, 0, 0], sizes = [16, 16, 128], strides = [1, 1, 1]} : vector<20x16x128xf32> to vector<16x16x128xf32>
    %c3 = arith.constant 3 : index
    %c0_11 = arith.constant 0 : index
    %47 = vector.load %arg4[%c3, %c0_11] : memref<48x128xf32, #tpu.memory_space<vmem>>, vector<1x128xf32>
    %48 = vector.shape_cast %47 : vector<1x128xf32> to vector<128xf32>
    %49 = vector.shape_cast %48 : vector<128xf32> to vector<1x1x128xf32>
    %50 = vector.broadcast %49 : vector<1x1x128xf32> to vector<16x16x128xf32>
    %51 = arith.mulf %46, %50 : vector<16x16x128xf32>
    %c12 = arith.constant 12 : index
    %c0_12 = arith.constant 0 : index
    %52 = vector.load %arg4[%c12, %c0_12] : memref<48x128xf32, #tpu.memory_space<vmem>>, vector<1x128xf32>
    %53 = vector.shape_cast %52 : vector<1x128xf32> to vector<128xf32>
    %54 = vector.shape_cast %53 : vector<128xf32> to vector<1x1x128xf32>
    %55 = vector.broadcast %54 : vector<1x1x128xf32> to vector<16x16x128xf32>
    %56 = arith.mulf %46, %55 : vector<16x16x128xf32>
    %57 = arith.addf %44, %51 : vector<16x16x128xf32>
    %58 = arith.addf %45, %56 : vector<16x16x128xf32>
    %59 = vector.extract_strided_slice %3 {offsets = [2, 0, 0], sizes = [16, 16, 128], strides = [1, 1, 1]} : vector<20x16x128xf32> to vector<16x16x128xf32>
    %c4 = arith.constant 4 : index
    %c0_13 = arith.constant 0 : index
    %60 = vector.load %arg4[%c4, %c0_13] : memref<48x128xf32, #tpu.memory_space<vmem>>, vector<1x128xf32>
    %61 = vector.shape_cast %60 : vector<1x128xf32> to vector<128xf32>
    %62 = vector.shape_cast %61 : vector<128xf32> to vector<1x1x128xf32>
    %63 = vector.broadcast %62 : vector<1x1x128xf32> to vector<16x16x128xf32>
    %64 = arith.mulf %59, %63 : vector<16x16x128xf32>
    %c13 = arith.constant 13 : index
    %c0_14 = arith.constant 0 : index
    %65 = vector.load %arg4[%c13, %c0_14] : memref<48x128xf32, #tpu.memory_space<vmem>>, vector<1x128xf32>
    %66 = vector.shape_cast %65 : vector<1x128xf32> to vector<128xf32>
    %67 = vector.shape_cast %66 : vector<128xf32> to vector<1x1x128xf32>
    %68 = vector.broadcast %67 : vector<1x1x128xf32> to vector<16x16x128xf32>
    %69 = arith.mulf %59, %68 : vector<16x16x128xf32>
    %70 = arith.addf %57, %64 : vector<16x16x128xf32>
    %71 = arith.addf %58, %69 : vector<16x16x128xf32>
    %72 = vector.extract_strided_slice %8 {offsets = [2, 0, 0], sizes = [16, 16, 128], strides = [1, 1, 1]} : vector<20x16x128xf32> to vector<16x16x128xf32>
    %c5 = arith.constant 5 : index
    %c0_15 = arith.constant 0 : index
    %73 = vector.load %arg4[%c5, %c0_15] : memref<48x128xf32, #tpu.memory_space<vmem>>, vector<1x128xf32>
    %74 = vector.shape_cast %73 : vector<1x128xf32> to vector<128xf32>
    %75 = vector.shape_cast %74 : vector<128xf32> to vector<1x1x128xf32>
    %76 = vector.broadcast %75 : vector<1x1x128xf32> to vector<16x16x128xf32>
    %77 = arith.mulf %72, %76 : vector<16x16x128xf32>
    %c14 = arith.constant 14 : index
    %c0_16 = arith.constant 0 : index
    %78 = vector.load %arg4[%c14, %c0_16] : memref<48x128xf32, #tpu.memory_space<vmem>>, vector<1x128xf32>
    %79 = vector.shape_cast %78 : vector<1x128xf32> to vector<128xf32>
    %80 = vector.shape_cast %79 : vector<128xf32> to vector<1x1x128xf32>
    %81 = vector.broadcast %80 : vector<1x1x128xf32> to vector<16x16x128xf32>
    %82 = arith.mulf %72, %81 : vector<16x16x128xf32>
    %83 = arith.addf %70, %77 : vector<16x16x128xf32>
    %84 = arith.addf %71, %82 : vector<16x16x128xf32>
    %85 = vector.extract_strided_slice %6 {offsets = [4, 0, 0], sizes = [16, 16, 128], strides = [1, 1, 1]} : vector<20x16x128xf32> to vector<16x16x128xf32>
    %c6 = arith.constant 6 : index
    %c0_17 = arith.constant 0 : index
    %86 = vector.load %arg4[%c6, %c0_17] : memref<48x128xf32, #tpu.memory_space<vmem>>, vector<1x128xf32>
    %87 = vector.shape_cast %86 : vector<1x128xf32> to vector<128xf32>
    %88 = vector.shape_cast %87 : vector<128xf32> to vector<1x1x128xf32>
    %89 = vector.broadcast %88 : vector<1x1x128xf32> to vector<16x16x128xf32>
    %90 = arith.mulf %85, %89 : vector<16x16x128xf32>
    %c15 = arith.constant 15 : index
    %c0_18 = arith.constant 0 : index
    %91 = vector.load %arg4[%c15, %c0_18] : memref<48x128xf32, #tpu.memory_space<vmem>>, vector<1x128xf32>
    %92 = vector.shape_cast %91 : vector<1x128xf32> to vector<128xf32>
    %93 = vector.shape_cast %92 : vector<128xf32> to vector<1x1x128xf32>
    %94 = vector.broadcast %93 : vector<1x1x128xf32> to vector<16x16x128xf32>
    %95 = arith.mulf %85, %94 : vector<16x16x128xf32>
    %96 = arith.addf %83, %90 : vector<16x16x128xf32>
    %97 = arith.addf %84, %95 : vector<16x16x128xf32>
    %98 = vector.extract_strided_slice %3 {offsets = [4, 0, 0], sizes = [16, 16, 128], strides = [1, 1, 1]} : vector<20x16x128xf32> to vector<16x16x128xf32>
    %c7 = arith.constant 7 : index
    %c0_19 = arith.constant 0 : index
    %99 = vector.load %arg4[%c7, %c0_19] : memref<48x128xf32, #tpu.memory_space<vmem>>, vector<1x128xf32>
    %100 = vector.shape_cast %99 : vector<1x128xf32> to vector<128xf32>
    %101 = vector.shape_cast %100 : vector<128xf32> to vector<1x1x128xf32>
    %102 = vector.broadcast %101 : vector<1x1x128xf32> to vector<16x16x128xf32>
    %103 = arith.mulf %98, %102 : vector<16x16x128xf32>
    %c16 = arith.constant 16 : index
    %c0_20 = arith.constant 0 : index
    %104 = vector.load %arg4[%c16, %c0_20] : memref<48x128xf32, #tpu.memory_space<vmem>>, vector<1x128xf32>
    %105 = vector.shape_cast %104 : vector<1x128xf32> to vector<128xf32>
    %106 = vector.shape_cast %105 : vector<128xf32> to vector<1x1x128xf32>
    %107 = vector.broadcast %106 : vector<1x1x128xf32> to vector<16x16x128xf32>
    %108 = arith.mulf %98, %107 : vector<16x16x128xf32>
    %109 = arith.addf %96, %103 : vector<16x16x128xf32>
    %110 = arith.addf %97, %108 : vector<16x16x128xf32>
    %111 = vector.extract_strided_slice %8 {offsets = [4, 0, 0], sizes = [16, 16, 128], strides = [1, 1, 1]} : vector<20x16x128xf32> to vector<16x16x128xf32>
    %c8 = arith.constant 8 : index
    %c0_21 = arith.constant 0 : index
    %112 = vector.load %arg4[%c8, %c0_21] : memref<48x128xf32, #tpu.memory_space<vmem>>, vector<1x128xf32>
    %113 = vector.shape_cast %112 : vector<1x128xf32> to vector<128xf32>
    %114 = vector.shape_cast %113 : vector<128xf32> to vector<1x1x128xf32>
    %115 = vector.broadcast %114 : vector<1x1x128xf32> to vector<16x16x128xf32>
    %116 = arith.mulf %111, %115 : vector<16x16x128xf32>
    %c17 = arith.constant 17 : index
    %c0_22 = arith.constant 0 : index
    %117 = vector.load %arg4[%c17, %c0_22] : memref<48x128xf32, #tpu.memory_space<vmem>>, vector<1x128xf32>
    %118 = vector.shape_cast %117 : vector<1x128xf32> to vector<128xf32>
    %119 = vector.shape_cast %118 : vector<128xf32> to vector<1x1x128xf32>
    %120 = vector.broadcast %119 : vector<1x1x128xf32> to vector<16x16x128xf32>
    %121 = arith.mulf %111, %120 : vector<16x16x128xf32>
    %122 = arith.addf %109, %116 : vector<16x16x128xf32>
    %123 = arith.addf %110, %121 : vector<16x16x128xf32>
    %c36 = arith.constant 36 : index
    %c0_23 = arith.constant 0 : index
    %124 = vector.load %arg4[%c36, %c0_23] : memref<48x128xf32, #tpu.memory_space<vmem>>, vector<1x128xf32>
    %125 = vector.shape_cast %124 : vector<1x128xf32> to vector<128xf32>
    %126 = vector.shape_cast %125 : vector<128xf32> to vector<1x1x128xf32>
    %127 = vector.broadcast %126 : vector<1x1x128xf32> to vector<16x16x128xf32>
    %128 = arith.mulf %122, %127 : vector<16x16x128xf32>
    %c37 = arith.constant 37 : index
    %c0_24 = arith.constant 0 : index
    %129 = vector.load %arg4[%c37, %c0_24] : memref<48x128xf32, #tpu.memory_space<vmem>>, vector<1x128xf32>
    %130 = vector.shape_cast %129 : vector<1x128xf32> to vector<128xf32>
    %131 = vector.shape_cast %130 : vector<128xf32> to vector<1x1x128xf32>
    %132 = vector.broadcast %131 : vector<1x1x128xf32> to vector<16x16x128xf32>
    %133 = arith.addf %128, %132 : vector<16x16x128xf32>
    %cst_25 = arith.constant 0.000000e+00 : f32
    %134 = vector.broadcast %cst_25 : f32 to vector<16x16x128xf32>
    %135 = arith.maximumf %133, %134 : vector<16x16x128xf32>
    %c38 = arith.constant 38 : index
    %c0_26 = arith.constant 0 : index
    %136 = vector.load %arg4[%c38, %c0_26] : memref<48x128xf32, #tpu.memory_space<vmem>>, vector<1x128xf32>
    %137 = vector.shape_cast %136 : vector<1x128xf32> to vector<128xf32>
    %138 = vector.shape_cast %137 : vector<128xf32> to vector<1x1x128xf32>
    %139 = vector.broadcast %138 : vector<1x1x128xf32> to vector<16x16x128xf32>
    %140 = arith.mulf %123, %139 : vector<16x16x128xf32>
    %c39 = arith.constant 39 : index
    %c0_27 = arith.constant 0 : index
    %141 = vector.load %arg4[%c39, %c0_27] : memref<48x128xf32, #tpu.memory_space<vmem>>, vector<1x128xf32>
    %142 = vector.shape_cast %141 : vector<1x128xf32> to vector<128xf32>
    %143 = vector.shape_cast %142 : vector<128xf32> to vector<1x1x128xf32>
    %144 = vector.broadcast %143 : vector<1x1x128xf32> to vector<16x16x128xf32>
    %145 = arith.addf %140, %144 : vector<16x16x128xf32>
    %cst_28 = arith.constant 0.000000e+00 : f32
    %146 = vector.broadcast %cst_28 : f32 to vector<16x16x128xf32>
    %147 = arith.maximumf %145, %146 : vector<16x16x128xf32>
    %cst_29 = arith.constant 0.000000e+00 : f32
    %148 = vector.broadcast %cst_29 : f32 to vector<16x1x128xf32>
    %149 = vector.extract_strided_slice %147 {offsets = [0, 0, 0], sizes = [16, 15, 128], strides = [1, 1, 1]} : vector<16x16x128xf32> to vector<16x15x128xf32>
    %150 = tpu.concatenate %148, %149 in 1 : vector<16x1x128xf32>, vector<16x15x128xf32> -> vector<16x16x128xf32>
    %151 = vector.extract_strided_slice %147 {offsets = [0, 1, 0], sizes = [16, 15, 128], strides = [1, 1, 1]} : vector<16x16x128xf32> to vector<16x15x128xf32>
    %152 = tpu.concatenate %151, %148 in 1 : vector<16x15x128xf32>, vector<16x1x128xf32> -> vector<16x16x128xf32>
    %153 = arith.addf %150, %147 : vector<16x16x128xf32>
    %154 = arith.addf %153, %152 : vector<16x16x128xf32>
    %cst_30 = arith.constant 0.000000e+00 : f32
    %155 = vector.broadcast %cst_30 : f32 to vector<1x16x128xf32>
    %156 = tpu.concatenate %155, %154, %155 in 0 : vector<1x16x128xf32>, vector<16x16x128xf32>, vector<1x16x128xf32> -> vector<18x16x128xf32>
    %157 = vector.extract_strided_slice %156 {offsets = [0, 0, 0], sizes = [16, 16, 128], strides = [1, 1, 1]} : vector<18x16x128xf32> to vector<16x16x128xf32>
    %158 = vector.extract_strided_slice %156 {offsets = [1, 0, 0], sizes = [16, 16, 128], strides = [1, 1, 1]} : vector<18x16x128xf32> to vector<16x16x128xf32>
    %159 = arith.addf %157, %158 : vector<16x16x128xf32>
    %160 = vector.extract_strided_slice %156 {offsets = [2, 0, 0], sizes = [16, 16, 128], strides = [1, 1, 1]} : vector<18x16x128xf32> to vector<16x16x128xf32>
    %161 = arith.addf %159, %160 : vector<16x16x128xf32>
    %cst_31 = arith.constant 0.111111112 : f32
    %162 = vector.broadcast %cst_31 : f32 to vector<16x16x128xf32>
    %163 = arith.mulf %161, %162 : vector<16x16x128xf32>
    %c0_32 = arith.constant 0 : index
    %c0_33 = arith.constant 0 : index
    %164 = vector.load %arg3[%c0_32, %c0_33] : memref<256x64xf32, #tpu.memory_space<vmem>>, vector<256x64xf32>
    %c0_34 = arith.constant 0 : index
    %c0_35 = arith.constant 0 : index
    %c0_36 = arith.constant 0 : index
    %165 = vector.load %arg2[%c0_34, %c0_35, %c0_36] : memref<1x64x128xf32, #tpu.memory_space<vmem>>, vector<1x64x128xf32>
    %166 = vector.shape_cast %165 : vector<1x64x128xf32> to vector<64x128xf32>
    %cst_37 = arith.constant dense<0.000000e+00> : vector<256x128xf32>
    %167 = tpu.matmul %164, %166, %cst_37 {dimension_numbers = #tpu.dot_dimension_numbers<[1], [0], [0], [1], [0, 0, 1, 1], [], []>} : vector<256x64xf32>, vector<64x128xf32>, vector<256x128xf32> -> vector<256x128xf32>
    %168 = vector.shape_cast %167 : vector<256x128xf32> to vector<16x16x128xf32>
    %cst_38 = arith.constant 0.000000e+00 : f32
    %169 = vector.broadcast %cst_38 : f32 to vector<1x16x128xf32>
    %170 = tpu.concatenate %169, %168, %169 in 0 : vector<1x16x128xf32>, vector<16x16x128xf32>, vector<1x16x128xf32> -> vector<18x16x128xf32>
    %cst_39 = arith.constant 0.000000e+00 : f32
    %171 = vector.broadcast %cst_39 : f32 to vector<18x1x128xf32>
    %172 = vector.extract_strided_slice %170 {offsets = [0, 0, 0], sizes = [18, 15, 128], strides = [1, 1, 1]} : vector<18x16x128xf32> to vector<18x15x128xf32>
    %173 = tpu.concatenate %171, %172 in 1 : vector<18x1x128xf32>, vector<18x15x128xf32> -> vector<18x16x128xf32>
    %174 = vector.extract_strided_slice %170 {offsets = [0, 1, 0], sizes = [18, 15, 128], strides = [1, 1, 1]} : vector<18x16x128xf32> to vector<18x15x128xf32>
    %175 = tpu.concatenate %174, %171 in 1 : vector<18x15x128xf32>, vector<18x1x128xf32> -> vector<18x16x128xf32>
    %176 = vector.extract_strided_slice %173 {offsets = [0, 0, 0], sizes = [16, 16, 128], strides = [1, 1, 1]} : vector<18x16x128xf32> to vector<16x16x128xf32>
    %c18 = arith.constant 18 : index
    %c0_40 = arith.constant 0 : index
    %177 = vector.load %arg4[%c18, %c0_40] : memref<48x128xf32, #tpu.memory_space<vmem>>, vector<1x128xf32>
    %178 = vector.shape_cast %177 : vector<1x128xf32> to vector<128xf32>
    %179 = vector.shape_cast %178 : vector<128xf32> to vector<1x1x128xf32>
    %180 = vector.broadcast %179 : vector<1x1x128xf32> to vector<16x16x128xf32>
    %181 = arith.mulf %176, %180 : vector<16x16x128xf32>
    %182 = vector.extract_strided_slice %170 {offsets = [0, 0, 0], sizes = [16, 16, 128], strides = [1, 1, 1]} : vector<18x16x128xf32> to vector<16x16x128xf32>
    %c19 = arith.constant 19 : index
    %c0_41 = arith.constant 0 : index
    %183 = vector.load %arg4[%c19, %c0_41] : memref<48x128xf32, #tpu.memory_space<vmem>>, vector<1x128xf32>
    %184 = vector.shape_cast %183 : vector<1x128xf32> to vector<128xf32>
    %185 = vector.shape_cast %184 : vector<128xf32> to vector<1x1x128xf32>
    %186 = vector.broadcast %185 : vector<1x1x128xf32> to vector<16x16x128xf32>
    %187 = arith.mulf %182, %186 : vector<16x16x128xf32>
    %188 = arith.addf %181, %187 : vector<16x16x128xf32>
    %189 = vector.extract_strided_slice %175 {offsets = [0, 0, 0], sizes = [16, 16, 128], strides = [1, 1, 1]} : vector<18x16x128xf32> to vector<16x16x128xf32>
    %c20 = arith.constant 20 : index
    %c0_42 = arith.constant 0 : index
    %190 = vector.load %arg4[%c20, %c0_42] : memref<48x128xf32, #tpu.memory_space<vmem>>, vector<1x128xf32>
    %191 = vector.shape_cast %190 : vector<1x128xf32> to vector<128xf32>
    %192 = vector.shape_cast %191 : vector<128xf32> to vector<1x1x128xf32>
    %193 = vector.broadcast %192 : vector<1x1x128xf32> to vector<16x16x128xf32>
    %194 = arith.mulf %189, %193 : vector<16x16x128xf32>
    %195 = arith.addf %188, %194 : vector<16x16x128xf32>
    %196 = vector.extract_strided_slice %173 {offsets = [1, 0, 0], sizes = [16, 16, 128], strides = [1, 1, 1]} : vector<18x16x128xf32> to vector<16x16x128xf32>
    %c21 = arith.constant 21 : index
    %c0_43 = arith.constant 0 : index
    %197 = vector.load %arg4[%c21, %c0_43] : memref<48x128xf32, #tpu.memory_space<vmem>>, vector<1x128xf32>
    %198 = vector.shape_cast %197 : vector<1x128xf32> to vector<128xf32>
    %199 = vector.shape_cast %198 : vector<128xf32> to vector<1x1x128xf32>
    %200 = vector.broadcast %199 : vector<1x1x128xf32> to vector<16x16x128xf32>
    %201 = arith.mulf %196, %200 : vector<16x16x128xf32>
    %202 = arith.addf %195, %201 : vector<16x16x128xf32>
    %203 = vector.extract_strided_slice %170 {offsets = [1, 0, 0], sizes = [16, 16, 128], strides = [1, 1, 1]} : vector<18x16x128xf32> to vector<16x16x128xf32>
    %c22 = arith.constant 22 : index
    %c0_44 = arith.constant 0 : index
    %204 = vector.load %arg4[%c22, %c0_44] : memref<48x128xf32, #tpu.memory_space<vmem>>, vector<1x128xf32>
    %205 = vector.shape_cast %204 : vector<1x128xf32> to vector<128xf32>
    %206 = vector.shape_cast %205 : vector<128xf32> to vector<1x1x128xf32>
    %207 = vector.broadcast %206 : vector<1x1x128xf32> to vector<16x16x128xf32>
    %208 = arith.mulf %203, %207 : vector<16x16x128xf32>
    %209 = arith.addf %202, %208 : vector<16x16x128xf32>
    %210 = vector.extract_strided_slice %175 {offsets = [1, 0, 0], sizes = [16, 16, 128], strides = [1, 1, 1]} : vector<18x16x128xf32> to vector<16x16x128xf32>
    %c23 = arith.constant 23 : index
    %c0_45 = arith.constant 0 : index
    %211 = vector.load %arg4[%c23, %c0_45] : memref<48x128xf32, #tpu.memory_space<vmem>>, vector<1x128xf32>
    %212 = vector.shape_cast %211 : vector<1x128xf32> to vector<128xf32>
    %213 = vector.shape_cast %212 : vector<128xf32> to vector<1x1x128xf32>
    %214 = vector.broadcast %213 : vector<1x1x128xf32> to vector<16x16x128xf32>
    %215 = arith.mulf %210, %214 : vector<16x16x128xf32>
    %216 = arith.addf %209, %215 : vector<16x16x128xf32>
    %217 = vector.extract_strided_slice %173 {offsets = [2, 0, 0], sizes = [16, 16, 128], strides = [1, 1, 1]} : vector<18x16x128xf32> to vector<16x16x128xf32>
    %c24 = arith.constant 24 : index
    %c0_46 = arith.constant 0 : index
    %218 = vector.load %arg4[%c24, %c0_46] : memref<48x128xf32, #tpu.memory_space<vmem>>, vector<1x128xf32>
    %219 = vector.shape_cast %218 : vector<1x128xf32> to vector<128xf32>
    %220 = vector.shape_cast %219 : vector<128xf32> to vector<1x1x128xf32>
    %221 = vector.broadcast %220 : vector<1x1x128xf32> to vector<16x16x128xf32>
    %222 = arith.mulf %217, %221 : vector<16x16x128xf32>
    %223 = arith.addf %216, %222 : vector<16x16x128xf32>
    %224 = vector.extract_strided_slice %170 {offsets = [2, 0, 0], sizes = [16, 16, 128], strides = [1, 1, 1]} : vector<18x16x128xf32> to vector<16x16x128xf32>
    %c25 = arith.constant 25 : index
    %c0_47 = arith.constant 0 : index
    %225 = vector.load %arg4[%c25, %c0_47] : memref<48x128xf32, #tpu.memory_space<vmem>>, vector<1x128xf32>
    %226 = vector.shape_cast %225 : vector<1x128xf32> to vector<128xf32>
    %227 = vector.shape_cast %226 : vector<128xf32> to vector<1x1x128xf32>
    %228 = vector.broadcast %227 : vector<1x1x128xf32> to vector<16x16x128xf32>
    %229 = arith.mulf %224, %228 : vector<16x16x128xf32>
    %230 = arith.addf %223, %229 : vector<16x16x128xf32>
    %231 = vector.extract_strided_slice %175 {offsets = [2, 0, 0], sizes = [16, 16, 128], strides = [1, 1, 1]} : vector<18x16x128xf32> to vector<16x16x128xf32>
    %c26 = arith.constant 26 : index
    %c0_48 = arith.constant 0 : index
    %232 = vector.load %arg4[%c26, %c0_48] : memref<48x128xf32, #tpu.memory_space<vmem>>, vector<1x128xf32>
    %233 = vector.shape_cast %232 : vector<1x128xf32> to vector<128xf32>
    %234 = vector.shape_cast %233 : vector<128xf32> to vector<1x1x128xf32>
    %235 = vector.broadcast %234 : vector<1x1x128xf32> to vector<16x16x128xf32>
    %236 = arith.mulf %231, %235 : vector<16x16x128xf32>
    %237 = arith.addf %230, %236 : vector<16x16x128xf32>
    %c40 = arith.constant 40 : index
    %c0_49 = arith.constant 0 : index
    %238 = vector.load %arg4[%c40, %c0_49] : memref<48x128xf32, #tpu.memory_space<vmem>>, vector<1x128xf32>
    %239 = vector.shape_cast %238 : vector<1x128xf32> to vector<128xf32>
    %240 = vector.shape_cast %239 : vector<128xf32> to vector<1x1x128xf32>
    %241 = vector.broadcast %240 : vector<1x1x128xf32> to vector<16x16x128xf32>
    %242 = arith.mulf %237, %241 : vector<16x16x128xf32>
    %c41 = arith.constant 41 : index
    %c0_50 = arith.constant 0 : index
    %243 = vector.load %arg4[%c41, %c0_50] : memref<48x128xf32, #tpu.memory_space<vmem>>, vector<1x128xf32>
    %244 = vector.shape_cast %243 : vector<1x128xf32> to vector<128xf32>
    %245 = vector.shape_cast %244 : vector<128xf32> to vector<1x1x128xf32>
    %246 = vector.broadcast %245 : vector<1x1x128xf32> to vector<16x16x128xf32>
    %247 = arith.addf %242, %246 : vector<16x16x128xf32>
    %cst_51 = arith.constant 0.000000e+00 : f32
    %248 = vector.broadcast %cst_51 : f32 to vector<16x16x128xf32>
    %249 = arith.maximumf %247, %248 : vector<16x16x128xf32>
    %250 = arith.truncf %249 : vector<16x16x128xf32> to vector<16x16x128xbf16>
    %cst_52 = arith.constant 0.000000e+00 : bf16
    %251 = vector.broadcast %cst_52 : bf16 to vector<2x16x128xbf16>
    %252 = tpu.concatenate %251, %250, %251 in 0 : vector<2x16x128xbf16>, vector<16x16x128xbf16>, vector<2x16x128xbf16> -> vector<20x16x128xbf16>
    %cst_53 = arith.constant 0.000000e+00 : bf16
    %253 = vector.broadcast %cst_53 : bf16 to vector<20x2x128xbf16>
    %254 = vector.extract_strided_slice %252 {offsets = [0, 0, 0], sizes = [20, 14, 128], strides = [1, 1, 1]} : vector<20x16x128xbf16> to vector<20x14x128xbf16>
    %255 = tpu.concatenate %253, %254 in 1 : vector<20x2x128xbf16>, vector<20x14x128xbf16> -> vector<20x16x128xbf16>
    %256 = vector.extract_strided_slice %252 {offsets = [0, 2, 0], sizes = [20, 14, 128], strides = [1, 1, 1]} : vector<20x16x128xbf16> to vector<20x14x128xbf16>
    %257 = tpu.concatenate %256, %253 in 1 : vector<20x14x128xbf16>, vector<20x2x128xbf16> -> vector<20x16x128xbf16>
    %258 = vector.extract_strided_slice %255 {offsets = [0, 0, 0], sizes = [16, 16, 128], strides = [1, 1, 1]} : vector<20x16x128xbf16> to vector<16x16x128xbf16>
    %259 = vector.shape_cast %258 : vector<16x16x128xbf16> to vector<256x128xbf16>
    %c0_54 = arith.constant 0 : index
    %c0_55 = arith.constant 0 : index
    %c0_56 = arith.constant 0 : index
    %260 = vector.load %arg5[%c0_54, %c0_55, %c0_56] : memref<9x128x128xbf16, #tpu.memory_space<vmem>>, vector<1x128x128xbf16>
    %261 = vector.shape_cast %260 : vector<1x128x128xbf16> to vector<128x128xbf16>
    %cst_57 = arith.constant dense<0.000000e+00> : vector<256x128xf32>
    %262 = tpu.matmul %259, %261, %cst_57 {dimension_numbers = #tpu.dot_dimension_numbers<[1], [0], [0], [1], [0, 0, 1, 1], [], []>} : vector<256x128xbf16>, vector<128x128xbf16>, vector<256x128xf32> -> vector<256x128xf32>
    %263 = vector.extract_strided_slice %252 {offsets = [0, 0, 0], sizes = [16, 16, 128], strides = [1, 1, 1]} : vector<20x16x128xbf16> to vector<16x16x128xbf16>
    %264 = vector.shape_cast %263 : vector<16x16x128xbf16> to vector<256x128xbf16>
    %c1_58 = arith.constant 1 : index
    %c0_59 = arith.constant 0 : index
    %c0_60 = arith.constant 0 : index
    %265 = vector.load %arg5[%c1_58, %c0_59, %c0_60] : memref<9x128x128xbf16, #tpu.memory_space<vmem>>, vector<1x128x128xbf16>
    %266 = vector.shape_cast %265 : vector<1x128x128xbf16> to vector<128x128xbf16>
    %cst_61 = arith.constant dense<0.000000e+00> : vector<256x128xf32>
    %267 = tpu.matmul %264, %266, %cst_61 {dimension_numbers = #tpu.dot_dimension_numbers<[1], [0], [0], [1], [0, 0, 1, 1], [], []>} : vector<256x128xbf16>, vector<128x128xbf16>, vector<256x128xf32> -> vector<256x128xf32>
    %268 = arith.addf %262, %267 : vector<256x128xf32>
    %269 = vector.extract_strided_slice %257 {offsets = [0, 0, 0], sizes = [16, 16, 128], strides = [1, 1, 1]} : vector<20x16x128xbf16> to vector<16x16x128xbf16>
    %270 = vector.shape_cast %269 : vector<16x16x128xbf16> to vector<256x128xbf16>
    %c2_62 = arith.constant 2 : index
    %c0_63 = arith.constant 0 : index
    %c0_64 = arith.constant 0 : index
    %271 = vector.load %arg5[%c2_62, %c0_63, %c0_64] : memref<9x128x128xbf16, #tpu.memory_space<vmem>>, vector<1x128x128xbf16>
    %272 = vector.shape_cast %271 : vector<1x128x128xbf16> to vector<128x128xbf16>
    %cst_65 = arith.constant dense<0.000000e+00> : vector<256x128xf32>
    %273 = tpu.matmul %270, %272, %cst_65 {dimension_numbers = #tpu.dot_dimension_numbers<[1], [0], [0], [1], [0, 0, 1, 1], [], []>} : vector<256x128xbf16>, vector<128x128xbf16>, vector<256x128xf32> -> vector<256x128xf32>
    %274 = arith.addf %268, %273 : vector<256x128xf32>
    %275 = vector.extract_strided_slice %255 {offsets = [2, 0, 0], sizes = [16, 16, 128], strides = [1, 1, 1]} : vector<20x16x128xbf16> to vector<16x16x128xbf16>
    %276 = vector.shape_cast %275 : vector<16x16x128xbf16> to vector<256x128xbf16>
    %c3_66 = arith.constant 3 : index
    %c0_67 = arith.constant 0 : index
    %c0_68 = arith.constant 0 : index
    %277 = vector.load %arg5[%c3_66, %c0_67, %c0_68] : memref<9x128x128xbf16, #tpu.memory_space<vmem>>, vector<1x128x128xbf16>
    %278 = vector.shape_cast %277 : vector<1x128x128xbf16> to vector<128x128xbf16>
    %cst_69 = arith.constant dense<0.000000e+00> : vector<256x128xf32>
    %279 = tpu.matmul %276, %278, %cst_69 {dimension_numbers = #tpu.dot_dimension_numbers<[1], [0], [0], [1], [0, 0, 1, 1], [], []>} : vector<256x128xbf16>, vector<128x128xbf16>, vector<256x128xf32> -> vector<256x128xf32>
    %280 = arith.addf %274, %279 : vector<256x128xf32>
    %281 = vector.extract_strided_slice %252 {offsets = [2, 0, 0], sizes = [16, 16, 128], strides = [1, 1, 1]} : vector<20x16x128xbf16> to vector<16x16x128xbf16>
    %282 = vector.shape_cast %281 : vector<16x16x128xbf16> to vector<256x128xbf16>
    %c4_70 = arith.constant 4 : index
    %c0_71 = arith.constant 0 : index
    %c0_72 = arith.constant 0 : index
    %283 = vector.load %arg5[%c4_70, %c0_71, %c0_72] : memref<9x128x128xbf16, #tpu.memory_space<vmem>>, vector<1x128x128xbf16>
    %284 = vector.shape_cast %283 : vector<1x128x128xbf16> to vector<128x128xbf16>
    %cst_73 = arith.constant dense<0.000000e+00> : vector<256x128xf32>
    %285 = tpu.matmul %282, %284, %cst_73 {dimension_numbers = #tpu.dot_dimension_numbers<[1], [0], [0], [1], [0, 0, 1, 1], [], []>} : vector<256x128xbf16>, vector<128x128xbf16>, vector<256x128xf32> -> vector<256x128xf32>
    %286 = arith.addf %280, %285 : vector<256x128xf32>
    %287 = vector.extract_strided_slice %257 {offsets = [2, 0, 0], sizes = [16, 16, 128], strides = [1, 1, 1]} : vector<20x16x128xbf16> to vector<16x16x128xbf16>
    %288 = vector.shape_cast %287 : vector<16x16x128xbf16> to vector<256x128xbf16>
    %c5_74 = arith.constant 5 : index
    %c0_75 = arith.constant 0 : index
    %c0_76 = arith.constant 0 : index
    %289 = vector.load %arg5[%c5_74, %c0_75, %c0_76] : memref<9x128x128xbf16, #tpu.memory_space<vmem>>, vector<1x128x128xbf16>
    %290 = vector.shape_cast %289 : vector<1x128x128xbf16> to vector<128x128xbf16>
    %cst_77 = arith.constant dense<0.000000e+00> : vector<256x128xf32>
    %291 = tpu.matmul %288, %290, %cst_77 {dimension_numbers = #tpu.dot_dimension_numbers<[1], [0], [0], [1], [0, 0, 1, 1], [], []>} : vector<256x128xbf16>, vector<128x128xbf16>, vector<256x128xf32> -> vector<256x128xf32>
    %292 = arith.addf %286, %291 : vector<256x128xf32>
    %293 = vector.extract_strided_slice %255 {offsets = [4, 0, 0], sizes = [16, 16, 128], strides = [1, 1, 1]} : vector<20x16x128xbf16> to vector<16x16x128xbf16>
    %294 = vector.shape_cast %293 : vector<16x16x128xbf16> to vector<256x128xbf16>
    %c6_78 = arith.constant 6 : index
    %c0_79 = arith.constant 0 : index
    %c0_80 = arith.constant 0 : index
    %295 = vector.load %arg5[%c6_78, %c0_79, %c0_80] : memref<9x128x128xbf16, #tpu.memory_space<vmem>>, vector<1x128x128xbf16>
    %296 = vector.shape_cast %295 : vector<1x128x128xbf16> to vector<128x128xbf16>
    %cst_81 = arith.constant dense<0.000000e+00> : vector<256x128xf32>
    %297 = tpu.matmul %294, %296, %cst_81 {dimension_numbers = #tpu.dot_dimension_numbers<[1], [0], [0], [1], [0, 0, 1, 1], [], []>} : vector<256x128xbf16>, vector<128x128xbf16>, vector<256x128xf32> -> vector<256x128xf32>
    %298 = arith.addf %292, %297 : vector<256x128xf32>
    %299 = vector.extract_strided_slice %252 {offsets = [4, 0, 0], sizes = [16, 16, 128], strides = [1, 1, 1]} : vector<20x16x128xbf16> to vector<16x16x128xbf16>
    %300 = vector.shape_cast %299 : vector<16x16x128xbf16> to vector<256x128xbf16>
    %c7_82 = arith.constant 7 : index
    %c0_83 = arith.constant 0 : index
    %c0_84 = arith.constant 0 : index
    %301 = vector.load %arg5[%c7_82, %c0_83, %c0_84] : memref<9x128x128xbf16, #tpu.memory_space<vmem>>, vector<1x128x128xbf16>
    %302 = vector.shape_cast %301 : vector<1x128x128xbf16> to vector<128x128xbf16>
    %cst_85 = arith.constant dense<0.000000e+00> : vector<256x128xf32>
    %303 = tpu.matmul %300, %302, %cst_85 {dimension_numbers = #tpu.dot_dimension_numbers<[1], [0], [0], [1], [0, 0, 1, 1], [], []>} : vector<256x128xbf16>, vector<128x128xbf16>, vector<256x128xf32> -> vector<256x128xf32>
    %304 = arith.addf %298, %303 : vector<256x128xf32>
    %305 = vector.extract_strided_slice %257 {offsets = [4, 0, 0], sizes = [16, 16, 128], strides = [1, 1, 1]} : vector<20x16x128xbf16> to vector<16x16x128xbf16>
    %306 = vector.shape_cast %305 : vector<16x16x128xbf16> to vector<256x128xbf16>
    %c8_86 = arith.constant 8 : index
    %c0_87 = arith.constant 0 : index
    %c0_88 = arith.constant 0 : index
    %307 = vector.load %arg5[%c8_86, %c0_87, %c0_88] : memref<9x128x128xbf16, #tpu.memory_space<vmem>>, vector<1x128x128xbf16>
    %308 = vector.shape_cast %307 : vector<1x128x128xbf16> to vector<128x128xbf16>
    %cst_89 = arith.constant dense<0.000000e+00> : vector<256x128xf32>
    %309 = tpu.matmul %306, %308, %cst_89 {dimension_numbers = #tpu.dot_dimension_numbers<[1], [0], [0], [1], [0, 0, 1, 1], [], []>} : vector<256x128xbf16>, vector<128x128xbf16>, vector<256x128xf32> -> vector<256x128xf32>
    %310 = arith.addf %304, %309 : vector<256x128xf32>
    %311 = vector.shape_cast %310 : vector<256x128xf32> to vector<16x16x128xf32>
    %c42 = arith.constant 42 : index
    %c0_90 = arith.constant 0 : index
    %312 = vector.load %arg4[%c42, %c0_90] : memref<48x128xf32, #tpu.memory_space<vmem>>, vector<1x128xf32>
    %313 = vector.shape_cast %312 : vector<1x128xf32> to vector<128xf32>
    %314 = vector.shape_cast %313 : vector<128xf32> to vector<1x1x128xf32>
    %315 = vector.broadcast %314 : vector<1x1x128xf32> to vector<16x16x128xf32>
    %316 = arith.mulf %311, %315 : vector<16x16x128xf32>
    %c43 = arith.constant 43 : index
    %c0_91 = arith.constant 0 : index
    %317 = vector.load %arg4[%c43, %c0_91] : memref<48x128xf32, #tpu.memory_space<vmem>>, vector<1x128xf32>
    %318 = vector.shape_cast %317 : vector<1x128xf32> to vector<128xf32>
    %319 = vector.shape_cast %318 : vector<128xf32> to vector<1x1x128xf32>
    %320 = vector.broadcast %319 : vector<1x1x128xf32> to vector<16x16x128xf32>
    %321 = arith.addf %316, %320 : vector<16x16x128xf32>
    %cst_92 = arith.constant 0.000000e+00 : f32
    %322 = vector.broadcast %cst_92 : f32 to vector<16x16x128xf32>
    %323 = arith.maximumf %321, %322 : vector<16x16x128xf32>
    %324 = arith.negf %168 : vector<16x16x128xf32>
    %325 = math.exp %324 : vector<16x16x128xf32>
    %cst_93 = arith.constant 1.000000e+00 : f32
    %326 = vector.broadcast %cst_93 : f32 to vector<16x16x128xf32>
    %327 = arith.addf %326, %325 : vector<16x16x128xf32>
    %328 = arith.divf %326, %327 : vector<16x16x128xf32>
    %329 = arith.mulf %135, %328 : vector<16x16x128xf32>
    %330 = arith.negf %323 : vector<16x16x128xf32>
    %331 = math.exp %330 : vector<16x16x128xf32>
    %cst_94 = arith.constant 1.000000e+00 : f32
    %332 = vector.broadcast %cst_94 : f32 to vector<16x16x128xf32>
    %333 = arith.addf %332, %331 : vector<16x16x128xf32>
    %334 = arith.divf %332, %333 : vector<16x16x128xf32>
    %335 = arith.mulf %163, %334 : vector<16x16x128xf32>
    %336 = arith.addf %329, %335 : vector<16x16x128xf32>
    %cst_95 = arith.constant 0.000000e+00 : f32
    %337 = vector.broadcast %cst_95 : f32 to vector<1x16x128xf32>
    %338 = tpu.concatenate %337, %336, %337 in 0 : vector<1x16x128xf32>, vector<16x16x128xf32>, vector<1x16x128xf32> -> vector<18x16x128xf32>
    %cst_96 = arith.constant 0.000000e+00 : f32
    %339 = vector.broadcast %cst_96 : f32 to vector<18x1x128xf32>
    %340 = vector.extract_strided_slice %338 {offsets = [0, 0, 0], sizes = [18, 15, 128], strides = [1, 1, 1]} : vector<18x16x128xf32> to vector<18x15x128xf32>
    %341 = tpu.concatenate %339, %340 in 1 : vector<18x1x128xf32>, vector<18x15x128xf32> -> vector<18x16x128xf32>
    %342 = vector.extract_strided_slice %338 {offsets = [0, 1, 0], sizes = [18, 15, 128], strides = [1, 1, 1]} : vector<18x16x128xf32> to vector<18x15x128xf32>
    %343 = tpu.concatenate %342, %339 in 1 : vector<18x15x128xf32>, vector<18x1x128xf32> -> vector<18x16x128xf32>
    %344 = vector.extract_strided_slice %341 {offsets = [0, 0, 0], sizes = [16, 16, 128], strides = [1, 1, 1]} : vector<18x16x128xf32> to vector<16x16x128xf32>
    %c27 = arith.constant 27 : index
    %c0_97 = arith.constant 0 : index
    %345 = vector.load %arg4[%c27, %c0_97] : memref<48x128xf32, #tpu.memory_space<vmem>>, vector<1x128xf32>
    %346 = vector.shape_cast %345 : vector<1x128xf32> to vector<128xf32>
    %347 = vector.shape_cast %346 : vector<128xf32> to vector<1x1x128xf32>
    %348 = vector.broadcast %347 : vector<1x1x128xf32> to vector<16x16x128xf32>
    %349 = arith.mulf %344, %348 : vector<16x16x128xf32>
    %350 = vector.extract_strided_slice %338 {offsets = [0, 0, 0], sizes = [16, 16, 128], strides = [1, 1, 1]} : vector<18x16x128xf32> to vector<16x16x128xf32>
    %c28 = arith.constant 28 : index
    %c0_98 = arith.constant 0 : index
    %351 = vector.load %arg4[%c28, %c0_98] : memref<48x128xf32, #tpu.memory_space<vmem>>, vector<1x128xf32>
    %352 = vector.shape_cast %351 : vector<1x128xf32> to vector<128xf32>
    %353 = vector.shape_cast %352 : vector<128xf32> to vector<1x1x128xf32>
    %354 = vector.broadcast %353 : vector<1x1x128xf32> to vector<16x16x128xf32>
    %355 = arith.mulf %350, %354 : vector<16x16x128xf32>
    %356 = arith.addf %349, %355 : vector<16x16x128xf32>
    %357 = vector.extract_strided_slice %343 {offsets = [0, 0, 0], sizes = [16, 16, 128], strides = [1, 1, 1]} : vector<18x16x128xf32> to vector<16x16x128xf32>
    %c29 = arith.constant 29 : index
    %c0_99 = arith.constant 0 : index
    %358 = vector.load %arg4[%c29, %c0_99] : memref<48x128xf32, #tpu.memory_space<vmem>>, vector<1x128xf32>
    %359 = vector.shape_cast %358 : vector<1x128xf32> to vector<128xf32>
    %360 = vector.shape_cast %359 : vector<128xf32> to vector<1x1x128xf32>
    %361 = vector.broadcast %360 : vector<1x1x128xf32> to vector<16x16x128xf32>
    %362 = arith.mulf %357, %361 : vector<16x16x128xf32>
    %363 = arith.addf %356, %362 : vector<16x16x128xf32>
    %364 = vector.extract_strided_slice %341 {offsets = [1, 0, 0], sizes = [16, 16, 128], strides = [1, 1, 1]} : vector<18x16x128xf32> to vector<16x16x128xf32>
    %c30 = arith.constant 30 : index
    %c0_100 = arith.constant 0 : index
    %365 = vector.load %arg4[%c30, %c0_100] : memref<48x128xf32, #tpu.memory_space<vmem>>, vector<1x128xf32>
    %366 = vector.shape_cast %365 : vector<1x128xf32> to vector<128xf32>
    %367 = vector.shape_cast %366 : vector<128xf32> to vector<1x1x128xf32>
    %368 = vector.broadcast %367 : vector<1x1x128xf32> to vector<16x16x128xf32>
    %369 = arith.mulf %364, %368 : vector<16x16x128xf32>
    %370 = arith.addf %363, %369 : vector<16x16x128xf32>
    %371 = vector.extract_strided_slice %338 {offsets = [1, 0, 0], sizes = [16, 16, 128], strides = [1, 1, 1]} : vector<18x16x128xf32> to vector<16x16x128xf32>
    %c31 = arith.constant 31 : index
    %c0_101 = arith.constant 0 : index
    %372 = vector.load %arg4[%c31, %c0_101] : memref<48x128xf32, #tpu.memory_space<vmem>>, vector<1x128xf32>
    %373 = vector.shape_cast %372 : vector<1x128xf32> to vector<128xf32>
    %374 = vector.shape_cast %373 : vector<128xf32> to vector<1x1x128xf32>
    %375 = vector.broadcast %374 : vector<1x1x128xf32> to vector<16x16x128xf32>
    %376 = arith.mulf %371, %375 : vector<16x16x128xf32>
    %377 = arith.addf %370, %376 : vector<16x16x128xf32>
    %378 = vector.extract_strided_slice %343 {offsets = [1, 0, 0], sizes = [16, 16, 128], strides = [1, 1, 1]} : vector<18x16x128xf32> to vector<16x16x128xf32>
    %c32 = arith.constant 32 : index
    %c0_102 = arith.constant 0 : index
    %379 = vector.load %arg4[%c32, %c0_102] : memref<48x128xf32, #tpu.memory_space<vmem>>, vector<1x128xf32>
    %380 = vector.shape_cast %379 : vector<1x128xf32> to vector<128xf32>
    %381 = vector.shape_cast %380 : vector<128xf32> to vector<1x1x128xf32>
    %382 = vector.broadcast %381 : vector<1x1x128xf32> to vector<16x16x128xf32>
    %383 = arith.mulf %378, %382 : vector<16x16x128xf32>
    %384 = arith.addf %377, %383 : vector<16x16x128xf32>
    %385 = vector.extract_strided_slice %341 {offsets = [2, 0, 0], sizes = [16, 16, 128], strides = [1, 1, 1]} : vector<18x16x128xf32> to vector<16x16x128xf32>
    %c33 = arith.constant 33 : index
    %c0_103 = arith.constant 0 : index
    %386 = vector.load %arg4[%c33, %c0_103] : memref<48x128xf32, #tpu.memory_space<vmem>>, vector<1x128xf32>
    %387 = vector.shape_cast %386 : vector<1x128xf32> to vector<128xf32>
    %388 = vector.shape_cast %387 : vector<128xf32> to vector<1x1x128xf32>
    %389 = vector.broadcast %388 : vector<1x1x128xf32> to vector<16x16x128xf32>
    %390 = arith.mulf %385, %389 : vector<16x16x128xf32>
    %391 = arith.addf %384, %390 : vector<16x16x128xf32>
    %392 = vector.extract_strided_slice %338 {offsets = [2, 0, 0], sizes = [16, 16, 128], strides = [1, 1, 1]} : vector<18x16x128xf32> to vector<16x16x128xf32>
    %c34 = arith.constant 34 : index
    %c0_104 = arith.constant 0 : index
    %393 = vector.load %arg4[%c34, %c0_104] : memref<48x128xf32, #tpu.memory_space<vmem>>, vector<1x128xf32>
    %394 = vector.shape_cast %393 : vector<1x128xf32> to vector<128xf32>
    %395 = vector.shape_cast %394 : vector<128xf32> to vector<1x1x128xf32>
    %396 = vector.broadcast %395 : vector<1x1x128xf32> to vector<16x16x128xf32>
    %397 = arith.mulf %392, %396 : vector<16x16x128xf32>
    %398 = arith.addf %391, %397 : vector<16x16x128xf32>
    %399 = vector.extract_strided_slice %343 {offsets = [2, 0, 0], sizes = [16, 16, 128], strides = [1, 1, 1]} : vector<18x16x128xf32> to vector<16x16x128xf32>
    %c35 = arith.constant 35 : index
    %c0_105 = arith.constant 0 : index
    %400 = vector.load %arg4[%c35, %c0_105] : memref<48x128xf32, #tpu.memory_space<vmem>>, vector<1x128xf32>
    %401 = vector.shape_cast %400 : vector<1x128xf32> to vector<128xf32>
    %402 = vector.shape_cast %401 : vector<128xf32> to vector<1x1x128xf32>
    %403 = vector.broadcast %402 : vector<1x1x128xf32> to vector<16x16x128xf32>
    %404 = arith.mulf %399, %403 : vector<16x16x128xf32>
    %405 = arith.addf %398, %404 : vector<16x16x128xf32>
    %c44 = arith.constant 44 : index
    %c0_106 = arith.constant 0 : index
    %406 = vector.load %arg4[%c44, %c0_106] : memref<48x128xf32, #tpu.memory_space<vmem>>, vector<1x128xf32>
    %407 = vector.shape_cast %406 : vector<1x128xf32> to vector<128xf32>
    %408 = vector.shape_cast %407 : vector<128xf32> to vector<1x1x128xf32>
    %409 = vector.broadcast %408 : vector<1x1x128xf32> to vector<16x16x128xf32>
    %410 = arith.mulf %405, %409 : vector<16x16x128xf32>
    %c45 = arith.constant 45 : index
    %c0_107 = arith.constant 0 : index
    %411 = vector.load %arg4[%c45, %c0_107] : memref<48x128xf32, #tpu.memory_space<vmem>>, vector<1x128xf32>
    %412 = vector.shape_cast %411 : vector<1x128xf32> to vector<128xf32>
    %413 = vector.shape_cast %412 : vector<128xf32> to vector<1x1x128xf32>
    %414 = vector.broadcast %413 : vector<1x1x128xf32> to vector<16x16x128xf32>
    %415 = arith.addf %410, %414 : vector<16x16x128xf32>
    %cst_108 = arith.constant 0.000000e+00 : f32
    %416 = vector.broadcast %cst_108 : f32 to vector<16x16x128xf32>
    %417 = arith.maximumf %415, %416 : vector<16x16x128xf32>
    %c0_109 = arith.constant 0 : index
    %c0_110 = arith.constant 0 : index
    %c0_111 = arith.constant 0 : index
    %c0_112 = arith.constant 0 : index
    %418 = vector.load %arg6[%c0_109, %c0_110, %c0_111, %c0_112] : memref<1x16x16x128xf32, #tpu.memory_space<vmem>>, vector<1x16x16x128xf32>
    %419 = vector.shape_cast %418 : vector<1x16x16x128xf32> to vector<16x16x128xf32>
    %420 = vector.shape_cast %417 : vector<16x16x128xf32> to vector<1x16x16x128xf32>
    tpu.vector_store %arg6[%c0_109, %c0_110, %c0_111, %c0_112], %420 {strides = array<i32>} : memref<1x16x16x128xf32, #tpu.memory_space<vmem>>, vector<1x16x16x128xf32>,
    return
  }
  func.func @transform_0(%arg0: i32) -> (i32, i32, i32, i32) {
    %c0_i32 = arith.constant 0 : i32
    %c0_i32_0 = arith.constant 0 : i32
    %c0_i32_1 = arith.constant 0 : i32
    %c0_i32_2 = arith.constant 0 : i32
    return %arg0, %c0_i32, %c0_i32_0, %c0_i32_1 : i32, i32, i32, i32
  }
  func.func @transform_1(%arg0: i32) -> (i32, i32, i32) {
    %c0_i32 = arith.constant 0 : i32
    %c0_i32_0 = arith.constant 0 : i32
    %c0_i32_1 = arith.constant 0 : i32
    return %arg0, %c0_i32, %c0_i32_0 : i32, i32, i32
  }
  func.func @transform_2(%arg0: i32) -> (i32, i32) {
    %c0_i32 = arith.constant 0 : i32
    %c0_i32_0 = arith.constant 0 : i32
    %c0_i32_1 = arith.constant 0 : i32
    return %c0_i32, %c0_i32_0 : i32, i32
  }
  func.func @transform_3(%arg0: i32) -> (i32, i32) {
    %c0_i32 = arith.constant 0 : i32
    %c0_i32_0 = arith.constant 0 : i32
    %c0_i32_1 = arith.constant 0 : i32
    return %c0_i32, %c0_i32_0 : i32, i32
  }
  func.func @transform_4(%arg0: i32) -> (i32, i32, i32) {
    %c0_i32 = arith.constant 0 : i32
    %c0_i32_0 = arith.constant 0 : i32
    %c0_i32_1 = arith.constant 0 : i32
    %c0_i32_2 = arith.constant 0 : i32
    return %c0_i32, %c0_i32_0, %c0_i32_1 : i32, i32, i32
  }
  func.func @transform_5(%arg0: i32) -> (i32, i32, i32, i32) {
    %c0_i32 = arith.constant 0 : i32
    %c0_i32_0 = arith.constant 0 : i32
    %c0_i32_1 = arith.constant 0 : i32
    %c0_i32_2 = arith.constant 0 : i32
    return %arg0, %c0_i32, %c0_i32_0, %c0_i32_1 : i32, i32, i32, i32
  }
}

</mosaic_0001>

<llo_original>
// kernel: tpu_custom_call.1
$region0: #{tpu_custom_call.1}
  #allocation0 [shape = 'u32[]', space=smem, size = 0x4, offset = 0x4, fixed_abs, tag = 'smem constant byte address 0x4 - core index']
  #allocation1 [shape = 'u32[144,128]{1,0:T(1,128)}', space=vmem, size = 0x12000, scoped, tag = 'internal scratch']
  %s0 = inlined_call_operand.vmem [shape: f32[1,16,16,128], index: 0, kind: input, shape index: {}]
  %s1 = inlined_call_operand.vmem [shape: f32[1,64,128], index: 1, kind: input, shape index: {}]
  %s2 = inlined_call_operand.vmem [shape: f32[256,64], index: 2, kind: input, shape index: {}]
  %s3 = inlined_call_operand.vmem [shape: f32[48,128], index: 3, kind: input, shape index: {}]
  %s4 = inlined_call_operand.hbm [shape: bf16[9,128,128], index: 4, kind: input, shape index: {}]
  %s5 = inlined_call_operand.hbm [shape: f32[1,16,16,128], index: 5, kind: output, shape index: {}]
  %s6 = sld [smem:[#allocation0]]
  $region34: #{tpu_custom_call.1} parent=0
    _
  %s8 = ssub.s32 1, %s6
  %s9 = scalar_select 0, %s8, %s6
  $region1: #{tpu_custom_call.1} parent=0
    #allocation2 [shape = 'u8[294912]{0}', space=vmem, size = 0x48000, scoped, tag = 'input window, operand 4, single buffered']
    #allocation3 [shape = 's32[1]{0}', space=sflag, size = 0x4, scoped, tag = 'scoped memory for tpu_custom_call.1']
    #allocation4 [shape = 's32[1]{0}', space=sflag, size = 0x4, scoped, tag = 'scoped memory for tpu_custom_call.1']
    #allocation5 [shape = 'u8[131072]{0}', space=vmem, size = 0x20000, scoped, tag = 'output window, operand 0, single buffered']
    %10 = vsyncpa [#allocation3], 0
    %11 = vsyncpa [#allocation4], 0
    // Predicated region
    $region2: #{tpu_custom_call.1} parent=1 // pred_check
      _
    $region3: #{tpu_custom_call.1} parent=1 // pred_check_branch
      %13 = sbr.rel (0) target = $region5
    $region4: #{tpu_custom_call.1} parent=1 // pred_region
      _
    $region5: #{tpu_custom_call.1} parent=1 // pred_fallthru
      _
    // Predicated region
    $region6: #{tpu_custom_call.1} parent=1 // pred_check
      _
    $region7: #{tpu_custom_call.1} parent=1 // pred_check_branch
      %15 = sbr.rel (0) target = $region9
    $region8: #{tpu_custom_call.1} parent=1 // pred_region
      _
    $region9: #{tpu_custom_call.1} parent=1 // pred_fallthru
      _
    // Predicated region
    $region10: #{tpu_custom_call.1} parent=1 // pred_check
      _
    $region11: #{tpu_custom_call.1} parent=1 // pred_check_branch
      %17 = sbr.rel (0) target = $region13
    $region12: #{tpu_custom_call.1} parent=1 // pred_region
      _
    $region13: #{tpu_custom_call.1} parent=1 // pred_fallthru
      _
    // Predicated region
    $region14: #{tpu_custom_call.1} parent=1 // pred_check
      _
    $region15: #{tpu_custom_call.1} parent=1 // pred_check_branch
      %19 = sbr.rel (0) target = $region17
    $region16: #{tpu_custom_call.1} parent=1 // pred_region
      _
    $region17: #{tpu_custom_call.1} parent=1 // pred_fallthru
      _
    // Predicated region
    $region18: #{tpu_custom_call.1} parent=1 // pred_check
      _
    $region19: #{tpu_custom_call.1} parent=1 // pred_check_branch
      %21 = sbr.rel (0) target = $region21
    $region20: #{tpu_custom_call.1} parent=1 // pred_region
      %s23 = ssub.s32 9216, 9216
      %24 = vsyncadd [#allocation3], %s23
      %s25 = sshll.u32 [#allocation2], 4
      %s26 = int_to_ptr.vmem [resolvable:$true] %s25
      %31 = dma.hbm_to_vmem [thread:$0]  %s4, 9216, %s26, [#allocation3], 64, 64, 4
    $region21: #{tpu_custom_call.1} parent=1 // pred_fallthru
      _
    // Predicated region
    $region22: #{tpu_custom_call.1} parent=1 // pred_check
      _
    $region23: #{tpu_custom_call.1} parent=1 // pred_check_branch
      %33 = sbr.rel (0) target = $region25
    $region24: #{tpu_custom_call.1} parent=1 // pred_region
      %34 = dma.done [#allocation3], 9216
    $region25: #{tpu_custom_call.1} parent=1 // pred_fallthru
      _
    %v36 = vld [vmem:[%s0] sm:$0xff]
    %v37 = vld [vmem:[%s0 + $0x8] sm:$0xff]
    %v38 = vld [vmem:[%s0 + $0x10] sm:$0xff]
    %v39 = vld [vmem:[%s0 + $0x18] sm:$0xff]
    %v40 = vld [vmem:[%s0 + $0x20] sm:$0xff]
    %v41 = vld [vmem:[%s0 + $0x28] sm:$0xff]
    %v42 = vld [vmem:[%s0 + $0x30] sm:$0xff]
    %v43 = vld [vmem:[%s0 + $0x38] sm:$0xff]
    %v44 = vld [vmem:[%s0 + $0x40] sm:$0xff]
    %v45 = vld [vmem:[%s0 + $0x48] sm:$0xff]
    %v46 = vld [vmem:[%s0 + $0x50] sm:$0xff]
    %v47 = vld [vmem:[%s0 + $0x58] sm:$0xff]
    %v48 = vld [vmem:[%s0 + $0x60] sm:$0xff]
    %v49 = vld [vmem:[%s0 + $0x68] sm:$0xff]
    %v50 = vld [vmem:[%s0 + $0x70] sm:$0xff]
    %v51 = vld [vmem:[%s0 + $0x78] sm:$0xff]
    %v52 = vld [vmem:[%s0 + $0x80] sm:$0xff]
    %v53 = vld [vmem:[%s0 + $0x88] sm:$0xff]
    %v54 = vld [vmem:[%s0 + $0x90] sm:$0xff]
    %v55 = vld [vmem:[%s0 + $0x98] sm:$0xff]
    %v56 = vld [vmem:[%s0 + $0xa0] sm:$0xff]
    %v57 = vld [vmem:[%s0 + $0xa8] sm:$0xff]
    %v58 = vld [vmem:[%s0 + $0xb0] sm:$0xff]
    %v59 = vld [vmem:[%s0 + $0xb8] sm:$0xff]
    %v60 = vld [vmem:[%s0 + $0xc0] sm:$0xff]
    %v61 = vld [vmem:[%s0 + $0xc8] sm:$0xff]
    %v62 = vld [vmem:[%s0 + $0xd0] sm:$0xff]
    %v63 = vld [vmem:[%s0 + $0xd8] sm:$0xff]
    %v64 = vld [vmem:[%s0 + $0xe0] sm:$0xff]
    %v65 = vld [vmem:[%s0 + $0xe8] sm:$0xff]
    %v66 = vld [vmem:[%s0 + $0xf0] sm:$0xff]
    %v67 = vld [vmem:[%s0 + $0xf8] sm:$0xff]
    %vm101 = vcmask 1041408
    %v102 = vrot.slane 0.0, 6
    %v103 = vsel %vm101, %v102, %v102
    %v104 = vrot.slane %v36, 6
    %v105 = vrot.slane %v37, 6
    %v106 = vsel %vm101, %v104, %v105
    %v107 = vrot.slane %v38, 6
    %v108 = vrot.slane %v39, 6
    %v109 = vsel %vm101, %v107, %v108
    %v110 = vrot.slane %v40, 6
    %v111 = vrot.slane %v41, 6
    %v112 = vsel %vm101, %v110, %v111
    %v113 = vrot.slane %v42, 6
    %v114 = vrot.slane %v43, 6
    %v115 = vsel %vm101, %v113, %v114
    %v116 = vrot.slane %v44, 6
    %v117 = vrot.slane %v45, 6
    %v118 = vsel %vm101, %v116, %v117
    %v119 = vrot.slane %v46, 6
    %v120 = vrot.slane %v47, 6
    %v121 = vsel %vm101, %v119, %v120
    %v122 = vrot.slane %v48, 6
    %v123 = vrot.slane %v49, 6
    %v124 = vsel %vm101, %v122, %v123
    %v125 = vrot.slane %v50, 6
    %v126 = vrot.slane %v51, 6
    %v127 = vsel %vm101, %v125, %v126
    %v128 = vrot.slane %v52, 6
    %v129 = vrot.slane %v53, 6
    %v130 = vsel %vm101, %v128, %v129
    %v131 = vrot.slane %v54, 6
    %v132 = vrot.slane %v55, 6
    %v133 = vsel %vm101, %v131, %v132
    %v134 = vrot.slane %v56, 6
    %v135 = vrot.slane %v57, 6
    %v136 = vsel %vm101, %v134, %v135
    %v137 = vrot.slane %v58, 6
    %v138 = vrot.slane %v59, 6
    %v139 = vsel %vm101, %v137, %v138
    %v140 = vrot.slane %v60, 6
    %v141 = vrot.slane %v61, 6
    %v142 = vsel %vm101, %v140, %v141
    %v143 = vrot.slane %v62, 6
    %v144 = vrot.slane %v63, 6
    %v145 = vsel %vm101, %v143, %v144
    %v146 = vrot.slane %v64, 6
    %v147 = vrot.slane %v65, 6
    %v148 = vsel %vm101, %v146, %v147
    %v149 = vrot.slane %v66, 6
    %v150 = vrot.slane %v67, 6
    %v151 = vsel %vm101, %v149, %v150
    %v186 = vsel %vm101, 0.0, %v102
    %v187 = vsel %vm101, 0.0, %v104
    %v188 = vsel %vm101, 0.0, %v107
    %v189 = vsel %vm101, 0.0, %v110
    %v190 = vsel %vm101, 0.0, %v113
    %v191 = vsel %vm101, 0.0, %v116
    %v192 = vsel %vm101, 0.0, %v119
    %v193 = vsel %vm101, 0.0, %v122
    %v194 = vsel %vm101, 0.0, %v125
    %v195 = vsel %vm101, 0.0, %v128
    %v196 = vsel %vm101, 0.0, %v131
    %v197 = vsel %vm101, 0.0, %v134
    %v198 = vsel %vm101, 0.0, %v137
    %v199 = vsel %vm101, 0.0, %v140
    %v200 = vsel %vm101, 0.0, %v143
    %v201 = vsel %vm101, 0.0, %v146
    %v202 = vsel %vm101, 0.0, %v149
    %vm203 = vcmask 1045504
    %v204 = vrot.slane 0.0, 2
    %v205 = vsel %vm203, %v204, %v204
    %v206 = vrot.slane %v36, 2
    %v207 = vrot.slane %v37, 2
    %v208 = vsel %vm203, %v206, %v207
    %v209 = vrot.slane %v38, 2
    %v210 = vrot.slane %v39, 2
    %v211 = vsel %vm203, %v209, %v210
    %v212 = vrot.slane %v40, 2
    %v213 = vrot.slane %v41, 2
    %v214 = vsel %vm203, %v212, %v213
    %v215 = vrot.slane %v42, 2
    %v216 = vrot.slane %v43, 2
    %v217 = vsel %vm203, %v215, %v216
    %v218 = vrot.slane %v44, 2
    %v219 = vrot.slane %v45, 2
    %v220 = vsel %vm203, %v218, %v219
    %v221 = vrot.slane %v46, 2
    %v222 = vrot.slane %v47, 2
    %v223 = vsel %vm203, %v221, %v222
    %v224 = vrot.slane %v48, 2
    %v225 = vrot.slane %v49, 2
    %v226 = vsel %vm203, %v224, %v225
    %v227 = vrot.slane %v50, 2
    %v228 = vrot.slane %v51, 2
    %v229 = vsel %vm203, %v227, %v228
    %v230 = vrot.slane %v52, 2
    %v231 = vrot.slane %v53, 2
    %v232 = vsel %vm203, %v230, %v231
    %v233 = vrot.slane %v54, 2
    %v234 = vrot.slane %v55, 2
    %v235 = vsel %vm203, %v233, %v234
    %v236 = vrot.slane %v56, 2
    %v237 = vrot.slane %v57, 2
    %v238 = vsel %vm203, %v236, %v237
    %v239 = vrot.slane %v58, 2
    %v240 = vrot.slane %v59, 2
    %v241 = vsel %vm203, %v239, %v240
    %v242 = vrot.slane %v60, 2
    %v243 = vrot.slane %v61, 2
    %v244 = vsel %vm203, %v242, %v243
    %v245 = vrot.slane %v62, 2
    %v246 = vrot.slane %v63, 2
    %v247 = vsel %vm203, %v245, %v246
    %v248 = vrot.slane %v64, 2
    %v249 = vrot.slane %v65, 2
    %v250 = vsel %vm203, %v248, %v249
    %v251 = vrot.slane %v66, 2
    %v252 = vrot.slane %v67, 2
    %v253 = vsel %vm203, %v251, %v252
    %v288 = vsel %vm203, %v204, 0.0
    %v289 = vsel %vm203, %v207, 0.0
    %v290 = vsel %vm203, %v210, 0.0
    %v291 = vsel %vm203, %v213, 0.0
    %v292 = vsel %vm203, %v216, 0.0
    %v293 = vsel %vm203, %v219, 0.0
    %v294 = vsel %vm203, %v222, 0.0
    %v295 = vsel %vm203, %v225, 0.0
    %v296 = vsel %vm203, %v228, 0.0
    %v297 = vsel %vm203, %v231, 0.0
    %v298 = vsel %vm203, %v234, 0.0
    %v299 = vsel %vm203, %v237, 0.0
    %v300 = vsel %vm203, %v240, 0.0
    %v301 = vsel %vm203, %v243, 0.0
    %v302 = vsel %vm203, %v246, 0.0
    %v303 = vsel %vm203, %v249, 0.0
    %v304 = vsel %vm203, %v252, 0.0
    %v305 = vld [vmem:[%s3] sm:$0x1]
    %v306 = vlaneseq
    %v307 = vshrl.u32 %v306, 7
    %v308 = vsub.s32 0, %v307
    %v309 = vrot.slane %v305, %v308
    %v310 = vmul.f32 %v186, %v309
    %v311 = vmul.f32 %v103, %v309
    %v312 = vmul.f32 %v187, %v309
    %v313 = vmul.f32 %v106, %v309
    %v314 = vmul.f32 %v188, %v309
    %v315 = vmul.f32 %v109, %v309
    %v316 = vmul.f32 %v189, %v309
    %v317 = vmul.f32 %v112, %v309
    %v318 = vmul.f32 %v190, %v309
    %v319 = vmul.f32 %v115, %v309
    %v320 = vmul.f32 %v191, %v309
    %v321 = vmul.f32 %v118, %v309
    %v322 = vmul.f32 %v192, %v309
    %v323 = vmul.f32 %v121, %v309
    %v324 = vmul.f32 %v193, %v309
    %v325 = vmul.f32 %v124, %v309
    %v326 = vmul.f32 %v194, %v309
    %v327 = vmul.f32 %v127, %v309
    %v328 = vmul.f32 %v195, %v309
    %v329 = vmul.f32 %v130, %v309
    %v330 = vmul.f32 %v196, %v309
    %v331 = vmul.f32 %v133, %v309
    %v332 = vmul.f32 %v197, %v309
    %v333 = vmul.f32 %v136, %v309
    %v334 = vmul.f32 %v198, %v309
    %v335 = vmul.f32 %v139, %v309
    %v336 = vmul.f32 %v199, %v309
    %v337 = vmul.f32 %v142, %v309
    %v338 = vmul.f32 %v200, %v309
    %v339 = vmul.f32 %v145, %v309
    %v340 = vld [vmem:[%s3 + $0x9] sm:$0x1]
    %v341 = vlaneseq
    %v342 = vshrl.u32 %v341, 7
    %v343 = vsub.s32 0, %v342
    %v344 = vrot.slane %v340, %v343
    %v345 = vmul.f32 %v186, %v344
    %v346 = vmul.f32 %v103, %v344
    %v347 = vmul.f32 %v187, %v344
    %v348 = vmul.f32 %v106, %v344
    %v349 = vmul.f32 %v188, %v344
    %v350 = vmul.f32 %v109, %v344
    %v351 = vmul.f32 %v189, %v344
    %v352 = vmul.f32 %v112, %v344
    %v353 = vmul.f32 %v190, %v344
    %v354 = vmul.f32 %v115, %v344
    %v355 = vmul.f32 %v191, %v344
    %v356 = vmul.f32 %v118, %v344
    %v357 = vmul.f32 %v192, %v344
    %v358 = vmul.f32 %v121, %v344
    %v359 = vmul.f32 %v193, %v344
    %v360 = vmul.f32 %v124, %v344
    %v361 = vmul.f32 %v194, %v344
    %v362 = vmul.f32 %v127, %v344
    %v363 = vmul.f32 %v195, %v344
    %v364 = vmul.f32 %v130, %v344
    %v365 = vmul.f32 %v196, %v344
    %v366 = vmul.f32 %v133, %v344
    %v367 = vmul.f32 %v197, %v344
    %v368 = vmul.f32 %v136, %v344
    %v369 = vmul.f32 %v198, %v344
    %v370 = vmul.f32 %v139, %v344
    %v371 = vmul.f32 %v199, %v344
    %v372 = vmul.f32 %v142, %v344
    %v373 = vmul.f32 %v200, %v344
    %v374 = vmul.f32 %v145, %v344
    %v375 = vld [vmem:[%s3 + $0x1] sm:$0x1]
    %v376 = vlaneseq
    %v377 = vshrl.u32 %v376, 7
    %v378 = vsub.s32 0, %v377
    %v379 = vrot.slane %v375, %v378
    %v380 = vmul.f32 %v379, 0.0
    %v381 = vmul.f32 %v36, %v379
    %v382 = vmul.f32 %v37, %v379
    %v383 = vmul.f32 %v38, %v379
    %v384 = vmul.f32 %v39, %v379
    %v385 = vmul.f32 %v40, %v379
    %v386 = vmul.f32 %v41, %v379
    %v387 = vmul.f32 %v42, %v379
    %v388 = vmul.f32 %v43, %v379
    %v389 = vmul.f32 %v44, %v379
    %v390 = vmul.f32 %v45, %v379
    %v391 = vmul.f32 %v46, %v379
    %v392 = vmul.f32 %v47, %v379
    %v393 = vmul.f32 %v48, %v379
    %v394 = vmul.f32 %v49, %v379
    %v395 = vmul.f32 %v50, %v379
    %v396 = vmul.f32 %v51, %v379
    %v397 = vmul.f32 %v52, %v379
    %v398 = vmul.f32 %v53, %v379
    %v399 = vmul.f32 %v54, %v379
    %v400 = vmul.f32 %v55, %v379
    %v401 = vmul.f32 %v56, %v379
    %v402 = vmul.f32 %v57, %v379
    %v403 = vmul.f32 %v58, %v379
    %v404 = vmul.f32 %v59, %v379
    %v405 = vmul.f32 %v60, %v379
    %v406 = vmul.f32 %v61, %v379
    %v407 = vmul.f32 %v62, %v379
    %v408 = vmul.f32 %v63, %v379
    %v409 = vld [vmem:[%s3 + $0xa] sm:$0x1]
    %v410 = vlaneseq
    %v411 = vshrl.u32 %v410, 7
    %v412 = vsub.s32 0, %v411
    %v413 = vrot.slane %v409, %v412
    %v414 = vmul.f32 %v413, 0.0
    %v415 = vmul.f32 %v36, %v413
    %v416 = vmul.f32 %v37, %v413
    %v417 = vmul.f32 %v38, %v413
    %v418 = vmul.f32 %v39, %v413
    %v419 = vmul.f32 %v40, %v413
    %v420 = vmul.f32 %v41, %v413
    %v421 = vmul.f32 %v42, %v413
    %v422 = vmul.f32 %v43, %v413
    %v423 = vmul.f32 %v44, %v413
    %v424 = vmul.f32 %v45, %v413
    %v425 = vmul.f32 %v46, %v413
    %v426 = vmul.f32 %v47, %v413
    %v427 = vmul.f32 %v48, %v413
    %v428 = vmul.f32 %v49, %v413
    %v429 = vmul.f32 %v50, %v413
    %v430 = vmul.f32 %v51, %v413
    %v431 = vmul.f32 %v52, %v413
    %v432 = vmul.f32 %v53, %v413
    %v433 = vmul.f32 %v54, %v413
    %v434 = vmul.f32 %v55, %v413
    %v435 = vmul.f32 %v56, %v413
    %v436 = vmul.f32 %v57, %v413
    %v437 = vmul.f32 %v58, %v413
    %v438 = vmul.f32 %v59, %v413
    %v439 = vmul.f32 %v60, %v413
    %v440 = vmul.f32 %v61, %v413
    %v441 = vmul.f32 %v62, %v413
    %v442 = vmul.f32 %v63, %v413
    %v443 = vadd.f32 %v310, %v380
    %v444 = vadd.f32 %v311, %v380
    %v445 = vadd.f32 %v312, %v381
    %v446 = vadd.f32 %v313, %v382
    %v447 = vadd.f32 %v314, %v383
    %v448 = vadd.f32 %v315, %v384
    %v449 = vadd.f32 %v316, %v385
    %v450 = vadd.f32 %v317, %v386
    %v451 = vadd.f32 %v318, %v387
    %v452 = vadd.f32 %v319, %v388
    %v453 = vadd.f32 %v320, %v389
    %v454 = vadd.f32 %v321, %v390
    %v455 = vadd.f32 %v322, %v391
    %v456 = vadd.f32 %v323, %v392
    %v457 = vadd.f32 %v324, %v393
    %v458 = vadd.f32 %v325, %v394
    %v459 = vadd.f32 %v326, %v395
    %v460 = vadd.f32 %v327, %v396
    %v461 = vadd.f32 %v328, %v397
    %v462 = vadd.f32 %v329, %v398
    %v463 = vadd.f32 %v330, %v399
    %v464 = vadd.f32 %v331, %v400
    %v465 = vadd.f32 %v332, %v401
    %v466 = vadd.f32 %v333, %v402
    %v467 = vadd.f32 %v334, %v403
    %v468 = vadd.f32 %v335, %v404
    %v469 = vadd.f32 %v336, %v405
    %v470 = vadd.f32 %v337, %v406
    %v471 = vadd.f32 %v338, %v407
    %v472 = vadd.f32 %v339, %v408
    %v473 = vadd.f32 %v345, %v414
    %v474 = vadd.f32 %v346, %v414
    %v475 = vadd.f32 %v347, %v415
    %v476 = vadd.f32 %v348, %v416
    %v477 = vadd.f32 %v349, %v417
    %v478 = vadd.f32 %v350, %v418
    %v479 = vadd.f32 %v351, %v419
    %v480 = vadd.f32 %v352, %v420
    %v481 = vadd.f32 %v353, %v421
    %v482 = vadd.f32 %v354, %v422
    %v483 = vadd.f32 %v355, %v423
    %v484 = vadd.f32 %v356, %v424
    %v485 = vadd.f32 %v357, %v425
    %v486 = vadd.f32 %v358, %v426
    %v487 = vadd.f32 %v359, %v427
    %v488 = vadd.f32 %v360, %v428
    %v489 = vadd.f32 %v361, %v429
    %v490 = vadd.f32 %v362, %v430
    %v491 = vadd.f32 %v363, %v431
    %v492 = vadd.f32 %v364, %v432
    %v493 = vadd.f32 %v365, %v433
    %v494 = vadd.f32 %v366, %v434
    %v495 = vadd.f32 %v367, %v435
    %v496 = vadd.f32 %v368, %v436
    %v497 = vadd.f32 %v369, %v437
    %v498 = vadd.f32 %v370, %v438
    %v499 = vadd.f32 %v371, %v439
    %v500 = vadd.f32 %v372, %v440
    %v501 = vadd.f32 %v373, %v441
    %v502 = vadd.f32 %v374, %v442
    %v503 = vld [vmem:[%s3 + $0x2] sm:$0x1]
    %v504 = vlaneseq
    %v505 = vshrl.u32 %v504, 7
    %v506 = vsub.s32 0, %v505
    %v507 = vrot.slane %v503, %v506
    %v508 = vmul.f32 %v205, %v507
    %v509 = vmul.f32 %v288, %v507
    %v510 = vmul.f32 %v208, %v507
    %v511 = vmul.f32 %v289, %v507
    %v512 = vmul.f32 %v211, %v507
    %v513 = vmul.f32 %v290, %v507
    %v514 = vmul.f32 %v214, %v507
    %v515 = vmul.f32 %v291, %v507
    %v516 = vmul.f32 %v217, %v507
    %v517 = vmul.f32 %v292, %v507
    %v518 = vmul.f32 %v220, %v507
    %v519 = vmul.f32 %v293, %v507
    %v520 = vmul.f32 %v223, %v507
    %v521 = vmul.f32 %v294, %v507
    %v522 = vmul.f32 %v226, %v507
    %v523 = vmul.f32 %v295, %v507
    %v524 = vmul.f32 %v229, %v507
    %v525 = vmul.f32 %v296, %v507
    %v526 = vmul.f32 %v232, %v507
    %v527 = vmul.f32 %v297, %v507
    %v528 = vmul.f32 %v235, %v507
    %v529 = vmul.f32 %v298, %v507
    %v530 = vmul.f32 %v238, %v507
    %v531 = vmul.f32 %v299, %v507
    %v532 = vmul.f32 %v241, %v507
    %v533 = vmul.f32 %v300, %v507
    %v534 = vmul.f32 %v244, %v507
    %v535 = vmul.f32 %v301, %v507
    %v536 = vmul.f32 %v247, %v507
    %v537 = vmul.f32 %v302, %v507
    %v538 = vld [vmem:[%s3 + $0xb] sm:$0x1]
    %v539 = vlaneseq
    %v540 = vshrl.u32 %v539, 7
    %v541 = vsub.s32 0, %v540
    %v542 = vrot.slane %v538, %v541
    %v543 = vmul.f32 %v205, %v542
    %v544 = vmul.f32 %v288, %v542
    %v545 = vmul.f32 %v208, %v542
    %v546 = vmul.f32 %v289, %v542
    %v547 = vmul.f32 %v211, %v542
    %v548 = vmul.f32 %v290, %v542
    %v549 = vmul.f32 %v214, %v542
    %v550 = vmul.f32 %v291, %v542
    %v551 = vmul.f32 %v217, %v542
    %v552 = vmul.f32 %v292, %v542
    %v553 = vmul.f32 %v220, %v542
    %v554 = vmul.f32 %v293, %v542
    %v555 = vmul.f32 %v223, %v542
    %v556 = vmul.f32 %v294, %v542
    %v557 = vmul.f32 %v226, %v542
    %v558 = vmul.f32 %v295, %v542
    %v559 = vmul.f32 %v229, %v542
    %v560 = vmul.f32 %v296, %v542
    %v561 = vmul.f32 %v232, %v542
    %v562 = vmul.f32 %v297, %v542
    %v563 = vmul.f32 %v235, %v542
    %v564 = vmul.f32 %v298, %v542
    %v565 = vmul.f32 %v238, %v542
    %v566 = vmul.f32 %v299, %v542
    %v567 = vmul.f32 %v241, %v542
    %v568 = vmul.f32 %v300, %v542
    %v569 = vmul.f32 %v244, %v542
    %v570 = vmul.f32 %v301, %v542
    %v571 = vmul.f32 %v247, %v542
    %v572 = vmul.f32 %v302, %v542
    %v573 = vadd.f32 %v443, %v508
    %v574 = vadd.f32 %v444, %v509
    %v575 = vadd.f32 %v445, %v510
    %v576 = vadd.f32 %v446, %v511
    %v577 = vadd.f32 %v447, %v512
    %v578 = vadd.f32 %v448, %v513
    %v579 = vadd.f32 %v449, %v514
    %v580 = vadd.f32 %v450, %v515
    %v581 = vadd.f32 %v451, %v516
    %v582 = vadd.f32 %v452, %v517
    %v583 = vadd.f32 %v453, %v518
    %v584 = vadd.f32 %v454, %v519
    %v585 = vadd.f32 %v455, %v520
    %v586 = vadd.f32 %v456, %v521
    %v587 = vadd.f32 %v457, %v522
    %v588 = vadd.f32 %v458, %v523
    %v589 = vadd.f32 %v459, %v524
    %v590 = vadd.f32 %v460, %v525
    %v591 = vadd.f32 %v461, %v526
    %v592 = vadd.f32 %v462, %v527
    %v593 = vadd.f32 %v463, %v528
    %v594 = vadd.f32 %v464, %v529
    %v595 = vadd.f32 %v465, %v530
    %v596 = vadd.f32 %v466, %v531
    %v597 = vadd.f32 %v467, %v532
    %v598 = vadd.f32 %v468, %v533
    %v599 = vadd.f32 %v469, %v534
    %v600 = vadd.f32 %v470, %v535
    %v601 = vadd.f32 %v471, %v536
    %v602 = vadd.f32 %v472, %v537
    %v603 = vadd.f32 %v473, %v543
    %v604 = vadd.f32 %v474, %v544
    %v605 = vadd.f32 %v475, %v545
    %v606 = vadd.f32 %v476, %v546
    %v607 = vadd.f32 %v477, %v547
    %v608 = vadd.f32 %v478, %v548
    %v609 = vadd.f32 %v479, %v549
    %v610 = vadd.f32 %v480, %v550
    %v611 = vadd.f32 %v481, %v551
    %v612 = vadd.f32 %v482, %v552
    %v613 = vadd.f32 %v483, %v553
    %v614 = vadd.f32 %v484, %v554
    %v615 = vadd.f32 %v485, %v555
    %v616 = vadd.f32 %v486, %v556
    %v617 = vadd.f32 %v487, %v557
    %v618 = vadd.f32 %v488, %v558
    %v619 = vadd.f32 %v489, %v559
    %v620 = vadd.f32 %v490, %v560
    %v621 = vadd.f32 %v491, %v561
    %v622 = vadd.f32 %v492, %v562
    %v623 = vadd.f32 %v493, %v563
    %v624 = vadd.f32 %v494, %v564
    %v625 = vadd.f32 %v495, %v565
    %v626 = vadd.f32 %v496, %v566
    %v627 = vadd.f32 %v497, %v567
    %v628 = vadd.f32 %v498, %v568
    %v629 = vadd.f32 %v499, %v569
    %v630 = vadd.f32 %v500, %v570
    %v631 = vadd.f32 %v501, %v571
    %v632 = vadd.f32 %v502, %v572
    %v633 = vld [vmem:[%s3 + $0x3] sm:$0x1]
    %v634 = vlaneseq
    %v635 = vshrl.u32 %v634, 7
    %v636 = vsub.s32 0, %v635
    %v637 = vrot.slane %v633, %v636
    %v638 = vmul.f32 %v187, %v637
    %v639 = vmul.f32 %v106, %v637
    %v640 = vmul.f32 %v188, %v637
    %v641 = vmul.f32 %v109, %v637
    %v642 = vmul.f32 %v189, %v637
    %v643 = vmul.f32 %v112, %v637
    %v644 = vmul.f32 %v190, %v637
    %v645 = vmul.f32 %v115, %v637
    %v646 = vmul.f32 %v191, %v637
    %v647 = vmul.f32 %v118, %v637
    %v648 = vmul.f32 %v192, %v637
    %v649 = vmul.f32 %v121, %v637
    %v650 = vmul.f32 %v193, %v637
    %v651 = vmul.f32 %v124, %v637
    %v652 = vmul.f32 %v194, %v637
    %v653 = vmul.f32 %v127, %v637
    %v654 = vmul.f32 %v195, %v637
    %v655 = vmul.f32 %v130, %v637
    %v656 = vmul.f32 %v196, %v637
    %v657 = vmul.f32 %v133, %v637
    %v658 = vmul.f32 %v197, %v637
    %v659 = vmul.f32 %v136, %v637
    %v660 = vmul.f32 %v198, %v637
    %v661 = vmul.f32 %v139, %v637
    %v662 = vmul.f32 %v199, %v637
    %v663 = vmul.f32 %v142, %v637
    %v664 = vmul.f32 %v200, %v637
    %v665 = vmul.f32 %v145, %v637
    %v666 = vmul.f32 %v201, %v637
    %v667 = vmul.f32 %v148, %v637
    %v668 = vmul.f32 %v202, %v637
    %v669 = vmul.f32 %v151, %v637
    %v670 = vld [vmem:[%s3 + $0xc] sm:$0x1]
    %v671 = vlaneseq
    %v672 = vshrl.u32 %v671, 7
    %v673 = vsub.s32 0, %v672
    %v674 = vrot.slane %v670, %v673
    %v675 = vmul.f32 %v187, %v674
    %v676 = vmul.f32 %v106, %v674
    %v677 = vmul.f32 %v188, %v674
    %v678 = vmul.f32 %v109, %v674
    %v679 = vmul.f32 %v189, %v674
    %v680 = vmul.f32 %v112, %v674
    %v681 = vmul.f32 %v190, %v674
    %v682 = vmul.f32 %v115, %v674
    %v683 = vmul.f32 %v191, %v674
    %v684 = vmul.f32 %v118, %v674
    %v685 = vmul.f32 %v192, %v674
    %v686 = vmul.f32 %v121, %v674
    %v687 = vmul.f32 %v193, %v674
    %v688 = vmul.f32 %v124, %v674
    %v689 = vmul.f32 %v194, %v674
    %v690 = vmul.f32 %v127, %v674
    %v691 = vmul.f32 %v195, %v674
    %v692 = vmul.f32 %v130, %v674
    %v693 = vmul.f32 %v196, %v674
    %v694 = vmul.f32 %v133, %v674
    %v695 = vmul.f32 %v197, %v674
    %v696 = vmul.f32 %v136, %v674
    %v697 = vmul.f32 %v198, %v674
    %v698 = vmul.f32 %v139, %v674
    %v699 = vmul.f32 %v199, %v674
    %v700 = vmul.f32 %v142, %v674
    %v701 = vmul.f32 %v200, %v674
    %v702 = vmul.f32 %v145, %v674
    %v703 = vmul.f32 %v201, %v674
    %v704 = vmul.f32 %v148, %v674
    %v705 = vmul.f32 %v202, %v674
    %v706 = vmul.f32 %v151, %v674
    %v707 = vadd.f32 %v573, %v638
    %v708 = vadd.f32 %v574, %v639
    %v709 = vadd.f32 %v573, %v640
    %v710 = vadd.f32 %v574, %v641
    %v711 = vadd.f32 %v575, %v642
    %v712 = vadd.f32 %v576, %v643
    %v713 = vadd.f32 %v577, %v644
    %v714 = vadd.f32 %v578, %v645
    %v715 = vadd.f32 %v579, %v646
    %v716 = vadd.f32 %v580, %v647
    %v717 = vadd.f32 %v581, %v648
    %v718 = vadd.f32 %v582, %v649
    %v719 = vadd.f32 %v583, %v650
    %v720 = vadd.f32 %v584, %v651
    %v721 = vadd.f32 %v585, %v652
    %v722 = vadd.f32 %v586, %v653
    %v723 = vadd.f32 %v587, %v654
    %v724 = vadd.f32 %v588, %v655
    %v725 = vadd.f32 %v589, %v656
    %v726 = vadd.f32 %v590, %v657
    %v727 = vadd.f32 %v591, %v658
    %v728 = vadd.f32 %v592, %v659
    %v729 = vadd.f32 %v593, %v660
    %v730 = vadd.f32 %v594, %v661
    %v731 = vadd.f32 %v595, %v662
    %v732 = vadd.f32 %v596, %v663
    %v733 = vadd.f32 %v597, %v664
    %v734 = vadd.f32 %v598, %v665
    %v735 = vadd.f32 %v599, %v666
    %v736 = vadd.f32 %v600, %v667
    %v737 = vadd.f32 %v601, %v668
    %v738 = vadd.f32 %v602, %v669
    %v739 = vadd.f32 %v603, %v675
    %v740 = vadd.f32 %v604, %v676
    %v741 = vadd.f32 %v603, %v677
    %v742 = vadd.f32 %v604, %v678
    %v743 = vadd.f32 %v605, %v679
    %v744 = vadd.f32 %v606, %v680
    %v745 = vadd.f32 %v607, %v681
    %v746 = vadd.f32 %v608, %v682
    %v747 = vadd.f32 %v609, %v683
    %v748 = vadd.f32 %v610, %v684
    %v749 = vadd.f32 %v611, %v685
    %v750 = vadd.f32 %v612, %v686
    %v751 = vadd.f32 %v613, %v687
    %v752 = vadd.f32 %v614, %v688
    %v753 = vadd.f32 %v615, %v689
    %v754 = vadd.f32 %v616, %v690
    %v755 = vadd.f32 %v617, %v691
    %v756 = vadd.f32 %v618, %v692
    %v757 = vadd.f32 %v619, %v693
    %v758 = vadd.f32 %v620, %v694
    %v759 = vadd.f32 %v621, %v695
    %v760 = vadd.f32 %v622, %v696
    %v761 = vadd.f32 %v623, %v697
    %v762 = vadd.f32 %v624, %v698
    %v763 = vadd.f32 %v625, %v699
    %v764 = vadd.f32 %v626, %v700
    %v765 = vadd.f32 %v627, %v701
    %v766 = vadd.f32 %v628, %v702
    %v767 = vadd.f32 %v629, %v703
    %v768 = vadd.f32 %v630, %v704
    %v769 = vadd.f32 %v631, %v705
    %v770 = vadd.f32 %v632, %v706
    %v771 = vld [vmem:[%s3 + $0x4] sm:$0x1]
    %v772 = vlaneseq
    %v773 = vshrl.u32 %v772, 7
    %v774 = vsub.s32 0, %v773
    %v775 = vrot.slane %v771, %v774
    %v776 = vmul.f32 %v36, %v775
    %v777 = vmul.f32 %v37, %v775
    %v778 = vmul.f32 %v38, %v775
    %v779 = vmul.f32 %v39, %v775
    %v780 = vmul.f32 %v40, %v775
    %v781 = vmul.f32 %v41, %v775
    %v782 = vmul.f32 %v42, %v775
    %v783 = vmul.f32 %v43, %v775
    %v784 = vmul.f32 %v44, %v775
    %v785 = vmul.f32 %v45, %v775
    %v786 = vmul.f32 %v46, %v775
    %v787 = vmul.f32 %v47, %v775
    %v788 = vmul.f32 %v48, %v775
    %v789 = vmul.f32 %v49, %v775
    %v790 = vmul.f32 %v50, %v775
    %v791 = vmul.f32 %v51, %v775
    %v792 = vmul.f32 %v52, %v775
    %v793 = vmul.f32 %v53, %v775
    %v794 = vmul.f32 %v54, %v775
    %v795 = vmul.f32 %v55, %v775
    %v796 = vmul.f32 %v56, %v775
    %v797 = vmul.f32 %v57, %v775
    %v798 = vmul.f32 %v58, %v775
    %v799 = vmul.f32 %v59, %v775
    %v800 = vmul.f32 %v60, %v775
    %v801 = vmul.f32 %v61, %v775
    %v802 = vmul.f32 %v62, %v775
    %v803 = vmul.f32 %v63, %v775
    %v804 = vmul.f32 %v64, %v775
    %v805 = vmul.f32 %v65, %v775
    %v806 = vmul.f32 %v66, %v775
    %v807 = vmul.f32 %v67, %v775
    %v808 = vld [vmem:[%s3 + $0xd] sm:$0x1]
    %v809 = vlaneseq
    %v810 = vshrl.u32 %v809, 7
    %v811 = vsub.s32 0, %v810
    %v812 = vrot.slane %v808, %v811
    %v813 = vmul.f32 %v36, %v812
    %v814 = vmul.f32 %v37, %v812
    %v815 = vmul.f32 %v38, %v812
    %v816 = vmul.f32 %v39, %v812
    %v817 = vmul.f32 %v40, %v812
    %v818 = vmul.f32 %v41, %v812
    %v819 = vmul.f32 %v42, %v812
    %v820 = vmul.f32 %v43, %v812
    %v821 = vmul.f32 %v44, %v812
    %v822 = vmul.f32 %v45, %v812
    %v823 = vmul.f32 %v46, %v812
    %v824 = vmul.f32 %v47, %v812
    %v825 = vmul.f32 %v48, %v812
    %v826 = vmul.f32 %v49, %v812
    %v827 = vmul.f32 %v50, %v812
    %v828 = vmul.f32 %v51, %v812
    %v829 = vmul.f32 %v52, %v812
    %v830 = vmul.f32 %v53, %v812
    %v831 = vmul.f32 %v54, %v812
    %v832 = vmul.f32 %v55, %v812
    %v833 = vmul.f32 %v56, %v812
    %v834 = vmul.f32 %v57, %v812
    %v835 = vmul.f32 %v58, %v812
    %v836 = vmul.f32 %v59, %v812
    %v837 = vmul.f32 %v60, %v812
    %v838 = vmul.f32 %v61, %v812
    %v839 = vmul.f32 %v62, %v812
    %v840 = vmul.f32 %v63, %v812
    %v841 = vmul.f32 %v64, %v812
    %v842 = vmul.f32 %v65, %v812
    %v843 = vmul.f32 %v66, %v812
    %v844 = vmul.f32 %v67, %v812
    %v845 = vadd.f32 %v707, %v776
    %v846 = vadd.f32 %v708, %v777
    %v847 = vadd.f32 %v709, %v778
    %v848 = vadd.f32 %v710, %v779
    %v849 = vadd.f32 %v711, %v780
    %v850 = vadd.f32 %v712, %v781
    %v851 = vadd.f32 %v713, %v782
    %v852 = vadd.f32 %v714, %v783
    %v853 = vadd.f32 %v715, %v784
    %v854 = vadd.f32 %v716, %v785
    %v855 = vadd.f32 %v717, %v786
    %v856 = vadd.f32 %v718, %v787
    %v857 = vadd.f32 %v719, %v788
    %v858 = vadd.f32 %v720, %v789
    %v859 = vadd.f32 %v721, %v790
    %v860 = vadd.f32 %v722, %v791
    %v861 = vadd.f32 %v723, %v792
    %v862 = vadd.f32 %v724, %v793
    %v863 = vadd.f32 %v725, %v794
    %v864 = vadd.f32 %v726, %v795
    %v865 = vadd.f32 %v727, %v796
    %v866 = vadd.f32 %v728, %v797
    %v867 = vadd.f32 %v729, %v798
    %v868 = vadd.f32 %v730, %v799
    %v869 = vadd.f32 %v731, %v800
    %v870 = vadd.f32 %v732, %v801
    %v871 = vadd.f32 %v733, %v802
    %v872 = vadd.f32 %v734, %v803
    %v873 = vadd.f32 %v735, %v804
    %v874 = vadd.f32 %v736, %v805
    %v875 = vadd.f32 %v737, %v806
    %v876 = vadd.f32 %v738, %v807
    %v877 = vadd.f32 %v739, %v813
    %v878 = vadd.f32 %v740, %v814
    %v879 = vadd.f32 %v741, %v815
    %v880 = vadd.f32 %v742, %v816
    %v881 = vadd.f32 %v743, %v817
    %v882 = vadd.f32 %v744, %v818
    %v883 = vadd.f32 %v745, %v819
    %v884 = vadd.f32 %v746, %v820
    %v885 = vadd.f32 %v747, %v821
    %v886 = vadd.f32 %v748, %v822
    %v887 = vadd.f32 %v749, %v823
    %v888 = vadd.f32 %v750, %v824
    %v889 = vadd.f32 %v751, %v825
    %v890 = vadd.f32 %v752, %v826
    %v891 = vadd.f32 %v753, %v827
    %v892 = vadd.f32 %v754, %v828
    %v893 = vadd.f32 %v755, %v829
    %v894 = vadd.f32 %v756, %v830
    %v895 = vadd.f32 %v757, %v831
    %v896 = vadd.f32 %v758, %v832
    %v897 = vadd.f32 %v759, %v833
    %v898 = vadd.f32 %v760, %v834
    %v899 = vadd.f32 %v761, %v835
    %v900 = vadd.f32 %v762, %v836
    %v901 = vadd.f32 %v763, %v837
    %v902 = vadd.f32 %v764, %v838
    %v903 = vadd.f32 %v765, %v839
    %v904 = vadd.f32 %v766, %v840
    %v905 = vadd.f32 %v767, %v841
    %v906 = vadd.f32 %v768, %v842
    %v907 = vadd.f32 %v769, %v843
    %v908 = vadd.f32 %v770, %v844
    %v909 = vld [vmem:[%s3 + $0x5] sm:$0x1]
    %v910 = vlaneseq
    %v911 = vshrl.u32 %v910, 7
    %v912 = vsub.s32 0, %v911
    %v913 = vrot.slane %v909, %v912
    %v914 = vmul.f32 %v208, %v913
    %v915 = vmul.f32 %v289, %v913
    %v916 = vmul.f32 %v211, %v913
    %v917 = vmul.f32 %v290, %v913
    %v918 = vmul.f32 %v214, %v913
    %v919 = vmul.f32 %v291, %v913
    %v920 = vmul.f32 %v217, %v913
    %v921 = vmul.f32 %v292, %v913
    %v922 = vmul.f32 %v220, %v913
    %v923 = vmul.f32 %v293, %v913
    %v924 = vmul.f32 %v223, %v913
    %v925 = vmul.f32 %v294, %v913
    %v926 = vmul.f32 %v226, %v913
    %v927 = vmul.f32 %v295, %v913
    %v928 = vmul.f32 %v229, %v913
    %v929 = vmul.f32 %v296, %v913
    %v930 = vmul.f32 %v232, %v913
    %v931 = vmul.f32 %v297, %v913
    %v932 = vmul.f32 %v235, %v913
    %v933 = vmul.f32 %v298, %v913
    %v934 = vmul.f32 %v238, %v913
    %v935 = vmul.f32 %v299, %v913
    %v936 = vmul.f32 %v241, %v913
    %v937 = vmul.f32 %v300, %v913
    %v938 = vmul.f32 %v244, %v913
    %v939 = vmul.f32 %v301, %v913
    %v940 = vmul.f32 %v247, %v913
    %v941 = vmul.f32 %v302, %v913
    %v942 = vmul.f32 %v250, %v913
    %v943 = vmul.f32 %v303, %v913
    %v944 = vmul.f32 %v253, %v913
    %v945 = vmul.f32 %v304, %v913
    %v946 = vld [vmem:[%s3 + $0xe] sm:$0x1]
    %v947 = vlaneseq
    %v948 = vshrl.u32 %v947, 7
    %v949 = vsub.s32 0, %v948
    %v950 = vrot.slane %v946, %v949
    %v951 = vmul.f32 %v208, %v950
    %v952 = vmul.f32 %v289, %v950
    %v953 = vmul.f32 %v211, %v950
    %v954 = vmul.f32 %v290, %v950
    %v955 = vmul.f32 %v214, %v950
    %v956 = vmul.f32 %v291, %v950
    %v957 = vmul.f32 %v217, %v950
    %v958 = vmul.f32 %v292, %v950
    %v959 = vmul.f32 %v220, %v950
    %v960 = vmul.f32 %v293, %v950
    %v961 = vmul.f32 %v223, %v950
    %v962 = vmul.f32 %v294, %v950
    %v963 = vmul.f32 %v226, %v950
    %v964 = vmul.f32 %v295, %v950
    %v965 = vmul.f32 %v229, %v950
    %v966 = vmul.f32 %v296, %v950
    %v967 = vmul.f32 %v232, %v950
    %v968 = vmul.f32 %v297, %v950
    %v969 = vmul.f32 %v235, %v950
    %v970 = vmul.f32 %v298, %v950
    %v971 = vmul.f32 %v238, %v950
    %v972 = vmul.f32 %v299, %v950
    %v973 = vmul.f32 %v241, %v950
    %v974 = vmul.f32 %v300, %v950
    %v975 = vmul.f32 %v244, %v950
    %v976 = vmul.f32 %v301, %v950
    %v977 = vmul.f32 %v247, %v950
    %v978 = vmul.f32 %v302, %v950
    %v979 = vmul.f32 %v250, %v950
    %v980 = vmul.f32 %v303, %v950
    %v981 = vmul.f32 %v253, %v950
    %v982 = vmul.f32 %v304, %v950
    %v983 = vadd.f32 %v845, %v914
    %v984 = vadd.f32 %v846, %v915
    %v985 = vadd.f32 %v847, %v916
    %v986 = vadd.f32 %v848, %v917
    %v987 = vadd.f32 %v849, %v918
    %v988 = vadd.f32 %v850, %v919
    %v989 = vadd.f32 %v851, %v920
    %v990 = vadd.f32 %v852, %v921
    %v991 = vadd.f32 %v853, %v922
    %v992 = vadd.f32 %v854, %v923
    %v993 = vadd.f32 %v855, %v924
    %v994 = vadd.f32 %v856, %v925
    %v995 = vadd.f32 %v857, %v926
    %v996 = vadd.f32 %v858, %v927
    %v997 = vadd.f32 %v859, %v928
    %v998 = vadd.f32 %v860, %v929
    %v999 = vadd.f32 %v861, %v930
    %v1000 = vadd.f32 %v862, %v931
    %v1001 = vadd.f32 %v863, %v932
    %v1002 = vadd.f32 %v864, %v933
    %v1003 = vadd.f32 %v865, %v934
    %v1004 = vadd.f32 %v866, %v935
    %v1005 = vadd.f32 %v867, %v936
    %v1006 = vadd.f32 %v868, %v937
    %v1007 = vadd.f32 %v869, %v938
    %v1008 = vadd.f32 %v870, %v939
    %v1009 = vadd.f32 %v871, %v940
    %v1010 = vadd.f32 %v872, %v941
    %v1011 = vadd.f32 %v873, %v942
    %v1012 = vadd.f32 %v874, %v943
    %v1013 = vadd.f32 %v875, %v944
    %v1014 = vadd.f32 %v876, %v945
    %v1015 = vadd.f32 %v877, %v951
    %v1016 = vadd.f32 %v878, %v952
    %v1017 = vadd.f32 %v879, %v953
    %v1018 = vadd.f32 %v880, %v954
    %v1019 = vadd.f32 %v881, %v955
    %v1020 = vadd.f32 %v882, %v956
    %v1021 = vadd.f32 %v883, %v957
    %v1022 = vadd.f32 %v884, %v958
    %v1023 = vadd.f32 %v885, %v959
    %v1024 = vadd.f32 %v886, %v960
    %v1025 = vadd.f32 %v887, %v961
    %v1026 = vadd.f32 %v888, %v962
    %v1027 = vadd.f32 %v889, %v963
    %v1028 = vadd.f32 %v890, %v964
    %v1029 = vadd.f32 %v891, %v965
    %v1030 = vadd.f32 %v892, %v966
    %v1031 = vadd.f32 %v893, %v967
    %v1032 = vadd.f32 %v894, %v968
    %v1033 = vadd.f32 %v895, %v969
    %v1034 = vadd.f32 %v896, %v970
    %v1035 = vadd.f32 %v897, %v971
    %v1036 = vadd.f32 %v898, %v972
    %v1037 = vadd.f32 %v899, %v973
    %v1038 = vadd.f32 %v900, %v974
    %v1039 = vadd.f32 %v901, %v975
    %v1040 = vadd.f32 %v902, %v976
    %v1041 = vadd.f32 %v903, %v977
    %v1042 = vadd.f32 %v904, %v978
    %v1043 = vadd.f32 %v905, %v979
    %v1044 = vadd.f32 %v906, %v980
    %v1045 = vadd.f32 %v907, %v981
    %v1046 = vadd.f32 %v908, %v982
    %v1047 = vld [vmem:[%s3 + $0x6] sm:$0x1]
    %v1048 = vlaneseq
    %v1049 = vshrl.u32 %v1048, 7
    %v1050 = vsub.s32 0, %v1049
    %v1051 = vrot.slane %v1047, %v1050
    %v1052 = vmul.f32 %v189, %v1051
    %v1053 = vmul.f32 %v112, %v1051
    %v1054 = vmul.f32 %v190, %v1051
    %v1055 = vmul.f32 %v115, %v1051
    %v1056 = vmul.f32 %v191, %v1051
    %v1057 = vmul.f32 %v118, %v1051
    %v1058 = vmul.f32 %v192, %v1051
    %v1059 = vmul.f32 %v121, %v1051
    %v1060 = vmul.f32 %v193, %v1051
    %v1061 = vmul.f32 %v124, %v1051
    %v1062 = vmul.f32 %v194, %v1051
    %v1063 = vmul.f32 %v127, %v1051
    %v1064 = vmul.f32 %v195, %v1051
    %v1065 = vmul.f32 %v130, %v1051
    %v1066 = vmul.f32 %v196, %v1051
    %v1067 = vmul.f32 %v133, %v1051
    %v1068 = vmul.f32 %v197, %v1051
    %v1069 = vmul.f32 %v136, %v1051
    %v1070 = vmul.f32 %v198, %v1051
    %v1071 = vmul.f32 %v139, %v1051
    %v1072 = vmul.f32 %v199, %v1051
    %v1073 = vmul.f32 %v142, %v1051
    %v1074 = vmul.f32 %v200, %v1051
    %v1075 = vmul.f32 %v145, %v1051
    %v1076 = vmul.f32 %v201, %v1051
    %v1077 = vmul.f32 %v148, %v1051
    %v1078 = vmul.f32 %v202, %v1051
    %v1079 = vmul.f32 %v151, %v1051
    %v1080 = vmul.f32 %v186, %v1051
    %v1081 = vmul.f32 %v103, %v1051
    %v1082 = vld [vmem:[%s3 + $0xf] sm:$0x1]
    %v1083 = vlaneseq
    %v1084 = vshrl.u32 %v1083, 7
    %v1085 = vsub.s32 0, %v1084
    %v1086 = vrot.slane %v1082, %v1085
    %v1087 = vmul.f32 %v189, %v1086
    %v1088 = vmul.f32 %v112, %v1086
    %v1089 = vmul.f32 %v190, %v1086
    %v1090 = vmul.f32 %v115, %v1086
    %v1091 = vmul.f32 %v191, %v1086
    %v1092 = vmul.f32 %v118, %v1086
    %v1093 = vmul.f32 %v192, %v1086
    %v1094 = vmul.f32 %v121, %v1086
    %v1095 = vmul.f32 %v193, %v1086
    %v1096 = vmul.f32 %v124, %v1086
    %v1097 = vmul.f32 %v194, %v1086
    %v1098 = vmul.f32 %v127, %v1086
    %v1099 = vmul.f32 %v195, %v1086
    %v1100 = vmul.f32 %v130, %v1086
    %v1101 = vmul.f32 %v196, %v1086
    %v1102 = vmul.f32 %v133, %v1086
    %v1103 = vmul.f32 %v197, %v1086
    %v1104 = vmul.f32 %v136, %v1086
    %v1105 = vmul.f32 %v198, %v1086
    %v1106 = vmul.f32 %v139, %v1086
    %v1107 = vmul.f32 %v199, %v1086
    %v1108 = vmul.f32 %v142, %v1086
    %v1109 = vmul.f32 %v200, %v1086
    %v1110 = vmul.f32 %v145, %v1086
    %v1111 = vmul.f32 %v201, %v1086
    %v1112 = vmul.f32 %v148, %v1086
    %v1113 = vmul.f32 %v202, %v1086
    %v1114 = vmul.f32 %v151, %v1086
    %v1115 = vmul.f32 %v186, %v1086
    %v1116 = vmul.f32 %v103, %v1086
    %v1117 = vadd.f32 %v983, %v1052
    %v1118 = vadd.f32 %v984, %v1053
    %v1119 = vadd.f32 %v985, %v1054
    %v1120 = vadd.f32 %v986, %v1055
    %v1121 = vadd.f32 %v987, %v1056
    %v1122 = vadd.f32 %v988, %v1057
    %v1123 = vadd.f32 %v989, %v1058
    %v1124 = vadd.f32 %v990, %v1059
    %v1125 = vadd.f32 %v991, %v1060
    %v1126 = vadd.f32 %v992, %v1061
    %v1127 = vadd.f32 %v993, %v1062
    %v1128 = vadd.f32 %v994, %v1063
    %v1129 = vadd.f32 %v995, %v1064
    %v1130 = vadd.f32 %v996, %v1065
    %v1131 = vadd.f32 %v997, %v1066
    %v1132 = vadd.f32 %v998, %v1067
    %v1133 = vadd.f32 %v999, %v1068
    %v1134 = vadd.f32 %v1000, %v1069
    %v1135 = vadd.f32 %v1001, %v1070
    %v1136 = vadd.f32 %v1002, %v1071
    %v1137 = vadd.f32 %v1003, %v1072
    %v1138 = vadd.f32 %v1004, %v1073
    %v1139 = vadd.f32 %v1005, %v1074
    %v1140 = vadd.f32 %v1006, %v1075
    %v1141 = vadd.f32 %v1007, %v1076
    %v1142 = vadd.f32 %v1008, %v1077
    %v1143 = vadd.f32 %v1009, %v1078
    %v1144 = vadd.f32 %v1010, %v1079
    %v1145 = vadd.f32 %v1011, %v1080
    %v1146 = vadd.f32 %v1012, %v1081
    %v1147 = vadd.f32 %v1013, %v1080
    %v1148 = vadd.f32 %v1014, %v1081
    %v1149 = vadd.f32 %v1015, %v1087
    %v1150 = vadd.f32 %v1016, %v1088
    %v1151 = vadd.f32 %v1017, %v1089
    %v1152 = vadd.f32 %v1018, %v1090
    %v1153 = vadd.f32 %v1019, %v1091
    %v1154 = vadd.f32 %v1020, %v1092
    %v1155 = vadd.f32 %v1021, %v1093
    %v1156 = vadd.f32 %v1022, %v1094
    %v1157 = vadd.f32 %v1023, %v1095
    %v1158 = vadd.f32 %v1024, %v1096
    %v1159 = vadd.f32 %v1025, %v1097
    %v1160 = vadd.f32 %v1026, %v1098
    %v1161 = vadd.f32 %v1027, %v1099
    %v1162 = vadd.f32 %v1028, %v1100
    %v1163 = vadd.f32 %v1029, %v1101
    %v1164 = vadd.f32 %v1030, %v1102
    %v1165 = vadd.f32 %v1031, %v1103
    %v1166 = vadd.f32 %v1032, %v1104
    %v1167 = vadd.f32 %v1033, %v1105
    %v1168 = vadd.f32 %v1034, %v1106
    %v1169 = vadd.f32 %v1035, %v1107
    %v1170 = vadd.f32 %v1036, %v1108
    %v1171 = vadd.f32 %v1037, %v1109
    %v1172 = vadd.f32 %v1038, %v1110
    %v1173 = vadd.f32 %v1039, %v1111
    %v1174 = vadd.f32 %v1040, %v1112
    %v1175 = vadd.f32 %v1041, %v1113
    %v1176 = vadd.f32 %v1042, %v1114
    %v1177 = vadd.f32 %v1043, %v1115
    %v1178 = vadd.f32 %v1044, %v1116
    %v1179 = vadd.f32 %v1045, %v1115
    %v1180 = vadd.f32 %v1046, %v1116
    %v1181 = vld [vmem:[%s3 + $0x7] sm:$0x1]
    %v1182 = vlaneseq
    %v1183 = vshrl.u32 %v1182, 7
    %v1184 = vsub.s32 0, %v1183
    %v1185 = vrot.slane %v1181, %v1184
    %v1186 = vmul.f32 %v40, %v1185
    %v1187 = vmul.f32 %v41, %v1185
    %v1188 = vmul.f32 %v42, %v1185
    %v1189 = vmul.f32 %v43, %v1185
    %v1190 = vmul.f32 %v44, %v1185
    %v1191 = vmul.f32 %v45, %v1185
    %v1192 = vmul.f32 %v46, %v1185
    %v1193 = vmul.f32 %v47, %v1185
    %v1194 = vmul.f32 %v48, %v1185
    %v1195 = vmul.f32 %v49, %v1185
    %v1196 = vmul.f32 %v50, %v1185
    %v1197 = vmul.f32 %v51, %v1185
    %v1198 = vmul.f32 %v52, %v1185
    %v1199 = vmul.f32 %v53, %v1185
    %v1200 = vmul.f32 %v54, %v1185
    %v1201 = vmul.f32 %v55, %v1185
    %v1202 = vmul.f32 %v56, %v1185
    %v1203 = vmul.f32 %v57, %v1185
    %v1204 = vmul.f32 %v58, %v1185
    %v1205 = vmul.f32 %v59, %v1185
    %v1206 = vmul.f32 %v60, %v1185
    %v1207 = vmul.f32 %v61, %v1185
    %v1208 = vmul.f32 %v62, %v1185
    %v1209 = vmul.f32 %v63, %v1185
    %v1210 = vmul.f32 %v64, %v1185
    %v1211 = vmul.f32 %v65, %v1185
    %v1212 = vmul.f32 %v66, %v1185
    %v1213 = vmul.f32 %v67, %v1185
    %v1214 = vmul.f32 %v1185, 0.0
    %v1215 = vld [vmem:[%s3 + $0x10] sm:$0x1]
    %v1216 = vlaneseq
    %v1217 = vshrl.u32 %v1216, 7
    %v1218 = vsub.s32 0, %v1217
    %v1219 = vrot.slane %v1215, %v1218
    %v1220 = vmul.f32 %v40, %v1219
    %v1221 = vmul.f32 %v41, %v1219
    %v1222 = vmul.f32 %v42, %v1219
    %v1223 = vmul.f32 %v43, %v1219
    %v1224 = vmul.f32 %v44, %v1219
    %v1225 = vmul.f32 %v45, %v1219
    %v1226 = vmul.f32 %v46, %v1219
    %v1227 = vmul.f32 %v47, %v1219
    %v1228 = vmul.f32 %v48, %v1219
    %v1229 = vmul.f32 %v49, %v1219
    %v1230 = vmul.f32 %v50, %v1219
    %v1231 = vmul.f32 %v51, %v1219
    %v1232 = vmul.f32 %v52, %v1219
    %v1233 = vmul.f32 %v53, %v1219
    %v1234 = vmul.f32 %v54, %v1219
    %v1235 = vmul.f32 %v55, %v1219
    %v1236 = vmul.f32 %v56, %v1219
    %v1237 = vmul.f32 %v57, %v1219
    %v1238 = vmul.f32 %v58, %v1219
    %v1239 = vmul.f32 %v59, %v1219
    %v1240 = vmul.f32 %v60, %v1219
    %v1241 = vmul.f32 %v61, %v1219
    %v1242 = vmul.f32 %v62, %v1219
    %v1243 = vmul.f32 %v63, %v1219
    %v1244 = vmul.f32 %v64, %v1219
    %v1245 = vmul.f32 %v65, %v1219
    %v1246 = vmul.f32 %v66, %v1219
    %v1247 = vmul.f32 %v67, %v1219
    %v1248 = vmul.f32 %v1219, 0.0
    %v1249 = vadd.f32 %v1117, %v1186
    %v1250 = vadd.f32 %v1118, %v1187
    %v1251 = vadd.f32 %v1119, %v1188
    %v1252 = vadd.f32 %v1120, %v1189
    %v1253 = vadd.f32 %v1121, %v1190
    %v1254 = vadd.f32 %v1122, %v1191
    %v1255 = vadd.f32 %v1123, %v1192
    %v1256 = vadd.f32 %v1124, %v1193
    %v1257 = vadd.f32 %v1125, %v1194
    %v1258 = vadd.f32 %v1126, %v1195
    %v1259 = vadd.f32 %v1127, %v1196
    %v1260 = vadd.f32 %v1128, %v1197
    %v1261 = vadd.f32 %v1129, %v1198
    %v1262 = vadd.f32 %v1130, %v1199
    %v1263 = vadd.f32 %v1131, %v1200
    %v1264 = vadd.f32 %v1132, %v1201
    %v1265 = vadd.f32 %v1133, %v1202
    %v1266 = vadd.f32 %v1134, %v1203
    %v1267 = vadd.f32 %v1135, %v1204
    %v1268 = vadd.f32 %v1136, %v1205
    %v1269 = vadd.f32 %v1137, %v1206
    %v1270 = vadd.f32 %v1138, %v1207
    %v1271 = vadd.f32 %v1139, %v1208
    %v1272 = vadd.f32 %v1140, %v1209
    %v1273 = vadd.f32 %v1141, %v1210
    %v1274 = vadd.f32 %v1142, %v1211
    %v1275 = vadd.f32 %v1143, %v1212
    %v1276 = vadd.f32 %v1144, %v1213
    %v1277 = vadd.f32 %v1145, %v1214
    %v1278 = vadd.f32 %v1146, %v1214
    %v1279 = vadd.f32 %v1147, %v1214
    %v1280 = vadd.f32 %v1148, %v1214
    %v1281 = vadd.f32 %v1149, %v1220
    %v1282 = vadd.f32 %v1150, %v1221
    %v1283 = vadd.f32 %v1151, %v1222
    %v1284 = vadd.f32 %v1152, %v1223
    %v1285 = vadd.f32 %v1153, %v1224
    %v1286 = vadd.f32 %v1154, %v1225
    %v1287 = vadd.f32 %v1155, %v1226
    %v1288 = vadd.f32 %v1156, %v1227
    %v1289 = vadd.f32 %v1157, %v1228
    %v1290 = vadd.f32 %v1158, %v1229
    %v1291 = vadd.f32 %v1159, %v1230
    %v1292 = vadd.f32 %v1160, %v1231
    %v1293 = vadd.f32 %v1161, %v1232
    %v1294 = vadd.f32 %v1162, %v1233
    %v1295 = vadd.f32 %v1163, %v1234
    %v1296 = vadd.f32 %v1164, %v1235
    %v1297 = vadd.f32 %v1165, %v1236
    %v1298 = vadd.f32 %v1166, %v1237
    %v1299 = vadd.f32 %v1167, %v1238
    %v1300 = vadd.f32 %v1168, %v1239
    %v1301 = vadd.f32 %v1169, %v1240
    %v1302 = vadd.f32 %v1170, %v1241
    %v1303 = vadd.f32 %v1171, %v1242
    %v1304 = vadd.f32 %v1172, %v1243
    %v1305 = vadd.f32 %v1173, %v1244
    %v1306 = vadd.f32 %v1174, %v1245
    %v1307 = vadd.f32 %v1175, %v1246
    %v1308 = vadd.f32 %v1176, %v1247
    %v1309 = vadd.f32 %v1177, %v1248
    %v1310 = vadd.f32 %v1178, %v1248
    %v1311 = vadd.f32 %v1179, %v1248
    %v1312 = vadd.f32 %v1180, %v1248
    %v1313 = vld [vmem:[%s3 + $0x8] sm:$0x1]
    %v1314 = vlaneseq
    %v1315 = vshrl.u32 %v1314, 7
    %v1316 = vsub.s32 0, %v1315
    %v1317 = vrot.slane %v1313, %v1316
    %v1318 = vmul.f32 %v214, %v1317
    %v1319 = vmul.f32 %v291, %v1317
    %v1320 = vmul.f32 %v217, %v1317
    %v1321 = vmul.f32 %v292, %v1317
    %v1322 = vmul.f32 %v220, %v1317
    %v1323 = vmul.f32 %v293, %v1317
    %v1324 = vmul.f32 %v223, %v1317
    %v1325 = vmul.f32 %v294, %v1317
    %v1326 = vmul.f32 %v226, %v1317
    %v1327 = vmul.f32 %v295, %v1317
    %v1328 = vmul.f32 %v229, %v1317
    %v1329 = vmul.f32 %v296, %v1317
    %v1330 = vmul.f32 %v232, %v1317
    %v1331 = vmul.f32 %v297, %v1317
    %v1332 = vmul.f32 %v235, %v1317
    %v1333 = vmul.f32 %v298, %v1317
    %v1334 = vmul.f32 %v238, %v1317
    %v1335 = vmul.f32 %v299, %v1317
    %v1336 = vmul.f32 %v241, %v1317
    %v1337 = vmul.f32 %v300, %v1317
    %v1338 = vmul.f32 %v244, %v1317
    %v1339 = vmul.f32 %v301, %v1317
    %v1340 = vmul.f32 %v247, %v1317
    %v1341 = vmul.f32 %v302, %v1317
    %v1342 = vmul.f32 %v250, %v1317
    %v1343 = vmul.f32 %v303, %v1317
    %v1344 = vmul.f32 %v253, %v1317
    %v1345 = vmul.f32 %v304, %v1317
    %v1346 = vmul.f32 %v205, %v1317
    %v1347 = vmul.f32 %v288, %v1317
    %v1348 = vld [vmem:[%s3 + $0x11] sm:$0x1]
    %v1349 = vlaneseq
    %v1350 = vshrl.u32 %v1349, 7
    %v1351 = vsub.s32 0, %v1350
    %v1352 = vrot.slane %v1348, %v1351
    %v1353 = vmul.f32 %v214, %v1352
    %v1354 = vmul.f32 %v291, %v1352
    %v1355 = vmul.f32 %v217, %v1352
    %v1356 = vmul.f32 %v292, %v1352
    %v1357 = vmul.f32 %v220, %v1352
    %v1358 = vmul.f32 %v293, %v1352
    %v1359 = vmul.f32 %v223, %v1352
    %v1360 = vmul.f32 %v294, %v1352
    %v1361 = vmul.f32 %v226, %v1352
    %v1362 = vmul.f32 %v295, %v1352
    %v1363 = vmul.f32 %v229, %v1352
    %v1364 = vmul.f32 %v296, %v1352
    %v1365 = vmul.f32 %v232, %v1352
    %v1366 = vmul.f32 %v297, %v1352
    %v1367 = vmul.f32 %v235, %v1352
    %v1368 = vmul.f32 %v298, %v1352
    %v1369 = vmul.f32 %v238, %v1352
    %v1370 = vmul.f32 %v299, %v1352
    %v1371 = vmul.f32 %v241, %v1352
    %v1372 = vmul.f32 %v300, %v1352
    %v1373 = vmul.f32 %v244, %v1352
    %v1374 = vmul.f32 %v301, %v1352
    %v1375 = vmul.f32 %v247, %v1352
    %v1376 = vmul.f32 %v302, %v1352
    %v1377 = vmul.f32 %v250, %v1352
    %v1378 = vmul.f32 %v303, %v1352
    %v1379 = vmul.f32 %v253, %v1352
    %v1380 = vmul.f32 %v304, %v1352
    %v1381 = vmul.f32 %v205, %v1352
    %v1382 = vmul.f32 %v288, %v1352
    %v1383 = vadd.f32 %v1249, %v1318
    %v1384 = vadd.f32 %v1250, %v1319
    %v1385 = vadd.f32 %v1251, %v1320
    %v1386 = vadd.f32 %v1252, %v1321
    %v1387 = vadd.f32 %v1253, %v1322
    %v1388 = vadd.f32 %v1254, %v1323
    %v1389 = vadd.f32 %v1255, %v1324
    %v1390 = vadd.f32 %v1256, %v1325
    %v1391 = vadd.f32 %v1257, %v1326
    %v1392 = vadd.f32 %v1258, %v1327
    %v1393 = vadd.f32 %v1259, %v1328
    %v1394 = vadd.f32 %v1260, %v1329
    %v1395 = vadd.f32 %v1261, %v1330
    %v1396 = vadd.f32 %v1262, %v1331
    %v1397 = vadd.f32 %v1263, %v1332
    %v1398 = vadd.f32 %v1264, %v1333
    %v1399 = vadd.f32 %v1265, %v1334
    %v1400 = vadd.f32 %v1266, %v1335
    %v1401 = vadd.f32 %v1267, %v1336
    %v1402 = vadd.f32 %v1268, %v1337
    %v1403 = vadd.f32 %v1269, %v1338
    %v1404 = vadd.f32 %v1270, %v1339
    %v1405 = vadd.f32 %v1271, %v1340
    %v1406 = vadd.f32 %v1272, %v1341
    %v1407 = vadd.f32 %v1273, %v1342
    %v1408 = vadd.f32 %v1274, %v1343
    %v1409 = vadd.f32 %v1275, %v1344
    %v1410 = vadd.f32 %v1276, %v1345
    %v1411 = vadd.f32 %v1277, %v1346
    %v1412 = vadd.f32 %v1278, %v1347
    %v1413 = vadd.f32 %v1279, %v1346
    %v1414 = vadd.f32 %v1280, %v1347
    %v1415 = vadd.f32 %v1281, %v1353
    %v1416 = vadd.f32 %v1282, %v1354
    %v1417 = vadd.f32 %v1283, %v1355
    %v1418 = vadd.f32 %v1284, %v1356
    %v1419 = vadd.f32 %v1285, %v1357
    %v1420 = vadd.f32 %v1286, %v1358
    %v1421 = vadd.f32 %v1287, %v1359
    %v1422 = vadd.f32 %v1288, %v1360
    %v1423 = vadd.f32 %v1289, %v1361
    %v1424 = vadd.f32 %v1290, %v1362
    %v1425 = vadd.f32 %v1291, %v1363
    %v1426 = vadd.f32 %v1292, %v1364
    %v1427 = vadd.f32 %v1293, %v1365
    %v1428 = vadd.f32 %v1294, %v1366
    %v1429 = vadd.f32 %v1295, %v1367
    %v1430 = vadd.f32 %v1296, %v1368
    %v1431 = vadd.f32 %v1297, %v1369
    %v1432 = vadd.f32 %v1298, %v1370
    %v1433 = vadd.f32 %v1299, %v1371
    %v1434 = vadd.f32 %v1300, %v1372
    %v1435 = vadd.f32 %v1301, %v1373
    %v1436 = vadd.f32 %v1302, %v1374
    %v1437 = vadd.f32 %v1303, %v1375
    %v1438 = vadd.f32 %v1304, %v1376
    %v1439 = vadd.f32 %v1305, %v1377
    %v1440 = vadd.f32 %v1306, %v1378
    %v1441 = vadd.f32 %v1307, %v1379
    %v1442 = vadd.f32 %v1308, %v1380
    %v1443 = vadd.f32 %v1309, %v1381
    %v1444 = vadd.f32 %v1310, %v1382
    %v1445 = vadd.f32 %v1311, %v1381
    %v1446 = vadd.f32 %v1312, %v1382
    %v1447 = vld [vmem:[%s3 + $0x24] sm:$0x1]
    %v1448 = vlaneseq
    %v1449 = vshrl.u32 %v1448, 7
    %v1450 = vsub.s32 0, %v1449
    %v1451 = vrot.slane %v1447, %v1450
    %v1452 = vmul.f32 %v1383, %v1451
    %v1453 = vmul.f32 %v1384, %v1451
    %v1454 = vmul.f32 %v1385, %v1451
    %v1455 = vmul.f32 %v1386, %v1451
    %v1456 = vmul.f32 %v1387, %v1451
    %v1457 = vmul.f32 %v1388, %v1451
    %v1458 = vmul.f32 %v1389, %v1451
    %v1459 = vmul.f32 %v1390, %v1451
    %v1460 = vmul.f32 %v1391, %v1451
    %v1461 = vmul.f32 %v1392, %v1451
    %v1462 = vmul.f32 %v1393, %v1451
    %v1463 = vmul.f32 %v1394, %v1451
    %v1464 = vmul.f32 %v1395, %v1451
    %v1465 = vmul.f32 %v1396, %v1451
    %v1466 = vmul.f32 %v1397, %v1451
    %v1467 = vmul.f32 %v1398, %v1451
    %v1468 = vmul.f32 %v1399, %v1451
    %v1469 = vmul.f32 %v1400, %v1451
    %v1470 = vmul.f32 %v1401, %v1451
    %v1471 = vmul.f32 %v1402, %v1451
    %v1472 = vmul.f32 %v1403, %v1451
    %v1473 = vmul.f32 %v1404, %v1451
    %v1474 = vmul.f32 %v1405, %v1451
    %v1475 = vmul.f32 %v1406, %v1451
    %v1476 = vmul.f32 %v1407, %v1451
    %v1477 = vmul.f32 %v1408, %v1451
    %v1478 = vmul.f32 %v1409, %v1451
    %v1479 = vmul.f32 %v1410, %v1451
    %v1480 = vmul.f32 %v1411, %v1451
    %v1481 = vmul.f32 %v1412, %v1451
    %v1482 = vmul.f32 %v1413, %v1451
    %v1483 = vmul.f32 %v1414, %v1451
    %v1484 = vld [vmem:[%s3 + $0x25] sm:$0x1]
    %v1485 = vlaneseq
    %v1486 = vshrl.u32 %v1485, 7
    %v1487 = vsub.s32 0, %v1486
    %v1488 = vrot.slane %v1484, %v1487
    %v1489 = vadd.f32 %v1452, %v1488
    %v1490 = vadd.f32 %v1453, %v1488
    %v1491 = vadd.f32 %v1454, %v1488
    %v1492 = vadd.f32 %v1455, %v1488
    %v1493 = vadd.f32 %v1456, %v1488
    %v1494 = vadd.f32 %v1457, %v1488
    %v1495 = vadd.f32 %v1458, %v1488
    %v1496 = vadd.f32 %v1459, %v1488
    %v1497 = vadd.f32 %v1460, %v1488
    %v1498 = vadd.f32 %v1461, %v1488
    %v1499 = vadd.f32 %v1462, %v1488
    %v1500 = vadd.f32 %v1463, %v1488
    %v1501 = vadd.f32 %v1464, %v1488
    %v1502 = vadd.f32 %v1465, %v1488
    %v1503 = vadd.f32 %v1466, %v1488
    %v1504 = vadd.f32 %v1467, %v1488
    %v1505 = vadd.f32 %v1468, %v1488
    %v1506 = vadd.f32 %v1469, %v1488
    %v1507 = vadd.f32 %v1470, %v1488
    %v1508 = vadd.f32 %v1471, %v1488
    %v1509 = vadd.f32 %v1472, %v1488
    %v1510 = vadd.f32 %v1473, %v1488
    %v1511 = vadd.f32 %v1474, %v1488
    %v1512 = vadd.f32 %v1475, %v1488
    %v1513 = vadd.f32 %v1476, %v1488
    %v1514 = vadd.f32 %v1477, %v1488
    %v1515 = vadd.f32 %v1478, %v1488
    %v1516 = vadd.f32 %v1479, %v1488
    %v1517 = vadd.f32 %v1480, %v1488
    %v1518 = vadd.f32 %v1481, %v1488
    %v1519 = vadd.f32 %v1482, %v1488
    %v1520 = vadd.f32 %v1483, %v1488
    %v1521 = vmax.f32 %v1489, 0.0
    %v1522 = vmax.f32 %v1490, 0.0
    %v1523 = vmax.f32 %v1491, 0.0
    %v1524 = vmax.f32 %v1492, 0.0
    %v1525 = vmax.f32 %v1493, 0.0
    %v1526 = vmax.f32 %v1494, 0.0
    %v1527 = vmax.f32 %v1495, 0.0
    %v1528 = vmax.f32 %v1496, 0.0
    %v1529 = vmax.f32 %v1497, 0.0
    %v1530 = vmax.f32 %v1498, 0.0
    %v1531 = vmax.f32 %v1499, 0.0
    %v1532 = vmax.f32 %v1500, 0.0
    %v1533 = vmax.f32 %v1501, 0.0
    %v1534 = vmax.f32 %v1502, 0.0
    %v1535 = vmax.f32 %v1503, 0.0
    %v1536 = vmax.f32 %v1504, 0.0
    %v1537 = vmax.f32 %v1505, 0.0
    %v1538 = vmax.f32 %v1506, 0.0
    %v1539 = vmax.f32 %v1507, 0.0
    %v1540 = vmax.f32 %v1508, 0.0
    %v1541 = vmax.f32 %v1509, 0.0
    %v1542 = vmax.f32 %v1510, 0.0
    %v1543 = vmax.f32 %v1511, 0.0
    %v1544 = vmax.f32 %v1512, 0.0
    %v1545 = vmax.f32 %v1513, 0.0
    %v1546 = vmax.f32 %v1514, 0.0
    %v1547 = vmax.f32 %v1515, 0.0
    %v1548 = vmax.f32 %v1516, 0.0
    %v1549 = vmax.f32 %v1517, 0.0
    %v1550 = vmax.f32 %v1518, 0.0
    %v1551 = vmax.f32 %v1519, 0.0
    %v1552 = vmax.f32 %v1520, 0.0
    %v1553 = vld [vmem:[%s3 + $0x26] sm:$0x1]
    %v1554 = vlaneseq
    %v1555 = vshrl.u32 %v1554, 7
    %v1556 = vsub.s32 0, %v1555
    %v1557 = vrot.slane %v1553, %v1556
    %v1558 = vmul.f32 %v1415, %v1557
    %v1559 = vmul.f32 %v1416, %v1557
    %v1560 = vmul.f32 %v1417, %v1557
    %v1561 = vmul.f32 %v1418, %v1557
    %v1562 = vmul.f32 %v1419, %v1557
    %v1563 = vmul.f32 %v1420, %v1557
    %v1564 = vmul.f32 %v1421, %v1557
    %v1565 = vmul.f32 %v1422, %v1557
    %v1566 = vmul.f32 %v1423, %v1557
    %v1567 = vmul.f32 %v1424, %v1557
    %v1568 = vmul.f32 %v1425, %v1557
    %v1569 = vmul.f32 %v1426, %v1557
    %v1570 = vmul.f32 %v1427, %v1557
    %v1571 = vmul.f32 %v1428, %v1557
    %v1572 = vmul.f32 %v1429, %v1557
    %v1573 = vmul.f32 %v1430, %v1557
    %v1574 = vmul.f32 %v1431, %v1557
    %v1575 = vmul.f32 %v1432, %v1557
    %v1576 = vmul.f32 %v1433, %v1557
    %v1577 = vmul.f32 %v1434, %v1557
    %v1578 = vmul.f32 %v1435, %v1557
    %v1579 = vmul.f32 %v1436, %v1557
    %v1580 = vmul.f32 %v1437, %v1557
    %v1581 = vmul.f32 %v1438, %v1557
    %v1582 = vmul.f32 %v1439, %v1557
    %v1583 = vmul.f32 %v1440, %v1557
    %v1584 = vmul.f32 %v1441, %v1557
    %v1585 = vmul.f32 %v1442, %v1557
    %v1586 = vmul.f32 %v1443, %v1557
    %v1587 = vmul.f32 %v1444, %v1557
    %v1588 = vmul.f32 %v1445, %v1557
    %v1589 = vmul.f32 %v1446, %v1557
    %v1590 = vld [vmem:[%s3 + $0x27] sm:$0x1]
    %v1591 = vlaneseq
    %v1592 = vshrl.u32 %v1591, 7
    %v1593 = vsub.s32 0, %v1592
    %v1594 = vrot.slane %v1590, %v1593
    %v1595 = vadd.f32 %v1558, %v1594
    %v1596 = vadd.f32 %v1559, %v1594
    %v1597 = vadd.f32 %v1560, %v1594
    %v1598 = vadd.f32 %v1561, %v1594
    %v1599 = vadd.f32 %v1562, %v1594
    %v1600 = vadd.f32 %v1563, %v1594
    %v1601 = vadd.f32 %v1564, %v1594
    %v1602 = vadd.f32 %v1565, %v1594
    %v1603 = vadd.f32 %v1566, %v1594
    %v1604 = vadd.f32 %v1567, %v1594
    %v1605 = vadd.f32 %v1568, %v1594
    %v1606 = vadd.f32 %v1569, %v1594
    %v1607 = vadd.f32 %v1570, %v1594
    %v1608 = vadd.f32 %v1571, %v1594
    %v1609 = vadd.f32 %v1572, %v1594
    %v1610 = vadd.f32 %v1573, %v1594
    %v1611 = vadd.f32 %v1574, %v1594
    %v1612 = vadd.f32 %v1575, %v1594
    %v1613 = vadd.f32 %v1576, %v1594
    %v1614 = vadd.f32 %v1577, %v1594
    %v1615 = vadd.f32 %v1578, %v1594
    %v1616 = vadd.f32 %v1579, %v1594
    %v1617 = vadd.f32 %v1580, %v1594
    %v1618 = vadd.f32 %v1581, %v1594
    %v1619 = vadd.f32 %v1582, %v1594
    %v1620 = vadd.f32 %v1583, %v1594
    %v1621 = vadd.f32 %v1584, %v1594
    %v1622 = vadd.f32 %v1585, %v1594
    %v1623 = vadd.f32 %v1586, %v1594
    %v1624 = vadd.f32 %v1587, %v1594
    %v1625 = vadd.f32 %v1588, %v1594
    %v1626 = vadd.f32 %v1589, %v1594
    %v1627 = vmax.f32 %v1595, 0.0
    %v1628 = vmax.f32 %v1596, 0.0
    %v1629 = vmax.f32 %v1597, 0.0
    %v1630 = vmax.f32 %v1598, 0.0
    %v1631 = vmax.f32 %v1599, 0.0
    %v1632 = vmax.f32 %v1600, 0.0
    %v1633 = vmax.f32 %v1601, 0.0
    %v1634 = vmax.f32 %v1602, 0.0
    %v1635 = vmax.f32 %v1603, 0.0
    %v1636 = vmax.f32 %v1604, 0.0
    %v1637 = vmax.f32 %v1605, 0.0
    %v1638 = vmax.f32 %v1606, 0.0
    %v1639 = vmax.f32 %v1607, 0.0
    %v1640 = vmax.f32 %v1608, 0.0
    %v1641 = vmax.f32 %v1609, 0.0
    %v1642 = vmax.f32 %v1610, 0.0
    %v1643 = vmax.f32 %v1611, 0.0
    %v1644 = vmax.f32 %v1612, 0.0
    %v1645 = vmax.f32 %v1613, 0.0
    %v1646 = vmax.f32 %v1614, 0.0
    %v1647 = vmax.f32 %v1615, 0.0
    %v1648 = vmax.f32 %v1616, 0.0
    %v1649 = vmax.f32 %v1617, 0.0
    %v1650 = vmax.f32 %v1618, 0.0
    %v1651 = vmax.f32 %v1619, 0.0
    %v1652 = vmax.f32 %v1620, 0.0
    %v1653 = vmax.f32 %v1621, 0.0
    %v1654 = vmax.f32 %v1622, 0.0
    %v1655 = vmax.f32 %v1623, 0.0
    %v1656 = vmax.f32 %v1624, 0.0
    %v1657 = vmax.f32 %v1625, 0.0
    %v1658 = vmax.f32 %v1626, 0.0
    %vm1691 = vcmask 1040384
    %v1692 = vrot.slane %v1627, 7
    %v1693 = vrot.slane %v1628, 7
    %v1694 = vsel %vm1691, %v1692, %v1693
    %v1695 = vrot.slane %v1629, 7
    %v1696 = vrot.slane %v1630, 7
    %v1697 = vsel %vm1691, %v1695, %v1696
    %v1698 = vrot.slane %v1631, 7
    %v1699 = vrot.slane %v1632, 7
    %v1700 = vsel %vm1691, %v1698, %v1699
    %v1701 = vrot.slane %v1633, 7
    %v1702 = vrot.slane %v1634, 7
    %v1703 = vsel %vm1691, %v1701, %v1702
    %v1704 = vrot.slane %v1635, 7
    %v1705 = vrot.slane %v1636, 7
    %v1706 = vsel %vm1691, %v1704, %v1705
    %v1707 = vrot.slane %v1637, 7
    %v1708 = vrot.slane %v1638, 7
    %v1709 = vsel %vm1691, %v1707, %v1708
    %v1710 = vrot.slane %v1639, 7
    %v1711 = vrot.slane %v1640, 7
    %v1712 = vsel %vm1691, %v1710, %v1711
    %v1713 = vrot.slane %v1641, 7
    %v1714 = vrot.slane %v1642, 7
    %v1715 = vsel %vm1691, %v1713, %v1714
    %v1716 = vrot.slane %v1643, 7
    %v1717 = vrot.slane %v1644, 7
    %v1718 = vsel %vm1691, %v1716, %v1717
    %v1719 = vrot.slane %v1645, 7
    %v1720 = vrot.slane %v1646, 7
    %v1721 = vsel %vm1691, %v1719, %v1720
    %v1722 = vrot.slane %v1647, 7
    %v1723 = vrot.slane %v1648, 7
    %v1724 = vsel %vm1691, %v1722, %v1723
    %v1725 = vrot.slane %v1649, 7
    %v1726 = vrot.slane %v1650, 7
    %v1727 = vsel %vm1691, %v1725, %v1726
    %v1728 = vrot.slane %v1651, 7
    %v1729 = vrot.slane %v1652, 7
    %v1730 = vsel %vm1691, %v1728, %v1729
    %v1731 = vrot.slane %v1653, 7
    %v1732 = vrot.slane %v1654, 7
    %v1733 = vsel %vm1691, %v1731, %v1732
    %v1734 = vrot.slane %v1655, 7
    %v1735 = vrot.slane %v1656, 7
    %v1736 = vsel %vm1691, %v1734, %v1735
    %v1737 = vrot.slane %v1657, 7
    %v1738 = vrot.slane %v1658, 7
    %v1739 = vsel %vm1691, %v1737, %v1738
    %v1772 = vsel %vm1691, 0.0, %v1692
    %v1773 = vsel %vm1691, 0.0, %v1695
    %v1774 = vsel %vm1691, 0.0, %v1698
    %v1775 = vsel %vm1691, 0.0, %v1701
    %v1776 = vsel %vm1691, 0.0, %v1704
    %v1777 = vsel %vm1691, 0.0, %v1707
    %v1778 = vsel %vm1691, 0.0, %v1710
    %v1779 = vsel %vm1691, 0.0, %v1713
    %v1780 = vsel %vm1691, 0.0, %v1716
    %v1781 = vsel %vm1691, 0.0, %v1719
    %v1782 = vsel %vm1691, 0.0, %v1722
    %v1783 = vsel %vm1691, 0.0, %v1725
    %v1784 = vsel %vm1691, 0.0, %v1728
    %v1785 = vsel %vm1691, 0.0, %v1731
    %v1786 = vsel %vm1691, 0.0, %v1734
    %v1787 = vsel %vm1691, 0.0, %v1737
    %vm1788 = vcmask 1046528
    %v1789 = vrot.slane %v1627, 1
    %v1790 = vrot.slane %v1628, 1
    %v1791 = vsel %vm1788, %v1789, %v1790
    %v1792 = vrot.slane %v1629, 1
    %v1793 = vrot.slane %v1630, 1
    %v1794 = vsel %vm1788, %v1792, %v1793
    %v1795 = vrot.slane %v1631, 1
    %v1796 = vrot.slane %v1632, 1
    %v1797 = vsel %vm1788, %v1795, %v1796
    %v1798 = vrot.slane %v1633, 1
    %v1799 = vrot.slane %v1634, 1
    %v1800 = vsel %vm1788, %v1798, %v1799
    %v1801 = vrot.slane %v1635, 1
    %v1802 = vrot.slane %v1636, 1
    %v1803 = vsel %vm1788, %v1801, %v1802
    %v1804 = vrot.slane %v1637, 1
    %v1805 = vrot.slane %v1638, 1
    %v1806 = vsel %vm1788, %v1804, %v1805
    %v1807 = vrot.slane %v1639, 1
    %v1808 = vrot.slane %v1640, 1
    %v1809 = vsel %vm1788, %v1807, %v1808
    %v1810 = vrot.slane %v1641, 1
    %v1811 = vrot.slane %v1642, 1
    %v1812 = vsel %vm1788, %v1810, %v1811
    %v1813 = vrot.slane %v1643, 1
    %v1814 = vrot.slane %v1644, 1
    %v1815 = vsel %vm1788, %v1813, %v1814
    %v1816 = vrot.slane %v1645, 1
    %v1817 = vrot.slane %v1646, 1
    %v1818 = vsel %vm1788, %v1816, %v1817
    %v1819 = vrot.slane %v1647, 1
    %v1820 = vrot.slane %v1648, 1
    %v1821 = vsel %vm1788, %v1819, %v1820
    %v1822 = vrot.slane %v1649, 1
    %v1823 = vrot.slane %v1650, 1
    %v1824 = vsel %vm1788, %v1822, %v1823
    %v1825 = vrot.slane %v1651, 1
    %v1826 = vrot.slane %v1652, 1
    %v1827 = vsel %vm1788, %v1825, %v1826
    %v1828 = vrot.slane %v1653, 1
    %v1829 = vrot.slane %v1654, 1
    %v1830 = vsel %vm1788, %v1828, %v1829
    %v1831 = vrot.slane %v1655, 1
    %v1832 = vrot.slane %v1656, 1
    %v1833 = vsel %vm1788, %v1831, %v1832
    %v1834 = vrot.slane %v1657, 1
    %v1835 = vrot.slane %v1658, 1
    %v1836 = vsel %vm1788, %v1834, %v1835
    %v1869 = vsel %vm1788, %v1790, 0.0
    %v1870 = vsel %vm1788, %v1793, 0.0
    %v1871 = vsel %vm1788, %v1796, 0.0
    %v1872 = vsel %vm1788, %v1799, 0.0
    %v1873 = vsel %vm1788, %v1802, 0.0
    %v1874 = vsel %vm1788, %v1805, 0.0
    %v1875 = vsel %vm1788, %v1808, 0.0
    %v1876 = vsel %vm1788, %v1811, 0.0
    %v1877 = vsel %vm1788, %v1814, 0.0
    %v1878 = vsel %vm1788, %v1817, 0.0
    %v1879 = vsel %vm1788, %v1820, 0.0
    %v1880 = vsel %vm1788, %v1823, 0.0
    %v1881 = vsel %vm1788, %v1826, 0.0
    %v1882 = vsel %vm1788, %v1829, 0.0
    %v1883 = vsel %vm1788, %v1832, 0.0
    %v1884 = vsel %vm1788, %v1835, 0.0
    %v1885 = vadd.f32 %v1772, %v1627
    %v1886 = vadd.f32 %v1694, %v1628
    %v1887 = vadd.f32 %v1773, %v1629
    %v1888 = vadd.f32 %v1697, %v1630
    %v1889 = vadd.f32 %v1774, %v1631
    %v1890 = vadd.f32 %v1700, %v1632
    %v1891 = vadd.f32 %v1775, %v1633
    %v1892 = vadd.f32 %v1703, %v1634
    %v1893 = vadd.f32 %v1776, %v1635
    %v1894 = vadd.f32 %v1706, %v1636
    %v1895 = vadd.f32 %v1777, %v1637
    %v1896 = vadd.f32 %v1709, %v1638
    %v1897 = vadd.f32 %v1778, %v1639
    %v1898 = vadd.f32 %v1712, %v1640
    %v1899 = vadd.f32 %v1779, %v1641
    %v1900 = vadd.f32 %v1715, %v1642
    %v1901 = vadd.f32 %v1780, %v1643
    %v1902 = vadd.f32 %v1718, %v1644
    %v1903 = vadd.f32 %v1781, %v1645
    %v1904 = vadd.f32 %v1721, %v1646
    %v1905 = vadd.f32 %v1782, %v1647
    %v1906 = vadd.f32 %v1724, %v1648
    %v1907 = vadd.f32 %v1783, %v1649
    %v1908 = vadd.f32 %v1727, %v1650
    %v1909 = vadd.f32 %v1784, %v1651
    %v1910 = vadd.f32 %v1730, %v1652
    %v1911 = vadd.f32 %v1785, %v1653
    %v1912 = vadd.f32 %v1733, %v1654
    %v1913 = vadd.f32 %v1786, %v1655
    %v1914 = vadd.f32 %v1736, %v1656
    %v1915 = vadd.f32 %v1787, %v1657
    %v1916 = vadd.f32 %v1739, %v1658
    %v1917 = vadd.f32 %v1885, %v1791
    %v1918 = vadd.f32 %v1886, %v1869
    %v1919 = vadd.f32 %v1887, %v1794
    %v1920 = vadd.f32 %v1888, %v1870
    %v1921 = vadd.f32 %v1889, %v1797
    %v1922 = vadd.f32 %v1890, %v1871
    %v1923 = vadd.f32 %v1891, %v1800
    %v1924 = vadd.f32 %v1892, %v1872
    %v1925 = vadd.f32 %v1893, %v1803
    %v1926 = vadd.f32 %v1894, %v1873
    %v1927 = vadd.f32 %v1895, %v1806
    %v1928 = vadd.f32 %v1896, %v1874
    %v1929 = vadd.f32 %v1897, %v1809
    %v1930 = vadd.f32 %v1898, %v1875
    %v1931 = vadd.f32 %v1899, %v1812
    %v1932 = vadd.f32 %v1900, %v1876
    %v1933 = vadd.f32 %v1901, %v1815
    %v1934 = vadd.f32 %v1902, %v1877
    %v1935 = vadd.f32 %v1903, %v1818
    %v1936 = vadd.f32 %v1904, %v1878
    %v1937 = vadd.f32 %v1905, %v1821
    %v1938 = vadd.f32 %v1906, %v1879
    %v1939 = vadd.f32 %v1907, %v1824
    %v1940 = vadd.f32 %v1908, %v1880
    %v1941 = vadd.f32 %v1909, %v1827
    %v1942 = vadd.f32 %v1910, %v1881
    %v1943 = vadd.f32 %v1911, %v1830
    %v1944 = vadd.f32 %v1912, %v1882
    %v1945 = vadd.f32 %v1913, %v1833
    %v1946 = vadd.f32 %v1914, %v1883
    %v1947 = vadd.f32 %v1915, %v1836
    %v1948 = vadd.f32 %v1916, %v1884
    %v1949 = vadd.f32 %v1917, 0.0
    %v1950 = vadd.f32 %v1918, 0.0
    %v1951 = vadd.f32 %v1917, %v1919
    %v1952 = vadd.f32 %v1918, %v1920
    %v1953 = vadd.f32 %v1919, %v1921
    %v1954 = vadd.f32 %v1920, %v1922
    %v1955 = vadd.f32 %v1921, %v1923
    %v1956 = vadd.f32 %v1922, %v1924
    %v1957 = vadd.f32 %v1923, %v1925
    %v1958 = vadd.f32 %v1924, %v1926
    %v1959 = vadd.f32 %v1925, %v1927
    %v1960 = vadd.f32 %v1926, %v1928
    %v1961 = vadd.f32 %v1927, %v1929
    %v1962 = vadd.f32 %v1928, %v1930
    %v1963 = vadd.f32 %v1929, %v1931
    %v1964 = vadd.f32 %v1930, %v1932
    %v1965 = vadd.f32 %v1931, %v1933
    %v1966 = vadd.f32 %v1932, %v1934
    %v1967 = vadd.f32 %v1933, %v1935
    %v1968 = vadd.f32 %v1934, %v1936
    %v1969 = vadd.f32 %v1935, %v1937
    %v1970 = vadd.f32 %v1936, %v1938
    %v1971 = vadd.f32 %v1937, %v1939
    %v1972 = vadd.f32 %v1938, %v1940
    %v1973 = vadd.f32 %v1939, %v1941
    %v1974 = vadd.f32 %v1940, %v1942
    %v1975 = vadd.f32 %v1941, %v1943
    %v1976 = vadd.f32 %v1942, %v1944
    %v1977 = vadd.f32 %v1943, %v1945
    %v1978 = vadd.f32 %v1944, %v1946
    %v1979 = vadd.f32 %v1945, %v1947
    %v1980 = vadd.f32 %v1946, %v1948
    %v1981 = vadd.f32 %v1949, %v1919
    %v1982 = vadd.f32 %v1950, %v1920
    %v1983 = vadd.f32 %v1951, %v1921
    %v1984 = vadd.f32 %v1952, %v1922
    %v1985 = vadd.f32 %v1953, %v1923
    %v1986 = vadd.f32 %v1954, %v1924
    %v1987 = vadd.f32 %v1955, %v1925
    %v1988 = vadd.f32 %v1956, %v1926
    %v1989 = vadd.f32 %v1957, %v1927
    %v1990 = vadd.f32 %v1958, %v1928
    %v1991 = vadd.f32 %v1959, %v1929
    %v1992 = vadd.f32 %v1960, %v1930
    %v1993 = vadd.f32 %v1961, %v1931
    %v1994 = vadd.f32 %v1962, %v1932
    %v1995 = vadd.f32 %v1963, %v1933
    %v1996 = vadd.f32 %v1964, %v1934
    %v1997 = vadd.f32 %v1965, %v1935
    %v1998 = vadd.f32 %v1966, %v1936
    %v1999 = vadd.f32 %v1967, %v1937
    %v2000 = vadd.f32 %v1968, %v1938
    %v2001 = vadd.f32 %v1969, %v1939
    %v2002 = vadd.f32 %v1970, %v1940
    %v2003 = vadd.f32 %v1971, %v1941
    %v2004 = vadd.f32 %v1972, %v1942
    %v2005 = vadd.f32 %v1973, %v1943
    %v2006 = vadd.f32 %v1974, %v1944
    %v2007 = vadd.f32 %v1975, %v1945
    %v2008 = vadd.f32 %v1976, %v1946
    %v2009 = vadd.f32 %v1977, %v1947
    %v2010 = vadd.f32 %v1978, %v1948
    %v2011 = vadd.f32 %v1979, 0.0
    %v2012 = vadd.f32 %v1980, 0.0
    %v2013 = vmul.f32 %v1981, 0.11111111
    %v2014 = vmul.f32 %v1982, 0.11111111
    %v2015 = vmul.f32 %v1983, 0.11111111
    %v2016 = vmul.f32 %v1984, 0.11111111
    %v2017 = vmul.f32 %v1985, 0.11111111
    %v2018 = vmul.f32 %v1986, 0.11111111
    %v2019 = vmul.f32 %v1987, 0.11111111
    %v2020 = vmul.f32 %v1988, 0.11111111
    %v2021 = vmul.f32 %v1989, 0.11111111
    %v2022 = vmul.f32 %v1990, 0.11111111
    %v2023 = vmul.f32 %v1991, 0.11111111
    %v2024 = vmul.f32 %v1992, 0.11111111
    %v2025 = vmul.f32 %v1993, 0.11111111
    %v2026 = vmul.f32 %v1994, 0.11111111
    %v2027 = vmul.f32 %v1995, 0.11111111
    %v2028 = vmul.f32 %v1996, 0.11111111
    %v2029 = vmul.f32 %v1997, 0.11111111
    %v2030 = vmul.f32 %v1998, 0.11111111
    %v2031 = vmul.f32 %v1999, 0.11111111
    %v2032 = vmul.f32 %v2000, 0.11111111
    %v2033 = vmul.f32 %v2001, 0.11111111
    %v2034 = vmul.f32 %v2002, 0.11111111
    %v2035 = vmul.f32 %v2003, 0.11111111
    %v2036 = vmul.f32 %v2004, 0.11111111
    %v2037 = vmul.f32 %v2005, 0.11111111
    %v2038 = vmul.f32 %v2006, 0.11111111
    %v2039 = vmul.f32 %v2007, 0.11111111
    %v2040 = vmul.f32 %v2008, 0.11111111
    %v2041 = vmul.f32 %v2009, 0.11111111
    %v2042 = vmul.f32 %v2010, 0.11111111
    %v2043 = vmul.f32 %v2011, 0.11111111
    %v2044 = vmul.f32 %v2012, 0.11111111
    %v2045 = vld [vmem:[%s2] sm:$0xff]
    %v2046 = vld [vmem:[%s2 + $0x8] sm:$0xff]
    %v2047 = vld [vmem:[%s2 + $0x10] sm:$0xff]
    %v2048 = vld [vmem:[%s2 + $0x18] sm:$0xff]
    %v2049 = vld [vmem:[%s2 + $0x20] sm:$0xff]
    %v2050 = vld [vmem:[%s2 + $0x28] sm:$0xff]
    %v2051 = vld [vmem:[%s2 + $0x30] sm:$0xff]
    %v2052 = vld [vmem:[%s2 + $0x38] sm:$0xff]
    %v2053 = vld [vmem:[%s2 + $0x40] sm:$0xff]
    %v2054 = vld [vmem:[%s2 + $0x48] sm:$0xff]
    %v2055 = vld [vmem:[%s2 + $0x50] sm:$0xff]
    %v2056 = vld [vmem:[%s2 + $0x58] sm:$0xff]
    %v2057 = vld [vmem:[%s2 + $0x60] sm:$0xff]
    %v2058 = vld [vmem:[%s2 + $0x68] sm:$0xff]
    %v2059 = vld [vmem:[%s2 + $0x70] sm:$0xff]
    %v2060 = vld [vmem:[%s2 + $0x78] sm:$0xff]
    %v2061 = vld [vmem:[%s2 + $0x80] sm:$0xff]
    %v2062 = vld [vmem:[%s2 + $0x88] sm:$0xff]
    %v2063 = vld [vmem:[%s2 + $0x90] sm:$0xff]
    %v2064 = vld [vmem:[%s2 + $0x98] sm:$0xff]
    %v2065 = vld [vmem:[%s2 + $0xa0] sm:$0xff]
    %v2066 = vld [vmem:[%s2 + $0xa8] sm:$0xff]
    %v2067 = vld [vmem:[%s2 + $0xb0] sm:$0xff]
    %v2068 = vld [vmem:[%s2 + $0xb8] sm:$0xff]
    %v2069 = vld [vmem:[%s2 + $0xc0] sm:$0xff]
    %v2070 = vld [vmem:[%s2 + $0xc8] sm:$0xff]
    %v2071 = vld [vmem:[%s2 + $0xd0] sm:$0xff]
    %v2072 = vld [vmem:[%s2 + $0xd8] sm:$0xff]
    %v2073 = vld [vmem:[%s2 + $0xe0] sm:$0xff]
    %v2074 = vld [vmem:[%s2 + $0xe8] sm:$0xff]
    %v2075 = vld [vmem:[%s2 + $0xf0] sm:$0xff]
    %v2076 = vld [vmem:[%s2 + $0xf8] sm:$0xff]
    %v2077 = vld [vmem:[%s1] sm:$0xff]
    %v2078 = vld [vmem:[%s1 + $0x8] sm:$0xff]
    %v2079 = vld [vmem:[%s1 + $0x10] sm:$0xff]
    %v2080 = vld [vmem:[%s1 + $0x18] sm:$0xff]
    %v2081 = vld [vmem:[%s1 + $0x20] sm:$0xff]
    %v2082 = vld [vmem:[%s1 + $0x28] sm:$0xff]
    %v2083 = vld [vmem:[%s1 + $0x30] sm:$0xff]
    %v2084 = vld [vmem:[%s1 + $0x38] sm:$0xff]
    %vm2085 = vcmask 523264
    %v2087 = vsel %vm2085, %v2045, 0
    %v2090 = vsel %vm2085, %v2046, 0
    %v2093 = vsel %vm2085, %v2047, 0
    %v2096 = vsel %vm2085, %v2048, 0
    %v2099 = vsel %vm2085, %v2049, 0
    %v2102 = vsel %vm2085, %v2050, 0
    %v2105 = vsel %vm2085, %v2051, 0
    %v2108 = vsel %vm2085, %v2052, 0
    %v2111 = vsel %vm2085, %v2053, 0
    %v2114 = vsel %vm2085, %v2054, 0
    %v2117 = vsel %vm2085, %v2055, 0
    %v2120 = vsel %vm2085, %v2056, 0
    %v2123 = vsel %vm2085, %v2057, 0
    %v2126 = vsel %vm2085, %v2058, 0
    %v2129 = vsel %vm2085, %v2059, 0
    %v2132 = vsel %vm2085, %v2060, 0
    %v2135 = vsel %vm2085, %v2061, 0
    %v2138 = vsel %vm2085, %v2062, 0
    %v2141 = vsel %vm2085, %v2063, 0
    %v2144 = vsel %vm2085, %v2064, 0
    %v2147 = vsel %vm2085, %v2065, 0
    %v2150 = vsel %vm2085, %v2066, 0
    %v2153 = vsel %vm2085, %v2067, 0
    %v2156 = vsel %vm2085, %v2068, 0
    %v2159 = vsel %vm2085, %v2069, 0
    %v2162 = vsel %vm2085, %v2070, 0
    %v2165 = vsel %vm2085, %v2071, 0
    %v2168 = vsel %vm2085, %v2072, 0
    %v2171 = vsel %vm2085, %v2073, 0
    %v2174 = vsel %vm2085, %v2074, 0
    %v2177 = vsel %vm2085, %v2075, 0
    %v2180 = vsel %vm2085, %v2076, 0
    %2182 = vmatprep.subr.mxu0 0.0
    %2183 = vmatpush1.msra.mxu0 0.0
    %2184 = vmatprep.subr.mxu0 0.0
    %2185 = vmatpush1.msra.mxu0 0.0
    %2186 = vmatprep.subr.mxu0 0.0
    %2187 = vmatpush1.msra.mxu0 0.0
    %2188 = vmatprep.subr.mxu0 0.0
    %2189 = vmatpush1.msra.mxu0 0.0
    %2190 = vmatprep.subr.mxu0 0.0
    %2191 = vmatpush1.msra.mxu0 0.0
    %2192 = vmatprep.subr.mxu0 0.0
    %2193 = vmatpush1.msra.mxu0 0.0
    %2194 = vmatprep.subr.mxu0 0.0
    %2195 = vmatpush1.msra.mxu0 0.0
    %2196 = vmatprep.subr.mxu0 0.0
    %2197 = vmatpush1.msra.mxu0 0.0
    %2198 = vmatprep.subr.mxu0 0.0
    %2199 = vmatpush1.msra.mxu0 %v2084
    %2200 = vmatprep.subr.mxu0 0.0
    %2201 = vmatpush1.msra.mxu0 %v2083
    %2202 = vmatprep.subr.mxu0 0.0
    %2203 = vmatpush1.msra.mxu0 %v2082
    %2204 = vmatprep.subr.mxu0 0.0
    %2205 = vmatpush1.msra.mxu0 %v2081
    %2206 = vmatprep.subr.mxu0 0.0
    %2207 = vmatpush1.msra.mxu0 %v2080
    %2208 = vmatprep.subr.mxu0 0.0
    %2209 = vmatpush1.msra.mxu0 %v2079
    %2210 = vmatprep.subr.mxu0 0.0
    %2211 = vmatpush1.msra.mxu0 %v2078
    %2212 = vmatprep.subr.mxu0 0.0
    %2213 = vmatpush1.msra.mxu0 %v2077
    %2214 = vmatprep.subr.mxu0 0.0
    %2215 = vmatpush2.msra.mxu0 0.0
    %2216 = vmatprep.subr.mxu0 0.0
    %2217 = vmatpush2.msra.mxu0 0.0
    %2218 = vmatprep.subr.mxu0 0.0
    %2219 = vmatpush2.msra.mxu0 0.0
    %2220 = vmatprep.subr.mxu0 0.0
    %2221 = vmatpush2.msra.mxu0 0.0
    %2222 = vmatprep.subr.mxu0 0.0
    %2223 = vmatpush2.msra.mxu0 0.0
    %2224 = vmatprep.subr.mxu0 0.0
    %2225 = vmatpush2.msra.mxu0 0.0
    %2226 = vmatprep.subr.mxu0 0.0
    %2227 = vmatpush2.msra.mxu0 0.0
    %2228 = vmatprep.subr.mxu0 0.0
    %2229 = vmatpush2.msra.mxu0 0.0
    %2230 = vmatprep.subr.mxu0 0.0
    %2231 = vmatpush2.msra.mxu0 0.0
    %2232 = vmatprep.subr.mxu0 0.0
    %2233 = vmatpush2.msra.mxu0 0.0
    %2234 = vmatprep.subr.mxu0 0.0
    %2235 = vmatpush2.msra.mxu0 0.0
    %2236 = vmatprep.subr.mxu0 0.0
    %2237 = vmatpush2.msra.mxu0 0.0
    %2238 = vmatprep.subr.mxu0 0.0
    %2239 = vmatpush2.msra.mxu0 0.0
    %2240 = vmatprep.subr.mxu0 0.0
    %2241 = vmatpush2.msra.mxu0 0.0
    %2242 = vmatprep.subr.mxu0 0.0
    %2243 = vmatpush2.msra.mxu0 0.0
    %2244 = vmatprep.subr.mxu0 0.0
    %2245 = vmatpush2.msra.mxu0 0.0
    %2246 = vmatprep.mubr.f32.mxu0 0.0
    %2247 = vmatmul.mubr.f32.gmra.mxu0 %v2087
    %v2248 = vpop.f32.mrf.mxu0
    %v2249 = vadd.f32 0.0, %v2248
    %v2250 = vpop.f32.mrf.mxu0
    %2251 = vmatprep.mubr.f32.mxu0 0.0
    %2252 = vmatmul.mubr.f32.gmra.mxu0 %v2090
    %v2253 = vpop.f32.mrf.mxu0
    %v2254 = vadd.f32 0.0, %v2253
    %v2255 = vpop.f32.mrf.mxu0
    %2256 = vmatprep.mubr.f32.mxu0 0.0
    %2257 = vmatmul.mubr.f32.gmra.mxu0 %v2093
    %v2258 = vpop.f32.mrf.mxu0
    %v2259 = vadd.f32 0.0, %v2258
    %v2260 = vpop.f32.mrf.mxu0
    %2261 = vmatprep.mubr.f32.mxu0 0.0
    %2262 = vmatmul.mubr.f32.gmra.mxu0 %v2096
    %v2263 = vpop.f32.mrf.mxu0
    %v2264 = vadd.f32 0.0, %v2263
    %v2265 = vpop.f32.mrf.mxu0
    %2266 = vmatprep.mubr.f32.mxu0 0.0
    %2267 = vmatmul.mubr.f32.gmra.mxu0 %v2099
    %v2268 = vpop.f32.mrf.mxu0
    %v2269 = vadd.f32 0.0, %v2268
    %v2270 = vpop.f32.mrf.mxu0
    %2271 = vmatprep.mubr.f32.mxu0 0.0
    %2272 = vmatmul.mubr.f32.gmra.mxu0 %v2102
    %v2273 = vpop.f32.mrf.mxu0
    %v2274 = vadd.f32 0.0, %v2273
    %v2275 = vpop.f32.mrf.mxu0
    %2276 = vmatprep.mubr.f32.mxu0 0.0
    %2277 = vmatmul.mubr.f32.gmra.mxu0 %v2105
    %v2278 = vpop.f32.mrf.mxu0
    %v2279 = vadd.f32 0.0, %v2278
    %v2280 = vpop.f32.mrf.mxu0
    %2281 = vmatprep.mubr.f32.mxu0 0.0
    %2282 = vmatmul.mubr.f32.gmra.mxu0 %v2108
    %v2283 = vpop.f32.mrf.mxu0
    %v2284 = vadd.f32 0.0, %v2283
    %v2285 = vpop.f32.mrf.mxu0
    %2286 = vmatprep.mubr.f32.mxu0 0.0
    %2287 = vmatmul.mubr.f32.gmra.mxu0 %v2111
    %v2288 = vpop.f32.mrf.mxu0
    %v2289 = vadd.f32 0.0, %v2288
    %v2290 = vpop.f32.mrf.mxu0
    %2291 = vmatprep.mubr.f32.mxu0 0.0
    %2292 = vmatmul.mubr.f32.gmra.mxu0 %v2114
    %v2293 = vpop.f32.mrf.mxu0
    %v2294 = vadd.f32 0.0, %v2293
    %v2295 = vpop.f32.mrf.mxu0
    %2296 = vmatprep.mubr.f32.mxu0 0.0
    %2297 = vmatmul.mubr.f32.gmra.mxu0 %v2117
    %v2298 = vpop.f32.mrf.mxu0
    %v2299 = vadd.f32 0.0, %v2298
    %v2300 = vpop.f32.mrf.mxu0
    %2301 = vmatprep.mubr.f32.mxu0 0.0
    %2302 = vmatmul.mubr.f32.gmra.mxu0 %v2120
    %v2303 = vpop.f32.mrf.mxu0
    %v2304 = vadd.f32 0.0, %v2303
    %v2305 = vpop.f32.mrf.mxu0
    %2306 = vmatprep.mubr.f32.mxu0 0.0
    %2307 = vmatmul.mubr.f32.gmra.mxu0 %v2123
    %v2308 = vpop.f32.mrf.mxu0
    %v2309 = vadd.f32 0.0, %v2308
    %v2310 = vpop.f32.mrf.mxu0
    %2311 = vmatprep.mubr.f32.mxu0 0.0
    %2312 = vmatmul.mubr.f32.gmra.mxu0 %v2126
    %v2313 = vpop.f32.mrf.mxu0
    %v2314 = vadd.f32 0.0, %v2313
    %v2315 = vpop.f32.mrf.mxu0
    %2316 = vmatprep.mubr.f32.mxu0 0.0
    %2317 = vmatmul.mubr.f32.gmra.mxu0 %v2129
    %v2318 = vpop.f32.mrf.mxu0
    %v2319 = vadd.f32 0.0, %v2318
    %v2320 = vpop.f32.mrf.mxu0
    %2321 = vmatprep.mubr.f32.mxu0 0.0
    %2322 = vmatmul.mubr.f32.gmra.mxu0 %v2132
    %v2323 = vpop.f32.mrf.mxu0
    %v2324 = vadd.f32 0.0, %v2323
    %v2325 = vpop.f32.mrf.mxu0
    %2326 = vmatprep.mubr.f32.mxu0 0.0
    %2327 = vmatmul.mubr.f32.gmra.mxu0 %v2135
    %v2328 = vpop.f32.mrf.mxu0
    %v2329 = vadd.f32 0.0, %v2328
    %v2330 = vpop.f32.mrf.mxu0
    %2331 = vmatprep.mubr.f32.mxu0 0.0
    %2332 = vmatmul.mubr.f32.gmra.mxu0 %v2138
    %v2333 = vpop.f32.mrf.mxu0
    %v2334 = vadd.f32 0.0, %v2333
    %v2335 = vpop.f32.mrf.mxu0
    %2336 = vmatprep.mubr.f32.mxu0 0.0
    %2337 = vmatmul.mubr.f32.gmra.mxu0 %v2141
    %v2338 = vpop.f32.mrf.mxu0
    %v2339 = vadd.f32 0.0, %v2338
    %v2340 = vpop.f32.mrf.mxu0
    %2341 = vmatprep.mubr.f32.mxu0 0.0
    %2342 = vmatmul.mubr.f32.gmra.mxu0 %v2144
    %v2343 = vpop.f32.mrf.mxu0
    %v2344 = vadd.f32 0.0, %v2343
    %v2345 = vpop.f32.mrf.mxu0
    %2346 = vmatprep.mubr.f32.mxu0 0.0
    %2347 = vmatmul.mubr.f32.gmra.mxu0 %v2147
    %v2348 = vpop.f32.mrf.mxu0
    %v2349 = vadd.f32 0.0, %v2348
    %v2350 = vpop.f32.mrf.mxu0
    %2351 = vmatprep.mubr.f32.mxu0 0.0
    %2352 = vmatmul.mubr.f32.gmra.mxu0 %v2150
    %v2353 = vpop.f32.mrf.mxu0
    %v2354 = vadd.f32 0.0, %v2353
    %v2355 = vpop.f32.mrf.mxu0
    %2356 = vmatprep.mubr.f32.mxu0 0.0
    %2357 = vmatmul.mubr.f32.gmra.mxu0 %v2153
    %v2358 = vpop.f32.mrf.mxu0
    %v2359 = vadd.f32 0.0, %v2358
    %v2360 = vpop.f32.mrf.mxu0
    %2361 = vmatprep.mubr.f32.mxu0 0.0
    %2362 = vmatmul.mubr.f32.gmra.mxu0 %v2156
    %v2363 = vpop.f32.mrf.mxu0
    %v2364 = vadd.f32 0.0, %v2363
    %v2365 = vpop.f32.mrf.mxu0
    %2366 = vmatprep.mubr.f32.mxu0 0.0
    %2367 = vmatmul.mubr.f32.gmra.mxu0 %v2159
    %v2368 = vpop.f32.mrf.mxu0
    %v2369 = vadd.f32 0.0, %v2368
    %v2370 = vpop.f32.mrf.mxu0
    %2371 = vmatprep.mubr.f32.mxu0 0.0
    %2372 = vmatmul.mubr.f32.gmra.mxu0 %v2162
    %v2373 = vpop.f32.mrf.mxu0
    %v2374 = vadd.f32 0.0, %v2373
    %v2375 = vpop.f32.mrf.mxu0
    %2376 = vmatprep.mubr.f32.mxu0 0.0
    %2377 = vmatmul.mubr.f32.gmra.mxu0 %v2165
    %v2378 = vpop.f32.mrf.mxu0
    %v2379 = vadd.f32 0.0, %v2378
    %v2380 = vpop.f32.mrf.mxu0
    %2381 = vmatprep.mubr.f32.mxu0 0.0
    %2382 = vmatmul.mubr.f32.gmra.mxu0 %v2168
    %v2383 = vpop.f32.mrf.mxu0
    %v2384 = vadd.f32 0.0, %v2383
    %v2385 = vpop.f32.mrf.mxu0
    %2386 = vmatprep.mubr.f32.mxu0 0.0
    %2387 = vmatmul.mubr.f32.gmra.mxu0 %v2171
    %v2388 = vpop.f32.mrf.mxu0
    %v2389 = vadd.f32 0.0, %v2388
    %v2390 = vpop.f32.mrf.mxu0
    %2391 = vmatprep.mubr.f32.mxu0 0.0
    %2392 = vmatmul.mubr.f32.gmra.mxu0 %v2174
    %v2393 = vpop.f32.mrf.mxu0
    %v2394 = vadd.f32 0.0, %v2393
    %v2395 = vpop.f32.mrf.mxu0
    %2396 = vmatprep.mubr.f32.mxu0 0.0
    %2397 = vmatmul.mubr.f32.gmra.mxu0 %v2177
    %v2398 = vpop.f32.mrf.mxu0
    %v2399 = vadd.f32 0.0, %v2398
    %v2400 = vpop.f32.mrf.mxu0
    %2401 = vmatprep.mubr.f32.mxu0 0.0
    %2402 = vmatmul.mubr.f32.gmra.mxu0 %v2180
    %v2403 = vpop.f32.mrf.mxu0
    %v2404 = vadd.f32 0.0, %v2403
    %v2405 = vpop.f32.mrf.mxu0
    %2406 = vdwg.mxu0
    %v2439 = vrot.slane 0.0, 7
    %v2440 = vsel %vm1691, %v2439, %v2439
    %v2441 = vrot.slane %v2249, 7
    %v2442 = vrot.slane %v2254, 7
    %v2443 = vsel %vm1691, %v2441, %v2442
    %v2444 = vrot.slane %v2259, 7
    %v2445 = vrot.slane %v2264, 7
    %v2446 = vsel %vm1691, %v2444, %v2445
    %v2447 = vrot.slane %v2269, 7
    %v2448 = vrot.slane %v2274, 7
    %v2449 = vsel %vm1691, %v2447, %v2448
    %v2450 = vrot.slane %v2279, 7
    %v2451 = vrot.slane %v2284, 7
    %v2452 = vsel %vm1691, %v2450, %v2451
    %v2453 = vrot.slane %v2289, 7
    %v2454 = vrot.slane %v2294, 7
    %v2455 = vsel %vm1691, %v2453, %v2454
    %v2456 = vrot.slane %v2299, 7
    %v2457 = vrot.slane %v2304, 7
    %v2458 = vsel %vm1691, %v2456, %v2457
    %v2459 = vrot.slane %v2309, 7
    %v2460 = vrot.slane %v2314, 7
    %v2461 = vsel %vm1691, %v2459, %v2460
    %v2462 = vrot.slane %v2319, 7
    %v2463 = vrot.slane %v2324, 7
    %v2464 = vsel %vm1691, %v2462, %v2463
    %v2465 = vrot.slane %v2329, 7
    %v2466 = vrot.slane %v2334, 7
    %v2467 = vsel %vm1691, %v2465, %v2466
    %v2468 = vrot.slane %v2339, 7
    %v2469 = vrot.slane %v2344, 7
    %v2470 = vsel %vm1691, %v2468, %v2469
    %v2471 = vrot.slane %v2349, 7
    %v2472 = vrot.slane %v2354, 7
    %v2473 = vsel %vm1691, %v2471, %v2472
    %v2474 = vrot.slane %v2359, 7
    %v2475 = vrot.slane %v2364, 7
    %v2476 = vsel %vm1691, %v2474, %v2475
    %v2477 = vrot.slane %v2369, 7
    %v2478 = vrot.slane %v2374, 7
    %v2479 = vsel %vm1691, %v2477, %v2478
    %v2480 = vrot.slane %v2379, 7
    %v2481 = vrot.slane %v2384, 7
    %v2482 = vsel %vm1691, %v2480, %v2481
    %v2483 = vrot.slane %v2389, 7
    %v2484 = vrot.slane %v2394, 7
    %v2485 = vsel %vm1691, %v2483, %v2484
    %v2486 = vrot.slane %v2399, 7
    %v2487 = vrot.slane %v2404, 7
    %v2488 = vsel %vm1691, %v2486, %v2487
    %v2523 = vsel %vm1691, 0.0, %v2439
    %v2524 = vsel %vm1691, 0.0, %v2441
    %v2525 = vsel %vm1691, 0.0, %v2444
    %v2526 = vsel %vm1691, 0.0, %v2447
    %v2527 = vsel %vm1691, 0.0, %v2450
    %v2528 = vsel %vm1691, 0.0, %v2453
    %v2529 = vsel %vm1691, 0.0, %v2456
    %v2530 = vsel %vm1691, 0.0, %v2459
    %v2531 = vsel %vm1691, 0.0, %v2462
    %v2532 = vsel %vm1691, 0.0, %v2465
    %v2533 = vsel %vm1691, 0.0, %v2468
    %v2534 = vsel %vm1691, 0.0, %v2471
    %v2535 = vsel %vm1691, 0.0, %v2474
    %v2536 = vsel %vm1691, 0.0, %v2477
    %v2537 = vsel %vm1691, 0.0, %v2480
    %v2538 = vsel %vm1691, 0.0, %v2483
    %v2539 = vsel %vm1691, 0.0, %v2486
    %v2540 = vrot.slane 0.0, 1
    %v2541 = vsel %vm1788, %v2540, %v2540
    %v2542 = vrot.slane %v2249, 1
    %v2543 = vrot.slane %v2254, 1
    %v2544 = vsel %vm1788, %v2542, %v2543
    %v2545 = vrot.slane %v2259, 1
    %v2546 = vrot.slane %v2264, 1
    %v2547 = vsel %vm1788, %v2545, %v2546
    %v2548 = vrot.slane %v2269, 1
    %v2549 = vrot.slane %v2274, 1
    %v2550 = vsel %vm1788, %v2548, %v2549
    %v2551 = vrot.slane %v2279, 1
    %v2552 = vrot.slane %v2284, 1
    %v2553 = vsel %vm1788, %v2551, %v2552
    %v2554 = vrot.slane %v2289, 1
    %v2555 = vrot.slane %v2294, 1
    %v2556 = vsel %vm1788, %v2554, %v2555
    %v2557 = vrot.slane %v2299, 1
    %v2558 = vrot.slane %v2304, 1
    %v2559 = vsel %vm1788, %v2557, %v2558
    %v2560 = vrot.slane %v2309, 1
    %v2561 = vrot.slane %v2314, 1
    %v2562 = vsel %vm1788, %v2560, %v2561
    %v2563 = vrot.slane %v2319, 1
    %v2564 = vrot.slane %v2324, 1
    %v2565 = vsel %vm1788, %v2563, %v2564
    %v2566 = vrot.slane %v2329, 1
    %v2567 = vrot.slane %v2334, 1
    %v2568 = vsel %vm1788, %v2566, %v2567
    %v2569 = vrot.slane %v2339, 1
    %v2570 = vrot.slane %v2344, 1
    %v2571 = vsel %vm1788, %v2569, %v2570
    %v2572 = vrot.slane %v2349, 1
    %v2573 = vrot.slane %v2354, 1
    %v2574 = vsel %vm1788, %v2572, %v2573
    %v2575 = vrot.slane %v2359, 1
    %v2576 = vrot.slane %v2364, 1
    %v2577 = vsel %vm1788, %v2575, %v2576
    %v2578 = vrot.slane %v2369, 1
    %v2579 = vrot.slane %v2374, 1
    %v2580 = vsel %vm1788, %v2578, %v2579
    %v2581 = vrot.slane %v2379, 1
    %v2582 = vrot.slane %v2384, 1
    %v2583 = vsel %vm1788, %v2581, %v2582
    %v2584 = vrot.slane %v2389, 1
    %v2585 = vrot.slane %v2394, 1
    %v2586 = vsel %vm1788, %v2584, %v2585
    %v2587 = vrot.slane %v2399, 1
    %v2588 = vrot.slane %v2404, 1
    %v2589 = vsel %vm1788, %v2587, %v2588
    %v2624 = vsel %vm1788, %v2540, 0.0
    %v2625 = vsel %vm1788, %v2543, 0.0
    %v2626 = vsel %vm1788, %v2546, 0.0
    %v2627 = vsel %vm1788, %v2549, 0.0
    %v2628 = vsel %vm1788, %v2552, 0.0
    %v2629 = vsel %vm1788, %v2555, 0.0
    %v2630 = vsel %vm1788, %v2558, 0.0
    %v2631 = vsel %vm1788, %v2561, 0.0
    %v2632 = vsel %vm1788, %v2564, 0.0
    %v2633 = vsel %vm1788, %v2567, 0.0
    %v2634 = vsel %vm1788, %v2570, 0.0
    %v2635 = vsel %vm1788, %v2573, 0.0
    %v2636 = vsel %vm1788, %v2576, 0.0
    %v2637 = vsel %vm1788, %v2579, 0.0
    %v2638 = vsel %vm1788, %v2582, 0.0
    %v2639 = vsel %vm1788, %v2585, 0.0
    %v2640 = vsel %vm1788, %v2588, 0.0
    %v2641 = vld [vmem:[%s3 + $0x12] sm:$0x1]
    %v2642 = vlaneseq
    %v2643 = vshrl.u32 %v2642, 7
    %v2644 = vsub.s32 0, %v2643
    %v2645 = vrot.slane %v2641, %v2644
    %v2646 = vmul.f32 %v2523, %v2645
    %v2647 = vmul.f32 %v2440, %v2645
    %v2648 = vmul.f32 %v2524, %v2645
    %v2649 = vmul.f32 %v2443, %v2645
    %v2650 = vmul.f32 %v2525, %v2645
    %v2651 = vmul.f32 %v2446, %v2645
    %v2652 = vmul.f32 %v2526, %v2645
    %v2653 = vmul.f32 %v2449, %v2645
    %v2654 = vmul.f32 %v2527, %v2645
    %v2655 = vmul.f32 %v2452, %v2645
    %v2656 = vmul.f32 %v2528, %v2645
    %v2657 = vmul.f32 %v2455, %v2645
    %v2658 = vmul.f32 %v2529, %v2645
    %v2659 = vmul.f32 %v2458, %v2645
    %v2660 = vmul.f32 %v2530, %v2645
    %v2661 = vmul.f32 %v2461, %v2645
    %v2662 = vmul.f32 %v2531, %v2645
    %v2663 = vmul.f32 %v2464, %v2645
    %v2664 = vmul.f32 %v2532, %v2645
    %v2665 = vmul.f32 %v2467, %v2645
    %v2666 = vmul.f32 %v2533, %v2645
    %v2667 = vmul.f32 %v2470, %v2645
    %v2668 = vmul.f32 %v2534, %v2645
    %v2669 = vmul.f32 %v2473, %v2645
    %v2670 = vmul.f32 %v2535, %v2645
    %v2671 = vmul.f32 %v2476, %v2645
    %v2672 = vmul.f32 %v2536, %v2645
    %v2673 = vmul.f32 %v2479, %v2645
    %v2674 = vmul.f32 %v2537, %v2645
    %v2675 = vmul.f32 %v2482, %v2645
    %v2676 = vmul.f32 %v2538, %v2645
    %v2677 = vmul.f32 %v2485, %v2645
    %v2678 = vld [vmem:[%s3 + $0x13] sm:$0x1]
    %v2679 = vlaneseq
    %v2680 = vshrl.u32 %v2679, 7
    %v2681 = vsub.s32 0, %v2680
    %v2682 = vrot.slane %v2678, %v2681
    %v2683 = vmul.f32 %v2682, 0.0
    %v2684 = vmul.f32 %v2249, %v2682
    %v2685 = vmul.f32 %v2254, %v2682
    %v2686 = vmul.f32 %v2259, %v2682
    %v2687 = vmul.f32 %v2264, %v2682
    %v2688 = vmul.f32 %v2269, %v2682
    %v2689 = vmul.f32 %v2274, %v2682
    %v2690 = vmul.f32 %v2279, %v2682
    %v2691 = vmul.f32 %v2284, %v2682
    %v2692 = vmul.f32 %v2289, %v2682
    %v2693 = vmul.f32 %v2294, %v2682
    %v2694 = vmul.f32 %v2299, %v2682
    %v2695 = vmul.f32 %v2304, %v2682
    %v2696 = vmul.f32 %v2309, %v2682
    %v2697 = vmul.f32 %v2314, %v2682
    %v2698 = vmul.f32 %v2319, %v2682
    %v2699 = vmul.f32 %v2324, %v2682
    %v2700 = vmul.f32 %v2329, %v2682
    %v2701 = vmul.f32 %v2334, %v2682
    %v2702 = vmul.f32 %v2339, %v2682
    %v2703 = vmul.f32 %v2344, %v2682
    %v2704 = vmul.f32 %v2349, %v2682
    %v2705 = vmul.f32 %v2354, %v2682
    %v2706 = vmul.f32 %v2359, %v2682
    %v2707 = vmul.f32 %v2364, %v2682
    %v2708 = vmul.f32 %v2369, %v2682
    %v2709 = vmul.f32 %v2374, %v2682
    %v2710 = vmul.f32 %v2379, %v2682
    %v2711 = vmul.f32 %v2384, %v2682
    %v2712 = vmul.f32 %v2389, %v2682
    %v2713 = vmul.f32 %v2394, %v2682
    %v2714 = vadd.f32 %v2646, %v2683
    %v2715 = vadd.f32 %v2647, %v2683
    %v2716 = vadd.f32 %v2648, %v2684
    %v2717 = vadd.f32 %v2649, %v2685
    %v2718 = vadd.f32 %v2650, %v2686
    %v2719 = vadd.f32 %v2651, %v2687
    %v2720 = vadd.f32 %v2652, %v2688
    %v2721 = vadd.f32 %v2653, %v2689
    %v2722 = vadd.f32 %v2654, %v2690
    %v2723 = vadd.f32 %v2655, %v2691
    %v2724 = vadd.f32 %v2656, %v2692
    %v2725 = vadd.f32 %v2657, %v2693
    %v2726 = vadd.f32 %v2658, %v2694
    %v2727 = vadd.f32 %v2659, %v2695
    %v2728 = vadd.f32 %v2660, %v2696
    %v2729 = vadd.f32 %v2661, %v2697
    %v2730 = vadd.f32 %v2662, %v2698
    %v2731 = vadd.f32 %v2663, %v2699
    %v2732 = vadd.f32 %v2664, %v2700
    %v2733 = vadd.f32 %v2665, %v2701
    %v2734 = vadd.f32 %v2666, %v2702
    %v2735 = vadd.f32 %v2667, %v2703
    %v2736 = vadd.f32 %v2668, %v2704
    %v2737 = vadd.f32 %v2669, %v2705
    %v2738 = vadd.f32 %v2670, %v2706
    %v2739 = vadd.f32 %v2671, %v2707
    %v2740 = vadd.f32 %v2672, %v2708
    %v2741 = vadd.f32 %v2673, %v2709
    %v2742 = vadd.f32 %v2674, %v2710
    %v2743 = vadd.f32 %v2675, %v2711
    %v2744 = vadd.f32 %v2676, %v2712
    %v2745 = vadd.f32 %v2677, %v2713
    %v2746 = vld [vmem:[%s3 + $0x14] sm:$0x1]
    %v2747 = vlaneseq
    %v2748 = vshrl.u32 %v2747, 7
    %v2749 = vsub.s32 0, %v2748
    %v2750 = vrot.slane %v2746, %v2749
    %v2751 = vmul.f32 %v2541, %v2750
    %v2752 = vmul.f32 %v2624, %v2750
    %v2753 = vmul.f32 %v2544, %v2750
    %v2754 = vmul.f32 %v2625, %v2750
    %v2755 = vmul.f32 %v2547, %v2750
    %v2756 = vmul.f32 %v2626, %v2750
    %v2757 = vmul.f32 %v2550, %v2750
    %v2758 = vmul.f32 %v2627, %v2750
    %v2759 = vmul.f32 %v2553, %v2750
    %v2760 = vmul.f32 %v2628, %v2750
    %v2761 = vmul.f32 %v2556, %v2750
    %v2762 = vmul.f32 %v2629, %v2750
    %v2763 = vmul.f32 %v2559, %v2750
    %v2764 = vmul.f32 %v2630, %v2750
    %v2765 = vmul.f32 %v2562, %v2750
    %v2766 = vmul.f32 %v2631, %v2750
    %v2767 = vmul.f32 %v2565, %v2750
    %v2768 = vmul.f32 %v2632, %v2750
    %v2769 = vmul.f32 %v2568, %v2750
    %v2770 = vmul.f32 %v2633, %v2750
    %v2771 = vmul.f32 %v2571, %v2750
    %v2772 = vmul.f32 %v2634, %v2750
    %v2773 = vmul.f32 %v2574, %v2750
    %v2774 = vmul.f32 %v2635, %v2750
    %v2775 = vmul.f32 %v2577, %v2750
    %v2776 = vmul.f32 %v2636, %v2750
    %v2777 = vmul.f32 %v2580, %v2750
    %v2778 = vmul.f32 %v2637, %v2750
    %v2779 = vmul.f32 %v2583, %v2750
    %v2780 = vmul.f32 %v2638, %v2750
    %v2781 = vmul.f32 %v2586, %v2750
    %v2782 = vmul.f32 %v2639, %v2750
    %v2783 = vadd.f32 %v2714, %v2751
    %v2784 = vadd.f32 %v2715, %v2752
    %v2785 = vadd.f32 %v2716, %v2753
    %v2786 = vadd.f32 %v2717, %v2754
    %v2787 = vadd.f32 %v2718, %v2755
    %v2788 = vadd.f32 %v2719, %v2756
    %v2789 = vadd.f32 %v2720, %v2757
    %v2790 = vadd.f32 %v2721, %v2758
    %v2791 = vadd.f32 %v2722, %v2759
    %v2792 = vadd.f32 %v2723, %v2760
    %v2793 = vadd.f32 %v2724, %v2761
    %v2794 = vadd.f32 %v2725, %v2762
    %v2795 = vadd.f32 %v2726, %v2763
    %v2796 = vadd.f32 %v2727, %v2764
    %v2797 = vadd.f32 %v2728, %v2765
    %v2798 = vadd.f32 %v2729, %v2766
    %v2799 = vadd.f32 %v2730, %v2767
    %v2800 = vadd.f32 %v2731, %v2768
    %v2801 = vadd.f32 %v2732, %v2769
    %v2802 = vadd.f32 %v2733, %v2770
    %v2803 = vadd.f32 %v2734, %v2771
    %v2804 = vadd.f32 %v2735, %v2772
    %v2805 = vadd.f32 %v2736, %v2773
    %v2806 = vadd.f32 %v2737, %v2774
    %v2807 = vadd.f32 %v2738, %v2775
    %v2808 = vadd.f32 %v2739, %v2776
    %v2809 = vadd.f32 %v2740, %v2777
    %v2810 = vadd.f32 %v2741, %v2778
    %v2811 = vadd.f32 %v2742, %v2779
    %v2812 = vadd.f32 %v2743, %v2780
    %v2813 = vadd.f32 %v2744, %v2781
    %v2814 = vadd.f32 %v2745, %v2782
    %v2815 = vld [vmem:[%s3 + $0x15] sm:$0x1]
    %v2816 = vlaneseq
    %v2817 = vshrl.u32 %v2816, 7
    %v2818 = vsub.s32 0, %v2817
    %v2819 = vrot.slane %v2815, %v2818
    %v2820 = vmul.f32 %v2524, %v2819
    %v2821 = vmul.f32 %v2443, %v2819
    %v2822 = vmul.f32 %v2525, %v2819
    %v2823 = vmul.f32 %v2446, %v2819
    %v2824 = vmul.f32 %v2526, %v2819
    %v2825 = vmul.f32 %v2449, %v2819
    %v2826 = vmul.f32 %v2527, %v2819
    %v2827 = vmul.f32 %v2452, %v2819
    %v2828 = vmul.f32 %v2528, %v2819
    %v2829 = vmul.f32 %v2455, %v2819
    %v2830 = vmul.f32 %v2529, %v2819
    %v2831 = vmul.f32 %v2458, %v2819
    %v2832 = vmul.f32 %v2530, %v2819
    %v2833 = vmul.f32 %v2461, %v2819
    %v2834 = vmul.f32 %v2531, %v2819
    %v2835 = vmul.f32 %v2464, %v2819
    %v2836 = vmul.f32 %v2532, %v2819
    %v2837 = vmul.f32 %v2467, %v2819
    %v2838 = vmul.f32 %v2533, %v2819
    %v2839 = vmul.f32 %v2470, %v2819
    %v2840 = vmul.f32 %v2534, %v2819
    %v2841 = vmul.f32 %v2473, %v2819
    %v2842 = vmul.f32 %v2535, %v2819
    %v2843 = vmul.f32 %v2476, %v2819
    %v2844 = vmul.f32 %v2536, %v2819
    %v2845 = vmul.f32 %v2479, %v2819
    %v2846 = vmul.f32 %v2537, %v2819
    %v2847 = vmul.f32 %v2482, %v2819
    %v2848 = vmul.f32 %v2538, %v2819
    %v2849 = vmul.f32 %v2485, %v2819
    %v2850 = vmul.f32 %v2539, %v2819
    %v2851 = vmul.f32 %v2488, %v2819
    %v2852 = vadd.f32 %v2783, %v2820
    %v2853 = vadd.f32 %v2784, %v2821
    %v2854 = vadd.f32 %v2785, %v2822
    %v2855 = vadd.f32 %v2786, %v2823
    %v2856 = vadd.f32 %v2787, %v2824
    %v2857 = vadd.f32 %v2788, %v2825
    %v2858 = vadd.f32 %v2789, %v2826
    %v2859 = vadd.f32 %v2790, %v2827
    %v2860 = vadd.f32 %v2791, %v2828
    %v2861 = vadd.f32 %v2792, %v2829
    %v2862 = vadd.f32 %v2793, %v2830
    %v2863 = vadd.f32 %v2794, %v2831
    %v2864 = vadd.f32 %v2795, %v2832
    %v2865 = vadd.f32 %v2796, %v2833
    %v2866 = vadd.f32 %v2797, %v2834
    %v2867 = vadd.f32 %v2798, %v2835
    %v2868 = vadd.f32 %v2799, %v2836
    %v2869 = vadd.f32 %v2800, %v2837
    %v2870 = vadd.f32 %v2801, %v2838
    %v2871 = vadd.f32 %v2802, %v2839
    %v2872 = vadd.f32 %v2803, %v2840
    %v2873 = vadd.f32 %v2804, %v2841
    %v2874 = vadd.f32 %v2805, %v2842
    %v2875 = vadd.f32 %v2806, %v2843
    %v2876 = vadd.f32 %v2807, %v2844
    %v2877 = vadd.f32 %v2808, %v2845
    %v2878 = vadd.f32 %v2809, %v2846
    %v2879 = vadd.f32 %v2810, %v2847
    %v2880 = vadd.f32 %v2811, %v2848
    %v2881 = vadd.f32 %v2812, %v2849
    %v2882 = vadd.f32 %v2813, %v2850
    %v2883 = vadd.f32 %v2814, %v2851
    %v2884 = vld [vmem:[%s3 + $0x16] sm:$0x1]
    %v2885 = vlaneseq
    %v2886 = vshrl.u32 %v2885, 7
    %v2887 = vsub.s32 0, %v2886
    %v2888 = vrot.slane %v2884, %v2887
    %v2889 = vmul.f32 %v2249, %v2888
    %v2890 = vmul.f32 %v2254, %v2888
    %v2891 = vmul.f32 %v2259, %v2888
    %v2892 = vmul.f32 %v2264, %v2888
    %v2893 = vmul.f32 %v2269, %v2888
    %v2894 = vmul.f32 %v2274, %v2888
    %v2895 = vmul.f32 %v2279, %v2888
    %v2896 = vmul.f32 %v2284, %v2888
    %v2897 = vmul.f32 %v2289, %v2888
    %v2898 = vmul.f32 %v2294, %v2888
    %v2899 = vmul.f32 %v2299, %v2888
    %v2900 = vmul.f32 %v2304, %v2888
    %v2901 = vmul.f32 %v2309, %v2888
    %v2902 = vmul.f32 %v2314, %v2888
    %v2903 = vmul.f32 %v2319, %v2888
    %v2904 = vmul.f32 %v2324, %v2888
    %v2905 = vmul.f32 %v2329, %v2888
    %v2906 = vmul.f32 %v2334, %v2888
    %v2907 = vmul.f32 %v2339, %v2888
    %v2908 = vmul.f32 %v2344, %v2888
    %v2909 = vmul.f32 %v2349, %v2888
    %v2910 = vmul.f32 %v2354, %v2888
    %v2911 = vmul.f32 %v2359, %v2888
    %v2912 = vmul.f32 %v2364, %v2888
    %v2913 = vmul.f32 %v2369, %v2888
    %v2914 = vmul.f32 %v2374, %v2888
    %v2915 = vmul.f32 %v2379, %v2888
    %v2916 = vmul.f32 %v2384, %v2888
    %v2917 = vmul.f32 %v2389, %v2888
    %v2918 = vmul.f32 %v2394, %v2888
    %v2919 = vmul.f32 %v2399, %v2888
    %v2920 = vmul.f32 %v2404, %v2888
    %v2921 = vadd.f32 %v2852, %v2889
    %v2922 = vadd.f32 %v2853, %v2890
    %v2923 = vadd.f32 %v2854, %v2891
    %v2924 = vadd.f32 %v2855, %v2892
    %v2925 = vadd.f32 %v2856, %v2893
    %v2926 = vadd.f32 %v2857, %v2894
    %v2927 = vadd.f32 %v2858, %v2895
    %v2928 = vadd.f32 %v2859, %v2896
    %v2929 = vadd.f32 %v2860, %v2897
    %v2930 = vadd.f32 %v2861, %v2898
    %v2931 = vadd.f32 %v2862, %v2899
    %v2932 = vadd.f32 %v2863, %v2900
    %v2933 = vadd.f32 %v2864, %v2901
    %v2934 = vadd.f32 %v2865, %v2902
    %v2935 = vadd.f32 %v2866, %v2903
    %v2936 = vadd.f32 %v2867, %v2904
    %v2937 = vadd.f32 %v2868, %v2905
    %v2938 = vadd.f32 %v2869, %v2906
    %v2939 = vadd.f32 %v2870, %v2907
    %v2940 = vadd.f32 %v2871, %v2908
    %v2941 = vadd.f32 %v2872, %v2909
    %v2942 = vadd.f32 %v2873, %v2910
    %v2943 = vadd.f32 %v2874, %v2911
    %v2944 = vadd.f32 %v2875, %v2912
    %v2945 = vadd.f32 %v2876, %v2913
    %v2946 = vadd.f32 %v2877, %v2914
    %v2947 = vadd.f32 %v2878, %v2915
    %v2948 = vadd.f32 %v2879, %v2916
    %v2949 = vadd.f32 %v2880, %v2917
    %v2950 = vadd.f32 %v2881, %v2918
    %v2951 = vadd.f32 %v2882, %v2919
    %v2952 = vadd.f32 %v2883, %v2920
    %v2953 = vld [vmem:[%s3 + $0x17] sm:$0x1]
    %v2954 = vlaneseq
    %v2955 = vshrl.u32 %v2954, 7
    %v2956 = vsub.s32 0, %v2955
    %v2957 = vrot.slane %v2953, %v2956
    %v2958 = vmul.f32 %v2544, %v2957
    %v2959 = vmul.f32 %v2625, %v2957
    %v2960 = vmul.f32 %v2547, %v2957
    %v2961 = vmul.f32 %v2626, %v2957
    %v2962 = vmul.f32 %v2550, %v2957
    %v2963 = vmul.f32 %v2627, %v2957
    %v2964 = vmul.f32 %v2553, %v2957
    %v2965 = vmul.f32 %v2628, %v2957
    %v2966 = vmul.f32 %v2556, %v2957
    %v2967 = vmul.f32 %v2629, %v2957
    %v2968 = vmul.f32 %v2559, %v2957
    %v2969 = vmul.f32 %v2630, %v2957
    %v2970 = vmul.f32 %v2562, %v2957
    %v2971 = vmul.f32 %v2631, %v2957
    %v2972 = vmul.f32 %v2565, %v2957
    %v2973 = vmul.f32 %v2632, %v2957
    %v2974 = vmul.f32 %v2568, %v2957
    %v2975 = vmul.f32 %v2633, %v2957
    %v2976 = vmul.f32 %v2571, %v2957
    %v2977 = vmul.f32 %v2634, %v2957
    %v2978 = vmul.f32 %v2574, %v2957
    %v2979 = vmul.f32 %v2635, %v2957
    %v2980 = vmul.f32 %v2577, %v2957
    %v2981 = vmul.f32 %v2636, %v2957
    %v2982 = vmul.f32 %v2580, %v2957
    %v2983 = vmul.f32 %v2637, %v2957
    %v2984 = vmul.f32 %v2583, %v2957
    %v2985 = vmul.f32 %v2638, %v2957
    %v2986 = vmul.f32 %v2586, %v2957
    %v2987 = vmul.f32 %v2639, %v2957
    %v2988 = vmul.f32 %v2589, %v2957
    %v2989 = vmul.f32 %v2640, %v2957
    %v2990 = vadd.f32 %v2921, %v2958
    %v2991 = vadd.f32 %v2922, %v2959
    %v2992 = vadd.f32 %v2923, %v2960
    %v2993 = vadd.f32 %v2924, %v2961
    %v2994 = vadd.f32 %v2925, %v2962
    %v2995 = vadd.f32 %v2926, %v2963
    %v2996 = vadd.f32 %v2927, %v2964
    %v2997 = vadd.f32 %v2928, %v2965
    %v2998 = vadd.f32 %v2929, %v2966
    %v2999 = vadd.f32 %v2930, %v2967
    %v3000 = vadd.f32 %v2931, %v2968
    %v3001 = vadd.f32 %v2932, %v2969
    %v3002 = vadd.f32 %v2933, %v2970
    %v3003 = vadd.f32 %v2934, %v2971
    %v3004 = vadd.f32 %v2935, %v2972
    %v3005 = vadd.f32 %v2936, %v2973
    %v3006 = vadd.f32 %v2937, %v2974
    %v3007 = vadd.f32 %v2938, %v2975
    %v3008 = vadd.f32 %v2939, %v2976
    %v3009 = vadd.f32 %v2940, %v2977
    %v3010 = vadd.f32 %v2941, %v2978
    %v3011 = vadd.f32 %v2942, %v2979
    %v3012 = vadd.f32 %v2943, %v2980
    %v3013 = vadd.f32 %v2944, %v2981
    %v3014 = vadd.f32 %v2945, %v2982
    %v3015 = vadd.f32 %v2946, %v2983
    %v3016 = vadd.f32 %v2947, %v2984
    %v3017 = vadd.f32 %v2948, %v2985
    %v3018 = vadd.f32 %v2949, %v2986
    %v3019 = vadd.f32 %v2950, %v2987
    %v3020 = vadd.f32 %v2951, %v2988
    %v3021 = vadd.f32 %v2952, %v2989
    %v3022 = vld [vmem:[%s3 + $0x18] sm:$0x1]
    %v3023 = vlaneseq
    %v3024 = vshrl.u32 %v3023, 7
    %v3025 = vsub.s32 0, %v3024
    %v3026 = vrot.slane %v3022, %v3025
    %v3027 = vmul.f32 %v2525, %v3026
    %v3028 = vmul.f32 %v2446, %v3026
    %v3029 = vmul.f32 %v2526, %v3026
    %v3030 = vmul.f32 %v2449, %v3026
    %v3031 = vmul.f32 %v2527, %v3026
    %v3032 = vmul.f32 %v2452, %v3026
    %v3033 = vmul.f32 %v2528, %v3026
    %v3034 = vmul.f32 %v2455, %v3026
    %v3035 = vmul.f32 %v2529, %v3026
    %v3036 = vmul.f32 %v2458, %v3026
    %v3037 = vmul.f32 %v2530, %v3026
    %v3038 = vmul.f32 %v2461, %v3026
    %v3039 = vmul.f32 %v2531, %v3026
    %v3040 = vmul.f32 %v2464, %v3026
    %v3041 = vmul.f32 %v2532, %v3026
    %v3042 = vmul.f32 %v2467, %v3026
    %v3043 = vmul.f32 %v2533, %v3026
    %v3044 = vmul.f32 %v2470, %v3026
    %v3045 = vmul.f32 %v2534, %v3026
    %v3046 = vmul.f32 %v2473, %v3026
    %v3047 = vmul.f32 %v2535, %v3026
    %v3048 = vmul.f32 %v2476, %v3026
    %v3049 = vmul.f32 %v2536, %v3026
    %v3050 = vmul.f32 %v2479, %v3026
    %v3051 = vmul.f32 %v2537, %v3026
    %v3052 = vmul.f32 %v2482, %v3026
    %v3053 = vmul.f32 %v2538, %v3026
    %v3054 = vmul.f32 %v2485, %v3026
    %v3055 = vmul.f32 %v2539, %v3026
    %v3056 = vmul.f32 %v2488, %v3026
    %v3057 = vmul.f32 %v2523, %v3026
    %v3058 = vmul.f32 %v2440, %v3026
    %v3059 = vadd.f32 %v2990, %v3027
    %v3060 = vadd.f32 %v2991, %v3028
    %v3061 = vadd.f32 %v2992, %v3029
    %v3062 = vadd.f32 %v2993, %v3030
    %v3063 = vadd.f32 %v2994, %v3031
    %v3064 = vadd.f32 %v2995, %v3032
    %v3065 = vadd.f32 %v2996, %v3033
    %v3066 = vadd.f32 %v2997, %v3034
    %v3067 = vadd.f32 %v2998, %v3035
    %v3068 = vadd.f32 %v2999, %v3036
    %v3069 = vadd.f32 %v3000, %v3037
    %v3070 = vadd.f32 %v3001, %v3038
    %v3071 = vadd.f32 %v3002, %v3039
    %v3072 = vadd.f32 %v3003, %v3040
    %v3073 = vadd.f32 %v3004, %v3041
    %v3074 = vadd.f32 %v3005, %v3042
    %v3075 = vadd.f32 %v3006, %v3043
    %v3076 = vadd.f32 %v3007, %v3044
    %v3077 = vadd.f32 %v3008, %v3045
    %v3078 = vadd.f32 %v3009, %v3046
    %v3079 = vadd.f32 %v3010, %v3047
    %v3080 = vadd.f32 %v3011, %v3048
    %v3081 = vadd.f32 %v3012, %v3049
    %v3082 = vadd.f32 %v3013, %v3050
    %v3083 = vadd.f32 %v3014, %v3051
    %v3084 = vadd.f32 %v3015, %v3052
    %v3085 = vadd.f32 %v3016, %v3053
    %v3086 = vadd.f32 %v3017, %v3054
    %v3087 = vadd.f32 %v3018, %v3055
    %v3088 = vadd.f32 %v3019, %v3056
    %v3089 = vadd.f32 %v3020, %v3057
    %v3090 = vadd.f32 %v3021, %v3058
    %v3091 = vld [vmem:[%s3 + $0x19] sm:$0x1]
    %v3092 = vlaneseq
    %v3093 = vshrl.u32 %v3092, 7
    %v3094 = vsub.s32 0, %v3093
    %v3095 = vrot.slane %v3091, %v3094
    %v3096 = vmul.f32 %v2259, %v3095
    %v3097 = vmul.f32 %v2264, %v3095
    %v3098 = vmul.f32 %v2269, %v3095
    %v3099 = vmul.f32 %v2274, %v3095
    %v3100 = vmul.f32 %v2279, %v3095
    %v3101 = vmul.f32 %v2284, %v3095
    %v3102 = vmul.f32 %v2289, %v3095
    %v3103 = vmul.f32 %v2294, %v3095
    %v3104 = vmul.f32 %v2299, %v3095
    %v3105 = vmul.f32 %v2304, %v3095
    %v3106 = vmul.f32 %v2309, %v3095
    %v3107 = vmul.f32 %v2314, %v3095
    %v3108 = vmul.f32 %v2319, %v3095
    %v3109 = vmul.f32 %v2324, %v3095
    %v3110 = vmul.f32 %v2329, %v3095
    %v3111 = vmul.f32 %v2334, %v3095
    %v3112 = vmul.f32 %v2339, %v3095
    %v3113 = vmul.f32 %v2344, %v3095
    %v3114 = vmul.f32 %v2349, %v3095
    %v3115 = vmul.f32 %v2354, %v3095
    %v3116 = vmul.f32 %v2359, %v3095
    %v3117 = vmul.f32 %v2364, %v3095
    %v3118 = vmul.f32 %v2369, %v3095
    %v3119 = vmul.f32 %v2374, %v3095
    %v3120 = vmul.f32 %v2379, %v3095
    %v3121 = vmul.f32 %v2384, %v3095
    %v3122 = vmul.f32 %v2389, %v3095
    %v3123 = vmul.f32 %v2394, %v3095
    %v3124 = vmul.f32 %v2399, %v3095
    %v3125 = vmul.f32 %v2404, %v3095
    %v3126 = vmul.f32 %v3095, 0.0
    %v3127 = vadd.f32 %v3059, %v3096
    %v3128 = vadd.f32 %v3060, %v3097
    %v3129 = vadd.f32 %v3061, %v3098
    %v3130 = vadd.f32 %v3062, %v3099
    %v3131 = vadd.f32 %v3063, %v3100
    %v3132 = vadd.f32 %v3064, %v3101
    %v3133 = vadd.f32 %v3065, %v3102
    %v3134 = vadd.f32 %v3066, %v3103
    %v3135 = vadd.f32 %v3067, %v3104
    %v3136 = vadd.f32 %v3068, %v3105
    %v3137 = vadd.f32 %v3069, %v3106
    %v3138 = vadd.f32 %v3070, %v3107
    %v3139 = vadd.f32 %v3071, %v3108
    %v3140 = vadd.f32 %v3072, %v3109
    %v3141 = vadd.f32 %v3073, %v3110
    %v3142 = vadd.f32 %v3074, %v3111
    %v3143 = vadd.f32 %v3075, %v3112
    %v3144 = vadd.f32 %v3076, %v3113
    %v3145 = vadd.f32 %v3077, %v3114
    %v3146 = vadd.f32 %v3078, %v3115
    %v3147 = vadd.f32 %v3079, %v3116
    %v3148 = vadd.f32 %v3080, %v3117
    %v3149 = vadd.f32 %v3081, %v3118
    %v3150 = vadd.f32 %v3082, %v3119
    %v3151 = vadd.f32 %v3083, %v3120
    %v3152 = vadd.f32 %v3084, %v3121
    %v3153 = vadd.f32 %v3085, %v3122
    %v3154 = vadd.f32 %v3086, %v3123
    %v3155 = vadd.f32 %v3087, %v3124
    %v3156 = vadd.f32 %v3088, %v3125
    %v3157 = vadd.f32 %v3089, %v3126
    %v3158 = vadd.f32 %v3090, %v3126
    %v3159 = vld [vmem:[%s3 + $0x1a] sm:$0x1]
    %v3160 = vlaneseq
    %v3161 = vshrl.u32 %v3160, 7
    %v3162 = vsub.s32 0, %v3161
    %v3163 = vrot.slane %v3159, %v3162
    %v3164 = vmul.f32 %v2547, %v3163
    %v3165 = vmul.f32 %v2626, %v3163
    %v3166 = vmul.f32 %v2550, %v3163
    %v3167 = vmul.f32 %v2627, %v3163
    %v3168 = vmul.f32 %v2553, %v3163
    %v3169 = vmul.f32 %v2628, %v3163
    %v3170 = vmul.f32 %v2556, %v3163
    %v3171 = vmul.f32 %v2629, %v3163
    %v3172 = vmul.f32 %v2559, %v3163
    %v3173 = vmul.f32 %v2630, %v3163
    %v3174 = vmul.f32 %v2562, %v3163
    %v3175 = vmul.f32 %v2631, %v3163
    %v3176 = vmul.f32 %v2565, %v3163
    %v3177 = vmul.f32 %v2632, %v3163
    %v3178 = vmul.f32 %v2568, %v3163
    %v3179 = vmul.f32 %v2633, %v3163
    %v3180 = vmul.f32 %v2571, %v3163
    %v3181 = vmul.f32 %v2634, %v3163
    %v3182 = vmul.f32 %v2574, %v3163
    %v3183 = vmul.f32 %v2635, %v3163
    %v3184 = vmul.f32 %v2577, %v3163
    %v3185 = vmul.f32 %v2636, %v3163
    %v3186 = vmul.f32 %v2580, %v3163
    %v3187 = vmul.f32 %v2637, %v3163
    %v3188 = vmul.f32 %v2583, %v3163
    %v3189 = vmul.f32 %v2638, %v3163
    %v3190 = vmul.f32 %v2586, %v3163
    %v3191 = vmul.f32 %v2639, %v3163
    %v3192 = vmul.f32 %v2589, %v3163
    %v3193 = vmul.f32 %v2640, %v3163
    %v3194 = vmul.f32 %v2541, %v3163
    %v3195 = vmul.f32 %v2624, %v3163
    %v3196 = vadd.f32 %v3127, %v3164
    %v3197 = vadd.f32 %v3128, %v3165
    %v3198 = vadd.f32 %v3129, %v3166
    %v3199 = vadd.f32 %v3130, %v3167
    %v3200 = vadd.f32 %v3131, %v3168
    %v3201 = vadd.f32 %v3132, %v3169
    %v3202 = vadd.f32 %v3133, %v3170
    %v3203 = vadd.f32 %v3134, %v3171
    %v3204 = vadd.f32 %v3135, %v3172
    %v3205 = vadd.f32 %v3136, %v3173
    %v3206 = vadd.f32 %v3137, %v3174
    %v3207 = vadd.f32 %v3138, %v3175
    %v3208 = vadd.f32 %v3139, %v3176
    %v3209 = vadd.f32 %v3140, %v3177
    %v3210 = vadd.f32 %v3141, %v3178
    %v3211 = vadd.f32 %v3142, %v3179
    %v3212 = vadd.f32 %v3143, %v3180
    %v3213 = vadd.f32 %v3144, %v3181
    %v3214 = vadd.f32 %v3145, %v3182
    %v3215 = vadd.f32 %v3146, %v3183
    %v3216 = vadd.f32 %v3147, %v3184
    %v3217 = vadd.f32 %v3148, %v3185
    %v3218 = vadd.f32 %v3149, %v3186
    %v3219 = vadd.f32 %v3150, %v3187
    %v3220 = vadd.f32 %v3151, %v3188
    %v3221 = vadd.f32 %v3152, %v3189
    %v3222 = vadd.f32 %v3153, %v3190
    %v3223 = vadd.f32 %v3154, %v3191
    %v3224 = vadd.f32 %v3155, %v3192
    %v3225 = vadd.f32 %v3156, %v3193
    %v3226 = vadd.f32 %v3157, %v3194
    %v3227 = vadd.f32 %v3158, %v3195
    %v3228 = vld [vmem:[%s3 + $0x28] sm:$0x1]
    %v3229 = vlaneseq
    %v3230 = vshrl.u32 %v3229, 7
    %v3231 = vsub.s32 0, %v3230
    %v3232 = vrot.slane %v3228, %v3231
    %v3233 = vmul.f32 %v3196, %v3232
    %v3234 = vmul.f32 %v3197, %v3232
    %v3235 = vmul.f32 %v3198, %v3232
    %v3236 = vmul.f32 %v3199, %v3232
    %v3237 = vmul.f32 %v3200, %v3232
    %v3238 = vmul.f32 %v3201, %v3232
    %v3239 = vmul.f32 %v3202, %v3232
    %v3240 = vmul.f32 %v3203, %v3232
    %v3241 = vmul.f32 %v3204, %v3232
    %v3242 = vmul.f32 %v3205, %v3232
    %v3243 = vmul.f32 %v3206, %v3232
    %v3244 = vmul.f32 %v3207, %v3232
    %v3245 = vmul.f32 %v3208, %v3232
    %v3246 = vmul.f32 %v3209, %v3232
    %v3247 = vmul.f32 %v3210, %v3232
    %v3248 = vmul.f32 %v3211, %v3232
    %v3249 = vmul.f32 %v3212, %v3232
    %v3250 = vmul.f32 %v3213, %v3232
    %v3251 = vmul.f32 %v3214, %v3232
    %v3252 = vmul.f32 %v3215, %v3232
    %v3253 = vmul.f32 %v3216, %v3232
    %v3254 = vmul.f32 %v3217, %v3232
    %v3255 = vmul.f32 %v3218, %v3232
    %v3256 = vmul.f32 %v3219, %v3232
    %v3257 = vmul.f32 %v3220, %v3232
    %v3258 = vmul.f32 %v3221, %v3232
    %v3259 = vmul.f32 %v3222, %v3232
    %v3260 = vmul.f32 %v3223, %v3232
    %v3261 = vmul.f32 %v3224, %v3232
    %v3262 = vmul.f32 %v3225, %v3232
    %v3263 = vmul.f32 %v3226, %v3232
    %v3264 = vmul.f32 %v3227, %v3232
    %v3265 = vld [vmem:[%s3 + $0x29] sm:$0x1]
    %v3266 = vlaneseq
    %v3267 = vshrl.u32 %v3266, 7
    %v3268 = vsub.s32 0, %v3267
    %v3269 = vrot.slane %v3265, %v3268
    %v3270 = vadd.f32 %v3233, %v3269
    %v3271 = vadd.f32 %v3234, %v3269
    %v3272 = vadd.f32 %v3235, %v3269
    %v3273 = vadd.f32 %v3236, %v3269
    %v3274 = vadd.f32 %v3237, %v3269
    %v3275 = vadd.f32 %v3238, %v3269
    %v3276 = vadd.f32 %v3239, %v3269
    %v3277 = vadd.f32 %v3240, %v3269
    %v3278 = vadd.f32 %v3241, %v3269
    %v3279 = vadd.f32 %v3242, %v3269
    %v3280 = vadd.f32 %v3243, %v3269
    %v3281 = vadd.f32 %v3244, %v3269
    %v3282 = vadd.f32 %v3245, %v3269
    %v3283 = vadd.f32 %v3246, %v3269
    %v3284 = vadd.f32 %v3247, %v3269
    %v3285 = vadd.f32 %v3248, %v3269
    %v3286 = vadd.f32 %v3249, %v3269
    %v3287 = vadd.f32 %v3250, %v3269
    %v3288 = vadd.f32 %v3251, %v3269
    %v3289 = vadd.f32 %v3252, %v3269
    %v3290 = vadd.f32 %v3253, %v3269
    %v3291 = vadd.f32 %v3254, %v3269
    %v3292 = vadd.f32 %v3255, %v3269
    %v3293 = vadd.f32 %v3256, %v3269
    %v3294 = vadd.f32 %v3257, %v3269
    %v3295 = vadd.f32 %v3258, %v3269
    %v3296 = vadd.f32 %v3259, %v3269
    %v3297 = vadd.f32 %v3260, %v3269
    %v3298 = vadd.f32 %v3261, %v3269
    %v3299 = vadd.f32 %v3262, %v3269
    %v3300 = vadd.f32 %v3263, %v3269
    %v3301 = vadd.f32 %v3264, %v3269
    %v3302 = vmax.f32 %v3270, 0.0
    %v3303 = vmax.f32 %v3271, 0.0
    %v3304 = vmax.f32 %v3272, 0.0
    %v3305 = vmax.f32 %v3273, 0.0
    %v3306 = vmax.f32 %v3274, 0.0
    %v3307 = vmax.f32 %v3275, 0.0
    %v3308 = vmax.f32 %v3276, 0.0
    %v3309 = vmax.f32 %v3277, 0.0
    %v3310 = vmax.f32 %v3278, 0.0
    %v3311 = vmax.f32 %v3279, 0.0
    %v3312 = vmax.f32 %v3280, 0.0
    %v3313 = vmax.f32 %v3281, 0.0
    %v3314 = vmax.f32 %v3282, 0.0
    %v3315 = vmax.f32 %v3283, 0.0
    %v3316 = vmax.f32 %v3284, 0.0
    %v3317 = vmax.f32 %v3285, 0.0
    %v3318 = vmax.f32 %v3286, 0.0
    %v3319 = vmax.f32 %v3287, 0.0
    %v3320 = vmax.f32 %v3288, 0.0
    %v3321 = vmax.f32 %v3289, 0.0
    %v3322 = vmax.f32 %v3290, 0.0
    %v3323 = vmax.f32 %v3291, 0.0
    %v3324 = vmax.f32 %v3292, 0.0
    %v3325 = vmax.f32 %v3293, 0.0
    %v3326 = vmax.f32 %v3294, 0.0
    %v3327 = vmax.f32 %v3295, 0.0
    %v3328 = vmax.f32 %v3296, 0.0
    %v3329 = vmax.f32 %v3297, 0.0
    %v3330 = vmax.f32 %v3298, 0.0
    %v3331 = vmax.f32 %v3299, 0.0
    %v3332 = vmax.f32 %v3300, 0.0
    %v3333 = vmax.f32 %v3301, 0.0
    %v3334 = vpack.c.bf16 %v3303, %v3302
    %v3335 = vpack.c.bf16 %v3305, %v3304
    %v3336 = vpack.c.bf16 %v3307, %v3306
    %v3337 = vpack.c.bf16 %v3309, %v3308
    %v3338 = vpack.c.bf16 %v3311, %v3310
    %v3339 = vpack.c.bf16 %v3313, %v3312
    %v3340 = vpack.c.bf16 %v3315, %v3314
    %v3341 = vpack.c.bf16 %v3317, %v3316
    %v3342 = vpack.c.bf16 %v3319, %v3318
    %v3343 = vpack.c.bf16 %v3321, %v3320
    %v3344 = vpack.c.bf16 %v3323, %v3322
    %v3345 = vpack.c.bf16 %v3325, %v3324
    %v3346 = vpack.c.bf16 %v3327, %v3326
    %v3347 = vpack.c.bf16 %v3329, %v3328
    %v3348 = vpack.c.bf16 %v3331, %v3330
    %v3349 = vpack.c.bf16 %v3333, %v3332
    %v3367 = vrot.slane 0, 7
    %v3368 = vrot.slane %v3334, 7
    %v3369 = vrot.slane %v3335, 7
    %v3370 = vrot.slane %v3336, 7
    %v3371 = vrot.slane %v3337, 7
    %v3372 = vrot.slane %v3338, 7
    %v3373 = vrot.slane %v3339, 7
    %v3374 = vrot.slane %v3340, 7
    %v3375 = vrot.slane %v3341, 7
    %v3376 = vrot.slane %v3342, 7
    %v3377 = vrot.slane %v3343, 7
    %v3378 = vrot.slane %v3344, 7
    %v3379 = vrot.slane %v3345, 7
    %v3380 = vrot.slane %v3346, 7
    %v3381 = vrot.slane %v3347, 7
    %v3382 = vrot.slane %v3348, 7
    %v3383 = vrot.slane %v3349, 7
    %v3386 = vsel %vm1691, 0, %v3367
    %v3389 = vsel %vm1691, 0, %v3368
    %v3392 = vsel %vm1691, 0, %v3369
    %v3395 = vsel %vm1691, 0, %v3370
    %v3398 = vsel %vm1691, 0, %v3371
    %v3401 = vsel %vm1691, 0, %v3372
    %v3404 = vsel %vm1691, 0, %v3373
    %v3407 = vsel %vm1691, 0, %v3374
    %v3410 = vsel %vm1691, 0, %v3375
    %v3413 = vsel %vm1691, 0, %v3376
    %v3416 = vsel %vm1691, 0, %v3377
    %v3419 = vsel %vm1691, 0, %v3378
    %v3422 = vsel %vm1691, 0, %v3379
    %v3425 = vsel %vm1691, 0, %v3380
    %v3428 = vsel %vm1691, 0, %v3381
    %v3431 = vsel %vm1691, 0, %v3382
    %v3434 = vsel %vm1691, 0, %v3383
    %v3436 = vrot.slane 0, 1
    %v3437 = vrot.slane %v3334, 1
    %v3438 = vrot.slane %v3335, 1
    %v3439 = vrot.slane %v3336, 1
    %v3440 = vrot.slane %v3337, 1
    %v3441 = vrot.slane %v3338, 1
    %v3442 = vrot.slane %v3339, 1
    %v3443 = vrot.slane %v3340, 1
    %v3444 = vrot.slane %v3341, 1
    %v3445 = vrot.slane %v3342, 1
    %v3446 = vrot.slane %v3343, 1
    %v3447 = vrot.slane %v3344, 1
    %v3448 = vrot.slane %v3345, 1
    %v3449 = vrot.slane %v3346, 1
    %v3450 = vrot.slane %v3347, 1
    %v3451 = vrot.slane %v3348, 1
    %v3452 = vrot.slane %v3349, 1
    %v3454 = vsel %vm1788, %v3436, 0
    %v3457 = vsel %vm1788, %v3437, 0
    %v3460 = vsel %vm1788, %v3438, 0
    %v3463 = vsel %vm1788, %v3439, 0
    %v3466 = vsel %vm1788, %v3440, 0
    %v3469 = vsel %vm1788, %v3441, 0
    %v3472 = vsel %vm1788, %v3442, 0
    %v3475 = vsel %vm1788, %v3443, 0
    %v3478 = vsel %vm1788, %v3444, 0
    %v3481 = vsel %vm1788, %v3445, 0
    %v3484 = vsel %vm1788, %v3446, 0
    %v3487 = vsel %vm1788, %v3447, 0
    %v3490 = vsel %vm1788, %v3448, 0
    %v3493 = vsel %vm1788, %v3449, 0
    %v3496 = vsel %vm1788, %v3450, 0
    %v3499 = vsel %vm1788, %v3451, 0
    %v3502 = vsel %vm1788, %v3452, 0
    %v3504 = vld [vmem:[#allocation2] sm:$0xf]
    %v3505 = vld [vmem:[#allocation2 + $0x4] sm:$0xf]
    %v3506 = vld [vmem:[#allocation2 + $0x8] sm:$0xf]
    %v3507 = vld [vmem:[#allocation2 + $0xc] sm:$0xf]
    %v3508 = vld [vmem:[#allocation2 + $0x10] sm:$0xf]
    %v3509 = vld [vmem:[#allocation2 + $0x14] sm:$0xf]
    %v3510 = vld [vmem:[#allocation2 + $0x18] sm:$0xf]
    %v3511 = vld [vmem:[#allocation2 + $0x1c] sm:$0xf]
    %v3512 = vld [vmem:[#allocation2 + $0x20] sm:$0xf]
    %v3513 = vld [vmem:[#allocation2 + $0x24] sm:$0xf]
    %v3514 = vld [vmem:[#allocation2 + $0x28] sm:$0xf]
    %v3515 = vld [vmem:[#allocation2 + $0x2c] sm:$0xf]
    %v3516 = vld [vmem:[#allocation2 + $0x30] sm:$0xf]
    %v3517 = vld [vmem:[#allocation2 + $0x34] sm:$0xf]
    %v3518 = vld [vmem:[#allocation2 + $0x38] sm:$0xf]
    %v3519 = vld [vmem:[#allocation2 + $0x3c] sm:$0xf]
    %s3520 = scalar_lea.vmem [#allocation2], 64
    %v3521 = vld [vmem:[%s3520] sm:$0xf]
    %v3522 = vld [vmem:[%s3520 + $0x4] sm:$0xf]
    %v3523 = vld [vmem:[%s3520 + $0x8] sm:$0xf]
    %v3524 = vld [vmem:[%s3520 + $0xc] sm:$0xf]
    %v3525 = vld [vmem:[%s3520 + $0x10] sm:$0xf]
    %v3526 = vld [vmem:[%s3520 + $0x14] sm:$0xf]
    %v3527 = vld [vmem:[%s3520 + $0x18] sm:$0xf]
    %v3528 = vld [vmem:[%s3520 + $0x1c] sm:$0xf]
    %v3529 = vld [vmem:[%s3520 + $0x20] sm:$0xf]
    %v3530 = vld [vmem:[%s3520 + $0x24] sm:$0xf]
    %v3531 = vld [vmem:[%s3520 + $0x28] sm:$0xf]
    %v3532 = vld [vmem:[%s3520 + $0x2c] sm:$0xf]
    %v3533 = vld [vmem:[%s3520 + $0x30] sm:$0xf]
    %v3534 = vld [vmem:[%s3520 + $0x34] sm:$0xf]
    %v3535 = vld [vmem:[%s3520 + $0x38] sm:$0xf]
    %v3536 = vld [vmem:[%s3520 + $0x3c] sm:$0xf]
    %v3553 = vunpack.c.l.b16 %v3521
    %v3554 = vunpack.c.l.b16 %v3522
    %v3555 = vunpack.c.l.b16 %v3523
    %v3556 = vunpack.c.l.b16 %v3524
    %v3557 = vunpack.c.l.b16 %v3525
    %v3558 = vunpack.c.l.b16 %v3526
    %v3559 = vunpack.c.l.b16 %v3527
    %v3560 = vunpack.c.l.b16 %v3528
    %v3561 = vunpack.c.l.b16 %v3529
    %v3562 = vunpack.c.l.b16 %v3530
    %v3563 = vunpack.c.l.b16 %v3531
    %v3564 = vunpack.c.l.b16 %v3532
    %v3565 = vunpack.c.l.b16 %v3533
    %v3566 = vunpack.c.l.b16 %v3534
    %v3567 = vunpack.c.l.b16 %v3535
    %v3568 = vunpack.c.l.b16 %v3536
    %v3569 = vpack.c.b16 %v3554, %v3553
    %v3570 = vpack.c.b16 %v3556, %v3555
    %v3571 = vpack.c.b16 %v3558, %v3557
    %v3572 = vpack.c.b16 %v3560, %v3559
    %v3573 = vpack.c.b16 %v3562, %v3561
    %v3574 = vpack.c.b16 %v3564, %v3563
    %v3575 = vpack.c.b16 %v3566, %v3565
    %v3576 = vpack.c.b16 %v3568, %v3567
    %3585 = vmatprep.subr.bf16.mxu0 0
    %3586 = vmatpush1.bf16.msra.mxu0 %v3576
    %3587 = vmatprep.subr.bf16.mxu0 0
    %3588 = vmatpush1.bf16.msra.mxu0 %v3575
    %3589 = vmatprep.subr.bf16.mxu0 0
    %3590 = vmatpush1.bf16.msra.mxu0 %v3574
    %3591 = vmatprep.subr.bf16.mxu0 0
    %3592 = vmatpush1.bf16.msra.mxu0 %v3573
    %3593 = vmatprep.subr.bf16.mxu0 0
    %3594 = vmatpush1.bf16.msra.mxu0 %v3572
    %3595 = vmatprep.subr.bf16.mxu0 0
    %3596 = vmatpush1.bf16.msra.mxu0 %v3571
    %3597 = vmatprep.subr.bf16.mxu0 0
    %3598 = vmatpush1.bf16.msra.mxu0 %v3570
    %3599 = vmatprep.subr.bf16.mxu0 0
    %3600 = vmatpush1.bf16.msra.mxu0 %v3569
    %3601 = vmatprep.subr.bf16.mxu0 0
    %3602 = vmatpush2.bf16.msra.mxu0 0
    %3603 = vmatprep.subr.bf16.mxu0 0
    %3604 = vmatpush2.bf16.msra.mxu0 0
    %3605 = vmatprep.subr.bf16.mxu0 0
    %3606 = vmatpush2.bf16.msra.mxu0 0
    %3607 = vmatprep.subr.bf16.mxu0 0
    %3608 = vmatpush2.bf16.msra.mxu0 0
    %3609 = vmatprep.subr.bf16.mxu0 0
    %3610 = vmatpush2.bf16.msra.mxu0 0
    %3611 = vmatprep.subr.bf16.mxu0 0
    %3612 = vmatpush2.bf16.msra.mxu0 0
    %3613 = vmatprep.subr.bf16.mxu0 0
    %3614 = vmatpush2.bf16.msra.mxu0 0
    %3615 = vmatprep.subr.bf16.mxu0 0
    %3616 = vmatpush2.bf16.msra.mxu0 0
    %3617 = vmatprep.mubr.bf16.mxu0 0
    %3618 = vmatmul.mubr.bf16.gmra.mxu0 0
    %v3619 = vpop.f32.mrf.mxu0
    %v3620 = vadd.f32 0.0, %v3619
    %v3621 = vpop.f32.mrf.mxu0
    %v3622 = vpop.f32.mrf.mxu0
    %v3623 = vadd.f32 0.0, %v3622
    %v3624 = vpop.f32.mrf.mxu0
    %3625 = vmatprep.mubr.bf16.mxu0 0
    %3626 = vmatmul.mubr.bf16.gmra.mxu0 0
    %v3627 = vpop.f32.mrf.mxu0
    %v3628 = vadd.f32 0.0, %v3627
    %v3629 = vpop.f32.mrf.mxu0
    %v3630 = vpop.f32.mrf.mxu0
    %v3631 = vadd.f32 0.0, %v3630
    %v3632 = vpop.f32.mrf.mxu0
    %3633 = vmatprep.mubr.bf16.mxu0 0
    %3634 = vmatmul.mubr.bf16.gmra.mxu0 %v3334
    %v3635 = vpop.f32.mrf.mxu0
    %v3636 = vadd.f32 0.0, %v3635
    %v3637 = vpop.f32.mrf.mxu0
    %v3638 = vpop.f32.mrf.mxu0
    %v3639 = vadd.f32 0.0, %v3638
    %v3640 = vpop.f32.mrf.mxu0
    %3641 = vmatprep.mubr.bf16.mxu0 0
    %3642 = vmatmul.mubr.bf16.gmra.mxu0 %v3335
    %v3643 = vpop.f32.mrf.mxu0
    %v3644 = vadd.f32 0.0, %v3643
    %v3645 = vpop.f32.mrf.mxu0
    %v3646 = vpop.f32.mrf.mxu0
    %v3647 = vadd.f32 0.0, %v3646
    %v3648 = vpop.f32.mrf.mxu0
    %3649 = vmatprep.mubr.bf16.mxu0 0
    %3650 = vmatmul.mubr.bf16.gmra.mxu0 %v3336
    %v3651 = vpop.f32.mrf.mxu0
    %v3652 = vadd.f32 0.0, %v3651
    %v3653 = vpop.f32.mrf.mxu0
    %v3654 = vpop.f32.mrf.mxu0
    %v3655 = vadd.f32 0.0, %v3654
    %v3656 = vpop.f32.mrf.mxu0
    %3657 = vmatprep.mubr.bf16.mxu0 0
    %3658 = vmatmul.mubr.bf16.gmra.mxu0 %v3337
    %v3659 = vpop.f32.mrf.mxu0
    %v3660 = vadd.f32 0.0, %v3659
    %v3661 = vpop.f32.mrf.mxu0
    %v3662 = vpop.f32.mrf.mxu0
    %v3663 = vadd.f32 0.0, %v3662
    %v3664 = vpop.f32.mrf.mxu0
    %3665 = vmatprep.mubr.bf16.mxu0 0
    %3666 = vmatmul.mubr.bf16.gmra.mxu0 %v3338
    %v3667 = vpop.f32.mrf.mxu0
    %v3668 = vadd.f32 0.0, %v3667
    %v3669 = vpop.f32.mrf.mxu0
    %v3670 = vpop.f32.mrf.mxu0
    %v3671 = vadd.f32 0.0, %v3670
    %v3672 = vpop.f32.mrf.mxu0
    %3673 = vmatprep.mubr.bf16.mxu0 0
    %3674 = vmatmul.mubr.bf16.gmra.mxu0 %v3339
    %v3675 = vpop.f32.mrf.mxu0
    %v3676 = vadd.f32 0.0, %v3675
    %v3677 = vpop.f32.mrf.mxu0
    %v3678 = vpop.f32.mrf.mxu0
    %v3679 = vadd.f32 0.0, %v3678
    %v3680 = vpop.f32.mrf.mxu0
    %3681 = vmatprep.mubr.bf16.mxu0 0
    %3682 = vmatmul.mubr.bf16.gmra.mxu0 %v3340
    %v3683 = vpop.f32.mrf.mxu0
    %v3684 = vadd.f32 0.0, %v3683
    %v3685 = vpop.f32.mrf.mxu0
    %v3686 = vpop.f32.mrf.mxu0
    %v3687 = vadd.f32 0.0, %v3686
    %v3688 = vpop.f32.mrf.mxu0
    %3689 = vmatprep.mubr.bf16.mxu0 0
    %3690 = vmatmul.mubr.bf16.gmra.mxu0 %v3341
    %v3691 = vpop.f32.mrf.mxu0
    %v3692 = vadd.f32 0.0, %v3691
    %v3693 = vpop.f32.mrf.mxu0
    %v3694 = vpop.f32.mrf.mxu0
    %v3695 = vadd.f32 0.0, %v3694
    %v3696 = vpop.f32.mrf.mxu0
    %3697 = vmatprep.mubr.bf16.mxu0 0
    %3698 = vmatmul.mubr.bf16.gmra.mxu0 %v3342
    %v3699 = vpop.f32.mrf.mxu0
    %v3700 = vadd.f32 0.0, %v3699
    %v3701 = vpop.f32.mrf.mxu0
    %v3702 = vpop.f32.mrf.mxu0
    %v3703 = vadd.f32 0.0, %v3702
    %v3704 = vpop.f32.mrf.mxu0
    %3705 = vmatprep.mubr.bf16.mxu0 0
    %3706 = vmatmul.mubr.bf16.gmra.mxu0 %v3343
    %v3707 = vpop.f32.mrf.mxu0
    %v3708 = vadd.f32 0.0, %v3707
    %v3709 = vpop.f32.mrf.mxu0
    %v3710 = vpop.f32.mrf.mxu0
    %v3711 = vadd.f32 0.0, %v3710
    %v3712 = vpop.f32.mrf.mxu0
    %3713 = vmatprep.mubr.bf16.mxu0 0
    %3714 = vmatmul.mubr.bf16.gmra.mxu0 %v3344
    %v3715 = vpop.f32.mrf.mxu0
    %v3716 = vadd.f32 0.0, %v3715
    %v3717 = vpop.f32.mrf.mxu0
    %v3718 = vpop.f32.mrf.mxu0
    %v3719 = vadd.f32 0.0, %v3718
    %v3720 = vpop.f32.mrf.mxu0
    %3721 = vmatprep.mubr.bf16.mxu0 0
    %3722 = vmatmul.mubr.bf16.gmra.mxu0 %v3345
    %v3723 = vpop.f32.mrf.mxu0
    %v3724 = vadd.f32 0.0, %v3723
    %v3725 = vpop.f32.mrf.mxu0
    %v3726 = vpop.f32.mrf.mxu0
    %v3727 = vadd.f32 0.0, %v3726
    %v3728 = vpop.f32.mrf.mxu0
    %3729 = vmatprep.mubr.bf16.mxu0 0
    %3730 = vmatmul.mubr.bf16.gmra.mxu0 %v3346
    %v3731 = vpop.f32.mrf.mxu0
    %v3732 = vadd.f32 0.0, %v3731
    %v3733 = vpop.f32.mrf.mxu0
    %v3734 = vpop.f32.mrf.mxu0
    %v3735 = vadd.f32 0.0, %v3734
    %v3736 = vpop.f32.mrf.mxu0
    %3737 = vmatprep.mubr.bf16.mxu0 0
    %3738 = vmatmul.mubr.bf16.gmra.mxu0 %v3347
    %v3739 = vpop.f32.mrf.mxu0
    %v3740 = vadd.f32 0.0, %v3739
    %v3741 = vpop.f32.mrf.mxu0
    %v3742 = vpop.f32.mrf.mxu0
    %v3743 = vadd.f32 0.0, %v3742
    %v3744 = vpop.f32.mrf.mxu0
    %3745 = vdwg.mxu0
    %v3762 = vunpack.c.l.b16 %v3504
    %v3763 = vunpack.c.l.b16 %v3505
    %v3764 = vunpack.c.l.b16 %v3506
    %v3765 = vunpack.c.l.b16 %v3507
    %v3766 = vunpack.c.l.b16 %v3508
    %v3767 = vunpack.c.l.b16 %v3509
    %v3768 = vunpack.c.l.b16 %v3510
    %v3769 = vunpack.c.l.b16 %v3511
    %v3770 = vunpack.c.l.b16 %v3512
    %v3771 = vunpack.c.l.b16 %v3513
    %v3772 = vunpack.c.l.b16 %v3514
    %v3773 = vunpack.c.l.b16 %v3515
    %v3774 = vunpack.c.l.b16 %v3516
    %v3775 = vunpack.c.l.b16 %v3517
    %v3776 = vunpack.c.l.b16 %v3518
    %v3777 = vunpack.c.l.b16 %v3519
    %v3778 = vpack.c.b16 %v3763, %v3762
    %v3779 = vpack.c.b16 %v3765, %v3764
    %v3780 = vpack.c.b16 %v3767, %v3766
    %v3781 = vpack.c.b16 %v3769, %v3768
    %v3782 = vpack.c.b16 %v3771, %v3770
    %v3783 = vpack.c.b16 %v3773, %v3772
    %v3784 = vpack.c.b16 %v3775, %v3774
    %v3785 = vpack.c.b16 %v3777, %v3776
    %3794 = vmatprep.subr.bf16.mxu0 0
    %3795 = vmatpush1.bf16.msra.mxu0 %v3785
    %3796 = vmatprep.subr.bf16.mxu0 0
    %3797 = vmatpush1.bf16.msra.mxu0 %v3784
    %3798 = vmatprep.subr.bf16.mxu0 0
    %3799 = vmatpush1.bf16.msra.mxu0 %v3783
    %3800 = vmatprep.subr.bf16.mxu0 0
    %3801 = vmatpush1.bf16.msra.mxu0 %v3782
    %3802 = vmatprep.subr.bf16.mxu0 0
    %3803 = vmatpush1.bf16.msra.mxu0 %v3781
    %3804 = vmatprep.subr.bf16.mxu0 0
    %3805 = vmatpush1.bf16.msra.mxu0 %v3780
    %3806 = vmatprep.subr.bf16.mxu0 0
    %3807 = vmatpush1.bf16.msra.mxu0 %v3779
    %3808 = vmatprep.subr.bf16.mxu0 0
    %3809 = vmatpush1.bf16.msra.mxu0 %v3778
    %3810 = vmatprep.subr.bf16.mxu0 0
    %3811 = vmatpush2.bf16.msra.mxu0 0
    %3812 = vmatprep.subr.bf16.mxu0 0
    %3813 = vmatpush2.bf16.msra.mxu0 0
    %3814 = vmatprep.subr.bf16.mxu0 0
    %3815 = vmatpush2.bf16.msra.mxu0 0
    %3816 = vmatprep.subr.bf16.mxu0 0
    %3817 = vmatpush2.bf16.msra.mxu0 0
    %3818 = vmatprep.subr.bf16.mxu0 0
    %3819 = vmatpush2.bf16.msra.mxu0 0
    %3820 = vmatprep.subr.bf16.mxu0 0
    %3821 = vmatpush2.bf16.msra.mxu0 0
    %3822 = vmatprep.subr.bf16.mxu0 0
    %3823 = vmatpush2.bf16.msra.mxu0 0
    %3824 = vmatprep.subr.bf16.mxu0 0
    %3825 = vmatpush2.bf16.msra.mxu0 0
    %3826 = vmatprep.mubr.bf16.mxu0 0
    %3827 = vmatmul.mubr.bf16.gmra.mxu0 %v3386
    %v3828 = vpop.f32.mrf.mxu0
    %v3829 = vadd.f32 %v3620, %v3828
    %v3830 = vpop.f32.mrf.mxu0
    %v3831 = vpop.f32.mrf.mxu0
    %v3832 = vadd.f32 %v3623, %v3831
    %v3833 = vpop.f32.mrf.mxu0
    %3834 = vmatprep.mubr.bf16.mxu0 0
    %3835 = vmatmul.mubr.bf16.gmra.mxu0 %v3386
    %v3836 = vpop.f32.mrf.mxu0
    %v3837 = vadd.f32 %v3628, %v3836
    %v3838 = vpop.f32.mrf.mxu0
    %v3839 = vpop.f32.mrf.mxu0
    %v3840 = vadd.f32 %v3631, %v3839
    %v3841 = vpop.f32.mrf.mxu0
    %3842 = vmatprep.mubr.bf16.mxu0 0
    %3843 = vmatmul.mubr.bf16.gmra.mxu0 %v3389
    %v3844 = vpop.f32.mrf.mxu0
    %v3845 = vadd.f32 %v3636, %v3844
    %v3846 = vpop.f32.mrf.mxu0
    %v3847 = vpop.f32.mrf.mxu0
    %v3848 = vadd.f32 %v3639, %v3847
    %v3849 = vpop.f32.mrf.mxu0
    %3850 = vmatprep.mubr.bf16.mxu0 0
    %3851 = vmatmul.mubr.bf16.gmra.mxu0 %v3392
    %v3852 = vpop.f32.mrf.mxu0
    %v3853 = vadd.f32 %v3644, %v3852
    %v3854 = vpop.f32.mrf.mxu0
    %v3855 = vpop.f32.mrf.mxu0
    %v3856 = vadd.f32 %v3647, %v3855
    %v3857 = vpop.f32.mrf.mxu0
    %3858 = vmatprep.mubr.bf16.mxu0 0
    %3859 = vmatmul.mubr.bf16.gmra.mxu0 %v3395
    %v3860 = vpop.f32.mrf.mxu0
    %v3861 = vadd.f32 %v3652, %v3860
    %v3862 = vpop.f32.mrf.mxu0
    %v3863 = vpop.f32.mrf.mxu0
    %v3864 = vadd.f32 %v3655, %v3863
    %v3865 = vpop.f32.mrf.mxu0
    %3866 = vmatprep.mubr.bf16.mxu0 0
    %3867 = vmatmul.mubr.bf16.gmra.mxu0 %v3398
    %v3868 = vpop.f32.mrf.mxu0
    %v3869 = vadd.f32 %v3660, %v3868
    %v3870 = vpop.f32.mrf.mxu0
    %v3871 = vpop.f32.mrf.mxu0
    %v3872 = vadd.f32 %v3663, %v3871
    %v3873 = vpop.f32.mrf.mxu0
    %3874 = vmatprep.mubr.bf16.mxu0 0
    %3875 = vmatmul.mubr.bf16.gmra.mxu0 %v3401
    %v3876 = vpop.f32.mrf.mxu0
    %v3877 = vadd.f32 %v3668, %v3876
    %v3878 = vpop.f32.mrf.mxu0
    %v3879 = vpop.f32.mrf.mxu0
    %v3880 = vadd.f32 %v3671, %v3879
    %v3881 = vpop.f32.mrf.mxu0
    %3882 = vmatprep.mubr.bf16.mxu0 0
    %3883 = vmatmul.mubr.bf16.gmra.mxu0 %v3404
    %v3884 = vpop.f32.mrf.mxu0
    %v3885 = vadd.f32 %v3676, %v3884
    %v3886 = vpop.f32.mrf.mxu0
    %v3887 = vpop.f32.mrf.mxu0
    %v3888 = vadd.f32 %v3679, %v3887
    %v3889 = vpop.f32.mrf.mxu0
    %3890 = vmatprep.mubr.bf16.mxu0 0
    %3891 = vmatmul.mubr.bf16.gmra.mxu0 %v3407
    %v3892 = vpop.f32.mrf.mxu0
    %v3893 = vadd.f32 %v3684, %v3892
    %v3894 = vpop.f32.mrf.mxu0
    %v3895 = vpop.f32.mrf.mxu0
    %v3896 = vadd.f32 %v3687, %v3895
    %v3897 = vpop.f32.mrf.mxu0
    %3898 = vmatprep.mubr.bf16.mxu0 0
    %3899 = vmatmul.mubr.bf16.gmra.mxu0 %v3410
    %v3900 = vpop.f32.mrf.mxu0
    %v3901 = vadd.f32 %v3692, %v3900
    %v3902 = vpop.f32.mrf.mxu0
    %v3903 = vpop.f32.mrf.mxu0
    %v3904 = vadd.f32 %v3695, %v3903
    %v3905 = vpop.f32.mrf.mxu0
    %3906 = vmatprep.mubr.bf16.mxu0 0
    %3907 = vmatmul.mubr.bf16.gmra.mxu0 %v3413
    %v3908 = vpop.f32.mrf.mxu0
    %v3909 = vadd.f32 %v3700, %v3908
    %v3910 = vpop.f32.mrf.mxu0
    %v3911 = vpop.f32.mrf.mxu0
    %v3912 = vadd.f32 %v3703, %v3911
    %v3913 = vpop.f32.mrf.mxu0
    %3914 = vmatprep.mubr.bf16.mxu0 0
    %3915 = vmatmul.mubr.bf16.gmra.mxu0 %v3416
    %v3916 = vpop.f32.mrf.mxu0
    %v3917 = vadd.f32 %v3708, %v3916
    %v3918 = vpop.f32.mrf.mxu0
    %v3919 = vpop.f32.mrf.mxu0
    %v3920 = vadd.f32 %v3711, %v3919
    %v3921 = vpop.f32.mrf.mxu0
    %3922 = vmatprep.mubr.bf16.mxu0 0
    %3923 = vmatmul.mubr.bf16.gmra.mxu0 %v3419
    %v3924 = vpop.f32.mrf.mxu0
    %v3925 = vadd.f32 %v3716, %v3924
    %v3926 = vpop.f32.mrf.mxu0
    %v3927 = vpop.f32.mrf.mxu0
    %v3928 = vadd.f32 %v3719, %v3927
    %v3929 = vpop.f32.mrf.mxu0
    %3930 = vmatprep.mubr.bf16.mxu0 0
    %3931 = vmatmul.mubr.bf16.gmra.mxu0 %v3422
    %v3932 = vpop.f32.mrf.mxu0
    %v3933 = vadd.f32 %v3724, %v3932
    %v3934 = vpop.f32.mrf.mxu0
    %v3935 = vpop.f32.mrf.mxu0
    %v3936 = vadd.f32 %v3727, %v3935
    %v3937 = vpop.f32.mrf.mxu0
    %3938 = vmatprep.mubr.bf16.mxu0 0
    %3939 = vmatmul.mubr.bf16.gmra.mxu0 %v3425
    %v3940 = vpop.f32.mrf.mxu0
    %v3941 = vadd.f32 %v3732, %v3940
    %v3942 = vpop.f32.mrf.mxu0
    %v3943 = vpop.f32.mrf.mxu0
    %v3944 = vadd.f32 %v3735, %v3943
    %v3945 = vpop.f32.mrf.mxu0
    %3946 = vmatprep.mubr.bf16.mxu0 0
    %3947 = vmatmul.mubr.bf16.gmra.mxu0 %v3428
    %v3948 = vpop.f32.mrf.mxu0
    %v3949 = vadd.f32 %v3740, %v3948
    %v3950 = vpop.f32.mrf.mxu0
    %v3951 = vpop.f32.mrf.mxu0
    %v3952 = vadd.f32 %v3743, %v3951
    %v3953 = vpop.f32.mrf.mxu0
    %3954 = vdwg.mxu0
    %s3955 = scalar_lea.vmem [#allocation2], 128
    %v3956 = vld [vmem:[%s3955] sm:$0xf]
    %v3957 = vld [vmem:[%s3955 + $0x4] sm:$0xf]
    %v3958 = vld [vmem:[%s3955 + $0x8] sm:$0xf]
    %v3959 = vld [vmem:[%s3955 + $0xc] sm:$0xf]
    %v3960 = vld [vmem:[%s3955 + $0x10] sm:$0xf]
    %v3961 = vld [vmem:[%s3955 + $0x14] sm:$0xf]
    %v3962 = vld [vmem:[%s3955 + $0x18] sm:$0xf]
    %v3963 = vld [vmem:[%s3955 + $0x1c] sm:$0xf]
    %v3964 = vld [vmem:[%s3955 + $0x20] sm:$0xf]
    %v3965 = vld [vmem:[%s3955 + $0x24] sm:$0xf]
    %v3966 = vld [vmem:[%s3955 + $0x28] sm:$0xf]
    %v3967 = vld [vmem:[%s3955 + $0x2c] sm:$0xf]
    %v3968 = vld [vmem:[%s3955 + $0x30] sm:$0xf]
    %v3969 = vld [vmem:[%s3955 + $0x34] sm:$0xf]
    %v3970 = vld [vmem:[%s3955 + $0x38] sm:$0xf]
    %v3971 = vld [vmem:[%s3955 + $0x3c] sm:$0xf]
    %v3988 = vunpack.c.l.b16 %v3956
    %v3989 = vunpack.c.l.b16 %v3957
    %v3990 = vunpack.c.l.b16 %v3958
    %v3991 = vunpack.c.l.b16 %v3959
    %v3992 = vunpack.c.l.b16 %v3960
    %v3993 = vunpack.c.l.b16 %v3961
    %v3994 = vunpack.c.l.b16 %v3962
    %v3995 = vunpack.c.l.b16 %v3963
    %v3996 = vunpack.c.l.b16 %v3964
    %v3997 = vunpack.c.l.b16 %v3965
    %v3998 = vunpack.c.l.b16 %v3966
    %v3999 = vunpack.c.l.b16 %v3967
    %v4000 = vunpack.c.l.b16 %v3968
    %v4001 = vunpack.c.l.b16 %v3969
    %v4002 = vunpack.c.l.b16 %v3970
    %v4003 = vunpack.c.l.b16 %v3971
    %v4004 = vpack.c.b16 %v3989, %v3988
    %v4005 = vpack.c.b16 %v3991, %v3990
    %v4006 = vpack.c.b16 %v3993, %v3992
    %v4007 = vpack.c.b16 %v3995, %v3994
    %v4008 = vpack.c.b16 %v3997, %v3996
    %v4009 = vpack.c.b16 %v3999, %v3998
    %v4010 = vpack.c.b16 %v4001, %v4000
    %v4011 = vpack.c.b16 %v4003, %v4002
    %4020 = vmatprep.subr.bf16.mxu0 0
    %4021 = vmatpush1.bf16.msra.mxu0 %v4011
    %4022 = vmatprep.subr.bf16.mxu0 0
    %4023 = vmatpush1.bf16.msra.mxu0 %v4010
    %4024 = vmatprep.subr.bf16.mxu0 0
    %4025 = vmatpush1.bf16.msra.mxu0 %v4009
    %4026 = vmatprep.subr.bf16.mxu0 0
    %4027 = vmatpush1.bf16.msra.mxu0 %v4008
    %4028 = vmatprep.subr.bf16.mxu0 0
    %4029 = vmatpush1.bf16.msra.mxu0 %v4007
    %4030 = vmatprep.subr.bf16.mxu0 0
    %4031 = vmatpush1.bf16.msra.mxu0 %v4006
    %4032 = vmatprep.subr.bf16.mxu0 0
    %4033 = vmatpush1.bf16.msra.mxu0 %v4005
    %4034 = vmatprep.subr.bf16.mxu0 0
    %4035 = vmatpush1.bf16.msra.mxu0 %v4004
    %4036 = vmatprep.subr.bf16.mxu0 0
    %4037 = vmatpush2.bf16.msra.mxu0 0
    %4038 = vmatprep.subr.bf16.mxu0 0
    %4039 = vmatpush2.bf16.msra.mxu0 0
    %4040 = vmatprep.subr.bf16.mxu0 0
    %4041 = vmatpush2.bf16.msra.mxu0 0
    %4042 = vmatprep.subr.bf16.mxu0 0
    %4043 = vmatpush2.bf16.msra.mxu0 0
    %4044 = vmatprep.subr.bf16.mxu0 0
    %4045 = vmatpush2.bf16.msra.mxu0 0
    %4046 = vmatprep.subr.bf16.mxu0 0
    %4047 = vmatpush2.bf16.msra.mxu0 0
    %4048 = vmatprep.subr.bf16.mxu0 0
    %4049 = vmatpush2.bf16.msra.mxu0 0
    %4050 = vmatprep.subr.bf16.mxu0 0
    %4051 = vmatpush2.bf16.msra.mxu0 0
    %4052 = vmatprep.mubr.bf16.mxu0 0
    %4053 = vmatmul.mubr.bf16.gmra.mxu0 %v3454
    %v4054 = vpop.f32.mrf.mxu0
    %v4055 = vadd.f32 0.0, %v4054
    %v4056 = vpop.f32.mrf.mxu0
    %v4057 = vpop.f32.mrf.mxu0
    %v4058 = vadd.f32 0.0, %v4057
    %v4059 = vpop.f32.mrf.mxu0
    %4060 = vmatprep.mubr.bf16.mxu0 0
    %4061 = vmatmul.mubr.bf16.gmra.mxu0 %v3454
    %v4062 = vpop.f32.mrf.mxu0
    %v4063 = vadd.f32 0.0, %v4062
    %v4064 = vpop.f32.mrf.mxu0
    %v4065 = vpop.f32.mrf.mxu0
    %v4066 = vadd.f32 0.0, %v4065
    %v4067 = vpop.f32.mrf.mxu0
    %4068 = vmatprep.mubr.bf16.mxu0 0
    %4069 = vmatmul.mubr.bf16.gmra.mxu0 %v3457
    %v4070 = vpop.f32.mrf.mxu0
    %v4071 = vadd.f32 0.0, %v4070
    %v4072 = vpop.f32.mrf.mxu0
    %v4073 = vpop.f32.mrf.mxu0
    %v4074 = vadd.f32 0.0, %v4073
    %v4075 = vpop.f32.mrf.mxu0
    %4076 = vmatprep.mubr.bf16.mxu0 0
    %4077 = vmatmul.mubr.bf16.gmra.mxu0 %v3460
    %v4078 = vpop.f32.mrf.mxu0
    %v4079 = vadd.f32 0.0, %v4078
    %v4080 = vpop.f32.mrf.mxu0
    %v4081 = vpop.f32.mrf.mxu0
    %v4082 = vadd.f32 0.0, %v4081
    %v4083 = vpop.f32.mrf.mxu0
    %4084 = vmatprep.mubr.bf16.mxu0 0
    %4085 = vmatmul.mubr.bf16.gmra.mxu0 %v3463
    %v4086 = vpop.f32.mrf.mxu0
    %v4087 = vadd.f32 0.0, %v4086
    %v4088 = vpop.f32.mrf.mxu0
    %v4089 = vpop.f32.mrf.mxu0
    %v4090 = vadd.f32 0.0, %v4089
    %v4091 = vpop.f32.mrf.mxu0
    %4092 = vmatprep.mubr.bf16.mxu0 0
    %4093 = vmatmul.mubr.bf16.gmra.mxu0 %v3466
    %v4094 = vpop.f32.mrf.mxu0
    %v4095 = vadd.f32 0.0, %v4094
    %v4096 = vpop.f32.mrf.mxu0
    %v4097 = vpop.f32.mrf.mxu0
    %v4098 = vadd.f32 0.0, %v4097
    %v4099 = vpop.f32.mrf.mxu0
    %4100 = vmatprep.mubr.bf16.mxu0 0
    %4101 = vmatmul.mubr.bf16.gmra.mxu0 %v3469
    %v4102 = vpop.f32.mrf.mxu0
    %v4103 = vadd.f32 0.0, %v4102
    %v4104 = vpop.f32.mrf.mxu0
    %v4105 = vpop.f32.mrf.mxu0
    %v4106 = vadd.f32 0.0, %v4105
    %v4107 = vpop.f32.mrf.mxu0
    %4108 = vmatprep.mubr.bf16.mxu0 0
    %4109 = vmatmul.mubr.bf16.gmra.mxu0 %v3472
    %v4110 = vpop.f32.mrf.mxu0
    %v4111 = vadd.f32 0.0, %v4110
    %v4112 = vpop.f32.mrf.mxu0
    %v4113 = vpop.f32.mrf.mxu0
    %v4114 = vadd.f32 0.0, %v4113
    %v4115 = vpop.f32.mrf.mxu0
    %4116 = vmatprep.mubr.bf16.mxu0 0
    %4117 = vmatmul.mubr.bf16.gmra.mxu0 %v3475
    %v4118 = vpop.f32.mrf.mxu0
    %v4119 = vadd.f32 0.0, %v4118
    %v4120 = vpop.f32.mrf.mxu0
    %v4121 = vpop.f32.mrf.mxu0
    %v4122 = vadd.f32 0.0, %v4121
    %v4123 = vpop.f32.mrf.mxu0
    %4124 = vmatprep.mubr.bf16.mxu0 0
    %4125 = vmatmul.mubr.bf16.gmra.mxu0 %v3478
    %v4126 = vpop.f32.mrf.mxu0
    %v4127 = vadd.f32 0.0, %v4126
    %v4128 = vpop.f32.mrf.mxu0
    %v4129 = vpop.f32.mrf.mxu0
    %v4130 = vadd.f32 0.0, %v4129
    %v4131 = vpop.f32.mrf.mxu0
    %4132 = vmatprep.mubr.bf16.mxu0 0
    %4133 = vmatmul.mubr.bf16.gmra.mxu0 %v3481
    %v4134 = vpop.f32.mrf.mxu0
    %v4135 = vadd.f32 0.0, %v4134
    %v4136 = vpop.f32.mrf.mxu0
    %v4137 = vpop.f32.mrf.mxu0
    %v4138 = vadd.f32 0.0, %v4137
    %v4139 = vpop.f32.mrf.mxu0
    %4140 = vmatprep.mubr.bf16.mxu0 0
    %4141 = vmatmul.mubr.bf16.gmra.mxu0 %v3484
    %v4142 = vpop.f32.mrf.mxu0
    %v4143 = vadd.f32 0.0, %v4142
    %v4144 = vpop.f32.mrf.mxu0
    %v4145 = vpop.f32.mrf.mxu0
    %v4146 = vadd.f32 0.0, %v4145
    %v4147 = vpop.f32.mrf.mxu0
    %4148 = vmatprep.mubr.bf16.mxu0 0
    %4149 = vmatmul.mubr.bf16.gmra.mxu0 %v3487
    %v4150 = vpop.f32.mrf.mxu0
    %v4151 = vadd.f32 0.0, %v4150
    %v4152 = vpop.f32.mrf.mxu0
    %v4153 = vpop.f32.mrf.mxu0
    %v4154 = vadd.f32 0.0, %v4153
    %v4155 = vpop.f32.mrf.mxu0
    %4156 = vmatprep.mubr.bf16.mxu0 0
    %4157 = vmatmul.mubr.bf16.gmra.mxu0 %v3490
    %v4158 = vpop.f32.mrf.mxu0
    %v4159 = vadd.f32 0.0, %v4158
    %v4160 = vpop.f32.mrf.mxu0
    %v4161 = vpop.f32.mrf.mxu0
    %v4162 = vadd.f32 0.0, %v4161
    %v4163 = vpop.f32.mrf.mxu0
    %4164 = vmatprep.mubr.bf16.mxu0 0
    %4165 = vmatmul.mubr.bf16.gmra.mxu0 %v3493
    %v4166 = vpop.f32.mrf.mxu0
    %v4167 = vadd.f32 0.0, %v4166
    %v4168 = vpop.f32.mrf.mxu0
    %v4169 = vpop.f32.mrf.mxu0
    %v4170 = vadd.f32 0.0, %v4169
    %v4171 = vpop.f32.mrf.mxu0
    %4172 = vmatprep.mubr.bf16.mxu0 0
    %4173 = vmatmul.mubr.bf16.gmra.mxu0 %v3496
    %v4174 = vpop.f32.mrf.mxu0
    %v4175 = vadd.f32 0.0, %v4174
    %v4176 = vpop.f32.mrf.mxu0
    %v4177 = vpop.f32.mrf.mxu0
    %v4178 = vadd.f32 0.0, %v4177
    %v4179 = vpop.f32.mrf.mxu0
    %4180 = vdwg.mxu0
    %v4181 = vadd.f32 %v3829, %v4055
    %v4182 = vadd.f32 %v3832, %v4058
    %v4183 = vadd.f32 %v3837, %v4063
    %v4184 = vadd.f32 %v3840, %v4066
    %v4185 = vadd.f32 %v3845, %v4071
    %v4186 = vadd.f32 %v3848, %v4074
    %v4187 = vadd.f32 %v3853, %v4079
    %v4188 = vadd.f32 %v3856, %v4082
    %v4189 = vadd.f32 %v3861, %v4087
    %v4190 = vadd.f32 %v3864, %v4090
    %v4191 = vadd.f32 %v3869, %v4095
    %v4192 = vadd.f32 %v3872, %v4098
    %v4193 = vadd.f32 %v3877, %v4103
    %v4194 = vadd.f32 %v3880, %v4106
    %v4195 = vadd.f32 %v3885, %v4111
    %v4196 = vadd.f32 %v3888, %v4114
    %v4197 = vadd.f32 %v3893, %v4119
    %v4198 = vadd.f32 %v3896, %v4122
    %v4199 = vadd.f32 %v3901, %v4127
    %v4200 = vadd.f32 %v3904, %v4130
    %v4201 = vadd.f32 %v3909, %v4135
    %v4202 = vadd.f32 %v3912, %v4138
    %v4203 = vadd.f32 %v3917, %v4143
    %v4204 = vadd.f32 %v3920, %v4146
    %v4205 = vadd.f32 %v3925, %v4151
    %v4206 = vadd.f32 %v3928, %v4154
    %v4207 = vadd.f32 %v3933, %v4159
    %v4208 = vadd.f32 %v3936, %v4162
    %v4209 = vadd.f32 %v3941, %v4167
    %v4210 = vadd.f32 %v3944, %v4170
    %v4211 = vadd.f32 %v3949, %v4175
    %v4212 = vadd.f32 %v3952, %v4178
    %s4213 = scalar_lea.vmem [#allocation2], 192
    %v4214 = vld [vmem:[%s4213] sm:$0xf]
    %v4215 = vld [vmem:[%s4213 + $0x4] sm:$0xf]
    %v4216 = vld [vmem:[%s4213 + $0x8] sm:$0xf]
    %v4217 = vld [vmem:[%s4213 + $0xc] sm:$0xf]
    %v4218 = vld [vmem:[%s4213 + $0x10] sm:$0xf]
    %v4219 = vld [vmem:[%s4213 + $0x14] sm:$0xf]
    %v4220 = vld [vmem:[%s4213 + $0x18] sm:$0xf]
    %v4221 = vld [vmem:[%s4213 + $0x1c] sm:$0xf]
    %v4222 = vld [vmem:[%s4213 + $0x20] sm:$0xf]
    %v4223 = vld [vmem:[%s4213 + $0x24] sm:$0xf]
    %v4224 = vld [vmem:[%s4213 + $0x28] sm:$0xf]
    %v4225 = vld [vmem:[%s4213 + $0x2c] sm:$0xf]
    %v4226 = vld [vmem:[%s4213 + $0x30] sm:$0xf]
    %v4227 = vld [vmem:[%s4213 + $0x34] sm:$0xf]
    %v4228 = vld [vmem:[%s4213 + $0x38] sm:$0xf]
    %v4229 = vld [vmem:[%s4213 + $0x3c] sm:$0xf]
    %v4246 = vunpack.c.l.b16 %v4214
    %v4247 = vunpack.c.l.b16 %v4215
    %v4248 = vunpack.c.l.b16 %v4216
    %v4249 = vunpack.c.l.b16 %v4217
    %v4250 = vunpack.c.l.b16 %v4218
    %v4251 = vunpack.c.l.b16 %v4219
    %v4252 = vunpack.c.l.b16 %v4220
    %v4253 = vunpack.c.l.b16 %v4221
    %v4254 = vunpack.c.l.b16 %v4222
    %v4255 = vunpack.c.l.b16 %v4223
    %v4256 = vunpack.c.l.b16 %v4224
    %v4257 = vunpack.c.l.b16 %v4225
    %v4258 = vunpack.c.l.b16 %v4226
    %v4259 = vunpack.c.l.b16 %v4227
    %v4260 = vunpack.c.l.b16 %v4228
    %v4261 = vunpack.c.l.b16 %v4229
    %v4262 = vpack.c.b16 %v4247, %v4246
    %v4263 = vpack.c.b16 %v4249, %v4248
    %v4264 = vpack.c.b16 %v4251, %v4250
    %v4265 = vpack.c.b16 %v4253, %v4252
    %v4266 = vpack.c.b16 %v4255, %v4254
    %v4267 = vpack.c.b16 %v4257, %v4256
    %v4268 = vpack.c.b16 %v4259, %v4258
    %v4269 = vpack.c.b16 %v4261, %v4260
    %4278 = vmatprep.subr.bf16.mxu0 0
    %4279 = vmatpush1.bf16.msra.mxu0 %v4269
    %4280 = vmatprep.subr.bf16.mxu0 0
    %4281 = vmatpush1.bf16.msra.mxu0 %v4268
    %4282 = vmatprep.subr.bf16.mxu0 0
    %4283 = vmatpush1.bf16.msra.mxu0 %v4267
    %4284 = vmatprep.subr.bf16.mxu0 0
    %4285 = vmatpush1.bf16.msra.mxu0 %v4266
    %4286 = vmatprep.subr.bf16.mxu0 0
    %4287 = vmatpush1.bf16.msra.mxu0 %v4265
    %4288 = vmatprep.subr.bf16.mxu0 0
    %4289 = vmatpush1.bf16.msra.mxu0 %v4264
    %4290 = vmatprep.subr.bf16.mxu0 0
    %4291 = vmatpush1.bf16.msra.mxu0 %v4263
    %4292 = vmatprep.subr.bf16.mxu0 0
    %4293 = vmatpush1.bf16.msra.mxu0 %v4262
    %4294 = vmatprep.subr.bf16.mxu0 0
    %4295 = vmatpush2.bf16.msra.mxu0 0
    %4296 = vmatprep.subr.bf16.mxu0 0
    %4297 = vmatpush2.bf16.msra.mxu0 0
    %4298 = vmatprep.subr.bf16.mxu0 0
    %4299 = vmatpush2.bf16.msra.mxu0 0
    %4300 = vmatprep.subr.bf16.mxu0 0
    %4301 = vmatpush2.bf16.msra.mxu0 0
    %4302 = vmatprep.subr.bf16.mxu0 0
    %4303 = vmatpush2.bf16.msra.mxu0 0
    %4304 = vmatprep.subr.bf16.mxu0 0
    %4305 = vmatpush2.bf16.msra.mxu0 0
    %4306 = vmatprep.subr.bf16.mxu0 0
    %4307 = vmatpush2.bf16.msra.mxu0 0
    %4308 = vmatprep.subr.bf16.mxu0 0
    %4309 = vmatpush2.bf16.msra.mxu0 0
    %4310 = vmatprep.mubr.bf16.mxu0 0
    %4311 = vmatmul.mubr.bf16.gmra.mxu0 %v3389
    %v4312 = vpop.f32.mrf.mxu0
    %v4313 = vadd.f32 0.0, %v4312
    %v4314 = vpop.f32.mrf.mxu0
    %v4315 = vpop.f32.mrf.mxu0
    %v4316 = vadd.f32 0.0, %v4315
    %v4317 = vpop.f32.mrf.mxu0
    %4318 = vmatprep.mubr.bf16.mxu0 0
    %4319 = vmatmul.mubr.bf16.gmra.mxu0 %v3392
    %v4320 = vpop.f32.mrf.mxu0
    %v4321 = vadd.f32 0.0, %v4320
    %v4322 = vpop.f32.mrf.mxu0
    %v4323 = vpop.f32.mrf.mxu0
    %v4324 = vadd.f32 0.0, %v4323
    %v4325 = vpop.f32.mrf.mxu0
    %4326 = vmatprep.mubr.bf16.mxu0 0
    %4327 = vmatmul.mubr.bf16.gmra.mxu0 %v3395
    %v4328 = vpop.f32.mrf.mxu0
    %v4329 = vadd.f32 0.0, %v4328
    %v4330 = vpop.f32.mrf.mxu0
    %v4331 = vpop.f32.mrf.mxu0
    %v4332 = vadd.f32 0.0, %v4331
    %v4333 = vpop.f32.mrf.mxu0
    %4334 = vmatprep.mubr.bf16.mxu0 0
    %4335 = vmatmul.mubr.bf16.gmra.mxu0 %v3398
    %v4336 = vpop.f32.mrf.mxu0
    %v4337 = vadd.f32 0.0, %v4336
    %v4338 = vpop.f32.mrf.mxu0
    %v4339 = vpop.f32.mrf.mxu0
    %v4340 = vadd.f32 0.0, %v4339
    %v4341 = vpop.f32.mrf.mxu0
    %4342 = vmatprep.mubr.bf16.mxu0 0
    %4343 = vmatmul.mubr.bf16.gmra.mxu0 %v3401
    %v4344 = vpop.f32.mrf.mxu0
    %v4345 = vadd.f32 0.0, %v4344
    %v4346 = vpop.f32.mrf.mxu0
    %v4347 = vpop.f32.mrf.mxu0
    %v4348 = vadd.f32 0.0, %v4347
    %v4349 = vpop.f32.mrf.mxu0
    %4350 = vmatprep.mubr.bf16.mxu0 0
    %4351 = vmatmul.mubr.bf16.gmra.mxu0 %v3404
    %v4352 = vpop.f32.mrf.mxu0
    %v4353 = vadd.f32 0.0, %v4352
    %v4354 = vpop.f32.mrf.mxu0
    %v4355 = vpop.f32.mrf.mxu0
    %v4356 = vadd.f32 0.0, %v4355
    %v4357 = vpop.f32.mrf.mxu0
    %4358 = vmatprep.mubr.bf16.mxu0 0
    %4359 = vmatmul.mubr.bf16.gmra.mxu0 %v3407
    %v4360 = vpop.f32.mrf.mxu0
    %v4361 = vadd.f32 0.0, %v4360
    %v4362 = vpop.f32.mrf.mxu0
    %v4363 = vpop.f32.mrf.mxu0
    %v4364 = vadd.f32 0.0, %v4363
    %v4365 = vpop.f32.mrf.mxu0
    %4366 = vmatprep.mubr.bf16.mxu0 0
    %4367 = vmatmul.mubr.bf16.gmra.mxu0 %v3410
    %v4368 = vpop.f32.mrf.mxu0
    %v4369 = vadd.f32 0.0, %v4368
    %v4370 = vpop.f32.mrf.mxu0
    %v4371 = vpop.f32.mrf.mxu0
    %v4372 = vadd.f32 0.0, %v4371
    %v4373 = vpop.f32.mrf.mxu0
    %4374 = vmatprep.mubr.bf16.mxu0 0
    %4375 = vmatmul.mubr.bf16.gmra.mxu0 %v3413
    %v4376 = vpop.f32.mrf.mxu0
    %v4377 = vadd.f32 0.0, %v4376
    %v4378 = vpop.f32.mrf.mxu0
    %v4379 = vpop.f32.mrf.mxu0
    %v4380 = vadd.f32 0.0, %v4379
    %v4381 = vpop.f32.mrf.mxu0
    %4382 = vmatprep.mubr.bf16.mxu0 0
    %4383 = vmatmul.mubr.bf16.gmra.mxu0 %v3416
    %v4384 = vpop.f32.mrf.mxu0
    %v4385 = vadd.f32 0.0, %v4384
    %v4386 = vpop.f32.mrf.mxu0
    %v4387 = vpop.f32.mrf.mxu0
    %v4388 = vadd.f32 0.0, %v4387
    %v4389 = vpop.f32.mrf.mxu0
    %4390 = vmatprep.mubr.bf16.mxu0 0
    %4391 = vmatmul.mubr.bf16.gmra.mxu0 %v3419
    %v4392 = vpop.f32.mrf.mxu0
    %v4393 = vadd.f32 0.0, %v4392
    %v4394 = vpop.f32.mrf.mxu0
    %v4395 = vpop.f32.mrf.mxu0
    %v4396 = vadd.f32 0.0, %v4395
    %v4397 = vpop.f32.mrf.mxu0
    %4398 = vmatprep.mubr.bf16.mxu0 0
    %4399 = vmatmul.mubr.bf16.gmra.mxu0 %v3422
    %v4400 = vpop.f32.mrf.mxu0
    %v4401 = vadd.f32 0.0, %v4400
    %v4402 = vpop.f32.mrf.mxu0
    %v4403 = vpop.f32.mrf.mxu0
    %v4404 = vadd.f32 0.0, %v4403
    %v4405 = vpop.f32.mrf.mxu0
    %4406 = vmatprep.mubr.bf16.mxu0 0
    %4407 = vmatmul.mubr.bf16.gmra.mxu0 %v3425
    %v4408 = vpop.f32.mrf.mxu0
    %v4409 = vadd.f32 0.0, %v4408
    %v4410 = vpop.f32.mrf.mxu0
    %v4411 = vpop.f32.mrf.mxu0
    %v4412 = vadd.f32 0.0, %v4411
    %v4413 = vpop.f32.mrf.mxu0
    %4414 = vmatprep.mubr.bf16.mxu0 0
    %4415 = vmatmul.mubr.bf16.gmra.mxu0 %v3428
    %v4416 = vpop.f32.mrf.mxu0
    %v4417 = vadd.f32 0.0, %v4416
    %v4418 = vpop.f32.mrf.mxu0
    %v4419 = vpop.f32.mrf.mxu0
    %v4420 = vadd.f32 0.0, %v4419
    %v4421 = vpop.f32.mrf.mxu0
    %4422 = vmatprep.mubr.bf16.mxu0 0
    %4423 = vmatmul.mubr.bf16.gmra.mxu0 %v3431
    %v4424 = vpop.f32.mrf.mxu0
    %v4425 = vadd.f32 0.0, %v4424
    %v4426 = vpop.f32.mrf.mxu0
    %v4427 = vpop.f32.mrf.mxu0
    %v4428 = vadd.f32 0.0, %v4427
    %v4429 = vpop.f32.mrf.mxu0
    %4430 = vmatprep.mubr.bf16.mxu0 0
    %4431 = vmatmul.mubr.bf16.gmra.mxu0 %v3434
    %v4432 = vpop.f32.mrf.mxu0
    %v4433 = vadd.f32 0.0, %v4432
    %v4434 = vpop.f32.mrf.mxu0
    %v4435 = vpop.f32.mrf.mxu0
    %v4436 = vadd.f32 0.0, %v4435
    %v4437 = vpop.f32.mrf.mxu0
    %4438 = vdwg.mxu0
    %v4439 = vadd.f32 %v4181, %v4313
    %v4440 = vadd.f32 %v4182, %v4316
    %v4441 = vadd.f32 %v4183, %v4321
    %v4442 = vadd.f32 %v4184, %v4324
    %v4443 = vadd.f32 %v4185, %v4329
    %v4444 = vadd.f32 %v4186, %v4332
    %v4445 = vadd.f32 %v4187, %v4337
    %v4446 = vadd.f32 %v4188, %v4340
    %v4447 = vadd.f32 %v4189, %v4345
    %v4448 = vadd.f32 %v4190, %v4348
    %v4449 = vadd.f32 %v4191, %v4353
    %v4450 = vadd.f32 %v4192, %v4356
    %v4451 = vadd.f32 %v4193, %v4361
    %v4452 = vadd.f32 %v4194, %v4364
    %v4453 = vadd.f32 %v4195, %v4369
    %v4454 = vadd.f32 %v4196, %v4372
    %v4455 = vadd.f32 %v4197, %v4377
    %v4456 = vadd.f32 %v4198, %v4380
    %v4457 = vadd.f32 %v4199, %v4385
    %v4458 = vadd.f32 %v4200, %v4388
    %v4459 = vadd.f32 %v4201, %v4393
    %v4460 = vadd.f32 %v4202, %v4396
    %v4461 = vadd.f32 %v4203, %v4401
    %v4462 = vadd.f32 %v4204, %v4404
    %v4463 = vadd.f32 %v4205, %v4409
    %v4464 = vadd.f32 %v4206, %v4412
    %v4465 = vadd.f32 %v4207, %v4417
    %v4466 = vadd.f32 %v4208, %v4420
    %v4467 = vadd.f32 %v4209, %v4425
    %v4468 = vadd.f32 %v4210, %v4428
    %v4469 = vadd.f32 %v4211, %v4433
    %v4470 = vadd.f32 %v4212, %v4436
    %s4471 = scalar_lea.vmem [#allocation2], 256
    %v4472 = vld [vmem:[%s4471] sm:$0xf]
    %v4473 = vld [vmem:[%s4471 + $0x4] sm:$0xf]
    %v4474 = vld [vmem:[%s4471 + $0x8] sm:$0xf]
    %v4475 = vld [vmem:[%s4471 + $0xc] sm:$0xf]
    %v4476 = vld [vmem:[%s4471 + $0x10] sm:$0xf]
    %v4477 = vld [vmem:[%s4471 + $0x14] sm:$0xf]
    %v4478 = vld [vmem:[%s4471 + $0x18] sm:$0xf]
    %v4479 = vld [vmem:[%s4471 + $0x1c] sm:$0xf]
    %v4480 = vld [vmem:[%s4471 + $0x20] sm:$0xf]
    %v4481 = vld [vmem:[%s4471 + $0x24] sm:$0xf]
    %v4482 = vld [vmem:[%s4471 + $0x28] sm:$0xf]
    %v4483 = vld [vmem:[%s4471 + $0x2c] sm:$0xf]
    %v4484 = vld [vmem:[%s4471 + $0x30] sm:$0xf]
    %v4485 = vld [vmem:[%s4471 + $0x34] sm:$0xf]
    %v4486 = vld [vmem:[%s4471 + $0x38] sm:$0xf]
    %v4487 = vld [vmem:[%s4471 + $0x3c] sm:$0xf]
    %v4504 = vunpack.c.l.b16 %v4472
    %v4505 = vunpack.c.l.b16 %v4473
    %v4506 = vunpack.c.l.b16 %v4474
    %v4507 = vunpack.c.l.b16 %v4475
    %v4508 = vunpack.c.l.b16 %v4476
    %v4509 = vunpack.c.l.b16 %v4477
    %v4510 = vunpack.c.l.b16 %v4478
    %v4511 = vunpack.c.l.b16 %v4479
    %v4512 = vunpack.c.l.b16 %v4480
    %v4513 = vunpack.c.l.b16 %v4481
    %v4514 = vunpack.c.l.b16 %v4482
    %v4515 = vunpack.c.l.b16 %v4483
    %v4516 = vunpack.c.l.b16 %v4484
    %v4517 = vunpack.c.l.b16 %v4485
    %v4518 = vunpack.c.l.b16 %v4486
    %v4519 = vunpack.c.l.b16 %v4487
    %v4520 = vpack.c.b16 %v4505, %v4504
    %v4521 = vpack.c.b16 %v4507, %v4506
    %v4522 = vpack.c.b16 %v4509, %v4508
    %v4523 = vpack.c.b16 %v4511, %v4510
    %v4524 = vpack.c.b16 %v4513, %v4512
    %v4525 = vpack.c.b16 %v4515, %v4514
    %v4526 = vpack.c.b16 %v4517, %v4516
    %v4527 = vpack.c.b16 %v4519, %v4518
    %4536 = vmatprep.subr.bf16.mxu0 0
    %4537 = vmatpush1.bf16.msra.mxu0 %v4527
    %4538 = vmatprep.subr.bf16.mxu0 0
    %4539 = vmatpush1.bf16.msra.mxu0 %v4526
    %4540 = vmatprep.subr.bf16.mxu0 0
    %4541 = vmatpush1.bf16.msra.mxu0 %v4525
    %4542 = vmatprep.subr.bf16.mxu0 0
    %4543 = vmatpush1.bf16.msra.mxu0 %v4524
    %4544 = vmatprep.subr.bf16.mxu0 0
    %4545 = vmatpush1.bf16.msra.mxu0 %v4523
    %4546 = vmatprep.subr.bf16.mxu0 0
    %4547 = vmatpush1.bf16.msra.mxu0 %v4522
    %4548 = vmatprep.subr.bf16.mxu0 0
    %4549 = vmatpush1.bf16.msra.mxu0 %v4521
    %4550 = vmatprep.subr.bf16.mxu0 0
    %4551 = vmatpush1.bf16.msra.mxu0 %v4520
    %4552 = vmatprep.subr.bf16.mxu0 0
    %4553 = vmatpush2.bf16.msra.mxu0 0
    %4554 = vmatprep.subr.bf16.mxu0 0
    %4555 = vmatpush2.bf16.msra.mxu0 0
    %4556 = vmatprep.subr.bf16.mxu0 0
    %4557 = vmatpush2.bf16.msra.mxu0 0
    %4558 = vmatprep.subr.bf16.mxu0 0
    %4559 = vmatpush2.bf16.msra.mxu0 0
    %4560 = vmatprep.subr.bf16.mxu0 0
    %4561 = vmatpush2.bf16.msra.mxu0 0
    %4562 = vmatprep.subr.bf16.mxu0 0
    %4563 = vmatpush2.bf16.msra.mxu0 0
    %4564 = vmatprep.subr.bf16.mxu0 0
    %4565 = vmatpush2.bf16.msra.mxu0 0
    %4566 = vmatprep.subr.bf16.mxu0 0
    %4567 = vmatpush2.bf16.msra.mxu0 0
    %4568 = vmatprep.mubr.bf16.mxu0 0
    %4569 = vmatmul.mubr.bf16.gmra.mxu0 %v3334
    %v4570 = vpop.f32.mrf.mxu0
    %v4571 = vadd.f32 0.0, %v4570
    %v4572 = vpop.f32.mrf.mxu0
    %v4573 = vpop.f32.mrf.mxu0
    %v4574 = vadd.f32 0.0, %v4573
    %v4575 = vpop.f32.mrf.mxu0
    %4576 = vmatprep.mubr.bf16.mxu0 0
    %4577 = vmatmul.mubr.bf16.gmra.mxu0 %v3335
    %v4578 = vpop.f32.mrf.mxu0
    %v4579 = vadd.f32 0.0, %v4578
    %v4580 = vpop.f32.mrf.mxu0
    %v4581 = vpop.f32.mrf.mxu0
    %v4582 = vadd.f32 0.0, %v4581
    %v4583 = vpop.f32.mrf.mxu0
    %4584 = vmatprep.mubr.bf16.mxu0 0
    %4585 = vmatmul.mubr.bf16.gmra.mxu0 %v3336
    %v4586 = vpop.f32.mrf.mxu0
    %v4587 = vadd.f32 0.0, %v4586
    %v4588 = vpop.f32.mrf.mxu0
    %v4589 = vpop.f32.mrf.mxu0
    %v4590 = vadd.f32 0.0, %v4589
    %v4591 = vpop.f32.mrf.mxu0
    %4592 = vmatprep.mubr.bf16.mxu0 0
    %4593 = vmatmul.mubr.bf16.gmra.mxu0 %v3337
    %v4594 = vpop.f32.mrf.mxu0
    %v4595 = vadd.f32 0.0, %v4594
    %v4596 = vpop.f32.mrf.mxu0
    %v4597 = vpop.f32.mrf.mxu0
    %v4598 = vadd.f32 0.0, %v4597
    %v4599 = vpop.f32.mrf.mxu0
    %4600 = vmatprep.mubr.bf16.mxu0 0
    %4601 = vmatmul.mubr.bf16.gmra.mxu0 %v3338
    %v4602 = vpop.f32.mrf.mxu0
    %v4603 = vadd.f32 0.0, %v4602
    %v4604 = vpop.f32.mrf.mxu0
    %v4605 = vpop.f32.mrf.mxu0
    %v4606 = vadd.f32 0.0, %v4605
    %v4607 = vpop.f32.mrf.mxu0
    %4608 = vmatprep.mubr.bf16.mxu0 0
    %4609 = vmatmul.mubr.bf16.gmra.mxu0 %v3339
    %v4610 = vpop.f32.mrf.mxu0
    %v4611 = vadd.f32 0.0, %v4610
    %v4612 = vpop.f32.mrf.mxu0
    %v4613 = vpop.f32.mrf.mxu0
    %v4614 = vadd.f32 0.0, %v4613
    %v4615 = vpop.f32.mrf.mxu0
    %4616 = vmatprep.mubr.bf16.mxu0 0
    %4617 = vmatmul.mubr.bf16.gmra.mxu0 %v3340
    %v4618 = vpop.f32.mrf.mxu0
    %v4619 = vadd.f32 0.0, %v4618
    %v4620 = vpop.f32.mrf.mxu0
    %v4621 = vpop.f32.mrf.mxu0
    %v4622 = vadd.f32 0.0, %v4621
    %v4623 = vpop.f32.mrf.mxu0
    %4624 = vmatprep.mubr.bf16.mxu0 0
    %4625 = vmatmul.mubr.bf16.gmra.mxu0 %v3341
    %v4626 = vpop.f32.mrf.mxu0
    %v4627 = vadd.f32 0.0, %v4626
    %v4628 = vpop.f32.mrf.mxu0
    %v4629 = vpop.f32.mrf.mxu0
    %v4630 = vadd.f32 0.0, %v4629
    %v4631 = vpop.f32.mrf.mxu0
    %4632 = vmatprep.mubr.bf16.mxu0 0
    %4633 = vmatmul.mubr.bf16.gmra.mxu0 %v3342
    %v4634 = vpop.f32.mrf.mxu0
    %v4635 = vadd.f32 0.0, %v4634
    %v4636 = vpop.f32.mrf.mxu0
    %v4637 = vpop.f32.mrf.mxu0
    %v4638 = vadd.f32 0.0, %v4637
    %v4639 = vpop.f32.mrf.mxu0
    %4640 = vmatprep.mubr.bf16.mxu0 0
    %4641 = vmatmul.mubr.bf16.gmra.mxu0 %v3343
    %v4642 = vpop.f32.mrf.mxu0
    %v4643 = vadd.f32 0.0, %v4642
    %v4644 = vpop.f32.mrf.mxu0
    %v4645 = vpop.f32.mrf.mxu0
    %v4646 = vadd.f32 0.0, %v4645
    %v4647 = vpop.f32.mrf.mxu0
    %4648 = vmatprep.mubr.bf16.mxu0 0
    %4649 = vmatmul.mubr.bf16.gmra.mxu0 %v3344
    %v4650 = vpop.f32.mrf.mxu0
    %v4651 = vadd.f32 0.0, %v4650
    %v4652 = vpop.f32.mrf.mxu0
    %v4653 = vpop.f32.mrf.mxu0
    %v4654 = vadd.f32 0.0, %v4653
    %v4655 = vpop.f32.mrf.mxu0
    %4656 = vmatprep.mubr.bf16.mxu0 0
    %4657 = vmatmul.mubr.bf16.gmra.mxu0 %v3345
    %v4658 = vpop.f32.mrf.mxu0
    %v4659 = vadd.f32 0.0, %v4658
    %v4660 = vpop.f32.mrf.mxu0
    %v4661 = vpop.f32.mrf.mxu0
    %v4662 = vadd.f32 0.0, %v4661
    %v4663 = vpop.f32.mrf.mxu0
    %4664 = vmatprep.mubr.bf16.mxu0 0
    %4665 = vmatmul.mubr.bf16.gmra.mxu0 %v3346
    %v4666 = vpop.f32.mrf.mxu0
    %v4667 = vadd.f32 0.0, %v4666
    %v4668 = vpop.f32.mrf.mxu0
    %v4669 = vpop.f32.mrf.mxu0
    %v4670 = vadd.f32 0.0, %v4669
    %v4671 = vpop.f32.mrf.mxu0
    %4672 = vmatprep.mubr.bf16.mxu0 0
    %4673 = vmatmul.mubr.bf16.gmra.mxu0 %v3347
    %v4674 = vpop.f32.mrf.mxu0
    %v4675 = vadd.f32 0.0, %v4674
    %v4676 = vpop.f32.mrf.mxu0
    %v4677 = vpop.f32.mrf.mxu0
    %v4678 = vadd.f32 0.0, %v4677
    %v4679 = vpop.f32.mrf.mxu0
    %4680 = vmatprep.mubr.bf16.mxu0 0
    %4681 = vmatmul.mubr.bf16.gmra.mxu0 %v3348
    %v4682 = vpop.f32.mrf.mxu0
    %v4683 = vadd.f32 0.0, %v4682
    %v4684 = vpop.f32.mrf.mxu0
    %v4685 = vpop.f32.mrf.mxu0
    %v4686 = vadd.f32 0.0, %v4685
    %v4687 = vpop.f32.mrf.mxu0
    %4688 = vmatprep.mubr.bf16.mxu0 0
    %4689 = vmatmul.mubr.bf16.gmra.mxu0 %v3349
    %v4690 = vpop.f32.mrf.mxu0
    %v4691 = vadd.f32 0.0, %v4690
    %v4692 = vpop.f32.mrf.mxu0
    %v4693 = vpop.f32.mrf.mxu0
    %v4694 = vadd.f32 0.0, %v4693
    %v4695 = vpop.f32.mrf.mxu0
    %4696 = vdwg.mxu0
    %v4697 = vadd.f32 %v4439, %v4571
    %v4698 = vadd.f32 %v4440, %v4574
    %v4699 = vadd.f32 %v4441, %v4579
    %v4700 = vadd.f32 %v4442, %v4582
    %v4701 = vadd.f32 %v4443, %v4587
    %v4702 = vadd.f32 %v4444, %v4590
    %v4703 = vadd.f32 %v4445, %v4595
    %v4704 = vadd.f32 %v4446, %v4598
    %v4705 = vadd.f32 %v4447, %v4603
    %v4706 = vadd.f32 %v4448, %v4606
    %v4707 = vadd.f32 %v4449, %v4611
    %v4708 = vadd.f32 %v4450, %v4614
    %v4709 = vadd.f32 %v4451, %v4619
    %v4710 = vadd.f32 %v4452, %v4622
    %v4711 = vadd.f32 %v4453, %v4627
    %v4712 = vadd.f32 %v4454, %v4630
    %v4713 = vadd.f32 %v4455, %v4635
    %v4714 = vadd.f32 %v4456, %v4638
    %v4715 = vadd.f32 %v4457, %v4643
    %v4716 = vadd.f32 %v4458, %v4646
    %v4717 = vadd.f32 %v4459, %v4651
    %v4718 = vadd.f32 %v4460, %v4654
    %v4719 = vadd.f32 %v4461, %v4659
    %v4720 = vadd.f32 %v4462, %v4662
    %v4721 = vadd.f32 %v4463, %v4667
    %v4722 = vadd.f32 %v4464, %v4670
    %v4723 = vadd.f32 %v4465, %v4675
    %v4724 = vadd.f32 %v4466, %v4678
    %v4725 = vadd.f32 %v4467, %v4683
    %v4726 = vadd.f32 %v4468, %v4686
    %v4727 = vadd.f32 %v4469, %v4691
    %v4728 = vadd.f32 %v4470, %v4694
    %s4729 = scalar_lea.vmem [#allocation2], 320
    %v4730 = vld [vmem:[%s4729] sm:$0xf]
    %v4731 = vld [vmem:[%s4729 + $0x4] sm:$0xf]
    %v4732 = vld [vmem:[%s4729 + $0x8] sm:$0xf]
    %v4733 = vld [vmem:[%s4729 + $0xc] sm:$0xf]
    %v4734 = vld [vmem:[%s4729 + $0x10] sm:$0xf]
    %v4735 = vld [vmem:[%s4729 + $0x14] sm:$0xf]
    %v4736 = vld [vmem:[%s4729 + $0x18] sm:$0xf]
    %v4737 = vld [vmem:[%s4729 + $0x1c] sm:$0xf]
    %v4738 = vld [vmem:[%s4729 + $0x20] sm:$0xf]
    %v4739 = vld [vmem:[%s4729 + $0x24] sm:$0xf]
    %v4740 = vld [vmem:[%s4729 + $0x28] sm:$0xf]
    %v4741 = vld [vmem:[%s4729 + $0x2c] sm:$0xf]
    %v4742 = vld [vmem:[%s4729 + $0x30] sm:$0xf]
    %v4743 = vld [vmem:[%s4729 + $0x34] sm:$0xf]
    %v4744 = vld [vmem:[%s4729 + $0x38] sm:$0xf]
    %v4745 = vld [vmem:[%s4729 + $0x3c] sm:$0xf]
    %v4762 = vunpack.c.l.b16 %v4730
    %v4763 = vunpack.c.l.b16 %v4731
    %v4764 = vunpack.c.l.b16 %v4732
    %v4765 = vunpack.c.l.b16 %v4733
    %v4766 = vunpack.c.l.b16 %v4734
    %v4767 = vunpack.c.l.b16 %v4735
    %v4768 = vunpack.c.l.b16 %v4736
    %v4769 = vunpack.c.l.b16 %v4737
    %v4770 = vunpack.c.l.b16 %v4738
    %v4771 = vunpack.c.l.b16 %v4739
    %v4772 = vunpack.c.l.b16 %v4740
    %v4773 = vunpack.c.l.b16 %v4741
    %v4774 = vunpack.c.l.b16 %v4742
    %v4775 = vunpack.c.l.b16 %v4743
    %v4776 = vunpack.c.l.b16 %v4744
    %v4777 = vunpack.c.l.b16 %v4745
    %v4778 = vpack.c.b16 %v4763, %v4762
    %v4779 = vpack.c.b16 %v4765, %v4764
    %v4780 = vpack.c.b16 %v4767, %v4766
    %v4781 = vpack.c.b16 %v4769, %v4768
    %v4782 = vpack.c.b16 %v4771, %v4770
    %v4783 = vpack.c.b16 %v4773, %v4772
    %v4784 = vpack.c.b16 %v4775, %v4774
    %v4785 = vpack.c.b16 %v4777, %v4776
    %4794 = vmatprep.subr.bf16.mxu0 0
    %4795 = vmatpush1.bf16.msra.mxu0 %v4785
    %4796 = vmatprep.subr.bf16.mxu0 0
    %4797 = vmatpush1.bf16.msra.mxu0 %v4784
    %4798 = vmatprep.subr.bf16.mxu0 0
    %4799 = vmatpush1.bf16.msra.mxu0 %v4783
    %4800 = vmatprep.subr.bf16.mxu0 0
    %4801 = vmatpush1.bf16.msra.mxu0 %v4782
    %4802 = vmatprep.subr.bf16.mxu0 0
    %4803 = vmatpush1.bf16.msra.mxu0 %v4781
    %4804 = vmatprep.subr.bf16.mxu0 0
    %4805 = vmatpush1.bf16.msra.mxu0 %v4780
    %4806 = vmatprep.subr.bf16.mxu0 0
    %4807 = vmatpush1.bf16.msra.mxu0 %v4779
    %4808 = vmatprep.subr.bf16.mxu0 0
    %4809 = vmatpush1.bf16.msra.mxu0 %v4778
    %4810 = vmatprep.subr.bf16.mxu0 0
    %4811 = vmatpush2.bf16.msra.mxu0 0
    %4812 = vmatprep.subr.bf16.mxu0 0
    %4813 = vmatpush2.bf16.msra.mxu0 0
    %4814 = vmatprep.subr.bf16.mxu0 0
    %4815 = vmatpush2.bf16.msra.mxu0 0
    %4816 = vmatprep.subr.bf16.mxu0 0
    %4817 = vmatpush2.bf16.msra.mxu0 0
    %4818 = vmatprep.subr.bf16.mxu0 0
    %4819 = vmatpush2.bf16.msra.mxu0 0
    %4820 = vmatprep.subr.bf16.mxu0 0
    %4821 = vmatpush2.bf16.msra.mxu0 0
    %4822 = vmatprep.subr.bf16.mxu0 0
    %4823 = vmatpush2.bf16.msra.mxu0 0
    %4824 = vmatprep.subr.bf16.mxu0 0
    %4825 = vmatpush2.bf16.msra.mxu0 0
    %4826 = vmatprep.mubr.bf16.mxu0 0
    %4827 = vmatmul.mubr.bf16.gmra.mxu0 %v3457
    %v4828 = vpop.f32.mrf.mxu0
    %v4829 = vadd.f32 0.0, %v4828
    %v4830 = vpop.f32.mrf.mxu0
    %v4831 = vpop.f32.mrf.mxu0
    %v4832 = vadd.f32 0.0, %v4831
    %v4833 = vpop.f32.mrf.mxu0
    %4834 = vmatprep.mubr.bf16.mxu0 0
    %4835 = vmatmul.mubr.bf16.gmra.mxu0 %v3460
    %v4836 = vpop.f32.mrf.mxu0
    %v4837 = vadd.f32 0.0, %v4836
    %v4838 = vpop.f32.mrf.mxu0
    %v4839 = vpop.f32.mrf.mxu0
    %v4840 = vadd.f32 0.0, %v4839
    %v4841 = vpop.f32.mrf.mxu0
    %4842 = vmatprep.mubr.bf16.mxu0 0
    %4843 = vmatmul.mubr.bf16.gmra.mxu0 %v3463
    %v4844 = vpop.f32.mrf.mxu0
    %v4845 = vadd.f32 0.0, %v4844
    %v4846 = vpop.f32.mrf.mxu0
    %v4847 = vpop.f32.mrf.mxu0
    %v4848 = vadd.f32 0.0, %v4847
    %v4849 = vpop.f32.mrf.mxu0
    %4850 = vmatprep.mubr.bf16.mxu0 0
    %4851 = vmatmul.mubr.bf16.gmra.mxu0 %v3466
    %v4852 = vpop.f32.mrf.mxu0
    %v4853 = vadd.f32 0.0, %v4852
    %v4854 = vpop.f32.mrf.mxu0
    %v4855 = vpop.f32.mrf.mxu0
    %v4856 = vadd.f32 0.0, %v4855
    %v4857 = vpop.f32.mrf.mxu0
    %4858 = vmatprep.mubr.bf16.mxu0 0
    %4859 = vmatmul.mubr.bf16.gmra.mxu0 %v3469
    %v4860 = vpop.f32.mrf.mxu0
    %v4861 = vadd.f32 0.0, %v4860
    %v4862 = vpop.f32.mrf.mxu0
    %v4863 = vpop.f32.mrf.mxu0
    %v4864 = vadd.f32 0.0, %v4863
    %v4865 = vpop.f32.mrf.mxu0
    %4866 = vmatprep.mubr.bf16.mxu0 0
    %4867 = vmatmul.mubr.bf16.gmra.mxu0 %v3472
    %v4868 = vpop.f32.mrf.mxu0
    %v4869 = vadd.f32 0.0, %v4868
    %v4870 = vpop.f32.mrf.mxu0
    %v4871 = vpop.f32.mrf.mxu0
    %v4872 = vadd.f32 0.0, %v4871
    %v4873 = vpop.f32.mrf.mxu0
    %4874 = vmatprep.mubr.bf16.mxu0 0
    %4875 = vmatmul.mubr.bf16.gmra.mxu0 %v3475
    %v4876 = vpop.f32.mrf.mxu0
    %v4877 = vadd.f32 0.0, %v4876
    %v4878 = vpop.f32.mrf.mxu0
    %v4879 = vpop.f32.mrf.mxu0
    %v4880 = vadd.f32 0.0, %v4879
    %v4881 = vpop.f32.mrf.mxu0
    %4882 = vmatprep.mubr.bf16.mxu0 0
    %4883 = vmatmul.mubr.bf16.gmra.mxu0 %v3478
    %v4884 = vpop.f32.mrf.mxu0
    %v4885 = vadd.f32 0.0, %v4884
    %v4886 = vpop.f32.mrf.mxu0
    %v4887 = vpop.f32.mrf.mxu0
    %v4888 = vadd.f32 0.0, %v4887
    %v4889 = vpop.f32.mrf.mxu0
    %4890 = vmatprep.mubr.bf16.mxu0 0
    %4891 = vmatmul.mubr.bf16.gmra.mxu0 %v3481
    %v4892 = vpop.f32.mrf.mxu0
    %v4893 = vadd.f32 0.0, %v4892
    %v4894 = vpop.f32.mrf.mxu0
    %v4895 = vpop.f32.mrf.mxu0
    %v4896 = vadd.f32 0.0, %v4895
    %v4897 = vpop.f32.mrf.mxu0
    %4898 = vmatprep.mubr.bf16.mxu0 0
    %4899 = vmatmul.mubr.bf16.gmra.mxu0 %v3484
    %v4900 = vpop.f32.mrf.mxu0
    %v4901 = vadd.f32 0.0, %v4900
    %v4902 = vpop.f32.mrf.mxu0
    %v4903 = vpop.f32.mrf.mxu0
    %v4904 = vadd.f32 0.0, %v4903
    %v4905 = vpop.f32.mrf.mxu0
    %4906 = vmatprep.mubr.bf16.mxu0 0
    %4907 = vmatmul.mubr.bf16.gmra.mxu0 %v3487
    %v4908 = vpop.f32.mrf.mxu0
    %v4909 = vadd.f32 0.0, %v4908
    %v4910 = vpop.f32.mrf.mxu0
    %v4911 = vpop.f32.mrf.mxu0
    %v4912 = vadd.f32 0.0, %v4911
    %v4913 = vpop.f32.mrf.mxu0
    %4914 = vmatprep.mubr.bf16.mxu0 0
    %4915 = vmatmul.mubr.bf16.gmra.mxu0 %v3490
    %v4916 = vpop.f32.mrf.mxu0
    %v4917 = vadd.f32 0.0, %v4916
    %v4918 = vpop.f32.mrf.mxu0
    %v4919 = vpop.f32.mrf.mxu0
    %v4920 = vadd.f32 0.0, %v4919
    %v4921 = vpop.f32.mrf.mxu0
    %4922 = vmatprep.mubr.bf16.mxu0 0
    %4923 = vmatmul.mubr.bf16.gmra.mxu0 %v3493
    %v4924 = vpop.f32.mrf.mxu0
    %v4925 = vadd.f32 0.0, %v4924
    %v4926 = vpop.f32.mrf.mxu0
    %v4927 = vpop.f32.mrf.mxu0
    %v4928 = vadd.f32 0.0, %v4927
    %v4929 = vpop.f32.mrf.mxu0
    %4930 = vmatprep.mubr.bf16.mxu0 0
    %4931 = vmatmul.mubr.bf16.gmra.mxu0 %v3496
    %v4932 = vpop.f32.mrf.mxu0
    %v4933 = vadd.f32 0.0, %v4932
    %v4934 = vpop.f32.mrf.mxu0
    %v4935 = vpop.f32.mrf.mxu0
    %v4936 = vadd.f32 0.0, %v4935
    %v4937 = vpop.f32.mrf.mxu0
    %4938 = vmatprep.mubr.bf16.mxu0 0
    %4939 = vmatmul.mubr.bf16.gmra.mxu0 %v3499
    %v4940 = vpop.f32.mrf.mxu0
    %v4941 = vadd.f32 0.0, %v4940
    %v4942 = vpop.f32.mrf.mxu0
    %v4943 = vpop.f32.mrf.mxu0
    %v4944 = vadd.f32 0.0, %v4943
    %v4945 = vpop.f32.mrf.mxu0
    %4946 = vmatprep.mubr.bf16.mxu0 0
    %4947 = vmatmul.mubr.bf16.gmra.mxu0 %v3502
    %v4948 = vpop.f32.mrf.mxu0
    %v4949 = vadd.f32 0.0, %v4948
    %v4950 = vpop.f32.mrf.mxu0
    %v4951 = vpop.f32.mrf.mxu0
    %v4952 = vadd.f32 0.0, %v4951
    %v4953 = vpop.f32.mrf.mxu0
    %4954 = vdwg.mxu0
    %v4955 = vadd.f32 %v4697, %v4829
    %v4956 = vadd.f32 %v4698, %v4832
    %v4957 = vadd.f32 %v4699, %v4837
    %v4958 = vadd.f32 %v4700, %v4840
    %v4959 = vadd.f32 %v4701, %v4845
    %v4960 = vadd.f32 %v4702, %v4848
    %v4961 = vadd.f32 %v4703, %v4853
    %v4962 = vadd.f32 %v4704, %v4856
    %v4963 = vadd.f32 %v4705, %v4861
    %v4964 = vadd.f32 %v4706, %v4864
    %v4965 = vadd.f32 %v4707, %v4869
    %v4966 = vadd.f32 %v4708, %v4872
    %v4967 = vadd.f32 %v4709, %v4877
    %v4968 = vadd.f32 %v4710, %v4880
    %v4969 = vadd.f32 %v4711, %v4885
    %v4970 = vadd.f32 %v4712, %v4888
    %v4971 = vadd.f32 %v4713, %v4893
    %v4972 = vadd.f32 %v4714, %v4896
    %v4973 = vadd.f32 %v4715, %v4901
    %v4974 = vadd.f32 %v4716, %v4904
    %v4975 = vadd.f32 %v4717, %v4909
    %v4976 = vadd.f32 %v4718, %v4912
    %v4977 = vadd.f32 %v4719, %v4917
    %v4978 = vadd.f32 %v4720, %v4920
    %v4979 = vadd.f32 %v4721, %v4925
    %v4980 = vadd.f32 %v4722, %v4928
    %v4981 = vadd.f32 %v4723, %v4933
    %v4982 = vadd.f32 %v4724, %v4936
    %v4983 = vadd.f32 %v4725, %v4941
    %v4984 = vadd.f32 %v4726, %v4944
    %v4985 = vadd.f32 %v4727, %v4949
    %v4986 = vadd.f32 %v4728, %v4952
    %s4987 = scalar_lea.vmem [#allocation2], 384
    %v4988 = vld [vmem:[%s4987] sm:$0xf]
    %v4989 = vld [vmem:[%s4987 + $0x4] sm:$0xf]
    %v4990 = vld [vmem:[%s4987 + $0x8] sm:$0xf]
    %v4991 = vld [vmem:[%s4987 + $0xc] sm:$0xf]
    %v4992 = vld [vmem:[%s4987 + $0x10] sm:$0xf]
    %v4993 = vld [vmem:[%s4987 + $0x14] sm:$0xf]
    %v4994 = vld [vmem:[%s4987 + $0x18] sm:$0xf]
    %v4995 = vld [vmem:[%s4987 + $0x1c] sm:$0xf]
    %v4996 = vld [vmem:[%s4987 + $0x20] sm:$0xf]
    %v4997 = vld [vmem:[%s4987 + $0x24] sm:$0xf]
    %v4998 = vld [vmem:[%s4987 + $0x28] sm:$0xf]
    %v4999 = vld [vmem:[%s4987 + $0x2c] sm:$0xf]
    %v5000 = vld [vmem:[%s4987 + $0x30] sm:$0xf]
    %v5001 = vld [vmem:[%s4987 + $0x34] sm:$0xf]
    %v5002 = vld [vmem:[%s4987 + $0x38] sm:$0xf]
    %v5003 = vld [vmem:[%s4987 + $0x3c] sm:$0xf]
    %v5020 = vunpack.c.l.b16 %v4988
    %v5021 = vunpack.c.l.b16 %v4989
    %v5022 = vunpack.c.l.b16 %v4990
    %v5023 = vunpack.c.l.b16 %v4991
    %v5024 = vunpack.c.l.b16 %v4992
    %v5025 = vunpack.c.l.b16 %v4993
    %v5026 = vunpack.c.l.b16 %v4994
    %v5027 = vunpack.c.l.b16 %v4995
    %v5028 = vunpack.c.l.b16 %v4996
    %v5029 = vunpack.c.l.b16 %v4997
    %v5030 = vunpack.c.l.b16 %v4998
    %v5031 = vunpack.c.l.b16 %v4999
    %v5032 = vunpack.c.l.b16 %v5000
    %v5033 = vunpack.c.l.b16 %v5001
    %v5034 = vunpack.c.l.b16 %v5002
    %v5035 = vunpack.c.l.b16 %v5003
    %v5036 = vpack.c.b16 %v5021, %v5020
    %v5037 = vpack.c.b16 %v5023, %v5022
    %v5038 = vpack.c.b16 %v5025, %v5024
    %v5039 = vpack.c.b16 %v5027, %v5026
    %v5040 = vpack.c.b16 %v5029, %v5028
    %v5041 = vpack.c.b16 %v5031, %v5030
    %v5042 = vpack.c.b16 %v5033, %v5032
    %v5043 = vpack.c.b16 %v5035, %v5034
    %5052 = vmatprep.subr.bf16.mxu0 0
    %5053 = vmatpush1.bf16.msra.mxu0 %v5043
    %5054 = vmatprep.subr.bf16.mxu0 0
    %5055 = vmatpush1.bf16.msra.mxu0 %v5042
    %5056 = vmatprep.subr.bf16.mxu0 0
    %5057 = vmatpush1.bf16.msra.mxu0 %v5041
    %5058 = vmatprep.subr.bf16.mxu0 0
    %5059 = vmatpush1.bf16.msra.mxu0 %v5040
    %5060 = vmatprep.subr.bf16.mxu0 0
    %5061 = vmatpush1.bf16.msra.mxu0 %v5039
    %5062 = vmatprep.subr.bf16.mxu0 0
    %5063 = vmatpush1.bf16.msra.mxu0 %v5038
    %5064 = vmatprep.subr.bf16.mxu0 0
    %5065 = vmatpush1.bf16.msra.mxu0 %v5037
    %5066 = vmatprep.subr.bf16.mxu0 0
    %5067 = vmatpush1.bf16.msra.mxu0 %v5036
    %5068 = vmatprep.subr.bf16.mxu0 0
    %5069 = vmatpush2.bf16.msra.mxu0 0
    %5070 = vmatprep.subr.bf16.mxu0 0
    %5071 = vmatpush2.bf16.msra.mxu0 0
    %5072 = vmatprep.subr.bf16.mxu0 0
    %5073 = vmatpush2.bf16.msra.mxu0 0
    %5074 = vmatprep.subr.bf16.mxu0 0
    %5075 = vmatpush2.bf16.msra.mxu0 0
    %5076 = vmatprep.subr.bf16.mxu0 0
    %5077 = vmatpush2.bf16.msra.mxu0 0
    %5078 = vmatprep.subr.bf16.mxu0 0
    %5079 = vmatpush2.bf16.msra.mxu0 0
    %5080 = vmatprep.subr.bf16.mxu0 0
    %5081 = vmatpush2.bf16.msra.mxu0 0
    %5082 = vmatprep.subr.bf16.mxu0 0
    %5083 = vmatpush2.bf16.msra.mxu0 0
    %5084 = vmatprep.mubr.bf16.mxu0 0
    %5085 = vmatmul.mubr.bf16.gmra.mxu0 %v3395
    %v5086 = vpop.f32.mrf.mxu0
    %v5087 = vadd.f32 0.0, %v5086
    %v5088 = vpop.f32.mrf.mxu0
    %v5089 = vpop.f32.mrf.mxu0
    %v5090 = vadd.f32 0.0, %v5089
    %v5091 = vpop.f32.mrf.mxu0
    %5092 = vmatprep.mubr.bf16.mxu0 0
    %5093 = vmatmul.mubr.bf16.gmra.mxu0 %v3398
    %v5094 = vpop.f32.mrf.mxu0
    %v5095 = vadd.f32 0.0, %v5094
    %v5096 = vpop.f32.mrf.mxu0
    %v5097 = vpop.f32.mrf.mxu0
    %v5098 = vadd.f32 0.0, %v5097
    %v5099 = vpop.f32.mrf.mxu0
    %5100 = vmatprep.mubr.bf16.mxu0 0
    %5101 = vmatmul.mubr.bf16.gmra.mxu0 %v3401
    %v5102 = vpop.f32.mrf.mxu0
    %v5103 = vadd.f32 0.0, %v5102
    %v5104 = vpop.f32.mrf.mxu0
    %v5105 = vpop.f32.mrf.mxu0
    %v5106 = vadd.f32 0.0, %v5105
    %v5107 = vpop.f32.mrf.mxu0
    %5108 = vmatprep.mubr.bf16.mxu0 0
    %5109 = vmatmul.mubr.bf16.gmra.mxu0 %v3404
    %v5110 = vpop.f32.mrf.mxu0
    %v5111 = vadd.f32 0.0, %v5110
    %v5112 = vpop.f32.mrf.mxu0
    %v5113 = vpop.f32.mrf.mxu0
    %v5114 = vadd.f32 0.0, %v5113
    %v5115 = vpop.f32.mrf.mxu0
    %5116 = vmatprep.mubr.bf16.mxu0 0
    %5117 = vmatmul.mubr.bf16.gmra.mxu0 %v3407
    %v5118 = vpop.f32.mrf.mxu0
    %v5119 = vadd.f32 0.0, %v5118
    %v5120 = vpop.f32.mrf.mxu0
    %v5121 = vpop.f32.mrf.mxu0
    %v5122 = vadd.f32 0.0, %v5121
    %v5123 = vpop.f32.mrf.mxu0
    %5124 = vmatprep.mubr.bf16.mxu0 0
    %5125 = vmatmul.mubr.bf16.gmra.mxu0 %v3410
    %v5126 = vpop.f32.mrf.mxu0
    %v5127 = vadd.f32 0.0, %v5126
    %v5128 = vpop.f32.mrf.mxu0
    %v5129 = vpop.f32.mrf.mxu0
    %v5130 = vadd.f32 0.0, %v5129
    %v5131 = vpop.f32.mrf.mxu0
    %5132 = vmatprep.mubr.bf16.mxu0 0
    %5133 = vmatmul.mubr.bf16.gmra.mxu0 %v3413
    %v5134 = vpop.f32.mrf.mxu0
    %v5135 = vadd.f32 0.0, %v5134
    %v5136 = vpop.f32.mrf.mxu0
    %v5137 = vpop.f32.mrf.mxu0
    %v5138 = vadd.f32 0.0, %v5137
    %v5139 = vpop.f32.mrf.mxu0
    %5140 = vmatprep.mubr.bf16.mxu0 0
    %5141 = vmatmul.mubr.bf16.gmra.mxu0 %v3416
    %v5142 = vpop.f32.mrf.mxu0
    %v5143 = vadd.f32 0.0, %v5142
    %v5144 = vpop.f32.mrf.mxu0
    %v5145 = vpop.f32.mrf.mxu0
    %v5146 = vadd.f32 0.0, %v5145
    %v5147 = vpop.f32.mrf.mxu0
    %5148 = vmatprep.mubr.bf16.mxu0 0
    %5149 = vmatmul.mubr.bf16.gmra.mxu0 %v3419
    %v5150 = vpop.f32.mrf.mxu0
    %v5151 = vadd.f32 0.0, %v5150
    %v5152 = vpop.f32.mrf.mxu0
    %v5153 = vpop.f32.mrf.mxu0
    %v5154 = vadd.f32 0.0, %v5153
    %v5155 = vpop.f32.mrf.mxu0
    %5156 = vmatprep.mubr.bf16.mxu0 0
    %5157 = vmatmul.mubr.bf16.gmra.mxu0 %v3422
    %v5158 = vpop.f32.mrf.mxu0
    %v5159 = vadd.f32 0.0, %v5158
    %v5160 = vpop.f32.mrf.mxu0
    %v5161 = vpop.f32.mrf.mxu0
    %v5162 = vadd.f32 0.0, %v5161
    %v5163 = vpop.f32.mrf.mxu0
    %5164 = vmatprep.mubr.bf16.mxu0 0
    %5165 = vmatmul.mubr.bf16.gmra.mxu0 %v3425
    %v5166 = vpop.f32.mrf.mxu0
    %v5167 = vadd.f32 0.0, %v5166
    %v5168 = vpop.f32.mrf.mxu0
    %v5169 = vpop.f32.mrf.mxu0
    %v5170 = vadd.f32 0.0, %v5169
    %v5171 = vpop.f32.mrf.mxu0
    %5172 = vmatprep.mubr.bf16.mxu0 0
    %5173 = vmatmul.mubr.bf16.gmra.mxu0 %v3428
    %v5174 = vpop.f32.mrf.mxu0
    %v5175 = vadd.f32 0.0, %v5174
    %v5176 = vpop.f32.mrf.mxu0
    %v5177 = vpop.f32.mrf.mxu0
    %v5178 = vadd.f32 0.0, %v5177
    %v5179 = vpop.f32.mrf.mxu0
    %5180 = vmatprep.mubr.bf16.mxu0 0
    %5181 = vmatmul.mubr.bf16.gmra.mxu0 %v3431
    %v5182 = vpop.f32.mrf.mxu0
    %v5183 = vadd.f32 0.0, %v5182
    %v5184 = vpop.f32.mrf.mxu0
    %v5185 = vpop.f32.mrf.mxu0
    %v5186 = vadd.f32 0.0, %v5185
    %v5187 = vpop.f32.mrf.mxu0
    %5188 = vmatprep.mubr.bf16.mxu0 0
    %5189 = vmatmul.mubr.bf16.gmra.mxu0 %v3434
    %v5190 = vpop.f32.mrf.mxu0
    %v5191 = vadd.f32 0.0, %v5190
    %v5192 = vpop.f32.mrf.mxu0
    %v5193 = vpop.f32.mrf.mxu0
    %v5194 = vadd.f32 0.0, %v5193
    %v5195 = vpop.f32.mrf.mxu0
    %5196 = vmatprep.mubr.bf16.mxu0 0
    %5197 = vmatmul.mubr.bf16.gmra.mxu0 %v3386
    %v5198 = vpop.f32.mrf.mxu0
    %v5199 = vadd.f32 0.0, %v5198
    %v5200 = vpop.f32.mrf.mxu0
    %v5201 = vpop.f32.mrf.mxu0
    %v5202 = vadd.f32 0.0, %v5201
    %v5203 = vpop.f32.mrf.mxu0
    %5204 = vmatprep.mubr.bf16.mxu0 0
    %5205 = vmatmul.mubr.bf16.gmra.mxu0 %v3386
    %v5206 = vpop.f32.mrf.mxu0
    %v5207 = vadd.f32 0.0, %v5206
    %v5208 = vpop.f32.mrf.mxu0
    %v5209 = vpop.f32.mrf.mxu0
    %v5210 = vadd.f32 0.0, %v5209
    %v5211 = vpop.f32.mrf.mxu0
    %5212 = vdwg.mxu0
    %v5213 = vadd.f32 %v4955, %v5087
    %v5214 = vadd.f32 %v4956, %v5090
    %v5215 = vadd.f32 %v4957, %v5095
    %v5216 = vadd.f32 %v4958, %v5098
    %v5217 = vadd.f32 %v4959, %v5103
    %v5218 = vadd.f32 %v4960, %v5106
    %v5219 = vadd.f32 %v4961, %v5111
    %v5220 = vadd.f32 %v4962, %v5114
    %v5221 = vadd.f32 %v4963, %v5119
    %v5222 = vadd.f32 %v4964, %v5122
    %v5223 = vadd.f32 %v4965, %v5127
    %v5224 = vadd.f32 %v4966, %v5130
    %v5225 = vadd.f32 %v4967, %v5135
    %v5226 = vadd.f32 %v4968, %v5138
    %v5227 = vadd.f32 %v4969, %v5143
    %v5228 = vadd.f32 %v4970, %v5146
    %v5229 = vadd.f32 %v4971, %v5151
    %v5230 = vadd.f32 %v4972, %v5154
    %v5231 = vadd.f32 %v4973, %v5159
    %v5232 = vadd.f32 %v4974, %v5162
    %v5233 = vadd.f32 %v4975, %v5167
    %v5234 = vadd.f32 %v4976, %v5170
    %v5235 = vadd.f32 %v4977, %v5175
    %v5236 = vadd.f32 %v4978, %v5178
    %v5237 = vadd.f32 %v4979, %v5183
    %v5238 = vadd.f32 %v4980, %v5186
    %v5239 = vadd.f32 %v4981, %v5191
    %v5240 = vadd.f32 %v4982, %v5194
    %v5241 = vadd.f32 %v4983, %v5199
    %v5242 = vadd.f32 %v4984, %v5202
    %v5243 = vadd.f32 %v4985, %v5207
    %v5244 = vadd.f32 %v4986, %v5210
    %s5245 = scalar_lea.vmem [#allocation2], 448
    %v5246 = vld [vmem:[%s5245] sm:$0xf]
    %v5247 = vld [vmem:[%s5245 + $0x4] sm:$0xf]
    %v5248 = vld [vmem:[%s5245 + $0x8] sm:$0xf]
    %v5249 = vld [vmem:[%s5245 + $0xc] sm:$0xf]
    %v5250 = vld [vmem:[%s5245 + $0x10] sm:$0xf]
    %v5251 = vld [vmem:[%s5245 + $0x14] sm:$0xf]
    %v5252 = vld [vmem:[%s5245 + $0x18] sm:$0xf]
    %v5253 = vld [vmem:[%s5245 + $0x1c] sm:$0xf]
    %v5254 = vld [vmem:[%s5245 + $0x20] sm:$0xf]
    %v5255 = vld [vmem:[%s5245 + $0x24] sm:$0xf]
    %v5256 = vld [vmem:[%s5245 + $0x28] sm:$0xf]
    %v5257 = vld [vmem:[%s5245 + $0x2c] sm:$0xf]
    %v5258 = vld [vmem:[%s5245 + $0x30] sm:$0xf]
    %v5259 = vld [vmem:[%s5245 + $0x34] sm:$0xf]
    %v5260 = vld [vmem:[%s5245 + $0x38] sm:$0xf]
    %v5261 = vld [vmem:[%s5245 + $0x3c] sm:$0xf]
    %v5278 = vunpack.c.l.b16 %v5246
    %v5279 = vunpack.c.l.b16 %v5247
    %v5280 = vunpack.c.l.b16 %v5248
    %v5281 = vunpack.c.l.b16 %v5249
    %v5282 = vunpack.c.l.b16 %v5250
    %v5283 = vunpack.c.l.b16 %v5251
    %v5284 = vunpack.c.l.b16 %v5252
    %v5285 = vunpack.c.l.b16 %v5253
    %v5286 = vunpack.c.l.b16 %v5254
    %v5287 = vunpack.c.l.b16 %v5255
    %v5288 = vunpack.c.l.b16 %v5256
    %v5289 = vunpack.c.l.b16 %v5257
    %v5290 = vunpack.c.l.b16 %v5258
    %v5291 = vunpack.c.l.b16 %v5259
    %v5292 = vunpack.c.l.b16 %v5260
    %v5293 = vunpack.c.l.b16 %v5261
    %v5294 = vpack.c.b16 %v5279, %v5278
    %v5295 = vpack.c.b16 %v5281, %v5280
    %v5296 = vpack.c.b16 %v5283, %v5282
    %v5297 = vpack.c.b16 %v5285, %v5284
    %v5298 = vpack.c.b16 %v5287, %v5286
    %v5299 = vpack.c.b16 %v5289, %v5288
    %v5300 = vpack.c.b16 %v5291, %v5290
    %v5301 = vpack.c.b16 %v5293, %v5292
    %5310 = vmatprep.subr.bf16.mxu0 0
    %5311 = vmatpush1.bf16.msra.mxu0 %v5301
    %5312 = vmatprep.subr.bf16.mxu0 0
    %5313 = vmatpush1.bf16.msra.mxu0 %v5300
    %5314 = vmatprep.subr.bf16.mxu0 0
    %5315 = vmatpush1.bf16.msra.mxu0 %v5299
    %5316 = vmatprep.subr.bf16.mxu0 0
    %5317 = vmatpush1.bf16.msra.mxu0 %v5298
    %5318 = vmatprep.subr.bf16.mxu0 0
    %5319 = vmatpush1.bf16.msra.mxu0 %v5297
    %5320 = vmatprep.subr.bf16.mxu0 0
    %5321 = vmatpush1.bf16.msra.mxu0 %v5296
    %5322 = vmatprep.subr.bf16.mxu0 0
    %5323 = vmatpush1.bf16.msra.mxu0 %v5295
    %5324 = vmatprep.subr.bf16.mxu0 0
    %5325 = vmatpush1.bf16.msra.mxu0 %v5294
    %5326 = vmatprep.subr.bf16.mxu0 0
    %5327 = vmatpush2.bf16.msra.mxu0 0
    %5328 = vmatprep.subr.bf16.mxu0 0
    %5329 = vmatpush2.bf16.msra.mxu0 0
    %5330 = vmatprep.subr.bf16.mxu0 0
    %5331 = vmatpush2.bf16.msra.mxu0 0
    %5332 = vmatprep.subr.bf16.mxu0 0
    %5333 = vmatpush2.bf16.msra.mxu0 0
    %5334 = vmatprep.subr.bf16.mxu0 0
    %5335 = vmatpush2.bf16.msra.mxu0 0
    %5336 = vmatprep.subr.bf16.mxu0 0
    %5337 = vmatpush2.bf16.msra.mxu0 0
    %5338 = vmatprep.subr.bf16.mxu0 0
    %5339 = vmatpush2.bf16.msra.mxu0 0
    %5340 = vmatprep.subr.bf16.mxu0 0
    %5341 = vmatpush2.bf16.msra.mxu0 0
    %5342 = vmatprep.mubr.bf16.mxu0 0
    %5343 = vmatmul.mubr.bf16.gmra.mxu0 %v3336
    %v5344 = vpop.f32.mrf.mxu0
    %v5345 = vadd.f32 0.0, %v5344
    %v5346 = vpop.f32.mrf.mxu0
    %v5347 = vpop.f32.mrf.mxu0
    %v5348 = vadd.f32 0.0, %v5347
    %v5349 = vpop.f32.mrf.mxu0
    %5350 = vmatprep.mubr.bf16.mxu0 0
    %5351 = vmatmul.mubr.bf16.gmra.mxu0 %v3337
    %v5352 = vpop.f32.mrf.mxu0
    %v5353 = vadd.f32 0.0, %v5352
    %v5354 = vpop.f32.mrf.mxu0
    %v5355 = vpop.f32.mrf.mxu0
    %v5356 = vadd.f32 0.0, %v5355
    %v5357 = vpop.f32.mrf.mxu0
    %5358 = vmatprep.mubr.bf16.mxu0 0
    %5359 = vmatmul.mubr.bf16.gmra.mxu0 %v3338
    %v5360 = vpop.f32.mrf.mxu0
    %v5361 = vadd.f32 0.0, %v5360
    %v5362 = vpop.f32.mrf.mxu0
    %v5363 = vpop.f32.mrf.mxu0
    %v5364 = vadd.f32 0.0, %v5363
    %v5365 = vpop.f32.mrf.mxu0
    %5366 = vmatprep.mubr.bf16.mxu0 0
    %5367 = vmatmul.mubr.bf16.gmra.mxu0 %v3339
    %v5368 = vpop.f32.mrf.mxu0
    %v5369 = vadd.f32 0.0, %v5368
    %v5370 = vpop.f32.mrf.mxu0
    %v5371 = vpop.f32.mrf.mxu0
    %v5372 = vadd.f32 0.0, %v5371
    %v5373 = vpop.f32.mrf.mxu0
    %5374 = vmatprep.mubr.bf16.mxu0 0
    %5375 = vmatmul.mubr.bf16.gmra.mxu0 %v3340
    %v5376 = vpop.f32.mrf.mxu0
    %v5377 = vadd.f32 0.0, %v5376
    %v5378 = vpop.f32.mrf.mxu0
    %v5379 = vpop.f32.mrf.mxu0
    %v5380 = vadd.f32 0.0, %v5379
    %v5381 = vpop.f32.mrf.mxu0
    %5382 = vmatprep.mubr.bf16.mxu0 0
    %5383 = vmatmul.mubr.bf16.gmra.mxu0 %v3341
    %v5384 = vpop.f32.mrf.mxu0
    %v5385 = vadd.f32 0.0, %v5384
    %v5386 = vpop.f32.mrf.mxu0
    %v5387 = vpop.f32.mrf.mxu0
    %v5388 = vadd.f32 0.0, %v5387
    %v5389 = vpop.f32.mrf.mxu0
    %5390 = vmatprep.mubr.bf16.mxu0 0
    %5391 = vmatmul.mubr.bf16.gmra.mxu0 %v3342
    %v5392 = vpop.f32.mrf.mxu0
    %v5393 = vadd.f32 0.0, %v5392
    %v5394 = vpop.f32.mrf.mxu0
    %v5395 = vpop.f32.mrf.mxu0
    %v5396 = vadd.f32 0.0, %v5395
    %v5397 = vpop.f32.mrf.mxu0
    %5398 = vmatprep.mubr.bf16.mxu0 0
    %5399 = vmatmul.mubr.bf16.gmra.mxu0 %v3343
    %v5400 = vpop.f32.mrf.mxu0
    %v5401 = vadd.f32 0.0, %v5400
    %v5402 = vpop.f32.mrf.mxu0
    %v5403 = vpop.f32.mrf.mxu0
    %v5404 = vadd.f32 0.0, %v5403
    %v5405 = vpop.f32.mrf.mxu0
    %5406 = vmatprep.mubr.bf16.mxu0 0
    %5407 = vmatmul.mubr.bf16.gmra.mxu0 %v3344
    %v5408 = vpop.f32.mrf.mxu0
    %v5409 = vadd.f32 0.0, %v5408
    %v5410 = vpop.f32.mrf.mxu0
    %v5411 = vpop.f32.mrf.mxu0
    %v5412 = vadd.f32 0.0, %v5411
    %v5413 = vpop.f32.mrf.mxu0
    %5414 = vmatprep.mubr.bf16.mxu0 0
    %5415 = vmatmul.mubr.bf16.gmra.mxu0 %v3345
    %v5416 = vpop.f32.mrf.mxu0
    %v5417 = vadd.f32 0.0, %v5416
    %v5418 = vpop.f32.mrf.mxu0
    %v5419 = vpop.f32.mrf.mxu0
    %v5420 = vadd.f32 0.0, %v5419
    %v5421 = vpop.f32.mrf.mxu0
    %5422 = vmatprep.mubr.bf16.mxu0 0
    %5423 = vmatmul.mubr.bf16.gmra.mxu0 %v3346
    %v5424 = vpop.f32.mrf.mxu0
    %v5425 = vadd.f32 0.0, %v5424
    %v5426 = vpop.f32.mrf.mxu0
    %v5427 = vpop.f32.mrf.mxu0
    %v5428 = vadd.f32 0.0, %v5427
    %v5429 = vpop.f32.mrf.mxu0
    %5430 = vmatprep.mubr.bf16.mxu0 0
    %5431 = vmatmul.mubr.bf16.gmra.mxu0 %v3347
    %v5432 = vpop.f32.mrf.mxu0
    %v5433 = vadd.f32 0.0, %v5432
    %v5434 = vpop.f32.mrf.mxu0
    %v5435 = vpop.f32.mrf.mxu0
    %v5436 = vadd.f32 0.0, %v5435
    %v5437 = vpop.f32.mrf.mxu0
    %5438 = vmatprep.mubr.bf16.mxu0 0
    %5439 = vmatmul.mubr.bf16.gmra.mxu0 %v3348
    %v5440 = vpop.f32.mrf.mxu0
    %v5441 = vadd.f32 0.0, %v5440
    %v5442 = vpop.f32.mrf.mxu0
    %v5443 = vpop.f32.mrf.mxu0
    %v5444 = vadd.f32 0.0, %v5443
    %v5445 = vpop.f32.mrf.mxu0
    %5446 = vmatprep.mubr.bf16.mxu0 0
    %5447 = vmatmul.mubr.bf16.gmra.mxu0 %v3349
    %v5448 = vpop.f32.mrf.mxu0
    %v5449 = vadd.f32 0.0, %v5448
    %v5450 = vpop.f32.mrf.mxu0
    %v5451 = vpop.f32.mrf.mxu0
    %v5452 = vadd.f32 0.0, %v5451
    %v5453 = vpop.f32.mrf.mxu0
    %5454 = vmatprep.mubr.bf16.mxu0 0
    %5455 = vmatmul.mubr.bf16.gmra.mxu0 0
    %v5456 = vpop.f32.mrf.mxu0
    %v5457 = vadd.f32 0.0, %v5456
    %v5458 = vpop.f32.mrf.mxu0
    %v5459 = vpop.f32.mrf.mxu0
    %v5460 = vadd.f32 0.0, %v5459
    %v5461 = vpop.f32.mrf.mxu0
    %5462 = vmatprep.mubr.bf16.mxu0 0
    %5463 = vmatmul.mubr.bf16.gmra.mxu0 0
    %v5464 = vpop.f32.mrf.mxu0
    %v5465 = vadd.f32 0.0, %v5464
    %v5466 = vpop.f32.mrf.mxu0
    %v5467 = vpop.f32.mrf.mxu0
    %v5468 = vadd.f32 0.0, %v5467
    %v5469 = vpop.f32.mrf.mxu0
    %5470 = vdwg.mxu0
    %v5471 = vadd.f32 %v5213, %v5345
    %v5472 = vadd.f32 %v5214, %v5348
    %v5473 = vadd.f32 %v5215, %v5353
    %v5474 = vadd.f32 %v5216, %v5356
    %v5475 = vadd.f32 %v5217, %v5361
    %v5476 = vadd.f32 %v5218, %v5364
    %v5477 = vadd.f32 %v5219, %v5369
    %v5478 = vadd.f32 %v5220, %v5372
    %v5479 = vadd.f32 %v5221, %v5377
    %v5480 = vadd.f32 %v5222, %v5380
    %v5481 = vadd.f32 %v5223, %v5385
    %v5482 = vadd.f32 %v5224, %v5388
    %v5483 = vadd.f32 %v5225, %v5393
    %v5484 = vadd.f32 %v5226, %v5396
    %v5485 = vadd.f32 %v5227, %v5401
    %v5486 = vadd.f32 %v5228, %v5404
    %v5487 = vadd.f32 %v5229, %v5409
    %v5488 = vadd.f32 %v5230, %v5412
    %v5489 = vadd.f32 %v5231, %v5417
    %v5490 = vadd.f32 %v5232, %v5420
    %v5491 = vadd.f32 %v5233, %v5425
    %v5492 = vadd.f32 %v5234, %v5428
    %v5493 = vadd.f32 %v5235, %v5433
    %v5494 = vadd.f32 %v5236, %v5436
    %v5495 = vadd.f32 %v5237, %v5441
    %v5496 = vadd.f32 %v5238, %v5444
    %v5497 = vadd.f32 %v5239, %v5449
    %v5498 = vadd.f32 %v5240, %v5452
    %v5499 = vadd.f32 %v5241, %v5457
    %v5500 = vadd.f32 %v5242, %v5460
    %v5501 = vadd.f32 %v5243, %v5465
    %v5502 = vadd.f32 %v5244, %v5468
    %s5503 = scalar_lea.vmem [#allocation2], 512
    %v5504 = vld [vmem:[%s5503] sm:$0xf]
    %v5505 = vld [vmem:[%s5503 + $0x4] sm:$0xf]
    %v5506 = vld [vmem:[%s5503 + $0x8] sm:$0xf]
    %v5507 = vld [vmem:[%s5503 + $0xc] sm:$0xf]
    %v5508 = vld [vmem:[%s5503 + $0x10] sm:$0xf]
    %v5509 = vld [vmem:[%s5503 + $0x14] sm:$0xf]
    %v5510 = vld [vmem:[%s5503 + $0x18] sm:$0xf]
    %v5511 = vld [vmem:[%s5503 + $0x1c] sm:$0xf]
    %v5512 = vld [vmem:[%s5503 + $0x20] sm:$0xf]
    %v5513 = vld [vmem:[%s5503 + $0x24] sm:$0xf]
    %v5514 = vld [vmem:[%s5503 + $0x28] sm:$0xf]
    %v5515 = vld [vmem:[%s5503 + $0x2c] sm:$0xf]
    %v5516 = vld [vmem:[%s5503 + $0x30] sm:$0xf]
    %v5517 = vld [vmem:[%s5503 + $0x34] sm:$0xf]
    %v5518 = vld [vmem:[%s5503 + $0x38] sm:$0xf]
    %v5519 = vld [vmem:[%s5503 + $0x3c] sm:$0xf]
    %v5536 = vunpack.c.l.b16 %v5504
    %v5537 = vunpack.c.l.b16 %v5505
    %v5538 = vunpack.c.l.b16 %v5506
    %v5539 = vunpack.c.l.b16 %v5507
    %v5540 = vunpack.c.l.b16 %v5508
    %v5541 = vunpack.c.l.b16 %v5509
    %v5542 = vunpack.c.l.b16 %v5510
    %v5543 = vunpack.c.l.b16 %v5511
    %v5544 = vunpack.c.l.b16 %v5512
    %v5545 = vunpack.c.l.b16 %v5513
    %v5546 = vunpack.c.l.b16 %v5514
    %v5547 = vunpack.c.l.b16 %v5515
    %v5548 = vunpack.c.l.b16 %v5516
    %v5549 = vunpack.c.l.b16 %v5517
    %v5550 = vunpack.c.l.b16 %v5518
    %v5551 = vunpack.c.l.b16 %v5519
    %v5552 = vpack.c.b16 %v5537, %v5536
    %v5553 = vpack.c.b16 %v5539, %v5538
    %v5554 = vpack.c.b16 %v5541, %v5540
    %v5555 = vpack.c.b16 %v5543, %v5542
    %v5556 = vpack.c.b16 %v5545, %v5544
    %v5557 = vpack.c.b16 %v5547, %v5546
    %v5558 = vpack.c.b16 %v5549, %v5548
    %v5559 = vpack.c.b16 %v5551, %v5550
    %5568 = vmatprep.subr.bf16.mxu0 0
    %5569 = vmatpush1.bf16.msra.mxu0 %v5559
    %5570 = vmatprep.subr.bf16.mxu0 0
    %5571 = vmatpush1.bf16.msra.mxu0 %v5558
    %5572 = vmatprep.subr.bf16.mxu0 0
    %5573 = vmatpush1.bf16.msra.mxu0 %v5557
    %5574 = vmatprep.subr.bf16.mxu0 0
    %5575 = vmatpush1.bf16.msra.mxu0 %v5556
    %5576 = vmatprep.subr.bf16.mxu0 0
    %5577 = vmatpush1.bf16.msra.mxu0 %v5555
    %5578 = vmatprep.subr.bf16.mxu0 0
    %5579 = vmatpush1.bf16.msra.mxu0 %v5554
    %5580 = vmatprep.subr.bf16.mxu0 0
    %5581 = vmatpush1.bf16.msra.mxu0 %v5553
    %5582 = vmatprep.subr.bf16.mxu0 0
    %5583 = vmatpush1.bf16.msra.mxu0 %v5552
    %5584 = vmatprep.subr.bf16.mxu0 0
    %5585 = vmatpush2.bf16.msra.mxu0 0
    %5586 = vmatprep.subr.bf16.mxu0 0
    %5587 = vmatpush2.bf16.msra.mxu0 0
    %5588 = vmatprep.subr.bf16.mxu0 0
    %5589 = vmatpush2.bf16.msra.mxu0 0
    %5590 = vmatprep.subr.bf16.mxu0 0
    %5591 = vmatpush2.bf16.msra.mxu0 0
    %5592 = vmatprep.subr.bf16.mxu0 0
    %5593 = vmatpush2.bf16.msra.mxu0 0
    %5594 = vmatprep.subr.bf16.mxu0 0
    %5595 = vmatpush2.bf16.msra.mxu0 0
    %5596 = vmatprep.subr.bf16.mxu0 0
    %5597 = vmatpush2.bf16.msra.mxu0 0
    %5598 = vmatprep.subr.bf16.mxu0 0
    %5599 = vmatpush2.bf16.msra.mxu0 0
    %5600 = vmatprep.mubr.bf16.mxu0 0
    %5601 = vmatmul.mubr.bf16.gmra.mxu0 %v3463
    %v5602 = vpop.f32.mrf.mxu0
    %v5603 = vadd.f32 0.0, %v5602
    %v5604 = vpop.f32.mrf.mxu0
    %v5605 = vpop.f32.mrf.mxu0
    %v5606 = vadd.f32 0.0, %v5605
    %v5607 = vpop.f32.mrf.mxu0
    %5608 = vmatprep.mubr.bf16.mxu0 0
    %5609 = vmatmul.mubr.bf16.gmra.mxu0 %v3466
    %v5610 = vpop.f32.mrf.mxu0
    %v5611 = vadd.f32 0.0, %v5610
    %v5612 = vpop.f32.mrf.mxu0
    %v5613 = vpop.f32.mrf.mxu0
    %v5614 = vadd.f32 0.0, %v5613
    %v5615 = vpop.f32.mrf.mxu0
    %5616 = vmatprep.mubr.bf16.mxu0 0
    %5617 = vmatmul.mubr.bf16.gmra.mxu0 %v3469
    %v5618 = vpop.f32.mrf.mxu0
    %v5619 = vadd.f32 0.0, %v5618
    %v5620 = vpop.f32.mrf.mxu0
    %v5621 = vpop.f32.mrf.mxu0
    %v5622 = vadd.f32 0.0, %v5621
    %v5623 = vpop.f32.mrf.mxu0
    %5624 = vmatprep.mubr.bf16.mxu0 0
    %5625 = vmatmul.mubr.bf16.gmra.mxu0 %v3472
    %v5626 = vpop.f32.mrf.mxu0
    %v5627 = vadd.f32 0.0, %v5626
    %v5628 = vpop.f32.mrf.mxu0
    %v5629 = vpop.f32.mrf.mxu0
    %v5630 = vadd.f32 0.0, %v5629
    %v5631 = vpop.f32.mrf.mxu0
    %5632 = vmatprep.mubr.bf16.mxu0 0
    %5633 = vmatmul.mubr.bf16.gmra.mxu0 %v3475
    %v5634 = vpop.f32.mrf.mxu0
    %v5635 = vadd.f32 0.0, %v5634
    %v5636 = vpop.f32.mrf.mxu0
    %v5637 = vpop.f32.mrf.mxu0
    %v5638 = vadd.f32 0.0, %v5637
    %v5639 = vpop.f32.mrf.mxu0
    %5640 = vmatprep.mubr.bf16.mxu0 0
    %5641 = vmatmul.mubr.bf16.gmra.mxu0 %v3478
    %v5642 = vpop.f32.mrf.mxu0
    %v5643 = vadd.f32 0.0, %v5642
    %v5644 = vpop.f32.mrf.mxu0
    %v5645 = vpop.f32.mrf.mxu0
    %v5646 = vadd.f32 0.0, %v5645
    %v5647 = vpop.f32.mrf.mxu0
    %5648 = vmatprep.mubr.bf16.mxu0 0
    %5649 = vmatmul.mubr.bf16.gmra.mxu0 %v3481
    %v5650 = vpop.f32.mrf.mxu0
    %v5651 = vadd.f32 0.0, %v5650
    %v5652 = vpop.f32.mrf.mxu0
    %v5653 = vpop.f32.mrf.mxu0
    %v5654 = vadd.f32 0.0, %v5653
    %v5655 = vpop.f32.mrf.mxu0
    %5656 = vmatprep.mubr.bf16.mxu0 0
    %5657 = vmatmul.mubr.bf16.gmra.mxu0 %v3484
    %v5658 = vpop.f32.mrf.mxu0
    %v5659 = vadd.f32 0.0, %v5658
    %v5660 = vpop.f32.mrf.mxu0
    %v5661 = vpop.f32.mrf.mxu0
    %v5662 = vadd.f32 0.0, %v5661
    %v5663 = vpop.f32.mrf.mxu0
    %5664 = vmatprep.mubr.bf16.mxu0 0
    %5665 = vmatmul.mubr.bf16.gmra.mxu0 %v3487
    %v5666 = vpop.f32.mrf.mxu0
    %v5667 = vadd.f32 0.0, %v5666
    %v5668 = vpop.f32.mrf.mxu0
    %v5669 = vpop.f32.mrf.mxu0
    %v5670 = vadd.f32 0.0, %v5669
    %v5671 = vpop.f32.mrf.mxu0
    %5672 = vmatprep.mubr.bf16.mxu0 0
    %5673 = vmatmul.mubr.bf16.gmra.mxu0 %v3490
    %v5674 = vpop.f32.mrf.mxu0
    %v5675 = vadd.f32 0.0, %v5674
    %v5676 = vpop.f32.mrf.mxu0
    %v5677 = vpop.f32.mrf.mxu0
    %v5678 = vadd.f32 0.0, %v5677
    %v5679 = vpop.f32.mrf.mxu0
    %5680 = vmatprep.mubr.bf16.mxu0 0
    %5681 = vmatmul.mubr.bf16.gmra.mxu0 %v3493
    %v5682 = vpop.f32.mrf.mxu0
    %v5683 = vadd.f32 0.0, %v5682
    %v5684 = vpop.f32.mrf.mxu0
    %v5685 = vpop.f32.mrf.mxu0
    %v5686 = vadd.f32 0.0, %v5685
    %v5687 = vpop.f32.mrf.mxu0
    %5688 = vmatprep.mubr.bf16.mxu0 0
    %5689 = vmatmul.mubr.bf16.gmra.mxu0 %v3496
    %v5690 = vpop.f32.mrf.mxu0
    %v5691 = vadd.f32 0.0, %v5690
    %v5692 = vpop.f32.mrf.mxu0
    %v5693 = vpop.f32.mrf.mxu0
    %v5694 = vadd.f32 0.0, %v5693
    %v5695 = vpop.f32.mrf.mxu0
    %5696 = vmatprep.mubr.bf16.mxu0 0
    %5697 = vmatmul.mubr.bf16.gmra.mxu0 %v3499
    %v5698 = vpop.f32.mrf.mxu0
    %v5699 = vadd.f32 0.0, %v5698
    %v5700 = vpop.f32.mrf.mxu0
    %v5701 = vpop.f32.mrf.mxu0
    %v5702 = vadd.f32 0.0, %v5701
    %v5703 = vpop.f32.mrf.mxu0
    %5704 = vmatprep.mubr.bf16.mxu0 0
    %5705 = vmatmul.mubr.bf16.gmra.mxu0 %v3502
    %v5706 = vpop.f32.mrf.mxu0
    %v5707 = vadd.f32 0.0, %v5706
    %v5708 = vpop.f32.mrf.mxu0
    %v5709 = vpop.f32.mrf.mxu0
    %v5710 = vadd.f32 0.0, %v5709
    %v5711 = vpop.f32.mrf.mxu0
    %5712 = vmatprep.mubr.bf16.mxu0 0
    %5713 = vmatmul.mubr.bf16.gmra.mxu0 %v3454
    %v5714 = vpop.f32.mrf.mxu0
    %v5715 = vadd.f32 0.0, %v5714
    %v5716 = vpop.f32.mrf.mxu0
    %v5717 = vpop.f32.mrf.mxu0
    %v5718 = vadd.f32 0.0, %v5717
    %v5719 = vpop.f32.mrf.mxu0
    %5720 = vmatprep.mubr.bf16.mxu0 0
    %5721 = vmatmul.mubr.bf16.gmra.mxu0 %v3454
    %v5722 = vpop.f32.mrf.mxu0
    %v5723 = vadd.f32 0.0, %v5722
    %v5724 = vpop.f32.mrf.mxu0
    %v5725 = vpop.f32.mrf.mxu0
    %v5726 = vadd.f32 0.0, %v5725
    %v5727 = vpop.f32.mrf.mxu0
    %5728 = vdwg.mxu0
    %v5729 = vadd.f32 %v5471, %v5603
    %v5730 = vadd.f32 %v5472, %v5606
    %v5731 = vadd.f32 %v5473, %v5611
    %v5732 = vadd.f32 %v5474, %v5614
    %v5733 = vadd.f32 %v5475, %v5619
    %v5734 = vadd.f32 %v5476, %v5622
    %v5735 = vadd.f32 %v5477, %v5627
    %v5736 = vadd.f32 %v5478, %v5630
    %v5737 = vadd.f32 %v5479, %v5635
    %v5738 = vadd.f32 %v5480, %v5638
    %v5739 = vadd.f32 %v5481, %v5643
    %v5740 = vadd.f32 %v5482, %v5646
    %v5741 = vadd.f32 %v5483, %v5651
    %v5742 = vadd.f32 %v5484, %v5654
    %v5743 = vadd.f32 %v5485, %v5659
    %v5744 = vadd.f32 %v5486, %v5662
    %v5745 = vadd.f32 %v5487, %v5667
    %v5746 = vadd.f32 %v5488, %v5670
    %v5747 = vadd.f32 %v5489, %v5675
    %v5748 = vadd.f32 %v5490, %v5678
    %v5749 = vadd.f32 %v5491, %v5683
    %v5750 = vadd.f32 %v5492, %v5686
    %v5751 = vadd.f32 %v5493, %v5691
    %v5752 = vadd.f32 %v5494, %v5694
    %v5753 = vadd.f32 %v5495, %v5699
    %v5754 = vadd.f32 %v5496, %v5702
    %v5755 = vadd.f32 %v5497, %v5707
    %v5756 = vadd.f32 %v5498, %v5710
    %v5757 = vadd.f32 %v5499, %v5715
    %v5758 = vadd.f32 %v5500, %v5718
    %v5759 = vadd.f32 %v5501, %v5723
    %v5760 = vadd.f32 %v5502, %v5726
    %v5761 = vld [vmem:[%s3 + $0x2a] sm:$0x1]
    %v5762 = vlaneseq
    %v5763 = vshrl.u32 %v5762, 7
    %v5764 = vsub.s32 0, %v5763
    %v5765 = vrot.slane %v5761, %v5764
    %v5766 = vmul.f32 %v5729, %v5765
    %v5767 = vmul.f32 %v5730, %v5765
    %v5768 = vmul.f32 %v5731, %v5765
    %v5769 = vmul.f32 %v5732, %v5765
    %v5770 = vmul.f32 %v5733, %v5765
    %v5771 = vmul.f32 %v5734, %v5765
    %v5772 = vmul.f32 %v5735, %v5765
    %v5773 = vmul.f32 %v5736, %v5765
    %v5774 = vmul.f32 %v5737, %v5765
    %v5775 = vmul.f32 %v5738, %v5765
    %v5776 = vmul.f32 %v5739, %v5765
    %v5777 = vmul.f32 %v5740, %v5765
    %v5778 = vmul.f32 %v5741, %v5765
    %v5779 = vmul.f32 %v5742, %v5765
    %v5780 = vmul.f32 %v5743, %v5765
    %v5781 = vmul.f32 %v5744, %v5765
    %v5782 = vmul.f32 %v5745, %v5765
    %v5783 = vmul.f32 %v5746, %v5765
    %v5784 = vmul.f32 %v5747, %v5765
    %v5785 = vmul.f32 %v5748, %v5765
    %v5786 = vmul.f32 %v5749, %v5765
    %v5787 = vmul.f32 %v5750, %v5765
    %v5788 = vmul.f32 %v5751, %v5765
    %v5789 = vmul.f32 %v5752, %v5765
    %v5790 = vmul.f32 %v5753, %v5765
    %v5791 = vmul.f32 %v5754, %v5765
    %v5792 = vmul.f32 %v5755, %v5765
    %v5793 = vmul.f32 %v5756, %v5765
    %v5794 = vmul.f32 %v5757, %v5765
    %v5795 = vmul.f32 %v5758, %v5765
    %v5796 = vmul.f32 %v5759, %v5765
    %v5797 = vmul.f32 %v5760, %v5765
    %v5798 = vld [vmem:[%s3 + $0x2b] sm:$0x1]
    %v5799 = vlaneseq
    %v5800 = vshrl.u32 %v5799, 7
    %v5801 = vsub.s32 0, %v5800
    %v5802 = vrot.slane %v5798, %v5801
    %v5803 = vadd.f32 %v5766, %v5802
    %v5804 = vadd.f32 %v5767, %v5802
    %v5805 = vadd.f32 %v5768, %v5802
    %v5806 = vadd.f32 %v5769, %v5802
    %v5807 = vadd.f32 %v5770, %v5802
    %v5808 = vadd.f32 %v5771, %v5802
    %v5809 = vadd.f32 %v5772, %v5802
    %v5810 = vadd.f32 %v5773, %v5802
    %v5811 = vadd.f32 %v5774, %v5802
    %v5812 = vadd.f32 %v5775, %v5802
    %v5813 = vadd.f32 %v5776, %v5802
    %v5814 = vadd.f32 %v5777, %v5802
    %v5815 = vadd.f32 %v5778, %v5802
    %v5816 = vadd.f32 %v5779, %v5802
    %v5817 = vadd.f32 %v5780, %v5802
    %v5818 = vadd.f32 %v5781, %v5802
    %v5819 = vadd.f32 %v5782, %v5802
    %v5820 = vadd.f32 %v5783, %v5802
    %v5821 = vadd.f32 %v5784, %v5802
    %v5822 = vadd.f32 %v5785, %v5802
    %v5823 = vadd.f32 %v5786, %v5802
    %v5824 = vadd.f32 %v5787, %v5802
    %v5825 = vadd.f32 %v5788, %v5802
    %v5826 = vadd.f32 %v5789, %v5802
    %v5827 = vadd.f32 %v5790, %v5802
    %v5828 = vadd.f32 %v5791, %v5802
    %v5829 = vadd.f32 %v5792, %v5802
    %v5830 = vadd.f32 %v5793, %v5802
    %v5831 = vadd.f32 %v5794, %v5802
    %v5832 = vadd.f32 %v5795, %v5802
    %v5833 = vadd.f32 %v5796, %v5802
    %v5834 = vadd.f32 %v5797, %v5802
    %v5835 = vmax.f32 %v5803, 0.0
    %v5836 = vmax.f32 %v5804, 0.0
    %v5837 = vmax.f32 %v5805, 0.0
    %v5838 = vmax.f32 %v5806, 0.0
    %v5839 = vmax.f32 %v5807, 0.0
    %v5840 = vmax.f32 %v5808, 0.0
    %v5841 = vmax.f32 %v5809, 0.0
    %v5842 = vmax.f32 %v5810, 0.0
    %v5843 = vmax.f32 %v5811, 0.0
    %v5844 = vmax.f32 %v5812, 0.0
    %v5845 = vmax.f32 %v5813, 0.0
    %v5846 = vmax.f32 %v5814, 0.0
    %v5847 = vmax.f32 %v5815, 0.0
    %v5848 = vmax.f32 %v5816, 0.0
    %v5849 = vmax.f32 %v5817, 0.0
    %v5850 = vmax.f32 %v5818, 0.0
    %v5851 = vmax.f32 %v5819, 0.0
    %v5852 = vmax.f32 %v5820, 0.0
    %v5853 = vmax.f32 %v5821, 0.0
    %v5854 = vmax.f32 %v5822, 0.0
    %v5855 = vmax.f32 %v5823, 0.0
    %v5856 = vmax.f32 %v5824, 0.0
    %v5857 = vmax.f32 %v5825, 0.0
    %v5858 = vmax.f32 %v5826, 0.0
    %v5859 = vmax.f32 %v5827, 0.0
    %v5860 = vmax.f32 %v5828, 0.0
    %v5861 = vmax.f32 %v5829, 0.0
    %v5862 = vmax.f32 %v5830, 0.0
    %v5863 = vmax.f32 %v5831, 0.0
    %v5864 = vmax.f32 %v5832, 0.0
    %v5865 = vmax.f32 %v5833, 0.0
    %v5866 = vmax.f32 %v5834, 0.0
    %v5867 = vxor.u32 %v2249, 2147483648
    %v5868 = vxor.u32 %v2254, 2147483648
    %v5869 = vxor.u32 %v2259, 2147483648
    %v5870 = vxor.u32 %v2264, 2147483648
    %v5871 = vxor.u32 %v2269, 2147483648
    %v5872 = vxor.u32 %v2274, 2147483648
    %v5873 = vxor.u32 %v2279, 2147483648
    %v5874 = vxor.u32 %v2284, 2147483648
    %v5875 = vxor.u32 %v2289, 2147483648
    %v5876 = vxor.u32 %v2294, 2147483648
    %v5877 = vxor.u32 %v2299, 2147483648
    %v5878 = vxor.u32 %v2304, 2147483648
    %v5879 = vxor.u32 %v2309, 2147483648
    %v5880 = vxor.u32 %v2314, 2147483648
    %v5881 = vxor.u32 %v2319, 2147483648
    %v5882 = vxor.u32 %v2324, 2147483648
    %v5883 = vxor.u32 %v2329, 2147483648
    %v5884 = vxor.u32 %v2334, 2147483648
    %v5885 = vxor.u32 %v2339, 2147483648
    %v5886 = vxor.u32 %v2344, 2147483648
    %v5887 = vxor.u32 %v2349, 2147483648
    %v5888 = vxor.u32 %v2354, 2147483648
    %v5889 = vxor.u32 %v2359, 2147483648
    %v5890 = vxor.u32 %v2364, 2147483648
    %v5891 = vxor.u32 %v2369, 2147483648
    %v5892 = vxor.u32 %v2374, 2147483648
    %v5893 = vxor.u32 %v2379, 2147483648
    %v5894 = vxor.u32 %v2384, 2147483648
    %v5895 = vxor.u32 %v2389, 2147483648
    %v5896 = vxor.u32 %v2394, 2147483648
    %v5897 = vxor.u32 %v2399, 2147483648
    %v5898 = vxor.u32 %v2404, 2147483648
    %v5899 = vmul.f32 %v5867, 1.442695
    %v5900 = vpow.pop %v5899
    %v5901 = vmul.f32 %v5868, 1.442695
    %v5902 = vpow.pop %v5901
    %v5903 = vmul.f32 %v5869, 1.442695
    %v5904 = vpow.pop %v5903
    %v5905 = vmul.f32 %v5870, 1.442695
    %v5906 = vpow.pop %v5905
    %v5907 = vmul.f32 %v5871, 1.442695
    %v5908 = vpow.pop %v5907
    %v5909 = vmul.f32 %v5872, 1.442695
    %v5910 = vpow.pop %v5909
    %v5911 = vmul.f32 %v5873, 1.442695
    %v5912 = vpow.pop %v5911
    %v5913 = vmul.f32 %v5874, 1.442695
    %v5914 = vpow.pop %v5913
    %v5915 = vmul.f32 %v5875, 1.442695
    %v5916 = vpow.pop %v5915
    %v5917 = vmul.f32 %v5876, 1.442695
    %v5918 = vpow.pop %v5917
    %v5919 = vmul.f32 %v5877, 1.442695
    %v5920 = vpow.pop %v5919
    %v5921 = vmul.f32 %v5878, 1.442695
    %v5922 = vpow.pop %v5921
    %v5923 = vmul.f32 %v5879, 1.442695
    %v5924 = vpow.pop %v5923
    %v5925 = vmul.f32 %v5880, 1.442695
    %v5926 = vpow.pop %v5925
    %v5927 = vmul.f32 %v5881, 1.442695
    %v5928 = vpow.pop %v5927
    %v5929 = vmul.f32 %v5882, 1.442695
    %v5930 = vpow.pop %v5929
    %v5931 = vmul.f32 %v5883, 1.442695
    %v5932 = vpow.pop %v5931
    %v5933 = vmul.f32 %v5884, 1.442695
    %v5934 = vpow.pop %v5933
    %v5935 = vmul.f32 %v5885, 1.442695
    %v5936 = vpow.pop %v5935
    %v5937 = vmul.f32 %v5886, 1.442695
    %v5938 = vpow.pop %v5937
    %v5939 = vmul.f32 %v5887, 1.442695
    %v5940 = vpow.pop %v5939
    %v5941 = vmul.f32 %v5888, 1.442695
    %v5942 = vpow.pop %v5941
    %v5943 = vmul.f32 %v5889, 1.442695
    %v5944 = vpow.pop %v5943
    %v5945 = vmul.f32 %v5890, 1.442695
    %v5946 = vpow.pop %v5945
    %v5947 = vmul.f32 %v5891, 1.442695
    %v5948 = vpow.pop %v5947
    %v5949 = vmul.f32 %v5892, 1.442695
    %v5950 = vpow.pop %v5949
    %v5951 = vmul.f32 %v5893, 1.442695
    %v5952 = vpow.pop %v5951
    %v5953 = vmul.f32 %v5894, 1.442695
    %v5954 = vpow.pop %v5953
    %v5955 = vmul.f32 %v5895, 1.442695
    %v5956 = vpow.pop %v5955
    %v5957 = vmul.f32 %v5896, 1.442695
    %v5958 = vpow.pop %v5957
    %v5959 = vmul.f32 %v5897, 1.442695
    %v5960 = vpow.pop %v5959
    %v5961 = vmul.f32 %v5898, 1.442695
    %v5962 = vpow.pop %v5961
    %v5963 = vadd.f32 %v5900, 1.0
    %v5964 = vadd.f32 %v5902, 1.0
    %v5965 = vadd.f32 %v5904, 1.0
    %v5966 = vadd.f32 %v5906, 1.0
    %v5967 = vadd.f32 %v5908, 1.0
    %v5968 = vadd.f32 %v5910, 1.0
    %v5969 = vadd.f32 %v5912, 1.0
    %v5970 = vadd.f32 %v5914, 1.0
    %v5971 = vadd.f32 %v5916, 1.0
    %v5972 = vadd.f32 %v5918, 1.0
    %v5973 = vadd.f32 %v5920, 1.0
    %v5974 = vadd.f32 %v5922, 1.0
    %v5975 = vadd.f32 %v5924, 1.0
    %v5976 = vadd.f32 %v5926, 1.0
    %v5977 = vadd.f32 %v5928, 1.0
    %v5978 = vadd.f32 %v5930, 1.0
    %v5979 = vadd.f32 %v5932, 1.0
    %v5980 = vadd.f32 %v5934, 1.0
    %v5981 = vadd.f32 %v5936, 1.0
    %v5982 = vadd.f32 %v5938, 1.0
    %v5983 = vadd.f32 %v5940, 1.0
    %v5984 = vadd.f32 %v5942, 1.0
    %v5985 = vadd.f32 %v5944, 1.0
    %v5986 = vadd.f32 %v5946, 1.0
    %v5987 = vadd.f32 %v5948, 1.0
    %v5988 = vadd.f32 %v5950, 1.0
    %v5989 = vadd.f32 %v5952, 1.0
    %v5990 = vadd.f32 %v5954, 1.0
    %v5991 = vadd.f32 %v5956, 1.0
    %v5992 = vadd.f32 %v5958, 1.0
    %v5993 = vadd.f32 %v5960, 1.0
    %v5994 = vadd.f32 %v5962, 1.0
    %v5995 = vrcp.pop %v5963
    %v5996 = vmul.f32 1.0, %v5995
    %v5997 = vrcp.pop %v5964
    %v5998 = vmul.f32 1.0, %v5997
    %v5999 = vrcp.pop %v5965
    %v6000 = vmul.f32 1.0, %v5999
    %v6001 = vrcp.pop %v5966
    %v6002 = vmul.f32 1.0, %v6001
    %v6003 = vrcp.pop %v5967
    %v6004 = vmul.f32 1.0, %v6003
    %v6005 = vrcp.pop %v5968
    %v6006 = vmul.f32 1.0, %v6005
    %v6007 = vrcp.pop %v5969
    %v6008 = vmul.f32 1.0, %v6007
    %v6009 = vrcp.pop %v5970
    %v6010 = vmul.f32 1.0, %v6009
    %v6011 = vrcp.pop %v5971
    %v6012 = vmul.f32 1.0, %v6011
    %v6013 = vrcp.pop %v5972
    %v6014 = vmul.f32 1.0, %v6013
    %v6015 = vrcp.pop %v5973
    %v6016 = vmul.f32 1.0, %v6015
    %v6017 = vrcp.pop %v5974
    %v6018 = vmul.f32 1.0, %v6017
    %v6019 = vrcp.pop %v5975
    %v6020 = vmul.f32 1.0, %v6019
    %v6021 = vrcp.pop %v5976
    %v6022 = vmul.f32 1.0, %v6021
    %v6023 = vrcp.pop %v5977
    %v6024 = vmul.f32 1.0, %v6023
    %v6025 = vrcp.pop %v5978
    %v6026 = vmul.f32 1.0, %v6025
    %v6027 = vrcp.pop %v5979
    %v6028 = vmul.f32 1.0, %v6027
    %v6029 = vrcp.pop %v5980
    %v6030 = vmul.f32 1.0, %v6029
    %v6031 = vrcp.pop %v5981
    %v6032 = vmul.f32 1.0, %v6031
    %v6033 = vrcp.pop %v5982
    %v6034 = vmul.f32 1.0, %v6033
    %v6035 = vrcp.pop %v5983
    %v6036 = vmul.f32 1.0, %v6035
    %v6037 = vrcp.pop %v5984
    %v6038 = vmul.f32 1.0, %v6037
    %v6039 = vrcp.pop %v5985
    %v6040 = vmul.f32 1.0, %v6039
    %v6041 = vrcp.pop %v5986
    %v6042 = vmul.f32 1.0, %v6041
    %v6043 = vrcp.pop %v5987
    %v6044 = vmul.f32 1.0, %v6043
    %v6045 = vrcp.pop %v5988
    %v6046 = vmul.f32 1.0, %v6045
    %v6047 = vrcp.pop %v5989
    %v6048 = vmul.f32 1.0, %v6047
    %v6049 = vrcp.pop %v5990
    %v6050 = vmul.f32 1.0, %v6049
    %v6051 = vrcp.pop %v5991
    %v6052 = vmul.f32 1.0, %v6051
    %v6053 = vrcp.pop %v5992
    %v6054 = vmul.f32 1.0, %v6053
    %v6055 = vrcp.pop %v5993
    %v6056 = vmul.f32 1.0, %v6055
    %v6057 = vrcp.pop %v5994
    %v6058 = vmul.f32 1.0, %v6057
    %v6059 = vmul.f32 %v1521, %v5996
    %v6060 = vmul.f32 %v1522, %v5998
    %v6061 = vmul.f32 %v1523, %v6000
    %v6062 = vmul.f32 %v1524, %v6002
    %v6063 = vmul.f32 %v1525, %v6004
    %v6064 = vmul.f32 %v1526, %v6006
    %v6065 = vmul.f32 %v1527, %v6008
    %v6066 = vmul.f32 %v1528, %v6010
    %v6067 = vmul.f32 %v1529, %v6012
    %v6068 = vmul.f32 %v1530, %v6014
    %v6069 = vmul.f32 %v1531, %v6016
    %v6070 = vmul.f32 %v1532, %v6018
    %v6071 = vmul.f32 %v1533, %v6020
    %v6072 = vmul.f32 %v1534, %v6022
    %v6073 = vmul.f32 %v1535, %v6024
    %v6074 = vmul.f32 %v1536, %v6026
    %v6075 = vmul.f32 %v1537, %v6028
    %v6076 = vmul.f32 %v1538, %v6030
    %v6077 = vmul.f32 %v1539, %v6032
    %v6078 = vmul.f32 %v1540, %v6034
    %v6079 = vmul.f32 %v1541, %v6036
    %v6080 = vmul.f32 %v1542, %v6038
    %v6081 = vmul.f32 %v1543, %v6040
    %v6082 = vmul.f32 %v1544, %v6042
    %v6083 = vmul.f32 %v1545, %v6044
    %v6084 = vmul.f32 %v1546, %v6046
    %v6085 = vmul.f32 %v1547, %v6048
    %v6086 = vmul.f32 %v1548, %v6050
    %v6087 = vmul.f32 %v1549, %v6052
    %v6088 = vmul.f32 %v1550, %v6054
    %v6089 = vmul.f32 %v1551, %v6056
    %v6090 = vmul.f32 %v1552, %v6058
    %v6091 = vxor.u32 %v5835, 2147483648
    %v6092 = vxor.u32 %v5836, 2147483648
    %v6093 = vxor.u32 %v5837, 2147483648
    %v6094 = vxor.u32 %v5838, 2147483648
    %v6095 = vxor.u32 %v5839, 2147483648
    %v6096 = vxor.u32 %v5840, 2147483648
    %v6097 = vxor.u32 %v5841, 2147483648
    %v6098 = vxor.u32 %v5842, 2147483648
    %v6099 = vxor.u32 %v5843, 2147483648
    %v6100 = vxor.u32 %v5844, 2147483648
    %v6101 = vxor.u32 %v5845, 2147483648
    %v6102 = vxor.u32 %v5846, 2147483648
    %v6103 = vxor.u32 %v5847, 2147483648
    %v6104 = vxor.u32 %v5848, 2147483648
    %v6105 = vxor.u32 %v5849, 2147483648
    %v6106 = vxor.u32 %v5850, 2147483648
    %v6107 = vxor.u32 %v5851, 2147483648
    %v6108 = vxor.u32 %v5852, 2147483648
    %v6109 = vxor.u32 %v5853, 2147483648
    %v6110 = vxor.u32 %v5854, 2147483648
    %v6111 = vxor.u32 %v5855, 2147483648
    %v6112 = vxor.u32 %v5856, 2147483648
    %v6113 = vxor.u32 %v5857, 2147483648
    %v6114 = vxor.u32 %v5858, 2147483648
    %v6115 = vxor.u32 %v5859, 2147483648
    %v6116 = vxor.u32 %v5860, 2147483648
    %v6117 = vxor.u32 %v5861, 2147483648
    %v6118 = vxor.u32 %v5862, 2147483648
    %v6119 = vxor.u32 %v5863, 2147483648
    %v6120 = vxor.u32 %v5864, 2147483648
    %v6121 = vxor.u32 %v5865, 2147483648
    %v6122 = vxor.u32 %v5866, 2147483648
    %v6123 = vmul.f32 %v6091, 1.442695
    %v6124 = vpow.pop %v6123
    %v6125 = vmul.f32 %v6092, 1.442695
    %v6126 = vpow.pop %v6125
    %v6127 = vmul.f32 %v6093, 1.442695
    %v6128 = vpow.pop %v6127
    %v6129 = vmul.f32 %v6094, 1.442695
    %v6130 = vpow.pop %v6129
    %v6131 = vmul.f32 %v6095, 1.442695
    %v6132 = vpow.pop %v6131
    %v6133 = vmul.f32 %v6096, 1.442695
    %v6134 = vpow.pop %v6133
    %v6135 = vmul.f32 %v6097, 1.442695
    %v6136 = vpow.pop %v6135
    %v6137 = vmul.f32 %v6098, 1.442695
    %v6138 = vpow.pop %v6137
    %v6139 = vmul.f32 %v6099, 1.442695
    %v6140 = vpow.pop %v6139
    %v6141 = vmul.f32 %v6100, 1.442695
    %v6142 = vpow.pop %v6141
    %v6143 = vmul.f32 %v6101, 1.442695
    %v6144 = vpow.pop %v6143
    %v6145 = vmul.f32 %v6102, 1.442695
    %v6146 = vpow.pop %v6145
    %v6147 = vmul.f32 %v6103, 1.442695
    %v6148 = vpow.pop %v6147
    %v6149 = vmul.f32 %v6104, 1.442695
    %v6150 = vpow.pop %v6149
    %v6151 = vmul.f32 %v6105, 1.442695
    %v6152 = vpow.pop %v6151
    %v6153 = vmul.f32 %v6106, 1.442695
    %v6154 = vpow.pop %v6153
    %v6155 = vmul.f32 %v6107, 1.442695
    %v6156 = vpow.pop %v6155
    %v6157 = vmul.f32 %v6108, 1.442695
    %v6158 = vpow.pop %v6157
    %v6159 = vmul.f32 %v6109, 1.442695
    %v6160 = vpow.pop %v6159
    %v6161 = vmul.f32 %v6110, 1.442695
    %v6162 = vpow.pop %v6161
    %v6163 = vmul.f32 %v6111, 1.442695
    %v6164 = vpow.pop %v6163
    %v6165 = vmul.f32 %v6112, 1.442695
    %v6166 = vpow.pop %v6165
    %v6167 = vmul.f32 %v6113, 1.442695
    %v6168 = vpow.pop %v6167
    %v6169 = vmul.f32 %v6114, 1.442695
    %v6170 = vpow.pop %v6169
    %v6171 = vmul.f32 %v6115, 1.442695
    %v6172 = vpow.pop %v6171
    %v6173 = vmul.f32 %v6116, 1.442695
    %v6174 = vpow.pop %v6173
    %v6175 = vmul.f32 %v6117, 1.442695
    %v6176 = vpow.pop %v6175
    %v6177 = vmul.f32 %v6118, 1.442695
    %v6178 = vpow.pop %v6177
    %v6179 = vmul.f32 %v6119, 1.442695
    %v6180 = vpow.pop %v6179
    %v6181 = vmul.f32 %v6120, 1.442695
    %v6182 = vpow.pop %v6181
    %v6183 = vmul.f32 %v6121, 1.442695
    %v6184 = vpow.pop %v6183
    %v6185 = vmul.f32 %v6122, 1.442695
    %v6186 = vpow.pop %v6185
    %v6187 = vadd.f32 %v6124, 1.0
    %v6188 = vadd.f32 %v6126, 1.0
    %v6189 = vadd.f32 %v6128, 1.0
    %v6190 = vadd.f32 %v6130, 1.0
    %v6191 = vadd.f32 %v6132, 1.0
    %v6192 = vadd.f32 %v6134, 1.0
    %v6193 = vadd.f32 %v6136, 1.0
    %v6194 = vadd.f32 %v6138, 1.0
    %v6195 = vadd.f32 %v6140, 1.0
    %v6196 = vadd.f32 %v6142, 1.0
    %v6197 = vadd.f32 %v6144, 1.0
    %v6198 = vadd.f32 %v6146, 1.0
    %v6199 = vadd.f32 %v6148, 1.0
    %v6200 = vadd.f32 %v6150, 1.0
    %v6201 = vadd.f32 %v6152, 1.0
    %v6202 = vadd.f32 %v6154, 1.0
    %v6203 = vadd.f32 %v6156, 1.0
    %v6204 = vadd.f32 %v6158, 1.0
    %v6205 = vadd.f32 %v6160, 1.0
    %v6206 = vadd.f32 %v6162, 1.0
    %v6207 = vadd.f32 %v6164, 1.0
    %v6208 = vadd.f32 %v6166, 1.0
    %v6209 = vadd.f32 %v6168, 1.0
    %v6210 = vadd.f32 %v6170, 1.0
    %v6211 = vadd.f32 %v6172, 1.0
    %v6212 = vadd.f32 %v6174, 1.0
    %v6213 = vadd.f32 %v6176, 1.0
    %v6214 = vadd.f32 %v6178, 1.0
    %v6215 = vadd.f32 %v6180, 1.0
    %v6216 = vadd.f32 %v6182, 1.0
    %v6217 = vadd.f32 %v6184, 1.0
    %v6218 = vadd.f32 %v6186, 1.0
    %v6219 = vrcp.pop %v6187
    %v6220 = vmul.f32 1.0, %v6219
    %v6221 = vrcp.pop %v6188
    %v6222 = vmul.f32 1.0, %v6221
    %v6223 = vrcp.pop %v6189
    %v6224 = vmul.f32 1.0, %v6223
    %v6225 = vrcp.pop %v6190
    %v6226 = vmul.f32 1.0, %v6225
    %v6227 = vrcp.pop %v6191
    %v6228 = vmul.f32 1.0, %v6227
    %v6229 = vrcp.pop %v6192
    %v6230 = vmul.f32 1.0, %v6229
    %v6231 = vrcp.pop %v6193
    %v6232 = vmul.f32 1.0, %v6231
    %v6233 = vrcp.pop %v6194
    %v6234 = vmul.f32 1.0, %v6233
    %v6235 = vrcp.pop %v6195
    %v6236 = vmul.f32 1.0, %v6235
    %v6237 = vrcp.pop %v6196
    %v6238 = vmul.f32 1.0, %v6237
    %v6239 = vrcp.pop %v6197
    %v6240 = vmul.f32 1.0, %v6239
    %v6241 = vrcp.pop %v6198
    %v6242 = vmul.f32 1.0, %v6241
    %v6243 = vrcp.pop %v6199
    %v6244 = vmul.f32 1.0, %v6243
    %v6245 = vrcp.pop %v6200
    %v6246 = vmul.f32 1.0, %v6245
    %v6247 = vrcp.pop %v6201
    %v6248 = vmul.f32 1.0, %v6247
    %v6249 = vrcp.pop %v6202
    %v6250 = vmul.f32 1.0, %v6249
    %v6251 = vrcp.pop %v6203
    %v6252 = vmul.f32 1.0, %v6251
    %v6253 = vrcp.pop %v6204
    %v6254 = vmul.f32 1.0, %v6253
    %v6255 = vrcp.pop %v6205
    %v6256 = vmul.f32 1.0, %v6255
    %v6257 = vrcp.pop %v6206
    %v6258 = vmul.f32 1.0, %v6257
    %v6259 = vrcp.pop %v6207
    %v6260 = vmul.f32 1.0, %v6259
    %v6261 = vrcp.pop %v6208
    %v6262 = vmul.f32 1.0, %v6261
    %v6263 = vrcp.pop %v6209
    %v6264 = vmul.f32 1.0, %v6263
    %v6265 = vrcp.pop %v6210
    %v6266 = vmul.f32 1.0, %v6265
    %v6267 = vrcp.pop %v6211
    %v6268 = vmul.f32 1.0, %v6267
    %v6269 = vrcp.pop %v6212
    %v6270 = vmul.f32 1.0, %v6269
    %v6271 = vrcp.pop %v6213
    %v6272 = vmul.f32 1.0, %v6271
    %v6273 = vrcp.pop %v6214
    %v6274 = vmul.f32 1.0, %v6273
    %v6275 = vrcp.pop %v6215
    %v6276 = vmul.f32 1.0, %v6275
    %v6277 = vrcp.pop %v6216
    %v6278 = vmul.f32 1.0, %v6277
    %v6279 = vrcp.pop %v6217
    %v6280 = vmul.f32 1.0, %v6279
    %v6281 = vrcp.pop %v6218
    %v6282 = vmul.f32 1.0, %v6281
    %v6283 = vmul.f32 %v2013, %v6220
    %v6284 = vmul.f32 %v2014, %v6222
    %v6285 = vmul.f32 %v2015, %v6224
    %v6286 = vmul.f32 %v2016, %v6226
    %v6287 = vmul.f32 %v2017, %v6228
    %v6288 = vmul.f32 %v2018, %v6230
    %v6289 = vmul.f32 %v2019, %v6232
    %v6290 = vmul.f32 %v2020, %v6234
    %v6291 = vmul.f32 %v2021, %v6236
    %v6292 = vmul.f32 %v2022, %v6238
    %v6293 = vmul.f32 %v2023, %v6240
    %v6294 = vmul.f32 %v2024, %v6242
    %v6295 = vmul.f32 %v2025, %v6244
    %v6296 = vmul.f32 %v2026, %v6246
    %v6297 = vmul.f32 %v2027, %v6248
    %v6298 = vmul.f32 %v2028, %v6250
    %v6299 = vmul.f32 %v2029, %v6252
    %v6300 = vmul.f32 %v2030, %v6254
    %v6301 = vmul.f32 %v2031, %v6256
    %v6302 = vmul.f32 %v2032, %v6258
    %v6303 = vmul.f32 %v2033, %v6260
    %v6304 = vmul.f32 %v2034, %v6262
    %v6305 = vmul.f32 %v2035, %v6264
    %v6306 = vmul.f32 %v2036, %v6266
    %v6307 = vmul.f32 %v2037, %v6268
    %v6308 = vmul.f32 %v2038, %v6270
    %v6309 = vmul.f32 %v2039, %v6272
    %v6310 = vmul.f32 %v2040, %v6274
    %v6311 = vmul.f32 %v2041, %v6276
    %v6312 = vmul.f32 %v2042, %v6278
    %v6313 = vmul.f32 %v2043, %v6280
    %v6314 = vmul.f32 %v2044, %v6282
    %v6315 = vadd.f32 %v6059, %v6283
    %v6316 = vadd.f32 %v6060, %v6284
    %v6317 = vadd.f32 %v6061, %v6285
    %v6318 = vadd.f32 %v6062, %v6286
    %v6319 = vadd.f32 %v6063, %v6287
    %v6320 = vadd.f32 %v6064, %v6288
    %v6321 = vadd.f32 %v6065, %v6289
    %v6322 = vadd.f32 %v6066, %v6290
    %v6323 = vadd.f32 %v6067, %v6291
    %v6324 = vadd.f32 %v6068, %v6292
    %v6325 = vadd.f32 %v6069, %v6293
    %v6326 = vadd.f32 %v6070, %v6294
    %v6327 = vadd.f32 %v6071, %v6295
    %v6328 = vadd.f32 %v6072, %v6296
    %v6329 = vadd.f32 %v6073, %v6297
    %v6330 = vadd.f32 %v6074, %v6298
    %v6331 = vadd.f32 %v6075, %v6299
    %v6332 = vadd.f32 %v6076, %v6300
    %v6333 = vadd.f32 %v6077, %v6301
    %v6334 = vadd.f32 %v6078, %v6302
    %v6335 = vadd.f32 %v6079, %v6303
    %v6336 = vadd.f32 %v6080, %v6304
    %v6337 = vadd.f32 %v6081, %v6305
    %v6338 = vadd.f32 %v6082, %v6306
    %v6339 = vadd.f32 %v6083, %v6307
    %v6340 = vadd.f32 %v6084, %v6308
    %v6341 = vadd.f32 %v6085, %v6309
    %v6342 = vadd.f32 %v6086, %v6310
    %v6343 = vadd.f32 %v6087, %v6311
    %v6344 = vadd.f32 %v6088, %v6312
    %v6345 = vadd.f32 %v6089, %v6313
    %v6346 = vadd.f32 %v6090, %v6314
    %v6379 = vrot.slane %v6315, 7
    %v6380 = vrot.slane %v6316, 7
    %v6381 = vsel %vm1691, %v6379, %v6380
    %v6382 = vrot.slane %v6317, 7
    %v6383 = vrot.slane %v6318, 7
    %v6384 = vsel %vm1691, %v6382, %v6383
    %v6385 = vrot.slane %v6319, 7
    %v6386 = vrot.slane %v6320, 7
    %v6387 = vsel %vm1691, %v6385, %v6386
    %v6388 = vrot.slane %v6321, 7
    %v6389 = vrot.slane %v6322, 7
    %v6390 = vsel %vm1691, %v6388, %v6389
    %v6391 = vrot.slane %v6323, 7
    %v6392 = vrot.slane %v6324, 7
    %v6393 = vsel %vm1691, %v6391, %v6392
    %v6394 = vrot.slane %v6325, 7
    %v6395 = vrot.slane %v6326, 7
    %v6396 = vsel %vm1691, %v6394, %v6395
    %v6397 = vrot.slane %v6327, 7
    %v6398 = vrot.slane %v6328, 7
    %v6399 = vsel %vm1691, %v6397, %v6398
    %v6400 = vrot.slane %v6329, 7
    %v6401 = vrot.slane %v6330, 7
    %v6402 = vsel %vm1691, %v6400, %v6401
    %v6403 = vrot.slane %v6331, 7
    %v6404 = vrot.slane %v6332, 7
    %v6405 = vsel %vm1691, %v6403, %v6404
    %v6406 = vrot.slane %v6333, 7
    %v6407 = vrot.slane %v6334, 7
    %v6408 = vsel %vm1691, %v6406, %v6407
    %v6409 = vrot.slane %v6335, 7
    %v6410 = vrot.slane %v6336, 7
    %v6411 = vsel %vm1691, %v6409, %v6410
    %v6412 = vrot.slane %v6337, 7
    %v6413 = vrot.slane %v6338, 7
    %v6414 = vsel %vm1691, %v6412, %v6413
    %v6415 = vrot.slane %v6339, 7
    %v6416 = vrot.slane %v6340, 7
    %v6417 = vsel %vm1691, %v6415, %v6416
    %v6418 = vrot.slane %v6341, 7
    %v6419 = vrot.slane %v6342, 7
    %v6420 = vsel %vm1691, %v6418, %v6419
    %v6421 = vrot.slane %v6343, 7
    %v6422 = vrot.slane %v6344, 7
    %v6423 = vsel %vm1691, %v6421, %v6422
    %v6424 = vrot.slane %v6345, 7
    %v6425 = vrot.slane %v6346, 7
    %v6426 = vsel %vm1691, %v6424, %v6425
    %v6459 = vsel %vm1691, 0.0, %v6379
    %v6460 = vsel %vm1691, 0.0, %v6382
    %v6461 = vsel %vm1691, 0.0, %v6385
    %v6462 = vsel %vm1691, 0.0, %v6388
    %v6463 = vsel %vm1691, 0.0, %v6391
    %v6464 = vsel %vm1691, 0.0, %v6394
    %v6465 = vsel %vm1691, 0.0, %v6397
    %v6466 = vsel %vm1691, 0.0, %v6400
    %v6467 = vsel %vm1691, 0.0, %v6403
    %v6468 = vsel %vm1691, 0.0, %v6406
    %v6469 = vsel %vm1691, 0.0, %v6409
    %v6470 = vsel %vm1691, 0.0, %v6412
    %v6471 = vsel %vm1691, 0.0, %v6415
    %v6472 = vsel %vm1691, 0.0, %v6418
    %v6473 = vsel %vm1691, 0.0, %v6421
    %v6474 = vsel %vm1691, 0.0, %v6424
    %v6475 = vrot.slane %v6315, 1
    %v6476 = vrot.slane %v6316, 1
    %v6477 = vsel %vm1788, %v6475, %v6476
    %v6478 = vrot.slane %v6317, 1
    %v6479 = vrot.slane %v6318, 1
    %v6480 = vsel %vm1788, %v6478, %v6479
    %v6481 = vrot.slane %v6319, 1
    %v6482 = vrot.slane %v6320, 1
    %v6483 = vsel %vm1788, %v6481, %v6482
    %v6484 = vrot.slane %v6321, 1
    %v6485 = vrot.slane %v6322, 1
    %v6486 = vsel %vm1788, %v6484, %v6485
    %v6487 = vrot.slane %v6323, 1
    %v6488 = vrot.slane %v6324, 1
    %v6489 = vsel %vm1788, %v6487, %v6488
    %v6490 = vrot.slane %v6325, 1
    %v6491 = vrot.slane %v6326, 1
    %v6492 = vsel %vm1788, %v6490, %v6491
    %v6493 = vrot.slane %v6327, 1
    %v6494 = vrot.slane %v6328, 1
    %v6495 = vsel %vm1788, %v6493, %v6494
    %v6496 = vrot.slane %v6329, 1
    %v6497 = vrot.slane %v6330, 1
    %v6498 = vsel %vm1788, %v6496, %v6497
    %v6499 = vrot.slane %v6331, 1
    %v6500 = vrot.slane %v6332, 1
    %v6501 = vsel %vm1788, %v6499, %v6500
    %v6502 = vrot.slane %v6333, 1
    %v6503 = vrot.slane %v6334, 1
    %v6504 = vsel %vm1788, %v6502, %v6503
    %v6505 = vrot.slane %v6335, 1
    %v6506 = vrot.slane %v6336, 1
    %v6507 = vsel %vm1788, %v6505, %v6506
    %v6508 = vrot.slane %v6337, 1
    %v6509 = vrot.slane %v6338, 1
    %v6510 = vsel %vm1788, %v6508, %v6509
    %v6511 = vrot.slane %v6339, 1
    %v6512 = vrot.slane %v6340, 1
    %v6513 = vsel %vm1788, %v6511, %v6512
    %v6514 = vrot.slane %v6341, 1
    %v6515 = vrot.slane %v6342, 1
    %v6516 = vsel %vm1788, %v6514, %v6515
    %v6517 = vrot.slane %v6343, 1
    %v6518 = vrot.slane %v6344, 1
    %v6519 = vsel %vm1788, %v6517, %v6518
    %v6520 = vrot.slane %v6345, 1
    %v6521 = vrot.slane %v6346, 1
    %v6522 = vsel %vm1788, %v6520, %v6521
    %v6555 = vsel %vm1788, %v6476, 0.0
    %v6556 = vsel %vm1788, %v6479, 0.0
    %v6557 = vsel %vm1788, %v6482, 0.0
    %v6558 = vsel %vm1788, %v6485, 0.0
    %v6559 = vsel %vm1788, %v6488, 0.0
    %v6560 = vsel %vm1788, %v6491, 0.0
    %v6561 = vsel %vm1788, %v6494, 0.0
    %v6562 = vsel %vm1788, %v6497, 0.0
    %v6563 = vsel %vm1788, %v6500, 0.0
    %v6564 = vsel %vm1788, %v6503, 0.0
    %v6565 = vsel %vm1788, %v6506, 0.0
    %v6566 = vsel %vm1788, %v6509, 0.0
    %v6567 = vsel %vm1788, %v6512, 0.0
    %v6568 = vsel %vm1788, %v6515, 0.0
    %v6569 = vsel %vm1788, %v6518, 0.0
    %v6570 = vsel %vm1788, %v6521, 0.0
    %v6571 = vld [vmem:[%s3 + $0x1b] sm:$0x1]
    %v6572 = vlaneseq
    %v6573 = vshrl.u32 %v6572, 7
    %v6574 = vsub.s32 0, %v6573
    %v6575 = vrot.slane %v6571, %v6574
    %v6576 = vmul.f32 %v2523, %v6575
    %v6577 = vmul.f32 %v2440, %v6575
    %v6578 = vmul.f32 %v6459, %v6575
    %v6579 = vmul.f32 %v6381, %v6575
    %v6580 = vmul.f32 %v6460, %v6575
    %v6581 = vmul.f32 %v6384, %v6575
    %v6582 = vmul.f32 %v6461, %v6575
    %v6583 = vmul.f32 %v6387, %v6575
    %v6584 = vmul.f32 %v6462, %v6575
    %v6585 = vmul.f32 %v6390, %v6575
    %v6586 = vmul.f32 %v6463, %v6575
    %v6587 = vmul.f32 %v6393, %v6575
    %v6588 = vmul.f32 %v6464, %v6575
    %v6589 = vmul.f32 %v6396, %v6575
    %v6590 = vmul.f32 %v6465, %v6575
    %v6591 = vmul.f32 %v6399, %v6575
    %v6592 = vmul.f32 %v6466, %v6575
    %v6593 = vmul.f32 %v6402, %v6575
    %v6594 = vmul.f32 %v6467, %v6575
    %v6595 = vmul.f32 %v6405, %v6575
    %v6596 = vmul.f32 %v6468, %v6575
    %v6597 = vmul.f32 %v6408, %v6575
    %v6598 = vmul.f32 %v6469, %v6575
    %v6599 = vmul.f32 %v6411, %v6575
    %v6600 = vmul.f32 %v6470, %v6575
    %v6601 = vmul.f32 %v6414, %v6575
    %v6602 = vmul.f32 %v6471, %v6575
    %v6603 = vmul.f32 %v6417, %v6575
    %v6604 = vmul.f32 %v6472, %v6575
    %v6605 = vmul.f32 %v6420, %v6575
    %v6606 = vmul.f32 %v6473, %v6575
    %v6607 = vmul.f32 %v6423, %v6575
    %v6608 = vld [vmem:[%s3 + $0x1c] sm:$0x1]
    %v6609 = vlaneseq
    %v6610 = vshrl.u32 %v6609, 7
    %v6611 = vsub.s32 0, %v6610
    %v6612 = vrot.slane %v6608, %v6611
    %v6613 = vmul.f32 %v6612, 0.0
    %v6614 = vmul.f32 %v6315, %v6612
    %v6615 = vmul.f32 %v6316, %v6612
    %v6616 = vmul.f32 %v6317, %v6612
    %v6617 = vmul.f32 %v6318, %v6612
    %v6618 = vmul.f32 %v6319, %v6612
    %v6619 = vmul.f32 %v6320, %v6612
    %v6620 = vmul.f32 %v6321, %v6612
    %v6621 = vmul.f32 %v6322, %v6612
    %v6622 = vmul.f32 %v6323, %v6612
    %v6623 = vmul.f32 %v6324, %v6612
    %v6624 = vmul.f32 %v6325, %v6612
    %v6625 = vmul.f32 %v6326, %v6612
    %v6626 = vmul.f32 %v6327, %v6612
    %v6627 = vmul.f32 %v6328, %v6612
    %v6628 = vmul.f32 %v6329, %v6612
    %v6629 = vmul.f32 %v6330, %v6612
    %v6630 = vmul.f32 %v6331, %v6612
    %v6631 = vmul.f32 %v6332, %v6612
    %v6632 = vmul.f32 %v6333, %v6612
    %v6633 = vmul.f32 %v6334, %v6612
    %v6634 = vmul.f32 %v6335, %v6612
    %v6635 = vmul.f32 %v6336, %v6612
    %v6636 = vmul.f32 %v6337, %v6612
    %v6637 = vmul.f32 %v6338, %v6612
    %v6638 = vmul.f32 %v6339, %v6612
    %v6639 = vmul.f32 %v6340, %v6612
    %v6640 = vmul.f32 %v6341, %v6612
    %v6641 = vmul.f32 %v6342, %v6612
    %v6642 = vmul.f32 %v6343, %v6612
    %v6643 = vmul.f32 %v6344, %v6612
    %v6644 = vadd.f32 %v6576, %v6613
    %v6645 = vadd.f32 %v6577, %v6613
    %v6646 = vadd.f32 %v6578, %v6614
    %v6647 = vadd.f32 %v6579, %v6615
    %v6648 = vadd.f32 %v6580, %v6616
    %v6649 = vadd.f32 %v6581, %v6617
    %v6650 = vadd.f32 %v6582, %v6618
    %v6651 = vadd.f32 %v6583, %v6619
    %v6652 = vadd.f32 %v6584, %v6620
    %v6653 = vadd.f32 %v6585, %v6621
    %v6654 = vadd.f32 %v6586, %v6622
    %v6655 = vadd.f32 %v6587, %v6623
    %v6656 = vadd.f32 %v6588, %v6624
    %v6657 = vadd.f32 %v6589, %v6625
    %v6658 = vadd.f32 %v6590, %v6626
    %v6659 = vadd.f32 %v6591, %v6627
    %v6660 = vadd.f32 %v6592, %v6628
    %v6661 = vadd.f32 %v6593, %v6629
    %v6662 = vadd.f32 %v6594, %v6630
    %v6663 = vadd.f32 %v6595, %v6631
    %v6664 = vadd.f32 %v6596, %v6632
    %v6665 = vadd.f32 %v6597, %v6633
    %v6666 = vadd.f32 %v6598, %v6634
    %v6667 = vadd.f32 %v6599, %v6635
    %v6668 = vadd.f32 %v6600, %v6636
    %v6669 = vadd.f32 %v6601, %v6637
    %v6670 = vadd.f32 %v6602, %v6638
    %v6671 = vadd.f32 %v6603, %v6639
    %v6672 = vadd.f32 %v6604, %v6640
    %v6673 = vadd.f32 %v6605, %v6641
    %v6674 = vadd.f32 %v6606, %v6642
    %v6675 = vadd.f32 %v6607, %v6643
    %v6676 = vld [vmem:[%s3 + $0x1d] sm:$0x1]
    %v6677 = vlaneseq
    %v6678 = vshrl.u32 %v6677, 7
    %v6679 = vsub.s32 0, %v6678
    %v6680 = vrot.slane %v6676, %v6679
    %v6681 = vmul.f32 %v2541, %v6680
    %v6682 = vmul.f32 %v2624, %v6680
    %v6683 = vmul.f32 %v6477, %v6680
    %v6684 = vmul.f32 %v6555, %v6680
    %v6685 = vmul.f32 %v6480, %v6680
    %v6686 = vmul.f32 %v6556, %v6680
    %v6687 = vmul.f32 %v6483, %v6680
    %v6688 = vmul.f32 %v6557, %v6680
    %v6689 = vmul.f32 %v6486, %v6680
    %v6690 = vmul.f32 %v6558, %v6680
    %v6691 = vmul.f32 %v6489, %v6680
    %v6692 = vmul.f32 %v6559, %v6680
    %v6693 = vmul.f32 %v6492, %v6680
    %v6694 = vmul.f32 %v6560, %v6680
    %v6695 = vmul.f32 %v6495, %v6680
    %v6696 = vmul.f32 %v6561, %v6680
    %v6697 = vmul.f32 %v6498, %v6680
    %v6698 = vmul.f32 %v6562, %v6680
    %v6699 = vmul.f32 %v6501, %v6680
    %v6700 = vmul.f32 %v6563, %v6680
    %v6701 = vmul.f32 %v6504, %v6680
    %v6702 = vmul.f32 %v6564, %v6680
    %v6703 = vmul.f32 %v6507, %v6680
    %v6704 = vmul.f32 %v6565, %v6680
    %v6705 = vmul.f32 %v6510, %v6680
    %v6706 = vmul.f32 %v6566, %v6680
    %v6707 = vmul.f32 %v6513, %v6680
    %v6708 = vmul.f32 %v6567, %v6680
    %v6709 = vmul.f32 %v6516, %v6680
    %v6710 = vmul.f32 %v6568, %v6680
    %v6711 = vmul.f32 %v6519, %v6680
    %v6712 = vmul.f32 %v6569, %v6680
    %v6713 = vadd.f32 %v6644, %v6681
    %v6714 = vadd.f32 %v6645, %v6682
    %v6715 = vadd.f32 %v6646, %v6683
    %v6716 = vadd.f32 %v6647, %v6684
    %v6717 = vadd.f32 %v6648, %v6685
    %v6718 = vadd.f32 %v6649, %v6686
    %v6719 = vadd.f32 %v6650, %v6687
    %v6720 = vadd.f32 %v6651, %v6688
    %v6721 = vadd.f32 %v6652, %v6689
    %v6722 = vadd.f32 %v6653, %v6690
    %v6723 = vadd.f32 %v6654, %v6691
    %v6724 = vadd.f32 %v6655, %v6692
    %v6725 = vadd.f32 %v6656, %v6693
    %v6726 = vadd.f32 %v6657, %v6694
    %v6727 = vadd.f32 %v6658, %v6695
    %v6728 = vadd.f32 %v6659, %v6696
    %v6729 = vadd.f32 %v6660, %v6697
    %v6730 = vadd.f32 %v6661, %v6698
    %v6731 = vadd.f32 %v6662, %v6699
    %v6732 = vadd.f32 %v6663, %v6700
    %v6733 = vadd.f32 %v6664, %v6701
    %v6734 = vadd.f32 %v6665, %v6702
    %v6735 = vadd.f32 %v6666, %v6703
    %v6736 = vadd.f32 %v6667, %v6704
    %v6737 = vadd.f32 %v6668, %v6705
    %v6738 = vadd.f32 %v6669, %v6706
    %v6739 = vadd.f32 %v6670, %v6707
    %v6740 = vadd.f32 %v6671, %v6708
    %v6741 = vadd.f32 %v6672, %v6709
    %v6742 = vadd.f32 %v6673, %v6710
    %v6743 = vadd.f32 %v6674, %v6711
    %v6744 = vadd.f32 %v6675, %v6712
    %v6745 = vld [vmem:[%s3 + $0x1e] sm:$0x1]
    %v6746 = vlaneseq
    %v6747 = vshrl.u32 %v6746, 7
    %v6748 = vsub.s32 0, %v6747
    %v6749 = vrot.slane %v6745, %v6748
    %v6750 = vmul.f32 %v6459, %v6749
    %v6751 = vmul.f32 %v6381, %v6749
    %v6752 = vmul.f32 %v6460, %v6749
    %v6753 = vmul.f32 %v6384, %v6749
    %v6754 = vmul.f32 %v6461, %v6749
    %v6755 = vmul.f32 %v6387, %v6749
    %v6756 = vmul.f32 %v6462, %v6749
    %v6757 = vmul.f32 %v6390, %v6749
    %v6758 = vmul.f32 %v6463, %v6749
    %v6759 = vmul.f32 %v6393, %v6749
    %v6760 = vmul.f32 %v6464, %v6749
    %v6761 = vmul.f32 %v6396, %v6749
    %v6762 = vmul.f32 %v6465, %v6749
    %v6763 = vmul.f32 %v6399, %v6749
    %v6764 = vmul.f32 %v6466, %v6749
    %v6765 = vmul.f32 %v6402, %v6749
    %v6766 = vmul.f32 %v6467, %v6749
    %v6767 = vmul.f32 %v6405, %v6749
    %v6768 = vmul.f32 %v6468, %v6749
    %v6769 = vmul.f32 %v6408, %v6749
    %v6770 = vmul.f32 %v6469, %v6749
    %v6771 = vmul.f32 %v6411, %v6749
    %v6772 = vmul.f32 %v6470, %v6749
    %v6773 = vmul.f32 %v6414, %v6749
    %v6774 = vmul.f32 %v6471, %v6749
    %v6775 = vmul.f32 %v6417, %v6749
    %v6776 = vmul.f32 %v6472, %v6749
    %v6777 = vmul.f32 %v6420, %v6749
    %v6778 = vmul.f32 %v6473, %v6749
    %v6779 = vmul.f32 %v6423, %v6749
    %v6780 = vmul.f32 %v6474, %v6749
    %v6781 = vmul.f32 %v6426, %v6749
    %v6782 = vadd.f32 %v6713, %v6750
    %v6783 = vadd.f32 %v6714, %v6751
    %v6784 = vadd.f32 %v6715, %v6752
    %v6785 = vadd.f32 %v6716, %v6753
    %v6786 = vadd.f32 %v6717, %v6754
    %v6787 = vadd.f32 %v6718, %v6755
    %v6788 = vadd.f32 %v6719, %v6756
    %v6789 = vadd.f32 %v6720, %v6757
    %v6790 = vadd.f32 %v6721, %v6758
    %v6791 = vadd.f32 %v6722, %v6759
    %v6792 = vadd.f32 %v6723, %v6760
    %v6793 = vadd.f32 %v6724, %v6761
    %v6794 = vadd.f32 %v6725, %v6762
    %v6795 = vadd.f32 %v6726, %v6763
    %v6796 = vadd.f32 %v6727, %v6764
    %v6797 = vadd.f32 %v6728, %v6765
    %v6798 = vadd.f32 %v6729, %v6766
    %v6799 = vadd.f32 %v6730, %v6767
    %v6800 = vadd.f32 %v6731, %v6768
    %v6801 = vadd.f32 %v6732, %v6769
    %v6802 = vadd.f32 %v6733, %v6770
    %v6803 = vadd.f32 %v6734, %v6771
    %v6804 = vadd.f32 %v6735, %v6772
    %v6805 = vadd.f32 %v6736, %v6773
    %v6806 = vadd.f32 %v6737, %v6774
    %v6807 = vadd.f32 %v6738, %v6775
    %v6808 = vadd.f32 %v6739, %v6776
    %v6809 = vadd.f32 %v6740, %v6777
    %v6810 = vadd.f32 %v6741, %v6778
    %v6811 = vadd.f32 %v6742, %v6779
    %v6812 = vadd.f32 %v6743, %v6780
    %v6813 = vadd.f32 %v6744, %v6781
    %v6814 = vld [vmem:[%s3 + $0x1f] sm:$0x1]
    %v6815 = vlaneseq
    %v6816 = vshrl.u32 %v6815, 7
    %v6817 = vsub.s32 0, %v6816
    %v6818 = vrot.slane %v6814, %v6817
    %v6819 = vmul.f32 %v6315, %v6818
    %v6820 = vmul.f32 %v6316, %v6818
    %v6821 = vmul.f32 %v6317, %v6818
    %v6822 = vmul.f32 %v6318, %v6818
    %v6823 = vmul.f32 %v6319, %v6818
    %v6824 = vmul.f32 %v6320, %v6818
    %v6825 = vmul.f32 %v6321, %v6818
    %v6826 = vmul.f32 %v6322, %v6818
    %v6827 = vmul.f32 %v6323, %v6818
    %v6828 = vmul.f32 %v6324, %v6818
    %v6829 = vmul.f32 %v6325, %v6818
    %v6830 = vmul.f32 %v6326, %v6818
    %v6831 = vmul.f32 %v6327, %v6818
    %v6832 = vmul.f32 %v6328, %v6818
    %v6833 = vmul.f32 %v6329, %v6818
    %v6834 = vmul.f32 %v6330, %v6818
    %v6835 = vmul.f32 %v6331, %v6818
    %v6836 = vmul.f32 %v6332, %v6818
    %v6837 = vmul.f32 %v6333, %v6818
    %v6838 = vmul.f32 %v6334, %v6818
    %v6839 = vmul.f32 %v6335, %v6818
    %v6840 = vmul.f32 %v6336, %v6818
    %v6841 = vmul.f32 %v6337, %v6818
    %v6842 = vmul.f32 %v6338, %v6818
    %v6843 = vmul.f32 %v6339, %v6818
    %v6844 = vmul.f32 %v6340, %v6818
    %v6845 = vmul.f32 %v6341, %v6818
    %v6846 = vmul.f32 %v6342, %v6818
    %v6847 = vmul.f32 %v6343, %v6818
    %v6848 = vmul.f32 %v6344, %v6818
    %v6849 = vmul.f32 %v6345, %v6818
    %v6850 = vmul.f32 %v6346, %v6818
    %v6851 = vadd.f32 %v6782, %v6819
    %v6852 = vadd.f32 %v6783, %v6820
    %v6853 = vadd.f32 %v6784, %v6821
    %v6854 = vadd.f32 %v6785, %v6822
    %v6855 = vadd.f32 %v6786, %v6823
    %v6856 = vadd.f32 %v6787, %v6824
    %v6857 = vadd.f32 %v6788, %v6825
    %v6858 = vadd.f32 %v6789, %v6826
    %v6859 = vadd.f32 %v6790, %v6827
    %v6860 = vadd.f32 %v6791, %v6828
    %v6861 = vadd.f32 %v6792, %v6829
    %v6862 = vadd.f32 %v6793, %v6830
    %v6863 = vadd.f32 %v6794, %v6831
    %v6864 = vadd.f32 %v6795, %v6832
    %v6865 = vadd.f32 %v6796, %v6833
    %v6866 = vadd.f32 %v6797, %v6834
    %v6867 = vadd.f32 %v6798, %v6835
    %v6868 = vadd.f32 %v6799, %v6836
    %v6869 = vadd.f32 %v6800, %v6837
    %v6870 = vadd.f32 %v6801, %v6838
    %v6871 = vadd.f32 %v6802, %v6839
    %v6872 = vadd.f32 %v6803, %v6840
    %v6873 = vadd.f32 %v6804, %v6841
    %v6874 = vadd.f32 %v6805, %v6842
    %v6875 = vadd.f32 %v6806, %v6843
    %v6876 = vadd.f32 %v6807, %v6844
    %v6877 = vadd.f32 %v6808, %v6845
    %v6878 = vadd.f32 %v6809, %v6846
    %v6879 = vadd.f32 %v6810, %v6847
    %v6880 = vadd.f32 %v6811, %v6848
    %v6881 = vadd.f32 %v6812, %v6849
    %v6882 = vadd.f32 %v6813, %v6850
    %v6883 = vld [vmem:[%s3 + $0x20] sm:$0x1]
    %v6884 = vlaneseq
    %v6885 = vshrl.u32 %v6884, 7
    %v6886 = vsub.s32 0, %v6885
    %v6887 = vrot.slane %v6883, %v6886
    %v6888 = vmul.f32 %v6477, %v6887
    %v6889 = vmul.f32 %v6555, %v6887
    %v6890 = vmul.f32 %v6480, %v6887
    %v6891 = vmul.f32 %v6556, %v6887
    %v6892 = vmul.f32 %v6483, %v6887
    %v6893 = vmul.f32 %v6557, %v6887
    %v6894 = vmul.f32 %v6486, %v6887
    %v6895 = vmul.f32 %v6558, %v6887
    %v6896 = vmul.f32 %v6489, %v6887
    %v6897 = vmul.f32 %v6559, %v6887
    %v6898 = vmul.f32 %v6492, %v6887
    %v6899 = vmul.f32 %v6560, %v6887
    %v6900 = vmul.f32 %v6495, %v6887
    %v6901 = vmul.f32 %v6561, %v6887
    %v6902 = vmul.f32 %v6498, %v6887
    %v6903 = vmul.f32 %v6562, %v6887
    %v6904 = vmul.f32 %v6501, %v6887
    %v6905 = vmul.f32 %v6563, %v6887
    %v6906 = vmul.f32 %v6504, %v6887
    %v6907 = vmul.f32 %v6564, %v6887
    %v6908 = vmul.f32 %v6507, %v6887
    %v6909 = vmul.f32 %v6565, %v6887
    %v6910 = vmul.f32 %v6510, %v6887
    %v6911 = vmul.f32 %v6566, %v6887
    %v6912 = vmul.f32 %v6513, %v6887
    %v6913 = vmul.f32 %v6567, %v6887
    %v6914 = vmul.f32 %v6516, %v6887
    %v6915 = vmul.f32 %v6568, %v6887
    %v6916 = vmul.f32 %v6519, %v6887
    %v6917 = vmul.f32 %v6569, %v6887
    %v6918 = vmul.f32 %v6522, %v6887
    %v6919 = vmul.f32 %v6570, %v6887
    %v6920 = vadd.f32 %v6851, %v6888
    %v6921 = vadd.f32 %v6852, %v6889
    %v6922 = vadd.f32 %v6853, %v6890
    %v6923 = vadd.f32 %v6854, %v6891
    %v6924 = vadd.f32 %v6855, %v6892
    %v6925 = vadd.f32 %v6856, %v6893
    %v6926 = vadd.f32 %v6857, %v6894
    %v6927 = vadd.f32 %v6858, %v6895
    %v6928 = vadd.f32 %v6859, %v6896
    %v6929 = vadd.f32 %v6860, %v6897
    %v6930 = vadd.f32 %v6861, %v6898
    %v6931 = vadd.f32 %v6862, %v6899
    %v6932 = vadd.f32 %v6863, %v6900
    %v6933 = vadd.f32 %v6864, %v6901
    %v6934 = vadd.f32 %v6865, %v6902
    %v6935 = vadd.f32 %v6866, %v6903
    %v6936 = vadd.f32 %v6867, %v6904
    %v6937 = vadd.f32 %v6868, %v6905
    %v6938 = vadd.f32 %v6869, %v6906
    %v6939 = vadd.f32 %v6870, %v6907
    %v6940 = vadd.f32 %v6871, %v6908
    %v6941 = vadd.f32 %v6872, %v6909
    %v6942 = vadd.f32 %v6873, %v6910
    %v6943 = vadd.f32 %v6874, %v6911
    %v6944 = vadd.f32 %v6875, %v6912
    %v6945 = vadd.f32 %v6876, %v6913
    %v6946 = vadd.f32 %v6877, %v6914
    %v6947 = vadd.f32 %v6878, %v6915
    %v6948 = vadd.f32 %v6879, %v6916
    %v6949 = vadd.f32 %v6880, %v6917
    %v6950 = vadd.f32 %v6881, %v6918
    %v6951 = vadd.f32 %v6882, %v6919
    %v6952 = vld [vmem:[%s3 + $0x21] sm:$0x1]
    %v6953 = vlaneseq
    %v6954 = vshrl.u32 %v6953, 7
    %v6955 = vsub.s32 0, %v6954
    %v6956 = vrot.slane %v6952, %v6955
    %v6957 = vmul.f32 %v6460, %v6956
    %v6958 = vmul.f32 %v6384, %v6956
    %v6959 = vmul.f32 %v6461, %v6956
    %v6960 = vmul.f32 %v6387, %v6956
    %v6961 = vmul.f32 %v6462, %v6956
    %v6962 = vmul.f32 %v6390, %v6956
    %v6963 = vmul.f32 %v6463, %v6956
    %v6964 = vmul.f32 %v6393, %v6956
    %v6965 = vmul.f32 %v6464, %v6956
    %v6966 = vmul.f32 %v6396, %v6956
    %v6967 = vmul.f32 %v6465, %v6956
    %v6968 = vmul.f32 %v6399, %v6956
    %v6969 = vmul.f32 %v6466, %v6956
    %v6970 = vmul.f32 %v6402, %v6956
    %v6971 = vmul.f32 %v6467, %v6956
    %v6972 = vmul.f32 %v6405, %v6956
    %v6973 = vmul.f32 %v6468, %v6956
    %v6974 = vmul.f32 %v6408, %v6956
    %v6975 = vmul.f32 %v6469, %v6956
    %v6976 = vmul.f32 %v6411, %v6956
    %v6977 = vmul.f32 %v6470, %v6956
    %v6978 = vmul.f32 %v6414, %v6956
    %v6979 = vmul.f32 %v6471, %v6956
    %v6980 = vmul.f32 %v6417, %v6956
    %v6981 = vmul.f32 %v6472, %v6956
    %v6982 = vmul.f32 %v6420, %v6956
    %v6983 = vmul.f32 %v6473, %v6956
    %v6984 = vmul.f32 %v6423, %v6956
    %v6985 = vmul.f32 %v6474, %v6956
    %v6986 = vmul.f32 %v6426, %v6956
    %v6987 = vmul.f32 %v2523, %v6956
    %v6988 = vmul.f32 %v2440, %v6956
    %v6989 = vadd.f32 %v6920, %v6957
    %v6990 = vadd.f32 %v6921, %v6958
    %v6991 = vadd.f32 %v6922, %v6959
    %v6992 = vadd.f32 %v6923, %v6960
    %v6993 = vadd.f32 %v6924, %v6961
    %v6994 = vadd.f32 %v6925, %v6962
    %v6995 = vadd.f32 %v6926, %v6963
    %v6996 = vadd.f32 %v6927, %v6964
    %v6997 = vadd.f32 %v6928, %v6965
    %v6998 = vadd.f32 %v6929, %v6966
    %v6999 = vadd.f32 %v6930, %v6967
    %v7000 = vadd.f32 %v6931, %v6968
    %v7001 = vadd.f32 %v6932, %v6969
    %v7002 = vadd.f32 %v6933, %v6970
    %v7003 = vadd.f32 %v6934, %v6971
    %v7004 = vadd.f32 %v6935, %v6972
    %v7005 = vadd.f32 %v6936, %v6973
    %v7006 = vadd.f32 %v6937, %v6974
    %v7007 = vadd.f32 %v6938, %v6975
    %v7008 = vadd.f32 %v6939, %v6976
    %v7009 = vadd.f32 %v6940, %v6977
    %v7010 = vadd.f32 %v6941, %v6978
    %v7011 = vadd.f32 %v6942, %v6979
    %v7012 = vadd.f32 %v6943, %v6980
    %v7013 = vadd.f32 %v6944, %v6981
    %v7014 = vadd.f32 %v6945, %v6982
    %v7015 = vadd.f32 %v6946, %v6983
    %v7016 = vadd.f32 %v6947, %v6984
    %v7017 = vadd.f32 %v6948, %v6985
    %v7018 = vadd.f32 %v6949, %v6986
    %v7019 = vadd.f32 %v6950, %v6987
    %v7020 = vadd.f32 %v6951, %v6988
    %v7021 = vld [vmem:[%s3 + $0x22] sm:$0x1]
    %v7022 = vlaneseq
    %v7023 = vshrl.u32 %v7022, 7
    %v7024 = vsub.s32 0, %v7023
    %v7025 = vrot.slane %v7021, %v7024
    %v7026 = vmul.f32 %v6317, %v7025
    %v7027 = vmul.f32 %v6318, %v7025
    %v7028 = vmul.f32 %v6319, %v7025
    %v7029 = vmul.f32 %v6320, %v7025
    %v7030 = vmul.f32 %v6321, %v7025
    %v7031 = vmul.f32 %v6322, %v7025
    %v7032 = vmul.f32 %v6323, %v7025
    %v7033 = vmul.f32 %v6324, %v7025
    %v7034 = vmul.f32 %v6325, %v7025
    %v7035 = vmul.f32 %v6326, %v7025
    %v7036 = vmul.f32 %v6327, %v7025
    %v7037 = vmul.f32 %v6328, %v7025
    %v7038 = vmul.f32 %v6329, %v7025
    %v7039 = vmul.f32 %v6330, %v7025
    %v7040 = vmul.f32 %v6331, %v7025
    %v7041 = vmul.f32 %v6332, %v7025
    %v7042 = vmul.f32 %v6333, %v7025
    %v7043 = vmul.f32 %v6334, %v7025
    %v7044 = vmul.f32 %v6335, %v7025
    %v7045 = vmul.f32 %v6336, %v7025
    %v7046 = vmul.f32 %v6337, %v7025
    %v7047 = vmul.f32 %v6338, %v7025
    %v7048 = vmul.f32 %v6339, %v7025
    %v7049 = vmul.f32 %v6340, %v7025
    %v7050 = vmul.f32 %v6341, %v7025
    %v7051 = vmul.f32 %v6342, %v7025
    %v7052 = vmul.f32 %v6343, %v7025
    %v7053 = vmul.f32 %v6344, %v7025
    %v7054 = vmul.f32 %v6345, %v7025
    %v7055 = vmul.f32 %v6346, %v7025
    %v7056 = vmul.f32 %v7025, 0.0
    %v7057 = vadd.f32 %v6989, %v7026
    %v7058 = vadd.f32 %v6990, %v7027
    %v7059 = vadd.f32 %v6991, %v7028
    %v7060 = vadd.f32 %v6992, %v7029
    %v7061 = vadd.f32 %v6993, %v7030
    %v7062 = vadd.f32 %v6994, %v7031
    %v7063 = vadd.f32 %v6995, %v7032
    %v7064 = vadd.f32 %v6996, %v7033
    %v7065 = vadd.f32 %v6997, %v7034
    %v7066 = vadd.f32 %v6998, %v7035
    %v7067 = vadd.f32 %v6999, %v7036
    %v7068 = vadd.f32 %v7000, %v7037
    %v7069 = vadd.f32 %v7001, %v7038
    %v7070 = vadd.f32 %v7002, %v7039
    %v7071 = vadd.f32 %v7003, %v7040
    %v7072 = vadd.f32 %v7004, %v7041
    %v7073 = vadd.f32 %v7005, %v7042
    %v7074 = vadd.f32 %v7006, %v7043
    %v7075 = vadd.f32 %v7007, %v7044
    %v7076 = vadd.f32 %v7008, %v7045
    %v7077 = vadd.f32 %v7009, %v7046
    %v7078 = vadd.f32 %v7010, %v7047
    %v7079 = vadd.f32 %v7011, %v7048
    %v7080 = vadd.f32 %v7012, %v7049
    %v7081 = vadd.f32 %v7013, %v7050
    %v7082 = vadd.f32 %v7014, %v7051
    %v7083 = vadd.f32 %v7015, %v7052
    %v7084 = vadd.f32 %v7016, %v7053
    %v7085 = vadd.f32 %v7017, %v7054
    %v7086 = vadd.f32 %v7018, %v7055
    %v7087 = vadd.f32 %v7019, %v7056
    %v7088 = vadd.f32 %v7020, %v7056
    %v7089 = vld [vmem:[%s3 + $0x23] sm:$0x1]
    %v7090 = vlaneseq
    %v7091 = vshrl.u32 %v7090, 7
    %v7092 = vsub.s32 0, %v7091
    %v7093 = vrot.slane %v7089, %v7092
    %v7094 = vmul.f32 %v6480, %v7093
    %v7095 = vmul.f32 %v6556, %v7093
    %v7096 = vmul.f32 %v6483, %v7093
    %v7097 = vmul.f32 %v6557, %v7093
    %v7098 = vmul.f32 %v6486, %v7093
    %v7099 = vmul.f32 %v6558, %v7093
    %v7100 = vmul.f32 %v6489, %v7093
    %v7101 = vmul.f32 %v6559, %v7093
    %v7102 = vmul.f32 %v6492, %v7093
    %v7103 = vmul.f32 %v6560, %v7093
    %v7104 = vmul.f32 %v6495, %v7093
    %v7105 = vmul.f32 %v6561, %v7093
    %v7106 = vmul.f32 %v6498, %v7093
    %v7107 = vmul.f32 %v6562, %v7093
    %v7108 = vmul.f32 %v6501, %v7093
    %v7109 = vmul.f32 %v6563, %v7093
    %v7110 = vmul.f32 %v6504, %v7093
    %v7111 = vmul.f32 %v6564, %v7093
    %v7112 = vmul.f32 %v6507, %v7093
    %v7113 = vmul.f32 %v6565, %v7093
    %v7114 = vmul.f32 %v6510, %v7093
    %v7115 = vmul.f32 %v6566, %v7093
    %v7116 = vmul.f32 %v6513, %v7093
    %v7117 = vmul.f32 %v6567, %v7093
    %v7118 = vmul.f32 %v6516, %v7093
    %v7119 = vmul.f32 %v6568, %v7093
    %v7120 = vmul.f32 %v6519, %v7093
    %v7121 = vmul.f32 %v6569, %v7093
    %v7122 = vmul.f32 %v6522, %v7093
    %v7123 = vmul.f32 %v6570, %v7093
    %v7124 = vmul.f32 %v2541, %v7093
    %v7125 = vmul.f32 %v2624, %v7093
    %v7126 = vadd.f32 %v7057, %v7094
    %v7127 = vadd.f32 %v7058, %v7095
    %v7128 = vadd.f32 %v7059, %v7096
    %v7129 = vadd.f32 %v7060, %v7097
    %v7130 = vadd.f32 %v7061, %v7098
    %v7131 = vadd.f32 %v7062, %v7099
    %v7132 = vadd.f32 %v7063, %v7100
    %v7133 = vadd.f32 %v7064, %v7101
    %v7134 = vadd.f32 %v7065, %v7102
    %v7135 = vadd.f32 %v7066, %v7103
    %v7136 = vadd.f32 %v7067, %v7104
    %v7137 = vadd.f32 %v7068, %v7105
    %v7138 = vadd.f32 %v7069, %v7106
    %v7139 = vadd.f32 %v7070, %v7107
    %v7140 = vadd.f32 %v7071, %v7108
    %v7141 = vadd.f32 %v7072, %v7109
    %v7142 = vadd.f32 %v7073, %v7110
    %v7143 = vadd.f32 %v7074, %v7111
    %v7144 = vadd.f32 %v7075, %v7112
    %v7145 = vadd.f32 %v7076, %v7113
    %v7146 = vadd.f32 %v7077, %v7114
    %v7147 = vadd.f32 %v7078, %v7115
    %v7148 = vadd.f32 %v7079, %v7116
    %v7149 = vadd.f32 %v7080, %v7117
    %v7150 = vadd.f32 %v7081, %v7118
    %v7151 = vadd.f32 %v7082, %v7119
    %v7152 = vadd.f32 %v7083, %v7120
    %v7153 = vadd.f32 %v7084, %v7121
    %v7154 = vadd.f32 %v7085, %v7122
    %v7155 = vadd.f32 %v7086, %v7123
    %v7156 = vadd.f32 %v7087, %v7124
    %v7157 = vadd.f32 %v7088, %v7125
    %v7158 = vld [vmem:[%s3 + $0x2c] sm:$0x1]
    %v7159 = vlaneseq
    %v7160 = vshrl.u32 %v7159, 7
    %v7161 = vsub.s32 0, %v7160
    %v7162 = vrot.slane %v7158, %v7161
    %v7163 = vmul.f32 %v7126, %v7162
    %v7164 = vmul.f32 %v7127, %v7162
    %v7165 = vmul.f32 %v7128, %v7162
    %v7166 = vmul.f32 %v7129, %v7162
    %v7167 = vmul.f32 %v7130, %v7162
    %v7168 = vmul.f32 %v7131, %v7162
    %v7169 = vmul.f32 %v7132, %v7162
    %v7170 = vmul.f32 %v7133, %v7162
    %v7171 = vmul.f32 %v7134, %v7162
    %v7172 = vmul.f32 %v7135, %v7162
    %v7173 = vmul.f32 %v7136, %v7162
    %v7174 = vmul.f32 %v7137, %v7162
    %v7175 = vmul.f32 %v7138, %v7162
    %v7176 = vmul.f32 %v7139, %v7162
    %v7177 = vmul.f32 %v7140, %v7162
    %v7178 = vmul.f32 %v7141, %v7162
    %v7179 = vmul.f32 %v7142, %v7162
    %v7180 = vmul.f32 %v7143, %v7162
    %v7181 = vmul.f32 %v7144, %v7162
    %v7182 = vmul.f32 %v7145, %v7162
    %v7183 = vmul.f32 %v7146, %v7162
    %v7184 = vmul.f32 %v7147, %v7162
    %v7185 = vmul.f32 %v7148, %v7162
    %v7186 = vmul.f32 %v7149, %v7162
    %v7187 = vmul.f32 %v7150, %v7162
    %v7188 = vmul.f32 %v7151, %v7162
    %v7189 = vmul.f32 %v7152, %v7162
    %v7190 = vmul.f32 %v7153, %v7162
    %v7191 = vmul.f32 %v7154, %v7162
    %v7192 = vmul.f32 %v7155, %v7162
    %v7193 = vmul.f32 %v7156, %v7162
    %v7194 = vmul.f32 %v7157, %v7162
    %v7195 = vld [vmem:[%s3 + $0x2d] sm:$0x1]
    %v7196 = vlaneseq
    %v7197 = vshrl.u32 %v7196, 7
    %v7198 = vsub.s32 0, %v7197
    %v7199 = vrot.slane %v7195, %v7198
    %v7200 = vadd.f32 %v7163, %v7199
    %v7201 = vadd.f32 %v7164, %v7199
    %v7202 = vadd.f32 %v7165, %v7199
    %v7203 = vadd.f32 %v7166, %v7199
    %v7204 = vadd.f32 %v7167, %v7199
    %v7205 = vadd.f32 %v7168, %v7199
    %v7206 = vadd.f32 %v7169, %v7199
    %v7207 = vadd.f32 %v7170, %v7199
    %v7208 = vadd.f32 %v7171, %v7199
    %v7209 = vadd.f32 %v7172, %v7199
    %v7210 = vadd.f32 %v7173, %v7199
    %v7211 = vadd.f32 %v7174, %v7199
    %v7212 = vadd.f32 %v7175, %v7199
    %v7213 = vadd.f32 %v7176, %v7199
    %v7214 = vadd.f32 %v7177, %v7199
    %v7215 = vadd.f32 %v7178, %v7199
    %v7216 = vadd.f32 %v7179, %v7199
    %v7217 = vadd.f32 %v7180, %v7199
    %v7218 = vadd.f32 %v7181, %v7199
    %v7219 = vadd.f32 %v7182, %v7199
    %v7220 = vadd.f32 %v7183, %v7199
    %v7221 = vadd.f32 %v7184, %v7199
    %v7222 = vadd.f32 %v7185, %v7199
    %v7223 = vadd.f32 %v7186, %v7199
    %v7224 = vadd.f32 %v7187, %v7199
    %v7225 = vadd.f32 %v7188, %v7199
    %v7226 = vadd.f32 %v7189, %v7199
    %v7227 = vadd.f32 %v7190, %v7199
    %v7228 = vadd.f32 %v7191, %v7199
    %v7229 = vadd.f32 %v7192, %v7199
    %v7230 = vadd.f32 %v7193, %v7199
    %v7231 = vadd.f32 %v7194, %v7199
    %v7232 = vmax.f32 %v7200, 0.0
    %v7233 = vmax.f32 %v7201, 0.0
    %v7234 = vmax.f32 %v7202, 0.0
    %v7235 = vmax.f32 %v7203, 0.0
    %v7236 = vmax.f32 %v7204, 0.0
    %v7237 = vmax.f32 %v7205, 0.0
    %v7238 = vmax.f32 %v7206, 0.0
    %v7239 = vmax.f32 %v7207, 0.0
    %v7240 = vmax.f32 %v7208, 0.0
    %v7241 = vmax.f32 %v7209, 0.0
    %v7242 = vmax.f32 %v7210, 0.0
    %v7243 = vmax.f32 %v7211, 0.0
    %v7244 = vmax.f32 %v7212, 0.0
    %v7245 = vmax.f32 %v7213, 0.0
    %v7246 = vmax.f32 %v7214, 0.0
    %v7247 = vmax.f32 %v7215, 0.0
    %v7248 = vmax.f32 %v7216, 0.0
    %v7249 = vmax.f32 %v7217, 0.0
    %v7250 = vmax.f32 %v7218, 0.0
    %v7251 = vmax.f32 %v7219, 0.0
    %v7252 = vmax.f32 %v7220, 0.0
    %v7253 = vmax.f32 %v7221, 0.0
    %v7254 = vmax.f32 %v7222, 0.0
    %v7255 = vmax.f32 %v7223, 0.0
    %v7256 = vmax.f32 %v7224, 0.0
    %v7257 = vmax.f32 %v7225, 0.0
    %v7258 = vmax.f32 %v7226, 0.0
    %v7259 = vmax.f32 %v7227, 0.0
    %v7260 = vmax.f32 %v7228, 0.0
    %v7261 = vmax.f32 %v7229, 0.0
    %v7262 = vmax.f32 %v7230, 0.0
    %v7263 = vmax.f32 %v7231, 0.0
    %7264 = vst [vmem:[#allocation5] sm:$0xff] %v7232
    %7265 = vst [vmem:[#allocation5 + $0x8] sm:$0xff] %v7233
    %7266 = vst [vmem:[#allocation5 + $0x10] sm:$0xff] %v7234
    %7267 = vst [vmem:[#allocation5 + $0x18] sm:$0xff] %v7235
    %7268 = vst [vmem:[#allocation5 + $0x20] sm:$0xff] %v7236
    %7269 = vst [vmem:[#allocation5 + $0x28] sm:$0xff] %v7237
    %7270 = vst [vmem:[#allocation5 + $0x30] sm:$0xff] %v7238
    %7271 = vst [vmem:[#allocation5 + $0x38] sm:$0xff] %v7239
    %7272 = vst [vmem:[#allocation5 + $0x40] sm:$0xff] %v7240
    %7273 = vst [vmem:[#allocation5 + $0x48] sm:$0xff] %v7241
    %7274 = vst [vmem:[#allocation5 + $0x50] sm:$0xff] %v7242
    %7275 = vst [vmem:[#allocation5 + $0x58] sm:$0xff] %v7243
    %7276 = vst [vmem:[#allocation5 + $0x60] sm:$0xff] %v7244
    %7277 = vst [vmem:[#allocation5 + $0x68] sm:$0xff] %v7245
    %7278 = vst [vmem:[#allocation5 + $0x70] sm:$0xff] %v7246
    %7279 = vst [vmem:[#allocation5 + $0x78] sm:$0xff] %v7247
    %7280 = vst [vmem:[#allocation5 + $0x80] sm:$0xff] %v7248
    %7281 = vst [vmem:[#allocation5 + $0x88] sm:$0xff] %v7249
    %7282 = vst [vmem:[#allocation5 + $0x90] sm:$0xff] %v7250
    %7283 = vst [vmem:[#allocation5 + $0x98] sm:$0xff] %v7251
    %7284 = vst [vmem:[#allocation5 + $0xa0] sm:$0xff] %v7252
    %7285 = vst [vmem:[#allocation5 + $0xa8] sm:$0xff] %v7253
    %7286 = vst [vmem:[#allocation5 + $0xb0] sm:$0xff] %v7254
    %7287 = vst [vmem:[#allocation5 + $0xb8] sm:$0xff] %v7255
    %7288 = vst [vmem:[#allocation5 + $0xc0] sm:$0xff] %v7256
    %7289 = vst [vmem:[#allocation5 + $0xc8] sm:$0xff] %v7257
    %7290 = vst [vmem:[#allocation5 + $0xd0] sm:$0xff] %v7258
    %7291 = vst [vmem:[#allocation5 + $0xd8] sm:$0xff] %v7259
    %7292 = vst [vmem:[#allocation5 + $0xe0] sm:$0xff] %v7260
    %7293 = vst [vmem:[#allocation5 + $0xe8] sm:$0xff] %v7261
    %7294 = vst [vmem:[#allocation5 + $0xf0] sm:$0xff] %v7262
    %7295 = vst [vmem:[#allocation5 + $0xf8] sm:$0xff] %v7263
    // Predicated region
    $region26: #{tpu_custom_call.1} parent=1 // pred_check
      _
    $region27: #{tpu_custom_call.1} parent=1 // pred_check_branch
      %7297 = sbr.rel (0) target = $region29
    $region28: #{tpu_custom_call.1} parent=1 // pred_region
      %s7299 = ssub.s32 4096, 4096
      %7300 = vsyncadd [#allocation4], %s7299
      %s7301 = sshll.u32 [#allocation5], 4
      %s7302 = int_to_ptr.vmem [resolvable:$true] %s7301
      %7307 = dma.vmem_to_hbm [thread:$0]  %s7302, 4096, %s5, [#allocation4], 128, 128, 8
    $region29: #{tpu_custom_call.1} parent=1 // pred_fallthru
      _
    // Predicated region
    $region30: #{tpu_custom_call.1} parent=1 // pred_check
      _
    $region31: #{tpu_custom_call.1} parent=1 // pred_check_branch
      %7309 = sbr.rel (0) target = $region33
    $region32: #{tpu_custom_call.1} parent=1 // pred_region
      %7310 = dma.done [#allocation4], 4096
    $region33: #{tpu_custom_call.1} parent=1 // pred_fallthru
      _
    %7311 = vsyncpa [#allocation3], 1
    %7312 = vsyncpa [#allocation4], 1

</llo_original>
